<compile_context>
chip_gen: v7x
topology: tpu7x:2x2x1
jax: 0.10.0
libtpu: 0.0.40
codegen_flags: <defaults>
</compile_context>

<pallas_src>
import numpy as np
import jax
import jax.numpy as jnp
from jax.experimental import pallas as pl
from jax.experimental.pallas import tpu as pltpu


_G5 = (1.0, 4.0, 6.0, 4.0, 1.0)   # separable 5-tap Gaussian (outer product / 256)


def _reflect_pad2_into(ref, s, H, W):
    """Write F.pad(s, (2,2,2,2), mode='reflect') into a (H+4, W+4) scratch ref."""
    ref[2:H + 2, 2:W + 2] = s
    # reflect rows (interior columns only; columns fixed below, reflect is separable)
    ref[0:1, 2:W + 2] = s[2:3, :]
    ref[1:2, 2:W + 2] = s[1:2, :]
    ref[H + 2:H + 3, 2:W + 2] = s[H - 2:H - 1, :]
    ref[H + 3:H + 4, 2:W + 2] = s[H - 3:H - 2, :]
    # reflect columns over the full padded height
    ref[:, 0:1] = ref[:, 4:5]
    ref[:, 1:2] = ref[:, 3:4]
    ref[:, W + 2:W + 3] = ref[:, W:W + 1]
    ref[:, W + 3:W + 4] = ref[:, W - 1:W]


def _gauss5_sep(pad_ref, H, W, scale):
    """Separable 5x5 Gaussian on a reflect-padded (H+4, W+4) ref (5+5 taps)."""
    th = (_G5[0] * pad_ref[:, 0:W] + _G5[1] * pad_ref[:, 1:W + 1]
          + _G5[2] * pad_ref[:, 2:W + 2] + _G5[3] * pad_ref[:, 3:W + 3]
          + _G5[4] * pad_ref[:, 4:W + 4])                              # (H+4, W)
    tv = (_G5[0] * th[0:H, :] + _G5[1] * th[1:H + 1, :]
          + _G5[2] * th[2:H + 2, :] + _G5[3] * th[3:H + 3, :]
          + _G5[4] * th[4:H + 4, :])                                   # (H, W)
    return tv * (scale / 256.0)


def make_ega_kernel(H, W, C):
    HW = H * W
    C3 = 3 * C

    def kernel(pred_ref, x_ref, edge_ref, rh_ref, rwt_ref,
               wf_ref, fparams_ref, wat_ref, sc_ref,
               w1_ref, b1_ref, w2_ref, b2_ref, band_ref,
               out_ref,
               pad5, pad3c, pada, padsp, asp_ref):
        x3 = x_ref[0]                            # (H, W, C)
        s = jax.nn.sigmoid(pred_ref[0])          # sigmoid(pred), (H, W)

        # ---- background branch: x * (1 - sigmoid(pred)) ----
        background_x = x3 * (1.0 - s)[:, :, None]

        # ---- make_laplace(sigmoid(pred), channels=1): two separable Gaussians ----
        _reflect_pad2_into(pad5, s, H, W)
        filtered = _gauss5_sep(pad5, H, W, 1.0)
        rows = jax.lax.broadcasted_iota(jnp.int32, (H, W), 0)
        cols = jax.lax.broadcasted_iota(jnp.int32, (H, W), 1)
        even_mask = jnp.logical_and((rows & 1) == 0, (cols & 1) == 0)
        # downsample(::2) + zero-interleaving upsample == keep only even/even taps
        x_up = jnp.where(even_mask, filtered, 0.0)
        _reflect_pad2_into(pad5, x_up, H, W)
        up = _gauss5_sep(pad5, H, W, 4.0)
        edge_pred = s - up
        pred_feature = x3 * edge_pred[:, :, None]

        # ---- bilinear (align_corners=True) resize of edge_feature via 2 matmuls ----
        e = edge_ref[0]                                                    # (He, We)
        tmp = jnp.dot(rh_ref[...], e, preferred_element_type=jnp.float32)  # (H, We)
        edge_input = jnp.dot(tmp, rwt_ref[...],
                             preferred_element_type=jnp.float32)           # (H, W)
        input_feature = x3 * edge_input[:, :, None]

        # ---- fusion conv: Conv2d(3C->C, 3x3, pad=1) + BN + ReLU ----
        # zero only the 1-wide halo; interior is fully rewritten every step
        zr3 = jnp.zeros((1, W + 2, C3), jnp.float32)
        zc3 = jnp.zeros((H, 1, C3), jnp.float32)
        pad3c[0:1, :, :] = zr3
        pad3c[H + 1:H + 2, :, :] = zr3
        pad3c[1:H + 1, 0:1, :] = zc3
        pad3c[1:H + 1, W + 1:W + 2, :] = zc3
        pad3c[1:H + 1, 1:W + 1, 0:C] = background_x
        pad3c[1:H + 1, 1:W + 1, C:2 * C] = pred_feature
        pad3c[1:H + 1, 1:W + 1, 2 * C:C3] = input_feature
        # 9 accumulating MXU matmuls over shifted windows (no im2col scratch)
        fusion_pre = jnp.zeros((HW, C), jnp.float32)
        for k in range(9):
            ky, kx = divmod(k, 3)
            patch = pad3c[ky:ky + H, kx:kx + W, :].reshape(HW, C3)
            fusion_pre = fusion_pre + jnp.dot(
                patch, wf_ref[k], preferred_element_type=jnp.float32)
        fusion = jnp.maximum(
            (fusion_pre + fparams_ref[0:1, :]) * fparams_ref[1:2, :]
            + fparams_ref[2:3, :], 0.0)                                   # (HW, C)
        fusion3 = fusion.reshape(H, W, C)

        # ---- attention map: Conv2d(C->1, 3x3) + BN(1) + sigmoid ----
        # per-tap channel contraction on the MXU: (HW,C) @ (C,9),
        # then 9 shifted-window adds of (H,W,1) maps from a 9-lane padded scratch
        zr9 = jnp.zeros((1, W + 2, 9), jnp.float32)
        zc9 = jnp.zeros((H, 1, 9), jnp.float32)
        pada[0:1, :, :] = zr9
        pada[H + 1:H + 2, :, :] = zr9
        pada[1:H + 1, 0:1, :] = zc9
        pada[1:H + 1, W + 1:W + 2, :] = zc9
        taps = jnp.dot(fusion, wat_ref[...],
                       preferred_element_type=jnp.float32)                # (HW, 9)
        pada[1:H + 1, 1:W + 1, :] = taps.reshape(H, W, 9)
        att_logit = jnp.zeros((H, W, 1), jnp.float32)
        for k in range(9):
            ky, kx = divmod(k, 3)
            att_logit = att_logit + pada[ky:ky + H, kx:kx + W, k:k + 1]
        att = jax.nn.sigmoid((att_logit + sc_ref[0]) * sc_ref[1] + sc_ref[2])

        # fusion * attention + residual
        out0 = fusion3 * att + x3                                          # (H, W, C)

        # ---- CBAM ChannelGate: shared MLP on stacked (avg, max) pools ----
        avg_c = jnp.mean(jnp.mean(out0, axis=0), axis=0, keepdims=True)   # (1, C)
        max_c = jnp.max(jnp.max(out0, axis=0), axis=0, keepdims=True)     # (1, C)
        pools = jnp.concatenate([avg_c, max_c], axis=0)                   # (2, C)
        hid = jnp.maximum(
            jnp.dot(pools, w1_ref[...], preferred_element_type=jnp.float32)
            + b1_ref[...], 0.0)
        mlp_out = jnp.dot(hid, w2_ref[...],
                          preferred_element_type=jnp.float32) + b2_ref[...]
        c_att = jax.nn.sigmoid(mlp_out[0:1, :] + mlp_out[1:2, :])         # (1, C)
        xc3 = out0 * c_att                                                # (H, W, C)

        # ---- CBAM SpatialGate: 7x7 conv over [max_c, mean_c] as ONE banded matmul ----
        # zero only the 3-wide border ring; interior is fully rewritten every step
        zrs = jnp.zeros((2, 3, W + 6), jnp.float32)
        zcs = jnp.zeros((2, H, 3), jnp.float32)
        padsp[:, 0:3, :] = zrs
        padsp[:, H + 3:H + 6, :] = zrs
        padsp[:, 3:H + 3, 0:3] = zcs
        padsp[:, 3:H + 3, W + 3:W + 6] = zcs
        padsp[0, 3:H + 3, 3:W + 3] = jnp.max(xc3, axis=-1)
        padsp[1, 3:H + 3, 3:W + 3] = jnp.mean(xc3, axis=-1)
        Wp = W + 6
        for c in range(2):
            for ky in range(7):
                idx = c * 7 + ky
                asp_ref[:, idx * Wp:(idx + 1) * Wp] = padsp[c, ky:ky + H, :]
        sconv = jnp.dot(asp_ref[...], band_ref[...],
                        preferred_element_type=jnp.float32) + sc_ref[3]   # (H, W)
        sgate = jax.nn.sigmoid(sconv)

        out_ref[0] = xc3 * sgate[:, :, None]

    return kernel


def bilinear_matrix(out_size, in_size):
    """(out_size, in_size) matrix reproducing 1D bilinear resize, align_corners=True."""
    if out_size == 1:
        pos = np.zeros((1,), np.float64)
    else:
        pos = np.arange(out_size, dtype=np.float64) * (in_size - 1) / (out_size - 1)
    i0 = np.clip(np.floor(pos).astype(np.int64), 0, in_size - 1)
    i1 = np.minimum(i0 + 1, in_size - 1)
    frac = pos - i0
    M = np.zeros((out_size, in_size), np.float32)
    M[np.arange(out_size), i0] += (1.0 - frac).astype(np.float32)
    M[np.arange(out_size), i1] += frac.astype(np.float32)
    return M


def init_ega_params(key, C, reduction_ratio=16):
    """Deterministic synthetic parameters (shapes follow EGA.__init__)."""
    Cr = C // reduction_ratio
    assert Cr >= 1, "in_channels must be >= reduction_ratio (as in the PyTorch module)"
    ks = jax.random.split(key, 13)
    eps = 1e-5

    def bn_fold(gamma, beta, mean, var):
        scale = gamma / jnp.sqrt(var + eps)
        shift = beta - mean * scale
        return scale, shift

    # fusion_conv: Conv2d(3C, C, 3, 1, 1) weights stored as (kh, kw, Cin, Cout)
    wf = 0.05 * jax.random.normal(ks[0], (3, 3, 3 * C, C), jnp.float32)
    bf = 0.02 * jax.random.normal(ks[1], (C,), jnp.float32)
    gamma = 1.0 + 0.1 * jax.random.normal(ks[2], (C,), jnp.float32)
    beta = 0.1 * jax.random.normal(ks[3], (C,), jnp.float32)
    mean = 0.05 * jax.random.normal(ks[4], (C,), jnp.float32)
    var = 0.9 + 0.2 * jax.random.uniform(ks[5], (C,), jnp.float32)
    bn_s, bn_t = bn_fold(gamma, beta, mean, var)
    fparams = jnp.stack([bf, bn_s, bn_t], axis=0)            # (3, C)

    # attention: Conv2d(C, 1, 3, 1, 1) + BatchNorm2d(1)
    wa = 0.05 * jax.random.normal(ks[6], (3, 3, C, 1), jnp.float32)
    ba = jnp.float32(0.01)
    sa, ta = bn_fold(jnp.float32(1.05), jnp.float32(0.02),
                     jnp.float32(0.01), jnp.float32(1.1))
    aparams = jnp.stack([ba, sa, ta])                        # (3,)

    # ChannelGate MLP: Linear(C, Cr), Linear(Cr, C); stored (in, out)
    w1 = 0.1 * jax.random.normal(ks[7], (C, Cr), jnp.float32)
    b1 = 0.05 * jax.random.normal(ks[8], (1, Cr), jnp.float32)
    w2 = 0.1 * jax.random.normal(ks[9], (Cr, C), jnp.float32)
    b2 = 0.05 * jax.random.normal(ks[10], (1, C), jnp.float32)

    # SpatialGate: Conv2d(2, 1, 7, padding=3)  (conv + bias + sigmoid, as in the spec)
    wsp = 0.05 * jax.random.normal(ks[11], (2, 7, 7), jnp.float32)
    bsp = 0.02 * jax.random.normal(ks[12], (1,), jnp.float32)
    ws = jnp.concatenate([wsp.reshape(-1), bsp])             # (99,)

    return {"wf": wf, "fparams": fparams, "wa": wa, "aparams": aparams,
            "w1": w1, "b1": b1, "w2": w2, "b2": b2, "ws": ws}


def ega_forward(params, edge_feature, x, pred):
    """edge_feature: (B,1,He,We), x: (B,C,H,W), pred: (B,1,H,W)  -> (B,C,H,W)."""
    B, C, H, W = x.shape
    assert H % 2 == 0 and W % 2 == 0, "even spatial sizes assumed (see TODO(synk))"
    He, We = edge_feature.shape[2], edge_feature.shape[3]
    Cr = params["w1"].shape[1]
    C3 = 3 * C

    # glue: layout transposes, squeeze singleton channel, resize matrices
    x_nhwc = jnp.transpose(x, (0, 2, 3, 1)).astype(jnp.float32)
    pred2 = pred[:, 0].astype(jnp.float32)
    edge2 = edge_feature[:, 0].astype(jnp.float32)
    rh = jnp.asarray(bilinear_matrix(H, He))
    rwt = jnp.asarray(bilinear_matrix(W, We).T)

    # fusion conv weights as 9 per-tap (3C, C) matrices for accumulating matmuls
    wf9 = params["wf"].reshape(9, C3, C)
    # attention conv weights transposed for the (HW,C)@(C,9) tap matmul
    wat = params["wa"].reshape(9, C).T                       # (C, 9)
    # scalars in SMEM: [att conv bias, att BN scale, att BN shift, spatial bias]
    scalars = jnp.concatenate([params["aparams"], params["ws"][98:99]])
    # 7x7 SpatialGate conv as banded matmul: (H, 14*(W+6)) @ (14*(W+6), W)
    # (fine at small W; at W >~ 64-128 prefer 98 shift-MACs on the pooled maps)
    wsp = params["ws"][:98].reshape(2, 7, 7)
    Wp = W + 6
    sel = np.zeros((Wp, W, 7), np.float32)
    for w in range(W):
        for kx in range(7):
            sel[w + kx, w, kx] = 1.0
    band = jnp.einsum("ckx,jwx->ckjw", wsp, jnp.asarray(sel)).reshape(14 * Wp, W)

    def full_spec(shape):
        return pl.BlockSpec(shape, lambda b, _n=len(shape): (0,) * _n)

    kernel = make_ega_kernel(H, W, C)
    # NOTE: grid=(B,) "parallel" only balances v7x's 2 TCs when B is even; for
    # tiny/odd B, block >=2 batch elements per step or add a second parallel axis.
    out_nhwc = pl.pallas_call(
        kernel,
        out_shape=jax.ShapeDtypeStruct((B, H, W, C), jnp.float32),
        grid=(B,),
        in_specs=[
            pl.BlockSpec((1, H, W), lambda b: (b, 0, 0)),         # pred
            pl.BlockSpec((1, H, W, C), lambda b: (b, 0, 0, 0)),   # x (NHWC)
            pl.BlockSpec((1, He, We), lambda b: (b, 0, 0)),       # edge_feature
            full_spec((H, He)),                                   # row resize matrix
            full_spec((We, W)),                                   # col resize matrix^T
            full_spec((9, C3, C)),                                # fusion conv per-tap weights
            full_spec((3, C)),                                    # fusion bias / BN fold
            full_spec((C, 9)),                                    # attention conv taps (transposed)
            pl.BlockSpec(memory_space=pltpu.MemorySpace.SMEM),    # scalar params
            full_spec((C, Cr)),                                   # MLP W1
            full_spec((1, Cr)),                                   # MLP b1
            full_spec((Cr, C)),                                   # MLP W2
            full_spec((1, C)),                                    # MLP b2
            full_spec((14 * Wp, W)),                              # 7x7 band matrix
        ],
        out_specs=pl.BlockSpec((1, H, W, C), lambda b: (b, 0, 0, 0)),
        scratch_shapes=[
            pltpu.VMEM((H + 4, W + 4), jnp.float32),         # reflect-pad buffer
            pltpu.VMEM((H + 2, W + 2, C3), jnp.float32),     # zero-padded fusion input
            pltpu.VMEM((H + 2, W + 2, 9), jnp.float32),      # zero-padded attn tap maps
            pltpu.VMEM((2, H + 6, W + 6), jnp.float32),      # zero-padded spatial input
            pltpu.VMEM((H, 14 * Wp), jnp.float32),           # spatial-gate LHS slab
        ],
        compiler_params=pltpu.CompilerParams(
            dimension_semantics=("parallel",),
            vmem_limit_bytes=32 * 1024 * 1024),
    )(pred2, x_nhwc, edge2, rh, rwt, wf9, params["fparams"], wat, scalars,
      params["w1"], params["b1"], params["w2"], params["b2"], band)

    return jnp.transpose(out_nhwc, (0, 3, 1, 2))


if __name__ == "__main__":
    # C must be >= reduction_ratio (=16) for the ChannelGate MLP, as in the module.
    B, C, H, W = 2, 16, 16, 16
    He, We = 8, 8

    key = jax.random.PRNGKey(0)
    k_edge, k_x, k_pred, k_params = jax.random.split(key, 4)
    edge_feature = jax.random.normal(k_edge, (B, 1, He, We), jnp.float32)
    x = jax.random.normal(k_x, (B, C, H, W), jnp.float32)
    pred = jax.random.normal(k_pred, (B, 1, H, W), jnp.float32)

    params = init_ega_params(k_params, C)

    out = ega_forward(params, edge_feature, x, pred)
    out = jax.block_until_ready(out)
    assert out.shape == (B, C, H, W)
    print("KERNEL_OK")
</pallas_src>

<mosaic_0001>
module attributes {stable_mosaic.version = 11 : i64} {
  func.func @kernel(%arg0: i32, %arg1: memref<1x16x16xf32, #tpu.memory_space<vmem>>, %arg2: memref<1x16x16x16xf32, #tpu.memory_space<vmem>>, %arg3: memref<1x8x8xf32, #tpu.memory_space<vmem>>, %arg4: memref<16x8xf32, #tpu.memory_space<vmem>>, %arg5: memref<8x16xf32, #tpu.memory_space<vmem>>, %arg6: memref<9x48x16xf32, #tpu.memory_space<vmem>>, %arg7: memref<3x16xf32, #tpu.memory_space<vmem>>, %arg8: memref<16x9xf32, #tpu.memory_space<vmem>>, %arg9: memref<4xf32, #tpu.memory_space<smem>>, %arg10: memref<16x1xf32, #tpu.memory_space<vmem>>, %arg11: memref<1x1xf32, #tpu.memory_space<vmem>>, %arg12: memref<1x16xf32, #tpu.memory_space<vmem>>, %arg13: memref<1x16xf32, #tpu.memory_space<vmem>>, %arg14: memref<308x16xf32, #tpu.memory_space<vmem>>, %arg15: memref<1x16x16x16xf32, #tpu.memory_space<vmem>>, %arg16: memref<20x20xf32, #tpu.memory_space<vmem>>, %arg17: memref<18x18x48xf32, #tpu.memory_space<vmem>>, %arg18: memref<18x18x9xf32, #tpu.memory_space<vmem>>, %arg19: memref<2x22x22xf32, #tpu.memory_space<vmem>>, %arg20: memref<16x308xf32, #tpu.memory_space<vmem>>) attributes {dimension_semantics = [#tpu.dimension_semantics<parallel>], iteration_bounds = array<i64: 2>, scalar_prefetch = 0 : i64, scratch_operands = 5 : i64, tpu.core_type = #tpu.core_type<tc>, window_params = [{transform_indices = @transform_0, window_bounds = array<i64: 1, 16, 16>}, {transform_indices = @transform_1, window_bounds = array<i64: 1, 16, 16, 16>}, {transform_indices = @transform_2, window_bounds = array<i64: 1, 8, 8>}, {pipeline_mode = #tpu.pipeline_mode<synchronous>, transform_indices = @transform_3, window_bounds = array<i64: 16, 8>}, {pipeline_mode = #tpu.pipeline_mode<synchronous>, transform_indices = @transform_4, window_bounds = array<i64: 8, 16>}, {pipeline_mode = #tpu.pipeline_mode<synchronous>, transform_indices = @transform_5, window_bounds = array<i64: 9, 48, 16>}, {pipeline_mode = #tpu.pipeline_mode<synchronous>, transform_indices = @transform_6, window_bounds = array<i64: 3, 16>}, {pipeline_mode = #tpu.pipeline_mode<synchronous>, transform_indices = @transform_7, window_bounds = array<i64: 16, 9>}, {transform_indices = @transform_8, window_bounds = array<i64: 4>}, {pipeline_mode = #tpu.pipeline_mode<synchronous>, transform_indices = @transform_9, window_bounds = array<i64: 16, 1>}, {pipeline_mode = #tpu.pipeline_mode<synchronous>, transform_indices = @transform_10, window_bounds = array<i64: 1, 1>}, {pipeline_mode = #tpu.pipeline_mode<synchronous>, transform_indices = @transform_11, window_bounds = array<i64: 1, 16>}, {pipeline_mode = #tpu.pipeline_mode<synchronous>, transform_indices = @transform_12, window_bounds = array<i64: 1, 16>}, {pipeline_mode = #tpu.pipeline_mode<synchronous>, transform_indices = @transform_13, window_bounds = array<i64: 308, 16>}, {transform_indices = @transform_14, window_bounds = array<i64: 1, 16, 16, 16>}]} {
    %c0 = arith.constant 0 : index
    %c0_0 = arith.constant 0 : index
    %c0_1 = arith.constant 0 : index
    %c0_2 = arith.constant 0 : index
    %0 = vector.load %arg2[%c0, %c0_0, %c0_1, %c0_2] : memref<1x16x16x16xf32, #tpu.memory_space<vmem>>, vector<1x16x16x16xf32>
    %1 = vector.shape_cast %0 : vector<1x16x16x16xf32> to vector<16x16x16xf32>
    %c0_3 = arith.constant 0 : index
    %c0_4 = arith.constant 0 : index
    %c0_5 = arith.constant 0 : index
    %2 = vector.load %arg1[%c0_3, %c0_4, %c0_5] : memref<1x16x16xf32, #tpu.memory_space<vmem>>, vector<1x16x16xf32>
    %3 = vector.shape_cast %2 : vector<1x16x16xf32> to vector<16x16xf32>
    %4 = arith.negf %3 : vector<16x16xf32>
    %5 = math.exp %4 : vector<16x16xf32>
    %cst = arith.constant 1.000000e+00 : f32
    %6 = vector.broadcast %cst : f32 to vector<16x16xf32>
    %7 = arith.addf %6, %5 : vector<16x16xf32>
    %8 = arith.divf %6, %7 : vector<16x16xf32>
    %cst_6 = arith.constant 1.000000e+00 : f32
    %9 = vector.broadcast %cst_6 : f32 to vector<16x16xf32>
    %10 = arith.subf %9, %8 : vector<16x16xf32>
    %11 = vector.shape_cast %10 : vector<16x16xf32> to vector<16x16x1xf32>
    %12 = vector.broadcast %11 : vector<16x16x1xf32> to vector<16x16x16xf32>
    %13 = arith.mulf %1, %12 : vector<16x16x16xf32>
    %c2 = arith.constant 2 : index
    %c2_7 = arith.constant 2 : index
    %14 = vector.load %arg16[%c2, %c2_7] : memref<20x20xf32, #tpu.memory_space<vmem>>, vector<16x16xf32>
    tpu.vector_store %arg16[%c2, %c2_7], %8 {strides = array<i32>} : memref<20x20xf32, #tpu.memory_space<vmem>>, vector<16x16xf32>,
    %15 = vector.extract_strided_slice %8 {offsets = [2, 0], sizes = [1, 16], strides = [1, 1]} : vector<16x16xf32> to vector<1x16xf32>
    %c0_8 = arith.constant 0 : index
    %c2_9 = arith.constant 2 : index
    %16 = vector.load %arg16[%c0_8, %c2_9] : memref<20x20xf32, #tpu.memory_space<vmem>>, vector<1x16xf32>
    tpu.vector_store %arg16[%c0_8, %c2_9], %15 {strides = array<i32>} : memref<20x20xf32, #tpu.memory_space<vmem>>, vector<1x16xf32>,
    %17 = vector.extract_strided_slice %8 {offsets = [1, 0], sizes = [1, 16], strides = [1, 1]} : vector<16x16xf32> to vector<1x16xf32>
    %c1 = arith.constant 1 : index
    %c2_10 = arith.constant 2 : index
    %18 = vector.load %arg16[%c1, %c2_10] : memref<20x20xf32, #tpu.memory_space<vmem>>, vector<1x16xf32>
    tpu.vector_store %arg16[%c1, %c2_10], %17 {strides = array<i32>} : memref<20x20xf32, #tpu.memory_space<vmem>>, vector<1x16xf32>,
    %19 = vector.extract_strided_slice %8 {offsets = [14, 0], sizes = [1, 16], strides = [1, 1]} : vector<16x16xf32> to vector<1x16xf32>
    %c18 = arith.constant 18 : index
    %c2_11 = arith.constant 2 : index
    %20 = vector.load %arg16[%c18, %c2_11] : memref<20x20xf32, #tpu.memory_space<vmem>>, vector<1x16xf32>
    tpu.vector_store %arg16[%c18, %c2_11], %19 {strides = array<i32>} : memref<20x20xf32, #tpu.memory_space<vmem>>, vector<1x16xf32>,
    %21 = vector.extract_strided_slice %8 {offsets = [13, 0], sizes = [1, 16], strides = [1, 1]} : vector<16x16xf32> to vector<1x16xf32>
    %c19 = arith.constant 19 : index
    %c2_12 = arith.constant 2 : index
    %22 = vector.load %arg16[%c19, %c2_12] : memref<20x20xf32, #tpu.memory_space<vmem>>, vector<1x16xf32>
    tpu.vector_store %arg16[%c19, %c2_12], %21 {strides = array<i32>} : memref<20x20xf32, #tpu.memory_space<vmem>>, vector<1x16xf32>,
    %c0_13 = arith.constant 0 : index
    %c4 = arith.constant 4 : index
    %23 = vector.load %arg16[%c0_13, %c4] : memref<20x20xf32, #tpu.memory_space<vmem>>, vector<20x1xf32>
    %c0_14 = arith.constant 0 : index
    %c0_15 = arith.constant 0 : index
    %24 = vector.load %arg16[%c0_14, %c0_15] : memref<20x20xf32, #tpu.memory_space<vmem>>, vector<20x1xf32>
    tpu.vector_store %arg16[%c0_14, %c0_15], %23 {strides = array<i32>} : memref<20x20xf32, #tpu.memory_space<vmem>>, vector<20x1xf32>,
    %c0_16 = arith.constant 0 : index
    %c3 = arith.constant 3 : index
    %25 = vector.load %arg16[%c0_16, %c3] : memref<20x20xf32, #tpu.memory_space<vmem>>, vector<20x1xf32>
    %c0_17 = arith.constant 0 : index
    %c1_18 = arith.constant 1 : index
    %26 = vector.load %arg16[%c0_17, %c1_18] : memref<20x20xf32, #tpu.memory_space<vmem>>, vector<20x1xf32>
    tpu.vector_store %arg16[%c0_17, %c1_18], %25 {strides = array<i32>} : memref<20x20xf32, #tpu.memory_space<vmem>>, vector<20x1xf32>,
    %c0_19 = arith.constant 0 : index
    %c16 = arith.constant 16 : index
    %27 = vector.load %arg16[%c0_19, %c16] : memref<20x20xf32, #tpu.memory_space<vmem>>, vector<20x1xf32>
    %c0_20 = arith.constant 0 : index
    %c18_21 = arith.constant 18 : index
    %28 = vector.load %arg16[%c0_20, %c18_21] : memref<20x20xf32, #tpu.memory_space<vmem>>, vector<20x1xf32>
    tpu.vector_store %arg16[%c0_20, %c18_21], %27 {strides = array<i32>} : memref<20x20xf32, #tpu.memory_space<vmem>>, vector<20x1xf32>,
    %c0_22 = arith.constant 0 : index
    %c15 = arith.constant 15 : index
    %29 = vector.load %arg16[%c0_22, %c15] : memref<20x20xf32, #tpu.memory_space<vmem>>, vector<20x1xf32>
    %c0_23 = arith.constant 0 : index
    %c19_24 = arith.constant 19 : index
    %30 = vector.load %arg16[%c0_23, %c19_24] : memref<20x20xf32, #tpu.memory_space<vmem>>, vector<20x1xf32>
    tpu.vector_store %arg16[%c0_23, %c19_24], %29 {strides = array<i32>} : memref<20x20xf32, #tpu.memory_space<vmem>>, vector<20x1xf32>,
    %c0_25 = arith.constant 0 : index
    %c0_26 = arith.constant 0 : index
    %31 = vector.load %arg16[%c0_25, %c0_26] : memref<20x20xf32, #tpu.memory_space<vmem>>, vector<20x16xf32>
    %cst_27 = arith.constant 1.000000e+00 : f32
    %32 = vector.broadcast %cst_27 : f32 to vector<20x16xf32>
    %33 = arith.mulf %32, %31 : vector<20x16xf32>
    %c0_28 = arith.constant 0 : index
    %c1_29 = arith.constant 1 : index
    %34 = vector.load %arg16[%c0_28, %c1_29] : memref<20x20xf32, #tpu.memory_space<vmem>>, vector<20x16xf32>
    %cst_30 = arith.constant 4.000000e+00 : f32
    %35 = vector.broadcast %cst_30 : f32 to vector<20x16xf32>
    %36 = arith.mulf %35, %34 : vector<20x16xf32>
    %37 = arith.addf %33, %36 : vector<20x16xf32>
    %c0_31 = arith.constant 0 : index
    %c2_32 = arith.constant 2 : index
    %38 = vector.load %arg16[%c0_31, %c2_32] : memref<20x20xf32, #tpu.memory_space<vmem>>, vector<20x16xf32>
    %cst_33 = arith.constant 6.000000e+00 : f32
    %39 = vector.broadcast %cst_33 : f32 to vector<20x16xf32>
    %40 = arith.mulf %39, %38 : vector<20x16xf32>
    %41 = arith.addf %37, %40 : vector<20x16xf32>
    %c0_34 = arith.constant 0 : index
    %c3_35 = arith.constant 3 : index
    %42 = vector.load %arg16[%c0_34, %c3_35] : memref<20x20xf32, #tpu.memory_space<vmem>>, vector<20x16xf32>
    %cst_36 = arith.constant 4.000000e+00 : f32
    %43 = vector.broadcast %cst_36 : f32 to vector<20x16xf32>
    %44 = arith.mulf %43, %42 : vector<20x16xf32>
    %45 = arith.addf %41, %44 : vector<20x16xf32>
    %c0_37 = arith.constant 0 : index
    %c4_38 = arith.constant 4 : index
    %46 = vector.load %arg16[%c0_37, %c4_38] : memref<20x20xf32, #tpu.memory_space<vmem>>, vector<20x16xf32>
    %cst_39 = arith.constant 1.000000e+00 : f32
    %47 = vector.broadcast %cst_39 : f32 to vector<20x16xf32>
    %48 = arith.mulf %47, %46 : vector<20x16xf32>
    %49 = arith.addf %45, %48 : vector<20x16xf32>
    %50 = vector.extract_strided_slice %49 {offsets = [0, 0], sizes = [16, 16], strides = [1, 1]} : vector<20x16xf32> to vector<16x16xf32>
    %cst_40 = arith.constant 1.000000e+00 : f32
    %51 = vector.broadcast %cst_40 : f32 to vector<16x16xf32>
    %52 = arith.mulf %51, %50 : vector<16x16xf32>
    %53 = vector.extract_strided_slice %49 {offsets = [1, 0], sizes = [16, 16], strides = [1, 1]} : vector<20x16xf32> to vector<16x16xf32>
    %cst_41 = arith.constant 4.000000e+00 : f32
    %54 = vector.broadcast %cst_41 : f32 to vector<16x16xf32>
    %55 = arith.mulf %54, %53 : vector<16x16xf32>
    %56 = arith.addf %52, %55 : vector<16x16xf32>
    %57 = vector.extract_strided_slice %49 {offsets = [2, 0], sizes = [16, 16], strides = [1, 1]} : vector<20x16xf32> to vector<16x16xf32>
    %cst_42 = arith.constant 6.000000e+00 : f32
    %58 = vector.broadcast %cst_42 : f32 to vector<16x16xf32>
    %59 = arith.mulf %58, %57 : vector<16x16xf32>
    %60 = arith.addf %56, %59 : vector<16x16xf32>
    %61 = vector.extract_strided_slice %49 {offsets = [3, 0], sizes = [16, 16], strides = [1, 1]} : vector<20x16xf32> to vector<16x16xf32>
    %cst_43 = arith.constant 4.000000e+00 : f32
    %62 = vector.broadcast %cst_43 : f32 to vector<16x16xf32>
    %63 = arith.mulf %62, %61 : vector<16x16xf32>
    %64 = arith.addf %60, %63 : vector<16x16xf32>
    %65 = vector.extract_strided_slice %49 {offsets = [4, 0], sizes = [16, 16], strides = [1, 1]} : vector<20x16xf32> to vector<16x16xf32>
    %cst_44 = arith.constant 1.000000e+00 : f32
    %66 = vector.broadcast %cst_44 : f32 to vector<16x16xf32>
    %67 = arith.mulf %66, %65 : vector<16x16xf32>
    %68 = arith.addf %64, %67 : vector<16x16xf32>
    %cst_45 = arith.constant 3.906250e-03 : f32
    %69 = vector.broadcast %cst_45 : f32 to vector<16x16xf32>
    %70 = arith.mulf %68, %69 : vector<16x16xf32>
    %71 = tpu.iota {dimensions = array<i32: 0>} : vector<16x16xi32>
    %72 = tpu.iota {dimensions = array<i32: 1>} : vector<16x16xi32>
    %c1_i32 = arith.constant 1 : i32
    %73 = vector.broadcast %c1_i32 : i32 to vector<16x16xi32>
    %74 = arith.andi %71, %73 : vector<16x16xi32>
    %c0_i32 = arith.constant 0 : i32
    %75 = vector.broadcast %c0_i32 : i32 to vector<16x16xi32>
    %76 = arith.cmpi eq, %74, %75 : vector<16x16xi32>
    %c1_i32_46 = arith.constant 1 : i32
    %77 = vector.broadcast %c1_i32_46 : i32 to vector<16x16xi32>
    %78 = arith.andi %72, %77 : vector<16x16xi32>
    %c0_i32_47 = arith.constant 0 : i32
    %79 = vector.broadcast %c0_i32_47 : i32 to vector<16x16xi32>
    %80 = arith.cmpi eq, %78, %79 : vector<16x16xi32>
    %81 = arith.andi %76, %80 : vector<16x16xi1>
    %cst_48 = arith.constant 0.000000e+00 : f32
    %82 = vector.broadcast %cst_48 : f32 to vector<16x16xf32>
    %83 = arith.select %81, %70, %82 : vector<16x16xi1>, vector<16x16xf32>
    %c2_49 = arith.constant 2 : index
    %c2_50 = arith.constant 2 : index
    %84 = vector.load %arg16[%c2_49, %c2_50] : memref<20x20xf32, #tpu.memory_space<vmem>>, vector<16x16xf32>
    tpu.vector_store %arg16[%c2_49, %c2_50], %83 {strides = array<i32>} : memref<20x20xf32, #tpu.memory_space<vmem>>, vector<16x16xf32>,
    %85 = vector.extract_strided_slice %83 {offsets = [2, 0], sizes = [1, 16], strides = [1, 1]} : vector<16x16xf32> to vector<1x16xf32>
    %c0_51 = arith.constant 0 : index
    %c2_52 = arith.constant 2 : index
    %86 = vector.load %arg16[%c0_51, %c2_52] : memref<20x20xf32, #tpu.memory_space<vmem>>, vector<1x16xf32>
    tpu.vector_store %arg16[%c0_51, %c2_52], %85 {strides = array<i32>} : memref<20x20xf32, #tpu.memory_space<vmem>>, vector<1x16xf32>,
    %87 = vector.extract_strided_slice %83 {offsets = [1, 0], sizes = [1, 16], strides = [1, 1]} : vector<16x16xf32> to vector<1x16xf32>
    %c1_53 = arith.constant 1 : index
    %c2_54 = arith.constant 2 : index
    %88 = vector.load %arg16[%c1_53, %c2_54] : memref<20x20xf32, #tpu.memory_space<vmem>>, vector<1x16xf32>
    tpu.vector_store %arg16[%c1_53, %c2_54], %87 {strides = array<i32>} : memref<20x20xf32, #tpu.memory_space<vmem>>, vector<1x16xf32>,
    %89 = vector.extract_strided_slice %83 {offsets = [14, 0], sizes = [1, 16], strides = [1, 1]} : vector<16x16xf32> to vector<1x16xf32>
    %c18_55 = arith.constant 18 : index
    %c2_56 = arith.constant 2 : index
    %90 = vector.load %arg16[%c18_55, %c2_56] : memref<20x20xf32, #tpu.memory_space<vmem>>, vector<1x16xf32>
    tpu.vector_store %arg16[%c18_55, %c2_56], %89 {strides = array<i32>} : memref<20x20xf32, #tpu.memory_space<vmem>>, vector<1x16xf32>,
    %91 = vector.extract_strided_slice %83 {offsets = [13, 0], sizes = [1, 16], strides = [1, 1]} : vector<16x16xf32> to vector<1x16xf32>
    %c19_57 = arith.constant 19 : index
    %c2_58 = arith.constant 2 : index
    %92 = vector.load %arg16[%c19_57, %c2_58] : memref<20x20xf32, #tpu.memory_space<vmem>>, vector<1x16xf32>
    tpu.vector_store %arg16[%c19_57, %c2_58], %91 {strides = array<i32>} : memref<20x20xf32, #tpu.memory_space<vmem>>, vector<1x16xf32>,
    %c0_59 = arith.constant 0 : index
    %c4_60 = arith.constant 4 : index
    %93 = vector.load %arg16[%c0_59, %c4_60] : memref<20x20xf32, #tpu.memory_space<vmem>>, vector<20x1xf32>
    %c0_61 = arith.constant 0 : index
    %c0_62 = arith.constant 0 : index
    %94 = vector.load %arg16[%c0_61, %c0_62] : memref<20x20xf32, #tpu.memory_space<vmem>>, vector<20x1xf32>
    tpu.vector_store %arg16[%c0_61, %c0_62], %93 {strides = array<i32>} : memref<20x20xf32, #tpu.memory_space<vmem>>, vector<20x1xf32>,
    %c0_63 = arith.constant 0 : index
    %c3_64 = arith.constant 3 : index
    %95 = vector.load %arg16[%c0_63, %c3_64] : memref<20x20xf32, #tpu.memory_space<vmem>>, vector<20x1xf32>
    %c0_65 = arith.constant 0 : index
    %c1_66 = arith.constant 1 : index
    %96 = vector.load %arg16[%c0_65, %c1_66] : memref<20x20xf32, #tpu.memory_space<vmem>>, vector<20x1xf32>
    tpu.vector_store %arg16[%c0_65, %c1_66], %95 {strides = array<i32>} : memref<20x20xf32, #tpu.memory_space<vmem>>, vector<20x1xf32>,
    %c0_67 = arith.constant 0 : index
    %c16_68 = arith.constant 16 : index
    %97 = vector.load %arg16[%c0_67, %c16_68] : memref<20x20xf32, #tpu.memory_space<vmem>>, vector<20x1xf32>
    %c0_69 = arith.constant 0 : index
    %c18_70 = arith.constant 18 : index
    %98 = vector.load %arg16[%c0_69, %c18_70] : memref<20x20xf32, #tpu.memory_space<vmem>>, vector<20x1xf32>
    tpu.vector_store %arg16[%c0_69, %c18_70], %97 {strides = array<i32>} : memref<20x20xf32, #tpu.memory_space<vmem>>, vector<20x1xf32>,
    %c0_71 = arith.constant 0 : index
    %c15_72 = arith.constant 15 : index
    %99 = vector.load %arg16[%c0_71, %c15_72] : memref<20x20xf32, #tpu.memory_space<vmem>>, vector<20x1xf32>
    %c0_73 = arith.constant 0 : index
    %c19_74 = arith.constant 19 : index
    %100 = vector.load %arg16[%c0_73, %c19_74] : memref<20x20xf32, #tpu.memory_space<vmem>>, vector<20x1xf32>
    tpu.vector_store %arg16[%c0_73, %c19_74], %99 {strides = array<i32>} : memref<20x20xf32, #tpu.memory_space<vmem>>, vector<20x1xf32>,
    %c0_75 = arith.constant 0 : index
    %c0_76 = arith.constant 0 : index
    %101 = vector.load %arg16[%c0_75, %c0_76] : memref<20x20xf32, #tpu.memory_space<vmem>>, vector<20x16xf32>
    %cst_77 = arith.constant 1.000000e+00 : f32
    %102 = vector.broadcast %cst_77 : f32 to vector<20x16xf32>
    %103 = arith.mulf %102, %101 : vector<20x16xf32>
    %c0_78 = arith.constant 0 : index
    %c1_79 = arith.constant 1 : index
    %104 = vector.load %arg16[%c0_78, %c1_79] : memref<20x20xf32, #tpu.memory_space<vmem>>, vector<20x16xf32>
    %cst_80 = arith.constant 4.000000e+00 : f32
    %105 = vector.broadcast %cst_80 : f32 to vector<20x16xf32>
    %106 = arith.mulf %105, %104 : vector<20x16xf32>
    %107 = arith.addf %103, %106 : vector<20x16xf32>
    %c0_81 = arith.constant 0 : index
    %c2_82 = arith.constant 2 : index
    %108 = vector.load %arg16[%c0_81, %c2_82] : memref<20x20xf32, #tpu.memory_space<vmem>>, vector<20x16xf32>
    %cst_83 = arith.constant 6.000000e+00 : f32
    %109 = vector.broadcast %cst_83 : f32 to vector<20x16xf32>
    %110 = arith.mulf %109, %108 : vector<20x16xf32>
    %111 = arith.addf %107, %110 : vector<20x16xf32>
    %c0_84 = arith.constant 0 : index
    %c3_85 = arith.constant 3 : index
    %112 = vector.load %arg16[%c0_84, %c3_85] : memref<20x20xf32, #tpu.memory_space<vmem>>, vector<20x16xf32>
    %cst_86 = arith.constant 4.000000e+00 : f32
    %113 = vector.broadcast %cst_86 : f32 to vector<20x16xf32>
    %114 = arith.mulf %113, %112 : vector<20x16xf32>
    %115 = arith.addf %111, %114 : vector<20x16xf32>
    %c0_87 = arith.constant 0 : index
    %c4_88 = arith.constant 4 : index
    %116 = vector.load %arg16[%c0_87, %c4_88] : memref<20x20xf32, #tpu.memory_space<vmem>>, vector<20x16xf32>
    %cst_89 = arith.constant 1.000000e+00 : f32
    %117 = vector.broadcast %cst_89 : f32 to vector<20x16xf32>
    %118 = arith.mulf %117, %116 : vector<20x16xf32>
    %119 = arith.addf %115, %118 : vector<20x16xf32>
    %120 = vector.extract_strided_slice %119 {offsets = [0, 0], sizes = [16, 16], strides = [1, 1]} : vector<20x16xf32> to vector<16x16xf32>
    %cst_90 = arith.constant 1.000000e+00 : f32
    %121 = vector.broadcast %cst_90 : f32 to vector<16x16xf32>
    %122 = arith.mulf %121, %120 : vector<16x16xf32>
    %123 = vector.extract_strided_slice %119 {offsets = [1, 0], sizes = [16, 16], strides = [1, 1]} : vector<20x16xf32> to vector<16x16xf32>
    %cst_91 = arith.constant 4.000000e+00 : f32
    %124 = vector.broadcast %cst_91 : f32 to vector<16x16xf32>
    %125 = arith.mulf %124, %123 : vector<16x16xf32>
    %126 = arith.addf %122, %125 : vector<16x16xf32>
    %127 = vector.extract_strided_slice %119 {offsets = [2, 0], sizes = [16, 16], strides = [1, 1]} : vector<20x16xf32> to vector<16x16xf32>
    %cst_92 = arith.constant 6.000000e+00 : f32
    %128 = vector.broadcast %cst_92 : f32 to vector<16x16xf32>
    %129 = arith.mulf %128, %127 : vector<16x16xf32>
    %130 = arith.addf %126, %129 : vector<16x16xf32>
    %131 = vector.extract_strided_slice %119 {offsets = [3, 0], sizes = [16, 16], strides = [1, 1]} : vector<20x16xf32> to vector<16x16xf32>
    %cst_93 = arith.constant 4.000000e+00 : f32
    %132 = vector.broadcast %cst_93 : f32 to vector<16x16xf32>
    %133 = arith.mulf %132, %131 : vector<16x16xf32>
    %134 = arith.addf %130, %133 : vector<16x16xf32>
    %135 = vector.extract_strided_slice %119 {offsets = [4, 0], sizes = [16, 16], strides = [1, 1]} : vector<20x16xf32> to vector<16x16xf32>
    %cst_94 = arith.constant 1.000000e+00 : f32
    %136 = vector.broadcast %cst_94 : f32 to vector<16x16xf32>
    %137 = arith.mulf %136, %135 : vector<16x16xf32>
    %138 = arith.addf %134, %137 : vector<16x16xf32>
    %cst_95 = arith.constant 1.562500e-02 : f32
    %139 = vector.broadcast %cst_95 : f32 to vector<16x16xf32>
    %140 = arith.mulf %138, %139 : vector<16x16xf32>
    %141 = arith.subf %8, %140 : vector<16x16xf32>
    %142 = vector.shape_cast %141 : vector<16x16xf32> to vector<16x16x1xf32>
    %143 = vector.broadcast %142 : vector<16x16x1xf32> to vector<16x16x16xf32>
    %144 = arith.mulf %1, %143 : vector<16x16x16xf32>
    %c0_96 = arith.constant 0 : index
    %c0_97 = arith.constant 0 : index
    %c0_98 = arith.constant 0 : index
    %145 = vector.load %arg3[%c0_96, %c0_97, %c0_98] : memref<1x8x8xf32, #tpu.memory_space<vmem>>, vector<1x8x8xf32>
    %146 = vector.shape_cast %145 : vector<1x8x8xf32> to vector<8x8xf32>
    %c0_99 = arith.constant 0 : index
    %c0_100 = arith.constant 0 : index
    %147 = vector.load %arg4[%c0_99, %c0_100] : memref<16x8xf32, #tpu.memory_space<vmem>>, vector<16x8xf32>
    %cst_101 = arith.constant dense<0.000000e+00> : vector<16x8xf32>
    %148 = tpu.matmul %147, %146, %cst_101 {dimension_numbers = #tpu.dot_dimension_numbers<[1], [0], [0], [1], [0, 0, 1, 1], [], []>} : vector<16x8xf32>, vector<8x8xf32>, vector<16x8xf32> -> vector<16x8xf32>
    %c0_102 = arith.constant 0 : index
    %c0_103 = arith.constant 0 : index
    %149 = vector.load %arg5[%c0_102, %c0_103] : memref<8x16xf32, #tpu.memory_space<vmem>>, vector<8x16xf32>
    %cst_104 = arith.constant dense<0.000000e+00> : vector<16x16xf32>
    %150 = tpu.matmul %148, %149, %cst_104 {dimension_numbers = #tpu.dot_dimension_numbers<[1], [0], [0], [1], [0, 0, 1, 1], [], []>} : vector<16x8xf32>, vector<8x16xf32>, vector<16x16xf32> -> vector<16x16xf32>
    %151 = vector.shape_cast %150 : vector<16x16xf32> to vector<16x16x1xf32>
    %152 = vector.broadcast %151 : vector<16x16x1xf32> to vector<16x16x16xf32>
    %153 = arith.mulf %1, %152 : vector<16x16x16xf32>
    %cst_105 = arith.constant 0.000000e+00 : f32
    %154 = vector.broadcast %cst_105 : f32 to vector<1x18x48xf32>
    %cst_106 = arith.constant 0.000000e+00 : f32
    %155 = vector.broadcast %cst_106 : f32 to vector<16x1x48xf32>
    %c0_107 = arith.constant 0 : index
    %c0_108 = arith.constant 0 : index
    %c0_109 = arith.constant 0 : index
    %156 = vector.load %arg17[%c0_107, %c0_108, %c0_109] : memref<18x18x48xf32, #tpu.memory_space<vmem>>, vector<1x18x48xf32>
    tpu.vector_store %arg17[%c0_107, %c0_108, %c0_109], %154 {strides = array<i32>} : memref<18x18x48xf32, #tpu.memory_space<vmem>>, vector<1x18x48xf32>,
    %c17 = arith.constant 17 : index
    %c0_110 = arith.constant 0 : index
    %c0_111 = arith.constant 0 : index
    %157 = vector.load %arg17[%c17, %c0_110, %c0_111] : memref<18x18x48xf32, #tpu.memory_space<vmem>>, vector<1x18x48xf32>
    tpu.vector_store %arg17[%c17, %c0_110, %c0_111], %154 {strides = array<i32>} : memref<18x18x48xf32, #tpu.memory_space<vmem>>, vector<1x18x48xf32>,
    %c1_112 = arith.constant 1 : index
    %c0_113 = arith.constant 0 : index
    %c0_114 = arith.constant 0 : index
    %158 = vector.load %arg17[%c1_112, %c0_113, %c0_114] : memref<18x18x48xf32, #tpu.memory_space<vmem>>, vector<16x1x48xf32>
    tpu.vector_store %arg17[%c1_112, %c0_113, %c0_114], %155 {strides = array<i32>} : memref<18x18x48xf32, #tpu.memory_space<vmem>>, vector<16x1x48xf32>,
    %c1_115 = arith.constant 1 : index
    %c17_116 = arith.constant 17 : index
    %c0_117 = arith.constant 0 : index
    %159 = vector.load %arg17[%c1_115, %c17_116, %c0_117] : memref<18x18x48xf32, #tpu.memory_space<vmem>>, vector<16x1x48xf32>
    tpu.vector_store %arg17[%c1_115, %c17_116, %c0_117], %155 {strides = array<i32>} : memref<18x18x48xf32, #tpu.memory_space<vmem>>, vector<16x1x48xf32>,
    %c1_118 = arith.constant 1 : index
    %c1_119 = arith.constant 1 : index
    %c0_120 = arith.constant 0 : index
    %160 = vector.load %arg17[%c1_118, %c1_119, %c0_120] : memref<18x18x48xf32, #tpu.memory_space<vmem>>, vector<16x16x16xf32>
    tpu.vector_store %arg17[%c1_118, %c1_119, %c0_120], %13 {strides = array<i32>} : memref<18x18x48xf32, #tpu.memory_space<vmem>>, vector<16x16x16xf32>,
    %c1_121 = arith.constant 1 : index
    %c1_122 = arith.constant 1 : index
    %c16_123 = arith.constant 16 : index
    %161 = vector.load %arg17[%c1_121, %c1_122, %c16_123] : memref<18x18x48xf32, #tpu.memory_space<vmem>>, vector<16x16x16xf32>
    tpu.vector_store %arg17[%c1_121, %c1_122, %c16_123], %144 {strides = array<i32>} : memref<18x18x48xf32, #tpu.memory_space<vmem>>, vector<16x16x16xf32>,
    %c1_124 = arith.constant 1 : index
    %c1_125 = arith.constant 1 : index
    %c32 = arith.constant 32 : index
    %162 = vector.load %arg17[%c1_124, %c1_125, %c32] : memref<18x18x48xf32, #tpu.memory_space<vmem>>, vector<16x16x16xf32>
    tpu.vector_store %arg17[%c1_124, %c1_125, %c32], %153 {strides = array<i32>} : memref<18x18x48xf32, #tpu.memory_space<vmem>>, vector<16x16x16xf32>,
    %cst_126 = arith.constant 0.000000e+00 : f32
    %163 = vector.broadcast %cst_126 : f32 to vector<256x16xf32>
    %c0_127 = arith.constant 0 : index
    %c0_128 = arith.constant 0 : index
    %c0_129 = arith.constant 0 : index
    %164 = vector.load %arg17[%c0_127, %c0_128, %c0_129] : memref<18x18x48xf32, #tpu.memory_space<vmem>>, vector<16x16x48xf32>
    %165 = vector.shape_cast %164 : vector<16x16x48xf32> to vector<256x48xf32>
    %c0_130 = arith.constant 0 : index
    %c0_131 = arith.constant 0 : index
    %c0_132 = arith.constant 0 : index
    %166 = vector.load %arg6[%c0_130, %c0_131, %c0_132] : memref<9x48x16xf32, #tpu.memory_space<vmem>>, vector<1x48x16xf32>
    %167 = vector.shape_cast %166 : vector<1x48x16xf32> to vector<48x16xf32>
    %cst_133 = arith.constant dense<0.000000e+00> : vector<256x16xf32>
    %168 = tpu.matmul %165, %167, %cst_133 {dimension_numbers = #tpu.dot_dimension_numbers<[1], [0], [0], [1], [0, 0, 1, 1], [], []>} : vector<256x48xf32>, vector<48x16xf32>, vector<256x16xf32> -> vector<256x16xf32>
    %169 = arith.addf %163, %168 : vector<256x16xf32>
    %c0_134 = arith.constant 0 : index
    %c1_135 = arith.constant 1 : index
    %c0_136 = arith.constant 0 : index
    %170 = vector.load %arg17[%c0_134, %c1_135, %c0_136] : memref<18x18x48xf32, #tpu.memory_space<vmem>>, vector<16x16x48xf32>
    %171 = vector.shape_cast %170 : vector<16x16x48xf32> to vector<256x48xf32>
    %c1_137 = arith.constant 1 : index
    %c0_138 = arith.constant 0 : index
    %c0_139 = arith.constant 0 : index
    %172 = vector.load %arg6[%c1_137, %c0_138, %c0_139] : memref<9x48x16xf32, #tpu.memory_space<vmem>>, vector<1x48x16xf32>
    %173 = vector.shape_cast %172 : vector<1x48x16xf32> to vector<48x16xf32>
    %cst_140 = arith.constant dense<0.000000e+00> : vector<256x16xf32>
    %174 = tpu.matmul %171, %173, %cst_140 {dimension_numbers = #tpu.dot_dimension_numbers<[1], [0], [0], [1], [0, 0, 1, 1], [], []>} : vector<256x48xf32>, vector<48x16xf32>, vector<256x16xf32> -> vector<256x16xf32>
    %175 = arith.addf %169, %174 : vector<256x16xf32>
    %c0_141 = arith.constant 0 : index
    %c2_142 = arith.constant 2 : index
    %c0_143 = arith.constant 0 : index
    %176 = vector.load %arg17[%c0_141, %c2_142, %c0_143] : memref<18x18x48xf32, #tpu.memory_space<vmem>>, vector<16x16x48xf32>
    %177 = vector.shape_cast %176 : vector<16x16x48xf32> to vector<256x48xf32>
    %c2_144 = arith.constant 2 : index
    %c0_145 = arith.constant 0 : index
    %c0_146 = arith.constant 0 : index
    %178 = vector.load %arg6[%c2_144, %c0_145, %c0_146] : memref<9x48x16xf32, #tpu.memory_space<vmem>>, vector<1x48x16xf32>
    %179 = vector.shape_cast %178 : vector<1x48x16xf32> to vector<48x16xf32>
    %cst_147 = arith.constant dense<0.000000e+00> : vector<256x16xf32>
    %180 = tpu.matmul %177, %179, %cst_147 {dimension_numbers = #tpu.dot_dimension_numbers<[1], [0], [0], [1], [0, 0, 1, 1], [], []>} : vector<256x48xf32>, vector<48x16xf32>, vector<256x16xf32> -> vector<256x16xf32>
    %181 = arith.addf %175, %180 : vector<256x16xf32>
    %c1_148 = arith.constant 1 : index
    %c0_149 = arith.constant 0 : index
    %c0_150 = arith.constant 0 : index
    %182 = vector.load %arg17[%c1_148, %c0_149, %c0_150] : memref<18x18x48xf32, #tpu.memory_space<vmem>>, vector<16x16x48xf32>
    %183 = vector.shape_cast %182 : vector<16x16x48xf32> to vector<256x48xf32>
    %c3_151 = arith.constant 3 : index
    %c0_152 = arith.constant 0 : index
    %c0_153 = arith.constant 0 : index
    %184 = vector.load %arg6[%c3_151, %c0_152, %c0_153] : memref<9x48x16xf32, #tpu.memory_space<vmem>>, vector<1x48x16xf32>
    %185 = vector.shape_cast %184 : vector<1x48x16xf32> to vector<48x16xf32>
    %cst_154 = arith.constant dense<0.000000e+00> : vector<256x16xf32>
    %186 = tpu.matmul %183, %185, %cst_154 {dimension_numbers = #tpu.dot_dimension_numbers<[1], [0], [0], [1], [0, 0, 1, 1], [], []>} : vector<256x48xf32>, vector<48x16xf32>, vector<256x16xf32> -> vector<256x16xf32>
    %187 = arith.addf %181, %186 : vector<256x16xf32>
    %c1_155 = arith.constant 1 : index
    %c1_156 = arith.constant 1 : index
    %c0_157 = arith.constant 0 : index
    %188 = vector.load %arg17[%c1_155, %c1_156, %c0_157] : memref<18x18x48xf32, #tpu.memory_space<vmem>>, vector<16x16x48xf32>
    %189 = vector.shape_cast %188 : vector<16x16x48xf32> to vector<256x48xf32>
    %c4_158 = arith.constant 4 : index
    %c0_159 = arith.constant 0 : index
    %c0_160 = arith.constant 0 : index
    %190 = vector.load %arg6[%c4_158, %c0_159, %c0_160] : memref<9x48x16xf32, #tpu.memory_space<vmem>>, vector<1x48x16xf32>
    %191 = vector.shape_cast %190 : vector<1x48x16xf32> to vector<48x16xf32>
    %cst_161 = arith.constant dense<0.000000e+00> : vector<256x16xf32>
    %192 = tpu.matmul %189, %191, %cst_161 {dimension_numbers = #tpu.dot_dimension_numbers<[1], [0], [0], [1], [0, 0, 1, 1], [], []>} : vector<256x48xf32>, vector<48x16xf32>, vector<256x16xf32> -> vector<256x16xf32>
    %193 = arith.addf %187, %192 : vector<256x16xf32>
    %c1_162 = arith.constant 1 : index
    %c2_163 = arith.constant 2 : index
    %c0_164 = arith.constant 0 : index
    %194 = vector.load %arg17[%c1_162, %c2_163, %c0_164] : memref<18x18x48xf32, #tpu.memory_space<vmem>>, vector<16x16x48xf32>
    %195 = vector.shape_cast %194 : vector<16x16x48xf32> to vector<256x48xf32>
    %c5 = arith.constant 5 : index
    %c0_165 = arith.constant 0 : index
    %c0_166 = arith.constant 0 : index
    %196 = vector.load %arg6[%c5, %c0_165, %c0_166] : memref<9x48x16xf32, #tpu.memory_space<vmem>>, vector<1x48x16xf32>
    %197 = vector.shape_cast %196 : vector<1x48x16xf32> to vector<48x16xf32>
    %cst_167 = arith.constant dense<0.000000e+00> : vector<256x16xf32>
    %198 = tpu.matmul %195, %197, %cst_167 {dimension_numbers = #tpu.dot_dimension_numbers<[1], [0], [0], [1], [0, 0, 1, 1], [], []>} : vector<256x48xf32>, vector<48x16xf32>, vector<256x16xf32> -> vector<256x16xf32>
    %199 = arith.addf %193, %198 : vector<256x16xf32>
    %c2_168 = arith.constant 2 : index
    %c0_169 = arith.constant 0 : index
    %c0_170 = arith.constant 0 : index
    %200 = vector.load %arg17[%c2_168, %c0_169, %c0_170] : memref<18x18x48xf32, #tpu.memory_space<vmem>>, vector<16x16x48xf32>
    %201 = vector.shape_cast %200 : vector<16x16x48xf32> to vector<256x48xf32>
    %c6 = arith.constant 6 : index
    %c0_171 = arith.constant 0 : index
    %c0_172 = arith.constant 0 : index
    %202 = vector.load %arg6[%c6, %c0_171, %c0_172] : memref<9x48x16xf32, #tpu.memory_space<vmem>>, vector<1x48x16xf32>
    %203 = vector.shape_cast %202 : vector<1x48x16xf32> to vector<48x16xf32>
    %cst_173 = arith.constant dense<0.000000e+00> : vector<256x16xf32>
    %204 = tpu.matmul %201, %203, %cst_173 {dimension_numbers = #tpu.dot_dimension_numbers<[1], [0], [0], [1], [0, 0, 1, 1], [], []>} : vector<256x48xf32>, vector<48x16xf32>, vector<256x16xf32> -> vector<256x16xf32>
    %205 = arith.addf %199, %204 : vector<256x16xf32>
    %c2_174 = arith.constant 2 : index
    %c1_175 = arith.constant 1 : index
    %c0_176 = arith.constant 0 : index
    %206 = vector.load %arg17[%c2_174, %c1_175, %c0_176] : memref<18x18x48xf32, #tpu.memory_space<vmem>>, vector<16x16x48xf32>
    %207 = vector.shape_cast %206 : vector<16x16x48xf32> to vector<256x48xf32>
    %c7 = arith.constant 7 : index
    %c0_177 = arith.constant 0 : index
    %c0_178 = arith.constant 0 : index
    %208 = vector.load %arg6[%c7, %c0_177, %c0_178] : memref<9x48x16xf32, #tpu.memory_space<vmem>>, vector<1x48x16xf32>
    %209 = vector.shape_cast %208 : vector<1x48x16xf32> to vector<48x16xf32>
    %cst_179 = arith.constant dense<0.000000e+00> : vector<256x16xf32>
    %210 = tpu.matmul %207, %209, %cst_179 {dimension_numbers = #tpu.dot_dimension_numbers<[1], [0], [0], [1], [0, 0, 1, 1], [], []>} : vector<256x48xf32>, vector<48x16xf32>, vector<256x16xf32> -> vector<256x16xf32>
    %211 = arith.addf %205, %210 : vector<256x16xf32>
    %c2_180 = arith.constant 2 : index
    %c2_181 = arith.constant 2 : index
    %c0_182 = arith.constant 0 : index
    %212 = vector.load %arg17[%c2_180, %c2_181, %c0_182] : memref<18x18x48xf32, #tpu.memory_space<vmem>>, vector<16x16x48xf32>
    %213 = vector.shape_cast %212 : vector<16x16x48xf32> to vector<256x48xf32>
    %c8 = arith.constant 8 : index
    %c0_183 = arith.constant 0 : index
    %c0_184 = arith.constant 0 : index
    %214 = vector.load %arg6[%c8, %c0_183, %c0_184] : memref<9x48x16xf32, #tpu.memory_space<vmem>>, vector<1x48x16xf32>
    %215 = vector.shape_cast %214 : vector<1x48x16xf32> to vector<48x16xf32>
    %cst_185 = arith.constant dense<0.000000e+00> : vector<256x16xf32>
    %216 = tpu.matmul %213, %215, %cst_185 {dimension_numbers = #tpu.dot_dimension_numbers<[1], [0], [0], [1], [0, 0, 1, 1], [], []>} : vector<256x48xf32>, vector<48x16xf32>, vector<256x16xf32> -> vector<256x16xf32>
    %217 = arith.addf %211, %216 : vector<256x16xf32>
    %c0_186 = arith.constant 0 : index
    %c0_187 = arith.constant 0 : index
    %218 = vector.load %arg7[%c0_186, %c0_187] : memref<3x16xf32, #tpu.memory_space<vmem>>, vector<1x16xf32>
    %219 = vector.broadcast %218 : vector<1x16xf32> to vector<256x16xf32>
    %220 = arith.addf %217, %219 : vector<256x16xf32>
    %c1_188 = arith.constant 1 : index
    %c0_189 = arith.constant 0 : index
    %221 = vector.load %arg7[%c1_188, %c0_189] : memref<3x16xf32, #tpu.memory_space<vmem>>, vector<1x16xf32>
    %222 = vector.broadcast %221 : vector<1x16xf32> to vector<256x16xf32>
    %223 = arith.mulf %220, %222 : vector<256x16xf32>
    %c2_190 = arith.constant 2 : index
    %c0_191 = arith.constant 0 : index
    %224 = vector.load %arg7[%c2_190, %c0_191] : memref<3x16xf32, #tpu.memory_space<vmem>>, vector<1x16xf32>
    %225 = vector.broadcast %224 : vector<1x16xf32> to vector<256x16xf32>
    %226 = arith.addf %223, %225 : vector<256x16xf32>
    %cst_192 = arith.constant 0.000000e+00 : f32
    %227 = vector.broadcast %cst_192 : f32 to vector<256x16xf32>
    %228 = arith.maximumf %226, %227 : vector<256x16xf32>
    %229 = vector.shape_cast %228 : vector<256x16xf32> to vector<16x16x16xf32>
    %cst_193 = arith.constant 0.000000e+00 : f32
    %230 = vector.broadcast %cst_193 : f32 to vector<1x18x9xf32>
    %cst_194 = arith.constant 0.000000e+00 : f32
    %231 = vector.broadcast %cst_194 : f32 to vector<16x1x9xf32>
    %c0_195 = arith.constant 0 : index
    %c0_196 = arith.constant 0 : index
    %c0_197 = arith.constant 0 : index
    %232 = vector.load %arg18[%c0_195, %c0_196, %c0_197] : memref<18x18x9xf32, #tpu.memory_space<vmem>>, vector<1x18x9xf32>
    tpu.vector_store %arg18[%c0_195, %c0_196, %c0_197], %230 {strides = array<i32>} : memref<18x18x9xf32, #tpu.memory_space<vmem>>, vector<1x18x9xf32>,
    %c17_198 = arith.constant 17 : index
    %c0_199 = arith.constant 0 : index
    %c0_200 = arith.constant 0 : index
    %233 = vector.load %arg18[%c17_198, %c0_199, %c0_200] : memref<18x18x9xf32, #tpu.memory_space<vmem>>, vector<1x18x9xf32>
    tpu.vector_store %arg18[%c17_198, %c0_199, %c0_200], %230 {strides = array<i32>} : memref<18x18x9xf32, #tpu.memory_space<vmem>>, vector<1x18x9xf32>,
    %c1_201 = arith.constant 1 : index
    %c0_202 = arith.constant 0 : index
    %c0_203 = arith.constant 0 : index
    %234 = vector.load %arg18[%c1_201, %c0_202, %c0_203] : memref<18x18x9xf32, #tpu.memory_space<vmem>>, vector<16x1x9xf32>
    tpu.vector_store %arg18[%c1_201, %c0_202, %c0_203], %231 {strides = array<i32>} : memref<18x18x9xf32, #tpu.memory_space<vmem>>, vector<16x1x9xf32>,
    %c1_204 = arith.constant 1 : index
    %c17_205 = arith.constant 17 : index
    %c0_206 = arith.constant 0 : index
    %235 = vector.load %arg18[%c1_204, %c17_205, %c0_206] : memref<18x18x9xf32, #tpu.memory_space<vmem>>, vector<16x1x9xf32>
    tpu.vector_store %arg18[%c1_204, %c17_205, %c0_206], %231 {strides = array<i32>} : memref<18x18x9xf32, #tpu.memory_space<vmem>>, vector<16x1x9xf32>,
    %c0_207 = arith.constant 0 : index
    %c0_208 = arith.constant 0 : index
    %236 = vector.load %arg8[%c0_207, %c0_208] : memref<16x9xf32, #tpu.memory_space<vmem>>, vector<16x9xf32>
    %cst_209 = arith.constant dense<0.000000e+00> : vector<256x9xf32>
    %237 = tpu.matmul %228, %236, %cst_209 {dimension_numbers = #tpu.dot_dimension_numbers<[1], [0], [0], [1], [0, 0, 1, 1], [], []>} : vector<256x16xf32>, vector<16x9xf32>, vector<256x9xf32> -> vector<256x9xf32>
    %238 = vector.shape_cast %237 : vector<256x9xf32> to vector<16x16x9xf32>
    %c1_210 = arith.constant 1 : index
    %c1_211 = arith.constant 1 : index
    %c0_212 = arith.constant 0 : index
    %239 = vector.load %arg18[%c1_210, %c1_211, %c0_212] : memref<18x18x9xf32, #tpu.memory_space<vmem>>, vector<16x16x9xf32>
    tpu.vector_store %arg18[%c1_210, %c1_211, %c0_212], %238 {strides = array<i32>} : memref<18x18x9xf32, #tpu.memory_space<vmem>>, vector<16x16x9xf32>,
    %cst_213 = arith.constant 0.000000e+00 : f32
    %240 = vector.broadcast %cst_213 : f32 to vector<16x16x1xf32>
    %c0_214 = arith.constant 0 : index
    %c0_215 = arith.constant 0 : index
    %c0_216 = arith.constant 0 : index
    %241 = vector.load %arg18[%c0_214, %c0_215, %c0_216] : memref<18x18x9xf32, #tpu.memory_space<vmem>>, vector<16x16x1xf32>
    %242 = arith.addf %240, %241 : vector<16x16x1xf32>
    %c0_217 = arith.constant 0 : index
    %c1_218 = arith.constant 1 : index
    %c1_219 = arith.constant 1 : index
    %243 = vector.load %arg18[%c0_217, %c1_218, %c1_219] : memref<18x18x9xf32, #tpu.memory_space<vmem>>, vector<16x16x1xf32>
    %244 = arith.addf %242, %243 : vector<16x16x1xf32>
    %c0_220 = arith.constant 0 : index
    %c2_221 = arith.constant 2 : index
    %c2_222 = arith.constant 2 : index
    %245 = vector.load %arg18[%c0_220, %c2_221, %c2_222] : memref<18x18x9xf32, #tpu.memory_space<vmem>>, vector<16x16x1xf32>
    %246 = arith.addf %244, %245 : vector<16x16x1xf32>
    %c1_223 = arith.constant 1 : index
    %c0_224 = arith.constant 0 : index
    %c3_225 = arith.constant 3 : index
    %247 = vector.load %arg18[%c1_223, %c0_224, %c3_225] : memref<18x18x9xf32, #tpu.memory_space<vmem>>, vector<16x16x1xf32>
    %248 = arith.addf %246, %247 : vector<16x16x1xf32>
    %c1_226 = arith.constant 1 : index
    %c1_227 = arith.constant 1 : index
    %c4_228 = arith.constant 4 : index
    %249 = vector.load %arg18[%c1_226, %c1_227, %c4_228] : memref<18x18x9xf32, #tpu.memory_space<vmem>>, vector<16x16x1xf32>
    %250 = arith.addf %248, %249 : vector<16x16x1xf32>
    %c1_229 = arith.constant 1 : index
    %c2_230 = arith.constant 2 : index
    %c5_231 = arith.constant 5 : index
    %251 = vector.load %arg18[%c1_229, %c2_230, %c5_231] : memref<18x18x9xf32, #tpu.memory_space<vmem>>, vector<16x16x1xf32>
    %252 = arith.addf %250, %251 : vector<16x16x1xf32>
    %c2_232 = arith.constant 2 : index
    %c0_233 = arith.constant 0 : index
    %c6_234 = arith.constant 6 : index
    %253 = vector.load %arg18[%c2_232, %c0_233, %c6_234] : memref<18x18x9xf32, #tpu.memory_space<vmem>>, vector<16x16x1xf32>
    %254 = arith.addf %252, %253 : vector<16x16x1xf32>
    %c2_235 = arith.constant 2 : index
    %c1_236 = arith.constant 1 : index
    %c7_237 = arith.constant 7 : index
    %255 = vector.load %arg18[%c2_235, %c1_236, %c7_237] : memref<18x18x9xf32, #tpu.memory_space<vmem>>, vector<16x16x1xf32>
    %256 = arith.addf %254, %255 : vector<16x16x1xf32>
    %c2_238 = arith.constant 2 : index
    %c2_239 = arith.constant 2 : index
    %c8_240 = arith.constant 8 : index
    %257 = vector.load %arg18[%c2_238, %c2_239, %c8_240] : memref<18x18x9xf32, #tpu.memory_space<vmem>>, vector<16x16x1xf32>
    %258 = arith.addf %256, %257 : vector<16x16x1xf32>
    %c0_241 = arith.constant 0 : index
    %259 = memref.load %arg9[%c0_241] : memref<4xf32, #tpu.memory_space<smem>>
    %260 = vector.broadcast %259 : f32 to vector<16x16x1xf32>
    %261 = arith.addf %258, %260 : vector<16x16x1xf32>
    %c1_242 = arith.constant 1 : index
    %262 = memref.load %arg9[%c1_242] : memref<4xf32, #tpu.memory_space<smem>>
    %263 = vector.broadcast %262 : f32 to vector<16x16x1xf32>
    %264 = arith.mulf %261, %263 : vector<16x16x1xf32>
    %c2_243 = arith.constant 2 : index
    %265 = memref.load %arg9[%c2_243] : memref<4xf32, #tpu.memory_space<smem>>
    %266 = vector.broadcast %265 : f32 to vector<16x16x1xf32>
    %267 = arith.addf %264, %266 : vector<16x16x1xf32>
    %268 = arith.negf %267 : vector<16x16x1xf32>
    %269 = math.exp %268 : vector<16x16x1xf32>
    %cst_244 = arith.constant 1.000000e+00 : f32
    %270 = vector.broadcast %cst_244 : f32 to vector<16x16x1xf32>
    %271 = arith.addf %270, %269 : vector<16x16x1xf32>
    %272 = arith.divf %270, %271 : vector<16x16x1xf32>
    %273 = vector.broadcast %272 : vector<16x16x1xf32> to vector<16x16x16xf32>
    %274 = arith.mulf %229, %273 : vector<16x16x16xf32>
    %275 = arith.addf %274, %1 : vector<16x16x16xf32>
    %cst_245 = arith.constant dense<0.000000e+00> : vector<16x16xf32>
    %276 = vector.multi_reduction <add>, %275, %cst_245 [0] : vector<16x16x16xf32> to vector<16x16xf32>
    %cst_246 = arith.constant 1.600000e+01 : f32
    %277 = vector.broadcast %cst_246 : f32 to vector<16x16xf32>
    %278 = arith.divf %276, %277 : vector<16x16xf32>
    %cst_247 = arith.constant dense<0.000000e+00> : vector<16xf32>
    %279 = vector.multi_reduction <add>, %278, %cst_247 [0] : vector<16x16xf32> to vector<16xf32>
    %280 = vector.shape_cast %279 : vector<16xf32> to vector<1x16xf32>
    %cst_248 = arith.constant 1.600000e+01 : f32
    %281 = vector.broadcast %cst_248 : f32 to vector<1x16xf32>
    %282 = arith.divf %280, %281 : vector<1x16xf32>
    %cst_249 = arith.constant dense<0xFF800000> : vector<16x16xf32>
    %283 = vector.multi_reduction <maximumf>, %275, %cst_249 [0] : vector<16x16x16xf32> to vector<16x16xf32>
    %cst_250 = arith.constant dense<0xFF800000> : vector<16xf32>
    %284 = vector.multi_reduction <maximumf>, %283, %cst_250 [0] : vector<16x16xf32> to vector<16xf32>
    %285 = vector.shape_cast %284 : vector<16xf32> to vector<1x16xf32>
    %286 = tpu.concatenate %282, %285 in 0 : vector<1x16xf32>, vector<1x16xf32> -> vector<2x16xf32>
    %c0_251 = arith.constant 0 : index
    %c0_252 = arith.constant 0 : index
    %287 = vector.load %arg10[%c0_251, %c0_252] : memref<16x1xf32, #tpu.memory_space<vmem>>, vector<16x1xf32>
    %cst_253 = arith.constant dense<0.000000e+00> : vector<2x1xf32>
    %288 = tpu.matmul %286, %287, %cst_253 {dimension_numbers = #tpu.dot_dimension_numbers<[1], [0], [0], [1], [0, 0, 1, 1], [], []>} : vector<2x16xf32>, vector<16x1xf32>, vector<2x1xf32> -> vector<2x1xf32>
    %c0_254 = arith.constant 0 : index
    %c0_255 = arith.constant 0 : index
    %289 = vector.load %arg11[%c0_254, %c0_255] : memref<1x1xf32, #tpu.memory_space<vmem>>, vector<1x1xf32>
    %290 = vector.broadcast %289 : vector<1x1xf32> to vector<2x1xf32>
    %291 = arith.addf %288, %290 : vector<2x1xf32>
    %cst_256 = arith.constant 0.000000e+00 : f32
    %292 = vector.broadcast %cst_256 : f32 to vector<2x1xf32>
    %293 = arith.maximumf %291, %292 : vector<2x1xf32>
    %c0_257 = arith.constant 0 : index
    %c0_258 = arith.constant 0 : index
    %294 = vector.load %arg12[%c0_257, %c0_258] : memref<1x16xf32, #tpu.memory_space<vmem>>, vector<1x16xf32>
    %cst_259 = arith.constant dense<0.000000e+00> : vector<2x16xf32>
    %295 = tpu.matmul %293, %294, %cst_259 {dimension_numbers = #tpu.dot_dimension_numbers<[1], [0], [0], [1], [0, 0, 1, 1], [], []>} : vector<2x1xf32>, vector<1x16xf32>, vector<2x16xf32> -> vector<2x16xf32>
    %c0_260 = arith.constant 0 : index
    %c0_261 = arith.constant 0 : index
    %296 = vector.load %arg13[%c0_260, %c0_261] : memref<1x16xf32, #tpu.memory_space<vmem>>, vector<1x16xf32>
    %297 = vector.broadcast %296 : vector<1x16xf32> to vector<2x16xf32>
    %298 = arith.addf %295, %297 : vector<2x16xf32>
    %299 = vector.extract_strided_slice %298 {offsets = [0, 0], sizes = [1, 16], strides = [1, 1]} : vector<2x16xf32> to vector<1x16xf32>
    %300 = vector.extract_strided_slice %298 {offsets = [1, 0], sizes = [1, 16], strides = [1, 1]} : vector<2x16xf32> to vector<1x16xf32>
    %301 = arith.addf %299, %300 : vector<1x16xf32>
    %302 = arith.negf %301 : vector<1x16xf32>
    %303 = math.exp %302 : vector<1x16xf32>
    %cst_262 = arith.constant 1.000000e+00 : f32
    %304 = vector.broadcast %cst_262 : f32 to vector<1x16xf32>
    %305 = arith.addf %304, %303 : vector<1x16xf32>
    %306 = arith.divf %304, %305 : vector<1x16xf32>
    %307 = vector.shape_cast %306 : vector<1x16xf32> to vector<1x1x16xf32>
    %308 = vector.broadcast %307 : vector<1x1x16xf32> to vector<16x16x16xf32>
    %309 = arith.mulf %275, %308 : vector<16x16x16xf32>
    %cst_263 = arith.constant 0.000000e+00 : f32
    %310 = vector.broadcast %cst_263 : f32 to vector<2x3x22xf32>
    %cst_264 = arith.constant 0.000000e+00 : f32
    %311 = vector.broadcast %cst_264 : f32 to vector<2x16x3xf32>
    %c0_265 = arith.constant 0 : index
    %c0_266 = arith.constant 0 : index
    %c0_267 = arith.constant 0 : index
    %312 = vector.load %arg19[%c0_265, %c0_266, %c0_267] : memref<2x22x22xf32, #tpu.memory_space<vmem>>, vector<2x3x22xf32>
    tpu.vector_store %arg19[%c0_265, %c0_266, %c0_267], %310 {strides = array<i32>} : memref<2x22x22xf32, #tpu.memory_space<vmem>>, vector<2x3x22xf32>,
    %c0_268 = arith.constant 0 : index
    %c19_269 = arith.constant 19 : index
    %c0_270 = arith.constant 0 : index
    %313 = vector.load %arg19[%c0_268, %c19_269, %c0_270] : memref<2x22x22xf32, #tpu.memory_space<vmem>>, vector<2x3x22xf32>
    tpu.vector_store %arg19[%c0_268, %c19_269, %c0_270], %310 {strides = array<i32>} : memref<2x22x22xf32, #tpu.memory_space<vmem>>, vector<2x3x22xf32>,
    %c0_271 = arith.constant 0 : index
    %c3_272 = arith.constant 3 : index
    %c0_273 = arith.constant 0 : index
    %314 = vector.load %arg19[%c0_271, %c3_272, %c0_273] : memref<2x22x22xf32, #tpu.memory_space<vmem>>, vector<2x16x3xf32>
    tpu.vector_store %arg19[%c0_271, %c3_272, %c0_273], %311 {strides = array<i32>} : memref<2x22x22xf32, #tpu.memory_space<vmem>>, vector<2x16x3xf32>,
    %c0_274 = arith.constant 0 : index
    %c3_275 = arith.constant 3 : index
    %c19_276 = arith.constant 19 : index
    %315 = vector.load %arg19[%c0_274, %c3_275, %c19_276] : memref<2x22x22xf32, #tpu.memory_space<vmem>>, vector<2x16x3xf32>
    tpu.vector_store %arg19[%c0_274, %c3_275, %c19_276], %311 {strides = array<i32>} : memref<2x22x22xf32, #tpu.memory_space<vmem>>, vector<2x16x3xf32>,
    %cst_277 = arith.constant dense<0xFF800000> : vector<16x16xf32>
    %316 = vector.multi_reduction <maximumf>, %309, %cst_277 [2] : vector<16x16x16xf32> to vector<16x16xf32>
    %c0_278 = arith.constant 0 : index
    %c3_279 = arith.constant 3 : index
    %c3_280 = arith.constant 3 : index
    %317 = vector.load %arg19[%c0_278, %c3_279, %c3_280] : memref<2x22x22xf32, #tpu.memory_space<vmem>>, vector<1x16x16xf32>
    %318 = vector.shape_cast %317 : vector<1x16x16xf32> to vector<16x16xf32>
    %319 = vector.shape_cast %316 : vector<16x16xf32> to vector<1x16x16xf32>
    tpu.vector_store %arg19[%c0_278, %c3_279, %c3_280], %319 {strides = array<i32>} : memref<2x22x22xf32, #tpu.memory_space<vmem>>, vector<1x16x16xf32>,
    %cst_281 = arith.constant dense<0.000000e+00> : vector<16x16xf32>
    %320 = vector.multi_reduction <add>, %309, %cst_281 [2] : vector<16x16x16xf32> to vector<16x16xf32>
    %cst_282 = arith.constant 1.600000e+01 : f32
    %321 = vector.broadcast %cst_282 : f32 to vector<16x16xf32>
    %322 = arith.divf %320, %321 : vector<16x16xf32>
    %c1_283 = arith.constant 1 : index
    %c3_284 = arith.constant 3 : index
    %c3_285 = arith.constant 3 : index
    %323 = vector.load %arg19[%c1_283, %c3_284, %c3_285] : memref<2x22x22xf32, #tpu.memory_space<vmem>>, vector<1x16x16xf32>
    %324 = vector.shape_cast %323 : vector<1x16x16xf32> to vector<16x16xf32>
    %325 = vector.shape_cast %322 : vector<16x16xf32> to vector<1x16x16xf32>
    tpu.vector_store %arg19[%c1_283, %c3_284, %c3_285], %325 {strides = array<i32>} : memref<2x22x22xf32, #tpu.memory_space<vmem>>, vector<1x16x16xf32>,
    %c0_286 = arith.constant 0 : index
    %c0_287 = arith.constant 0 : index
    %c0_288 = arith.constant 0 : index
    %326 = vector.load %arg19[%c0_286, %c0_287, %c0_288] : memref<2x22x22xf32, #tpu.memory_space<vmem>>, vector<1x16x22xf32>
    %327 = vector.shape_cast %326 : vector<1x16x22xf32> to vector<16x22xf32>
    %c0_289 = arith.constant 0 : index
    %c0_290 = arith.constant 0 : index
    %328 = vector.load %arg20[%c0_289, %c0_290] : memref<16x308xf32, #tpu.memory_space<vmem>>, vector<16x22xf32>
    tpu.vector_store %arg20[%c0_289, %c0_290], %327 {strides = array<i32>} : memref<16x308xf32, #tpu.memory_space<vmem>>, vector<16x22xf32>,
    %c0_291 = arith.constant 0 : index
    %c1_292 = arith.constant 1 : index
    %c0_293 = arith.constant 0 : index
    %329 = vector.load %arg19[%c0_291, %c1_292, %c0_293] : memref<2x22x22xf32, #tpu.memory_space<vmem>>, vector<1x16x22xf32>
    %330 = vector.shape_cast %329 : vector<1x16x22xf32> to vector<16x22xf32>
    %c0_294 = arith.constant 0 : index
    %c22 = arith.constant 22 : index
    %331 = vector.load %arg20[%c0_294, %c22] : memref<16x308xf32, #tpu.memory_space<vmem>>, vector<16x22xf32>
    tpu.vector_store %arg20[%c0_294, %c22], %330 {strides = array<i32>} : memref<16x308xf32, #tpu.memory_space<vmem>>, vector<16x22xf32>,
    %c0_295 = arith.constant 0 : index
    %c2_296 = arith.constant 2 : index
    %c0_297 = arith.constant 0 : index
    %332 = vector.load %arg19[%c0_295, %c2_296, %c0_297] : memref<2x22x22xf32, #tpu.memory_space<vmem>>, vector<1x16x22xf32>
    %333 = vector.shape_cast %332 : vector<1x16x22xf32> to vector<16x22xf32>
    %c0_298 = arith.constant 0 : index
    %c44 = arith.constant 44 : index
    %334 = vector.load %arg20[%c0_298, %c44] : memref<16x308xf32, #tpu.memory_space<vmem>>, vector<16x22xf32>
    tpu.vector_store %arg20[%c0_298, %c44], %333 {strides = array<i32>} : memref<16x308xf32, #tpu.memory_space<vmem>>, vector<16x22xf32>,
    %c0_299 = arith.constant 0 : index
    %c3_300 = arith.constant 3 : index
    %c0_301 = arith.constant 0 : index
    %335 = vector.load %arg19[%c0_299, %c3_300, %c0_301] : memref<2x22x22xf32, #tpu.memory_space<vmem>>, vector<1x16x22xf32>
    %336 = vector.shape_cast %335 : vector<1x16x22xf32> to vector<16x22xf32>
    %c0_302 = arith.constant 0 : index
    %c66 = arith.constant 66 : index
    %337 = vector.load %arg20[%c0_302, %c66] : memref<16x308xf32, #tpu.memory_space<vmem>>, vector<16x22xf32>
    tpu.vector_store %arg20[%c0_302, %c66], %336 {strides = array<i32>} : memref<16x308xf32, #tpu.memory_space<vmem>>, vector<16x22xf32>,
    %c0_303 = arith.constant 0 : index
    %c4_304 = arith.constant 4 : index
    %c0_305 = arith.constant 0 : index
    %338 = vector.load %arg19[%c0_303, %c4_304, %c0_305] : memref<2x22x22xf32, #tpu.memory_space<vmem>>, vector<1x16x22xf32>
    %339 = vector.shape_cast %338 : vector<1x16x22xf32> to vector<16x22xf32>
    %c0_306 = arith.constant 0 : index
    %c88 = arith.constant 88 : index
    %340 = vector.load %arg20[%c0_306, %c88] : memref<16x308xf32, #tpu.memory_space<vmem>>, vector<16x22xf32>
    tpu.vector_store %arg20[%c0_306, %c88], %339 {strides = array<i32>} : memref<16x308xf32, #tpu.memory_space<vmem>>, vector<16x22xf32>,
    %c0_307 = arith.constant 0 : index
    %c5_308 = arith.constant 5 : index
    %c0_309 = arith.constant 0 : index
    %341 = vector.load %arg19[%c0_307, %c5_308, %c0_309] : memref<2x22x22xf32, #tpu.memory_space<vmem>>, vector<1x16x22xf32>
    %342 = vector.shape_cast %341 : vector<1x16x22xf32> to vector<16x22xf32>
    %c0_310 = arith.constant 0 : index
    %c110 = arith.constant 110 : index
    %343 = vector.load %arg20[%c0_310, %c110] : memref<16x308xf32, #tpu.memory_space<vmem>>, vector<16x22xf32>
    tpu.vector_store %arg20[%c0_310, %c110], %342 {strides = array<i32>} : memref<16x308xf32, #tpu.memory_space<vmem>>, vector<16x22xf32>,
    %c0_311 = arith.constant 0 : index
    %c6_312 = arith.constant 6 : index
    %c0_313 = arith.constant 0 : index
    %344 = vector.load %arg19[%c0_311, %c6_312, %c0_313] : memref<2x22x22xf32, #tpu.memory_space<vmem>>, vector<1x16x22xf32>
    %345 = vector.shape_cast %344 : vector<1x16x22xf32> to vector<16x22xf32>
    %c0_314 = arith.constant 0 : index
    %c132 = arith.constant 132 : index
    %346 = vector.load %arg20[%c0_314, %c132] : memref<16x308xf32, #tpu.memory_space<vmem>>, vector<16x22xf32>
    tpu.vector_store %arg20[%c0_314, %c132], %345 {strides = array<i32>} : memref<16x308xf32, #tpu.memory_space<vmem>>, vector<16x22xf32>,
    %c1_315 = arith.constant 1 : index
    %c0_316 = arith.constant 0 : index
    %c0_317 = arith.constant 0 : index
    %347 = vector.load %arg19[%c1_315, %c0_316, %c0_317] : memref<2x22x22xf32, #tpu.memory_space<vmem>>, vector<1x16x22xf32>
    %348 = vector.shape_cast %347 : vector<1x16x22xf32> to vector<16x22xf32>
    %c0_318 = arith.constant 0 : index
    %c154 = arith.constant 154 : index
    %349 = vector.load %arg20[%c0_318, %c154] : memref<16x308xf32, #tpu.memory_space<vmem>>, vector<16x22xf32>
    tpu.vector_store %arg20[%c0_318, %c154], %348 {strides = array<i32>} : memref<16x308xf32, #tpu.memory_space<vmem>>, vector<16x22xf32>,
    %c1_319 = arith.constant 1 : index
    %c1_320 = arith.constant 1 : index
    %c0_321 = arith.constant 0 : index
    %350 = vector.load %arg19[%c1_319, %c1_320, %c0_321] : memref<2x22x22xf32, #tpu.memory_space<vmem>>, vector<1x16x22xf32>
    %351 = vector.shape_cast %350 : vector<1x16x22xf32> to vector<16x22xf32>
    %c0_322 = arith.constant 0 : index
    %c176 = arith.constant 176 : index
    %352 = vector.load %arg20[%c0_322, %c176] : memref<16x308xf32, #tpu.memory_space<vmem>>, vector<16x22xf32>
    tpu.vector_store %arg20[%c0_322, %c176], %351 {strides = array<i32>} : memref<16x308xf32, #tpu.memory_space<vmem>>, vector<16x22xf32>,
    %c1_323 = arith.constant 1 : index
    %c2_324 = arith.constant 2 : index
    %c0_325 = arith.constant 0 : index
    %353 = vector.load %arg19[%c1_323, %c2_324, %c0_325] : memref<2x22x22xf32, #tpu.memory_space<vmem>>, vector<1x16x22xf32>
    %354 = vector.shape_cast %353 : vector<1x16x22xf32> to vector<16x22xf32>
    %c0_326 = arith.constant 0 : index
    %c198 = arith.constant 198 : index
    %355 = vector.load %arg20[%c0_326, %c198] : memref<16x308xf32, #tpu.memory_space<vmem>>, vector<16x22xf32>
    tpu.vector_store %arg20[%c0_326, %c198], %354 {strides = array<i32>} : memref<16x308xf32, #tpu.memory_space<vmem>>, vector<16x22xf32>,
    %c1_327 = arith.constant 1 : index
    %c3_328 = arith.constant 3 : index
    %c0_329 = arith.constant 0 : index
    %356 = vector.load %arg19[%c1_327, %c3_328, %c0_329] : memref<2x22x22xf32, #tpu.memory_space<vmem>>, vector<1x16x22xf32>
    %357 = vector.shape_cast %356 : vector<1x16x22xf32> to vector<16x22xf32>
    %c0_330 = arith.constant 0 : index
    %c220 = arith.constant 220 : index
    %358 = vector.load %arg20[%c0_330, %c220] : memref<16x308xf32, #tpu.memory_space<vmem>>, vector<16x22xf32>
    tpu.vector_store %arg20[%c0_330, %c220], %357 {strides = array<i32>} : memref<16x308xf32, #tpu.memory_space<vmem>>, vector<16x22xf32>,
    %c1_331 = arith.constant 1 : index
    %c4_332 = arith.constant 4 : index
    %c0_333 = arith.constant 0 : index
    %359 = vector.load %arg19[%c1_331, %c4_332, %c0_333] : memref<2x22x22xf32, #tpu.memory_space<vmem>>, vector<1x16x22xf32>
    %360 = vector.shape_cast %359 : vector<1x16x22xf32> to vector<16x22xf32>
    %c0_334 = arith.constant 0 : index
    %c242 = arith.constant 242 : index
    %361 = vector.load %arg20[%c0_334, %c242] : memref<16x308xf32, #tpu.memory_space<vmem>>, vector<16x22xf32>
    tpu.vector_store %arg20[%c0_334, %c242], %360 {strides = array<i32>} : memref<16x308xf32, #tpu.memory_space<vmem>>, vector<16x22xf32>,
    %c1_335 = arith.constant 1 : index
    %c5_336 = arith.constant 5 : index
    %c0_337 = arith.constant 0 : index
    %362 = vector.load %arg19[%c1_335, %c5_336, %c0_337] : memref<2x22x22xf32, #tpu.memory_space<vmem>>, vector<1x16x22xf32>
    %363 = vector.shape_cast %362 : vector<1x16x22xf32> to vector<16x22xf32>
    %c0_338 = arith.constant 0 : index
    %c264 = arith.constant 264 : index
    %364 = vector.load %arg20[%c0_338, %c264] : memref<16x308xf32, #tpu.memory_space<vmem>>, vector<16x22xf32>
    tpu.vector_store %arg20[%c0_338, %c264], %363 {strides = array<i32>} : memref<16x308xf32, #tpu.memory_space<vmem>>, vector<16x22xf32>,
    %c1_339 = arith.constant 1 : index
    %c6_340 = arith.constant 6 : index
    %c0_341 = arith.constant 0 : index
    %365 = vector.load %arg19[%c1_339, %c6_340, %c0_341] : memref<2x22x22xf32, #tpu.memory_space<vmem>>, vector<1x16x22xf32>
    %366 = vector.shape_cast %365 : vector<1x16x22xf32> to vector<16x22xf32>
    %c0_342 = arith.constant 0 : index
    %c286 = arith.constant 286 : index
    %367 = vector.load %arg20[%c0_342, %c286] : memref<16x308xf32, #tpu.memory_space<vmem>>, vector<16x22xf32>
    tpu.vector_store %arg20[%c0_342, %c286], %366 {strides = array<i32>} : memref<16x308xf32, #tpu.memory_space<vmem>>, vector<16x22xf32>,
    %c0_343 = arith.constant 0 : index
    %c0_344 = arith.constant 0 : index
    %368 = vector.load %arg20[%c0_343, %c0_344] : memref<16x308xf32, #tpu.memory_space<vmem>>, vector<16x308xf32>
    %c0_345 = arith.constant 0 : index
    %c0_346 = arith.constant 0 : index
    %369 = vector.load %arg14[%c0_345, %c0_346] : memref<308x16xf32, #tpu.memory_space<vmem>>, vector<308x16xf32>
    %cst_347 = arith.constant dense<0.000000e+00> : vector<16x16xf32>
    %370 = tpu.matmul %368, %369, %cst_347 {dimension_numbers = #tpu.dot_dimension_numbers<[1], [0], [0], [1], [0, 0, 1, 1], [], []>} : vector<16x308xf32>, vector<308x16xf32>, vector<16x16xf32> -> vector<16x16xf32>
    %c3_348 = arith.constant 3 : index
    %371 = memref.load %arg9[%c3_348] : memref<4xf32, #tpu.memory_space<smem>>
    %372 = vector.broadcast %371 : f32 to vector<16x16xf32>
    %373 = arith.addf %370, %372 : vector<16x16xf32>
    %374 = arith.negf %373 : vector<16x16xf32>
    %375 = math.exp %374 : vector<16x16xf32>
    %cst_349 = arith.constant 1.000000e+00 : f32
    %376 = vector.broadcast %cst_349 : f32 to vector<16x16xf32>
    %377 = arith.addf %376, %375 : vector<16x16xf32>
    %378 = arith.divf %376, %377 : vector<16x16xf32>
    %379 = vector.shape_cast %378 : vector<16x16xf32> to vector<16x16x1xf32>
    %380 = vector.broadcast %379 : vector<16x16x1xf32> to vector<16x16x16xf32>
    %381 = arith.mulf %309, %380 : vector<16x16x16xf32>
    %c0_350 = arith.constant 0 : index
    %c0_351 = arith.constant 0 : index
    %c0_352 = arith.constant 0 : index
    %c0_353 = arith.constant 0 : index
    %382 = vector.load %arg15[%c0_350, %c0_351, %c0_352, %c0_353] : memref<1x16x16x16xf32, #tpu.memory_space<vmem>>, vector<1x16x16x16xf32>
    %383 = vector.shape_cast %382 : vector<1x16x16x16xf32> to vector<16x16x16xf32>
    %384 = vector.shape_cast %381 : vector<16x16x16xf32> to vector<1x16x16x16xf32>
    tpu.vector_store %arg15[%c0_350, %c0_351, %c0_352, %c0_353], %384 {strides = array<i32>} : memref<1x16x16x16xf32, #tpu.memory_space<vmem>>, vector<1x16x16x16xf32>,
    return
  }
  func.func @transform_0(%arg0: i32) -> (i32, i32, i32) {
    %c0_i32 = arith.constant 0 : i32
    %c0_i32_0 = arith.constant 0 : i32
    %c0_i32_1 = arith.constant 0 : i32
    return %arg0, %c0_i32, %c0_i32_0 : i32, i32, i32
  }
  func.func @transform_1(%arg0: i32) -> (i32, i32, i32, i32) {
    %c0_i32 = arith.constant 0 : i32
    %c0_i32_0 = arith.constant 0 : i32
    %c0_i32_1 = arith.constant 0 : i32
    %c0_i32_2 = arith.constant 0 : i32
    return %arg0, %c0_i32, %c0_i32_0, %c0_i32_1 : i32, i32, i32, i32
  }
  func.func @transform_2(%arg0: i32) -> (i32, i32, i32) {
    %c0_i32 = arith.constant 0 : i32
    %c0_i32_0 = arith.constant 0 : i32
    %c0_i32_1 = arith.constant 0 : i32
    return %arg0, %c0_i32, %c0_i32_0 : i32, i32, i32
  }
  func.func @transform_3(%arg0: i32) -> (i32, i32) {
    %c0_i32 = arith.constant 0 : i32
    %c0_i32_0 = arith.constant 0 : i32
    %c0_i32_1 = arith.constant 0 : i32
    return %c0_i32, %c0_i32_0 : i32, i32
  }
  func.func @transform_4(%arg0: i32) -> (i32, i32) {
    %c0_i32 = arith.constant 0 : i32
    %c0_i32_0 = arith.constant 0 : i32
    %c0_i32_1 = arith.constant 0 : i32
    return %c0_i32, %c0_i32_0 : i32, i32
  }
  func.func @transform_5(%arg0: i32) -> (i32, i32, i32) {
    %c0_i32 = arith.constant 0 : i32
    %c0_i32_0 = arith.constant 0 : i32
    %c0_i32_1 = arith.constant 0 : i32
    %c0_i32_2 = arith.constant 0 : i32
    return %c0_i32, %c0_i32_0, %c0_i32_1 : i32, i32, i32
  }
  func.func @transform_6(%arg0: i32) -> (i32, i32) {
    %c0_i32 = arith.constant 0 : i32
    %c0_i32_0 = arith.constant 0 : i32
    %c0_i32_1 = arith.constant 0 : i32
    return %c0_i32, %c0_i32_0 : i32, i32
  }
  func.func @transform_7(%arg0: i32) -> (i32, i32) {
    %c0_i32 = arith.constant 0 : i32
    %c0_i32_0 = arith.constant 0 : i32
    %c0_i32_1 = arith.constant 0 : i32
    return %c0_i32, %c0_i32_0 : i32, i32
  }
  func.func @transform_8(%arg0: i32) -> i32 {
    %c0_i32 = arith.constant 0 : i32
    %c0_i32_0 = arith.constant 0 : i32
    return %c0_i32 : i32
  }
  func.func @transform_9(%arg0: i32) -> (i32, i32) {
    %c0_i32 = arith.constant 0 : i32
    %c0_i32_0 = arith.constant 0 : i32
    %c0_i32_1 = arith.constant 0 : i32
    return %c0_i32, %c0_i32_0 : i32, i32
  }
  func.func @transform_10(%arg0: i32) -> (i32, i32) {
    %c0_i32 = arith.constant 0 : i32
    %c0_i32_0 = arith.constant 0 : i32
    %c0_i32_1 = arith.constant 0 : i32
    return %c0_i32, %c0_i32_0 : i32, i32
  }
  func.func @transform_11(%arg0: i32) -> (i32, i32) {
    %c0_i32 = arith.constant 0 : i32
    %c0_i32_0 = arith.constant 0 : i32
    %c0_i32_1 = arith.constant 0 : i32
    return %c0_i32, %c0_i32_0 : i32, i32
  }
  func.func @transform_12(%arg0: i32) -> (i32, i32) {
    %c0_i32 = arith.constant 0 : i32
    %c0_i32_0 = arith.constant 0 : i32
    %c0_i32_1 = arith.constant 0 : i32
    return %c0_i32, %c0_i32_0 : i32, i32
  }
  func.func @transform_13(%arg0: i32) -> (i32, i32) {
    %c0_i32 = arith.constant 0 : i32
    %c0_i32_0 = arith.constant 0 : i32
    %c0_i32_1 = arith.constant 0 : i32
    return %c0_i32, %c0_i32_0 : i32, i32
  }
  func.func @transform_14(%arg0: i32) -> (i32, i32, i32, i32) {
    %c0_i32 = arith.constant 0 : i32
    %c0_i32_0 = arith.constant 0 : i32
    %c0_i32_1 = arith.constant 0 : i32
    %c0_i32_2 = arith.constant 0 : i32
    return %arg0, %c0_i32, %c0_i32_0, %c0_i32_1 : i32, i32, i32, i32
  }
}

</mosaic_0001>

<llo_original>
// kernel: tpu_custom_call.1
$region0: #{tpu_custom_call.1}
  #allocation0 [shape = 'u32[]', space=smem, size = 0x4, offset = 0x4, fixed_abs, tag = 'smem constant byte address 0x4 - core index']
  #allocation1 [shape = 'u32[144,128]{1,0:T(1,128)}', space=vmem, size = 0x12000, scoped, tag = 'internal scratch']
  #allocation2 [shape = 'f32[20,20]{1,0:T(8,128)}', space=vmem, size = 0x3000, scoped, tag = 'scratch operand']
  #allocation3 [shape = 'f32[18,18,48]{2,1,0:T(8,128)}', space=vmem, size = 0x36000, scoped, tag = 'scratch operand']
  #allocation4 [shape = 'f32[18,18,9]{2,1,0:T(8,128)}', space=vmem, size = 0x36000, scoped, tag = 'scratch operand']
  #allocation5 [shape = 'f32[2,22,22]{2,1,0:T(8,128)}', space=vmem, size = 0x6000, scoped, tag = 'scratch operand']
  #allocation6 [shape = 'f32[16,308]{1,0:T(8,128)}', space=vmem, size = 0x6000, scoped, tag = 'scratch operand']
  #allocation7 [shape = 'f32[1,1]{1,0:T(1,128)S(1)}', space=vmem, size = 0x200, scoped, tag = 'scoped memory for tpu_custom_call.1']
  %s0 = inlined_call_operand.vmem [shape: f32[2,16,16], index: 0, kind: input, shape index: {}]
  %s1 = inlined_call_operand.vmem [shape: f32[2,16,16,16], index: 1, kind: input, shape index: {}]
  %s2 = inlined_call_operand.vmem [shape: f32[2,8,8], index: 2, kind: input, shape index: {}]
  %s3 = inlined_call_operand.vmem [shape: f32[16,8], index: 3, kind: input, shape index: {}]
  %s4 = inlined_call_operand.vmem [shape: f32[8,16], index: 4, kind: input, shape index: {}]
  %s5 = inlined_call_operand.vmem [shape: f32[9,48,16], index: 5, kind: input, shape index: {}]
  %s6 = inlined_call_operand.vmem [shape: f32[3,16], index: 6, kind: input, shape index: {}]
  %s7 = inlined_call_operand.vmem [shape: f32[16,9], index: 7, kind: input, shape index: {}]
  %s8 = inlined_call_operand.vmem [shape: f32[4], index: 8, kind: input, shape index: {}]
  %s9 = inlined_call_operand.vmem [shape: f32[16,1], index: 9, kind: input, shape index: {}]
  %s10 = inlined_call_operand.<no memory space> [shape: f32[1,1], index: 10, kind: input, shape index: {}]
  %s11 = inlined_call_operand.vmem [shape: f32[1,16], index: 11, kind: input, shape index: {}]
  %s12 = inlined_call_operand.vmem [shape: f32[1,16], index: 12, kind: input, shape index: {}]
  %s13 = inlined_call_operand.vmem [shape: f32[308,16], index: 13, kind: input, shape index: {}]
  %s14 = inlined_call_operand.hbm [shape: f32[2,16,16,16], index: 14, kind: output, shape index: {}]
  %s15 = sld [smem:[#allocation0]]
  $region93: #{tpu_custom_call.1} parent=0
    _
  %s17 = ssub.s32 1, %s15
  %s18 = scalar_select 0, %s17, %s15
  %v19 = vstv %s10
  %20 = vst [vmem:[#allocation7] sm:$0x1] %v19
  $region1: #{tpu_custom_call.1} parent=0
    #allocation8 [shape = 'u8[512]{0}', space=smem, size = 0x200, scoped, tag = 'input window, operand 8, single buffered']
    #allocation9 [shape = 's32[2]{0}', space=sflag, size = 0x8, scoped, tag = 'scoped memory for tpu_custom_call.1']
    #allocation10 [shape = 's32[2]{0}', space=sflag, size = 0x8, scoped, tag = 'scoped memory for tpu_custom_call.1']
    #allocation11 [shape = 'u8[262144]{0}', space=vmem, size = 0x40000, scoped, tag = 'output window, operand 0']
    %21 = vsyncpa [#allocation10], 0
    %22 = vsyncpa [#allocation9], 0
    %s23 = scalar_lea.sflag [#allocation9], 1
    %24 = vsyncpa %s23, 0
    loop: start=0, step=1, limit=4
    $region2: #{tpu_custom_call.1} parent=1 // loop_pre_header
      _
    $region3: #{tpu_custom_call.1} parent=1 // loop_header
      %s26 = sphi 0, %s30
      %p27 = scmp.ge.s32.totalorder %s26, 4
      %s36 = sphi 0, %s38
      %s39 = sphi 0, %s36
      %s40 = sphi 0, %s39
      %s56 = sphi 0, %s40
      %s62 = sphi 0, %s64
      %s65 = sphi 0, %s62
      %s66 = sphi 0, %s65
      %s82 = sphi 0, %s66
      %s88 = sphi 0, %s90
      %s91 = sphi 0, %s88
      %s92 = sphi 0, %s91
      %s108 = sphi 0, %s92
      %s112 = sphi 0, %s112
      %s114 = sphi 0, %s112
      %s115 = sphi 0, %s114
      %s129 = sphi 0, %s115
      %s133 = sphi 0, %s133
      %s135 = sphi 0, %s133
      %s136 = sphi 0, %s135
      %s150 = sphi 0, %s136
      %s154 = sphi 0, %s154
      %s156 = sphi 0, %s154
      %s157 = sphi 0, %s156
      %s171 = sphi 0, %s157
      %s175 = sphi 0, %s175
      %s177 = sphi 0, %s175
      %s178 = sphi 0, %s177
      %s192 = sphi 0, %s178
      %s196 = sphi 0, %s196
      %s198 = sphi 0, %s196
      %s199 = sphi 0, %s198
      %s213 = sphi 0, %s199
      %s217 = sphi 0, %s217
      %s219 = sphi 0, %s217
      %s220 = sphi 0, %s219
      %s234 = sphi 0, %s220
      %s238 = sphi 0, %s238
      %s240 = sphi 0, %s238
      %s241 = sphi 0, %s240
      %s255 = sphi 0, %s241
      %s259 = sphi 0, %s259
      %s261 = sphi 0, %s259
      %s262 = sphi 0, %s261
      %s276 = sphi 0, %s262
      %s280 = sphi 0, %s280
      %s282 = sphi 0, %s280
      %s283 = sphi 0, %s282
      %s297 = sphi 0, %s283
      %s301 = sphi 0, %s301
      %s303 = sphi 0, %s301
      %s304 = sphi 0, %s303
      %s318 = sphi 0, %s304
      %s322 = sphi 0, %s322
      %s324 = sphi 0, %s322
      %s325 = sphi 0, %s324
      %s339 = sphi 0, %s325
      %s345 = sphi 0, %s347
      %s348 = sphi 0, %s345
      %s349 = sphi 0, %s348
      %s365 = sphi 0, %s349
    $region4: #{tpu_custom_call.1} parent=1 // loop_header_branch
      %29 = sbr.rel (%p27) target = $region8
    $region5: #{tpu_custom_call.1} parent=1 // loop_body
      %s31 = ssub.s32 %s26, 1
      %s32 = ssub.s32 %s26, 2
      %s33 = sadd.s32 %s26, 1
      %s34 = ssub.s32 %s26, %s33
      %p35 = scmp.eq.s32.totalorder %s34, 0
      %s37 = sadd.s32 %s36, 1
      %s38 = scalar_select %p35, %s36, %s37
      %p41 = pneg %p35
      %p42 = scmp.eq.s32.totalorder %s26, 1
      %p43 = por %p41, %p42
      %p44 = scmp.ne.s32.totalorder %s36, %s39
      %p45 = scmp.eq.s32.totalorder %s26, 0
      %p46 = por %p44, %p45
      %p47 = scmp.ne.s32.totalorder %s36, %s39
      %p48 = scmp.eq.s32.totalorder %s31, 1
      %p49 = por %p47, %p48
      %p50 = scmp.ne.s32.totalorder %s39, %s40
      %p51 = scmp.eq.s32.totalorder %s31, 0
      %p52 = por %p50, %p51
      %p53 = scmp.ne.s32.totalorder %s39, %s40
      %p54 = scmp.eq.s32.totalorder %s32, 1
      %p55 = por %p53, %p54
      %p57 = scmp.ne.s32.totalorder %s40, %s56
      %p58 = scmp.eq.s32.totalorder %s32, 0
      %p59 = por %p57, %p58
      %s60 = ssub.s32 %s26, %s33
      %p61 = scmp.eq.s32.totalorder %s60, 0
      %s63 = sadd.s32 %s62, 1
      %s64 = scalar_select %p61, %s62, %s63
      %p67 = pneg %p61
      %p68 = scmp.eq.s32.totalorder %s26, 1
      %p69 = por %p67, %p68
      %p70 = scmp.ne.s32.totalorder %s62, %s65
      %p71 = scmp.eq.s32.totalorder %s26, 0
      %p72 = por %p70, %p71
      %p73 = scmp.ne.s32.totalorder %s62, %s65
      %p74 = scmp.eq.s32.totalorder %s31, 1
      %p75 = por %p73, %p74
      %p76 = scmp.ne.s32.totalorder %s65, %s66
      %p77 = scmp.eq.s32.totalorder %s31, 0
      %p78 = por %p76, %p77
      %p79 = scmp.ne.s32.totalorder %s65, %s66
      %p80 = scmp.eq.s32.totalorder %s32, 1
      %p81 = por %p79, %p80
      %p83 = scmp.ne.s32.totalorder %s66, %s82
      %p84 = scmp.eq.s32.totalorder %s32, 0
      %p85 = por %p83, %p84
      %s86 = ssub.s32 %s26, %s33
      %p87 = scmp.eq.s32.totalorder %s86, 0
      %s89 = sadd.s32 %s88, 1
      %s90 = scalar_select %p87, %s88, %s89
      %p93 = pneg %p87
      %p94 = scmp.eq.s32.totalorder %s26, 1
      %p95 = por %p93, %p94
      %p96 = scmp.ne.s32.totalorder %s88, %s91
      %p97 = scmp.eq.s32.totalorder %s26, 0
      %p98 = por %p96, %p97
      %p99 = scmp.ne.s32.totalorder %s88, %s91
      %p100 = scmp.eq.s32.totalorder %s31, 1
      %p101 = por %p99, %p100
      %p102 = scmp.ne.s32.totalorder %s91, %s92
      %p103 = scmp.eq.s32.totalorder %s31, 0
      %p104 = por %p102, %p103
      %p105 = scmp.ne.s32.totalorder %s91, %s92
      %p106 = scmp.eq.s32.totalorder %s32, 1
      %p107 = por %p105, %p106
      %p109 = scmp.ne.s32.totalorder %s92, %s108
      %p110 = scmp.eq.s32.totalorder %s32, 0
      %p111 = por %p109, %p110
      %s113 = sadd.s32 %s112, 1
      %p116 = scmp.eq.s32.totalorder %s26, 1
      %p117 = scmp.ne.s32.totalorder %s112, %s114
      %p118 = scmp.eq.s32.totalorder %s26, 0
      %p119 = por %p117, %p118
      %p120 = scmp.ne.s32.totalorder %s112, %s114
      %p121 = scmp.eq.s32.totalorder %s31, 1
      %p122 = por %p120, %p121
      %p123 = scmp.ne.s32.totalorder %s114, %s115
      %p124 = scmp.eq.s32.totalorder %s31, 0
      %p125 = por %p123, %p124
      %p126 = scmp.ne.s32.totalorder %s114, %s115
      %p127 = scmp.eq.s32.totalorder %s32, 1
      %p128 = por %p126, %p127
      %p130 = scmp.ne.s32.totalorder %s115, %s129
      %p131 = scmp.eq.s32.totalorder %s32, 0
      %p132 = por %p130, %p131
      %s134 = sadd.s32 %s133, 1
      %p137 = scmp.eq.s32.totalorder %s26, 1
      %p138 = scmp.ne.s32.totalorder %s133, %s135
      %p139 = scmp.eq.s32.totalorder %s26, 0
      %p140 = por %p138, %p139
      %p141 = scmp.ne.s32.totalorder %s133, %s135
      %p142 = scmp.eq.s32.totalorder %s31, 1
      %p143 = por %p141, %p142
      %p144 = scmp.ne.s32.totalorder %s135, %s136
      %p145 = scmp.eq.s32.totalorder %s31, 0
      %p146 = por %p144, %p145
      %p147 = scmp.ne.s32.totalorder %s135, %s136
      %p148 = scmp.eq.s32.totalorder %s32, 1
      %p149 = por %p147, %p148
      %p151 = scmp.ne.s32.totalorder %s136, %s150
      %p152 = scmp.eq.s32.totalorder %s32, 0
      %p153 = por %p151, %p152
      %s155 = sadd.s32 %s154, 1
      %p158 = scmp.eq.s32.totalorder %s26, 1
      %p159 = scmp.ne.s32.totalorder %s154, %s156
      %p160 = scmp.eq.s32.totalorder %s26, 0
      %p161 = por %p159, %p160
      %p162 = scmp.ne.s32.totalorder %s154, %s156
      %p163 = scmp.eq.s32.totalorder %s31, 1
      %p164 = por %p162, %p163
      %p165 = scmp.ne.s32.totalorder %s156, %s157
      %p166 = scmp.eq.s32.totalorder %s31, 0
      %p167 = por %p165, %p166
      %p168 = scmp.ne.s32.totalorder %s156, %s157
      %p169 = scmp.eq.s32.totalorder %s32, 1
      %p170 = por %p168, %p169
      %p172 = scmp.ne.s32.totalorder %s157, %s171
      %p173 = scmp.eq.s32.totalorder %s32, 0
      %p174 = por %p172, %p173
      %s176 = sadd.s32 %s175, 1
      %p179 = scmp.eq.s32.totalorder %s26, 1
      %p180 = scmp.ne.s32.totalorder %s175, %s177
      %p181 = scmp.eq.s32.totalorder %s26, 0
      %p182 = por %p180, %p181
      %p183 = scmp.ne.s32.totalorder %s175, %s177
      %p184 = scmp.eq.s32.totalorder %s31, 1
      %p185 = por %p183, %p184
      %p186 = scmp.ne.s32.totalorder %s177, %s178
      %p187 = scmp.eq.s32.totalorder %s31, 0
      %p188 = por %p186, %p187
      %p189 = scmp.ne.s32.totalorder %s177, %s178
      %p190 = scmp.eq.s32.totalorder %s32, 1
      %p191 = por %p189, %p190
      %p193 = scmp.ne.s32.totalorder %s178, %s192
      %p194 = scmp.eq.s32.totalorder %s32, 0
      %p195 = por %p193, %p194
      %s197 = sadd.s32 %s196, 1
      %p200 = scmp.eq.s32.totalorder %s26, 1
      %p201 = scmp.ne.s32.totalorder %s196, %s198
      %p202 = scmp.eq.s32.totalorder %s26, 0
      %p203 = por %p201, %p202
      %p204 = scmp.ne.s32.totalorder %s196, %s198
      %p205 = scmp.eq.s32.totalorder %s31, 1
      %p206 = por %p204, %p205
      %p207 = scmp.ne.s32.totalorder %s198, %s199
      %p208 = scmp.eq.s32.totalorder %s31, 0
      %p209 = por %p207, %p208
      %p210 = scmp.ne.s32.totalorder %s198, %s199
      %p211 = scmp.eq.s32.totalorder %s32, 1
      %p212 = por %p210, %p211
      %p214 = scmp.ne.s32.totalorder %s199, %s213
      %p215 = scmp.eq.s32.totalorder %s32, 0
      %p216 = por %p214, %p215
      %s218 = sadd.s32 %s217, 1
      %p221 = scmp.eq.s32.totalorder %s26, 1
      %p222 = scmp.ne.s32.totalorder %s217, %s219
      %p223 = scmp.eq.s32.totalorder %s26, 0
      %p224 = por %p222, %p223
      %p225 = scmp.ne.s32.totalorder %s217, %s219
      %p226 = scmp.eq.s32.totalorder %s31, 1
      %p227 = por %p225, %p226
      %p228 = scmp.ne.s32.totalorder %s219, %s220
      %p229 = scmp.eq.s32.totalorder %s31, 0
      %p230 = por %p228, %p229
      %p231 = scmp.ne.s32.totalorder %s219, %s220
      %p232 = scmp.eq.s32.totalorder %s32, 1
      %p233 = por %p231, %p232
      %p235 = scmp.ne.s32.totalorder %s220, %s234
      %p236 = scmp.eq.s32.totalorder %s32, 0
      %p237 = por %p235, %p236
      %s239 = sadd.s32 %s238, 1
      %p242 = scmp.eq.s32.totalorder %s26, 1
      %p243 = scmp.ne.s32.totalorder %s238, %s240
      %p244 = scmp.eq.s32.totalorder %s26, 0
      %p245 = por %p243, %p244
      %p246 = scmp.ne.s32.totalorder %s238, %s240
      %p247 = scmp.eq.s32.totalorder %s31, 1
      %p248 = por %p246, %p247
      %p249 = scmp.ne.s32.totalorder %s240, %s241
      %p250 = scmp.eq.s32.totalorder %s31, 0
      %p251 = por %p249, %p250
      %p252 = scmp.ne.s32.totalorder %s240, %s241
      %p253 = scmp.eq.s32.totalorder %s32, 1
      %p254 = por %p252, %p253
      %p256 = scmp.ne.s32.totalorder %s241, %s255
      %p257 = scmp.eq.s32.totalorder %s32, 0
      %p258 = por %p256, %p257
      %s260 = sadd.s32 %s259, 1
      %p263 = scmp.eq.s32.totalorder %s26, 1
      %p264 = scmp.ne.s32.totalorder %s259, %s261
      %p265 = scmp.eq.s32.totalorder %s26, 0
      %p266 = por %p264, %p265
      %p267 = scmp.ne.s32.totalorder %s259, %s261
      %p268 = scmp.eq.s32.totalorder %s31, 1
      %p269 = por %p267, %p268
      %p270 = scmp.ne.s32.totalorder %s261, %s262
      %p271 = scmp.eq.s32.totalorder %s31, 0
      %p272 = por %p270, %p271
      %p273 = scmp.ne.s32.totalorder %s261, %s262
      %p274 = scmp.eq.s32.totalorder %s32, 1
      %p275 = por %p273, %p274
      %p277 = scmp.ne.s32.totalorder %s262, %s276
      %p278 = scmp.eq.s32.totalorder %s32, 0
      %p279 = por %p277, %p278
      %s281 = sadd.s32 %s280, 1
      %p284 = scmp.eq.s32.totalorder %s26, 1
      %p285 = scmp.ne.s32.totalorder %s280, %s282
      %p286 = scmp.eq.s32.totalorder %s26, 0
      %p287 = por %p285, %p286
      %p288 = scmp.ne.s32.totalorder %s280, %s282
      %p289 = scmp.eq.s32.totalorder %s31, 1
      %p290 = por %p288, %p289
      %p291 = scmp.ne.s32.totalorder %s282, %s283
      %p292 = scmp.eq.s32.totalorder %s31, 0
      %p293 = por %p291, %p292
      %p294 = scmp.ne.s32.totalorder %s282, %s283
      %p295 = scmp.eq.s32.totalorder %s32, 1
      %p296 = por %p294, %p295
      %p298 = scmp.ne.s32.totalorder %s283, %s297
      %p299 = scmp.eq.s32.totalorder %s32, 0
      %p300 = por %p298, %p299
      %s302 = sadd.s32 %s301, 1
      %p305 = scmp.eq.s32.totalorder %s26, 1
      %p306 = scmp.ne.s32.totalorder %s301, %s303
      %p307 = scmp.eq.s32.totalorder %s26, 0
      %p308 = por %p306, %p307
      %p309 = scmp.ne.s32.totalorder %s301, %s303
      %p310 = scmp.eq.s32.totalorder %s31, 1
      %p311 = por %p309, %p310
      %p312 = scmp.ne.s32.totalorder %s303, %s304
      %p313 = scmp.eq.s32.totalorder %s31, 0
      %p314 = por %p312, %p313
      %p315 = scmp.ne.s32.totalorder %s303, %s304
      %p316 = scmp.eq.s32.totalorder %s32, 1
      %p317 = por %p315, %p316
      %p319 = scmp.ne.s32.totalorder %s304, %s318
      %p320 = scmp.eq.s32.totalorder %s32, 0
      %p321 = por %p319, %p320
      %s323 = sadd.s32 %s322, 1
      %p326 = scmp.eq.s32.totalorder %s26, 1
      %p327 = scmp.ne.s32.totalorder %s322, %s324
      %p328 = scmp.eq.s32.totalorder %s26, 0
      %p329 = por %p327, %p328
      %p330 = scmp.ne.s32.totalorder %s322, %s324
      %p331 = scmp.eq.s32.totalorder %s31, 1
      %p332 = por %p330, %p331
      %p333 = scmp.ne.s32.totalorder %s324, %s325
      %p334 = scmp.eq.s32.totalorder %s31, 0
      %p335 = por %p333, %p334
      %p336 = scmp.ne.s32.totalorder %s324, %s325
      %p337 = scmp.eq.s32.totalorder %s32, 1
      %p338 = por %p336, %p337
      %p340 = scmp.ne.s32.totalorder %s325, %s339
      %p341 = scmp.eq.s32.totalorder %s32, 0
      %p342 = por %p340, %p341
      %s343 = ssub.s32 %s26, %s33
      %p344 = scmp.eq.s32.totalorder %s343, 0
      %s346 = sadd.s32 %s345, 1
      %s347 = scalar_select %p344, %s345, %s346
      %p350 = pneg %p344
      %p351 = scmp.eq.s32.totalorder %s26, 1
      %p352 = por %p350, %p351
      %p353 = scmp.ne.s32.totalorder %s345, %s348
      %p354 = scmp.eq.s32.totalorder %s26, 0
      %p355 = por %p353, %p354
      %p356 = scmp.ne.s32.totalorder %s345, %s348
      %p357 = scmp.eq.s32.totalorder %s31, 1
      %p358 = por %p356, %p357
      %p359 = scmp.ne.s32.totalorder %s348, %s349
      %p360 = scmp.eq.s32.totalorder %s31, 0
      %p361 = por %p359, %p360
      %p362 = scmp.ne.s32.totalorder %s348, %s349
      %p363 = scmp.eq.s32.totalorder %s32, 1
      %p364 = por %p362, %p363
      %p366 = scmp.ne.s32.totalorder %s349, %s365
      %p367 = scmp.eq.s32.totalorder %s32, 0
      %p368 = por %p366, %p367
      %p369 = scmp.le.s32.totalorder 1, %s26
      %p370 = scmp.lt.s32.totalorder %s26, 3
      %p371 = pnand %p369, %p370
      %p372 = pneg %p371
      // Predicated region
      $region9: #{tpu_custom_call.1} parent=5 // pred_check
        _
      $region10: #{tpu_custom_call.1} parent=5 // pred_check_branch
        %374 = sbr.rel (%p371) target = $region12
      $region11: #{tpu_custom_call.1} parent=5 // pred_region
        %s375 = ssub.s32 %s26, 1
        // Predicated region
        $region13: #{tpu_custom_call.1} parent=11 // pred_check
          %p376 = pneg %p125
        $region14: #{tpu_custom_call.1} parent=11 // pred_check_branch
          %378 = sbr.rel (%p376) target = $region16
        $region15: #{tpu_custom_call.1} parent=11 // pred_region
          _
        $region16: #{tpu_custom_call.1} parent=11 // pred_fallthru
          _
        // Predicated region
        $region17: #{tpu_custom_call.1} parent=11 // pred_check
          %p379 = pneg %p146
        $region18: #{tpu_custom_call.1} parent=11 // pred_check_branch
          %381 = sbr.rel (%p379) target = $region20
        $region19: #{tpu_custom_call.1} parent=11 // pred_region
          _
        $region20: #{tpu_custom_call.1} parent=11 // pred_fallthru
          _
        // Predicated region
        $region21: #{tpu_custom_call.1} parent=11 // pred_check
          %p382 = pneg %p167
        $region22: #{tpu_custom_call.1} parent=11 // pred_check_branch
          %384 = sbr.rel (%p382) target = $region24
        $region23: #{tpu_custom_call.1} parent=11 // pred_region
          _
        $region24: #{tpu_custom_call.1} parent=11 // pred_fallthru
          _
        // Predicated region
        $region25: #{tpu_custom_call.1} parent=11 // pred_check
          %p385 = pneg %p188
        $region26: #{tpu_custom_call.1} parent=11 // pred_check_branch
          %387 = sbr.rel (%p385) target = $region28
        $region27: #{tpu_custom_call.1} parent=11 // pred_region
          _
        $region28: #{tpu_custom_call.1} parent=11 // pred_fallthru
          _
        // Predicated region
        $region29: #{tpu_custom_call.1} parent=11 // pred_check
          %p388 = pneg %p209
        $region30: #{tpu_custom_call.1} parent=11 // pred_check_branch
          %390 = sbr.rel (%p388) target = $region32
        $region31: #{tpu_custom_call.1} parent=11 // pred_region
          _
        $region32: #{tpu_custom_call.1} parent=11 // pred_fallthru
          _
        // Predicated region
        $region33: #{tpu_custom_call.1} parent=11 // pred_check
          %p391 = pneg %p230
        $region34: #{tpu_custom_call.1} parent=11 // pred_check_branch
          %393 = sbr.rel (%p391) target = $region36
        $region35: #{tpu_custom_call.1} parent=11 // pred_region
          %s395 = ssub.s32 16, 16
          %396 = vsyncadd [#allocation10], %s395
          %s398 = sshll.u32 %s8, 4
          %s399 = int_to_ptr.vmem [resolvable:$true] %s398
          %401 = dma.vmem_to_smem %s399, 16, [#allocation8], [#allocation10]
        $region36: #{tpu_custom_call.1} parent=11 // pred_fallthru
          _
        // Predicated region
        $region37: #{tpu_custom_call.1} parent=11 // pred_check
          %p402 = pneg %p251
        $region38: #{tpu_custom_call.1} parent=11 // pred_check_branch
          %404 = sbr.rel (%p402) target = $region40
        $region39: #{tpu_custom_call.1} parent=11 // pred_region
          _
        $region40: #{tpu_custom_call.1} parent=11 // pred_fallthru
          _
        // Predicated region
        $region41: #{tpu_custom_call.1} parent=11 // pred_check
          %p405 = pneg %p272
        $region42: #{tpu_custom_call.1} parent=11 // pred_check_branch
          %407 = sbr.rel (%p405) target = $region44
        $region43: #{tpu_custom_call.1} parent=11 // pred_region
          _
        $region44: #{tpu_custom_call.1} parent=11 // pred_fallthru
          _
        // Predicated region
        $region45: #{tpu_custom_call.1} parent=11 // pred_check
          %p408 = pneg %p293
        $region46: #{tpu_custom_call.1} parent=11 // pred_check_branch
          %410 = sbr.rel (%p408) target = $region48
        $region47: #{tpu_custom_call.1} parent=11 // pred_region
          _
        $region48: #{tpu_custom_call.1} parent=11 // pred_fallthru
          _
        // Predicated region
        $region49: #{tpu_custom_call.1} parent=11 // pred_check
          %p411 = pneg %p314
        $region50: #{tpu_custom_call.1} parent=11 // pred_check_branch
          %413 = sbr.rel (%p411) target = $region52
        $region51: #{tpu_custom_call.1} parent=11 // pred_region
          _
        $region52: #{tpu_custom_call.1} parent=11 // pred_fallthru
          _
        // Predicated region
        $region53: #{tpu_custom_call.1} parent=11 // pred_check
          %p414 = pneg %p335
        $region54: #{tpu_custom_call.1} parent=11 // pred_check_branch
          %416 = sbr.rel (%p414) target = $region56
        $region55: #{tpu_custom_call.1} parent=11 // pred_region
          _
        $region56: #{tpu_custom_call.1} parent=11 // pred_fallthru
          _
      $region12: #{tpu_custom_call.1} parent=5 // pred_fallthru
        _
      %p417 = scmp.lt.s32.totalorder %s26, 2
      // Predicated region
      $region57: #{tpu_custom_call.1} parent=5 // pred_check
        %p418 = pneg %p417
      $region58: #{tpu_custom_call.1} parent=5 // pred_check_branch
        %420 = sbr.rel (%p418) target = $region60
      $region59: #{tpu_custom_call.1} parent=5 // pred_region
        // Predicated region
        $region61: #{tpu_custom_call.1} parent=59 // pred_check
          %p421 = pneg %p46
        $region62: #{tpu_custom_call.1} parent=59 // pred_check_branch
          %423 = sbr.rel (%p421) target = $region64
        $region63: #{tpu_custom_call.1} parent=59 // pred_region
          %p424 = scmp.lt.s32.totalorder %s26, 1
          %s425 = scalar_select %p424, %s26, 1
          %s426 = smul.addr %s425, 2
          %s427 = smul.addr %s426, 8
          %s428 = scalar_lea.vmem %s0, %s427
        $region64: #{tpu_custom_call.1} parent=59 // pred_fallthru
          _
        // Predicated region
        $region65: #{tpu_custom_call.1} parent=59 // pred_check
          %p429 = pneg %p72
        $region66: #{tpu_custom_call.1} parent=59 // pred_check_branch
          %431 = sbr.rel (%p429) target = $region68
        $region67: #{tpu_custom_call.1} parent=59 // pred_region
          %p432 = scmp.lt.s32.totalorder %s26, 1
          %s433 = scalar_select %p432, %s26, 1
          %s434 = smul.addr %s433, 32
          %s435 = smul.addr %s434, 8
          %s436 = scalar_lea.vmem %s1, %s435
        $region68: #{tpu_custom_call.1} parent=59 // pred_fallthru
          _
        // Predicated region
        $region69: #{tpu_custom_call.1} parent=59 // pred_check
          %p437 = pneg %p98
        $region70: #{tpu_custom_call.1} parent=59 // pred_check_branch
          %439 = sbr.rel (%p437) target = $region72
        $region71: #{tpu_custom_call.1} parent=59 // pred_region
          %p440 = scmp.lt.s32.totalorder %s26, 1
          %s441 = scalar_select %p440, %s26, 1
          %s442 = smul.addr %s441, 8
          %s443 = scalar_lea.vmem %s2, %s442
        $region72: #{tpu_custom_call.1} parent=59 // pred_fallthru
          _
      $region60: #{tpu_custom_call.1} parent=5 // pred_fallthru
        _
      %p444 = scmp.le.s32.totalorder 1, %s26
      %p445 = scmp.lt.s32.totalorder %s26, 3
      %p446 = pnand %p444, %p445
      %p447 = pneg %p446
      // Predicated region
      $region73: #{tpu_custom_call.1} parent=5 // pred_check
        _
      $region74: #{tpu_custom_call.1} parent=5 // pred_check_branch
        %449 = sbr.rel (%p446) target = $region76
      $region75: #{tpu_custom_call.1} parent=5 // pred_region
        %s450 = ssub.s32 %s26, 1
        // Predicated region
        $region77: #{tpu_custom_call.1} parent=75 // pred_check
          %p451 = pneg %p230
        $region78: #{tpu_custom_call.1} parent=75 // pred_check_branch
          %453 = sbr.rel (%p451) target = $region80
        $region79: #{tpu_custom_call.1} parent=75 // pred_region
          %454 = dma.done [#allocation10], 16
        $region80: #{tpu_custom_call.1} parent=75 // pred_fallthru
          _
        %455 = sfence
        %p456 = scmp.lt.s32.totalorder %s31, 1
        %s457 = scalar_select %p456, %s31, 1
        %s458 = smul.addr %s457, 2
        %s459 = smul.addr %s458, 8
        %s460 = scalar_lea.vmem %s0, %s459
        %p461 = pneg %p52
        %p462 = pneg %p49
        %p463 = scmp.lt.s32.totalorder %s31, 1
        %s464 = scalar_select %p463, %s31, 1
        %s465 = smul.addr %s464, 32
        %s466 = smul.addr %s465, 8
        %s467 = scalar_lea.vmem %s1, %s466
        %p468 = pneg %p78
        %p469 = pneg %p75
        %p470 = scmp.lt.s32.totalorder %s31, 1
        %s471 = scalar_select %p470, %s31, 1
        %s472 = smul.addr %s471, 8
        %s473 = scalar_lea.vmem %s2, %s472
        %p474 = pneg %p104
        %p475 = pneg %p101
        %p476 = pneg %p125
        %p477 = pneg %p122
        %p478 = pneg %p146
        %p479 = pneg %p143
        %p480 = pneg %p167
        %p481 = pneg %p164
        %p482 = pneg %p188
        %p483 = pneg %p185
        %p484 = pneg %p209
        %p485 = pneg %p206
        %p486 = pneg %p230
        %p487 = pneg %p227
        %p488 = pneg %p251
        %p489 = pneg %p248
        %p490 = pneg %p272
        %p491 = pneg %p269
        %p492 = pneg %p293
        %p493 = pneg %p290
        %p494 = pneg %p314
        %p495 = pneg %p311
        %p496 = pneg %p335
        %p497 = pneg %p332
        %p498 = pneg %p361
        %p499 = pneg %p358
        %s500 = sand.u32 %s348, 1
        %s501 = scalar_lea.sflag [#allocation9], %s500
        %s502 = sand.u32 %s348, 1
        %s503 = smul.addr %s502, 256
        %s504 = scalar_lea.vmem [#allocation11], %s503
        %p505 = scmp.lt.s32.totalorder %s31, 1
        %s506 = scalar_select %p505, %s31, 1
        %s507 = smul.addr %s506, 2
        %s508 = smul.addr %s507, 8
        %s509 = scalar_lea.vmem %s0, %s508
        %p510 = scmp.lt.s32.totalorder %s31, 1
        %s511 = scalar_select %p510, %s31, 1
        %s512 = smul.addr %s511, 32
        %s513 = smul.addr %s512, 8
        %s514 = scalar_lea.vmem %s1, %s513
        %p515 = scmp.lt.s32.totalorder %s31, 1
        %s516 = scalar_select %p515, %s31, 1
        %s517 = smul.addr %s516, 8
        %s518 = scalar_lea.vmem %s2, %s517
        %v519 = vld [vmem:[%s514] sm:$0xff]
        %v520 = vld [vmem:[%s514 + $0x8] sm:$0xff]
        %v521 = vld [vmem:[%s514 + $0x10] sm:$0xff]
        %v522 = vld [vmem:[%s514 + $0x18] sm:$0xff]
        %v523 = vld [vmem:[%s514 + $0x20] sm:$0xff]
        %v524 = vld [vmem:[%s514 + $0x28] sm:$0xff]
        %v525 = vld [vmem:[%s514 + $0x30] sm:$0xff]
        %v526 = vld [vmem:[%s514 + $0x38] sm:$0xff]
        %v527 = vld [vmem:[%s514 + $0x40] sm:$0xff]
        %v528 = vld [vmem:[%s514 + $0x48] sm:$0xff]
        %v529 = vld [vmem:[%s514 + $0x50] sm:$0xff]
        %v530 = vld [vmem:[%s514 + $0x58] sm:$0xff]
        %v531 = vld [vmem:[%s514 + $0x60] sm:$0xff]
        %v532 = vld [vmem:[%s514 + $0x68] sm:$0xff]
        %v533 = vld [vmem:[%s514 + $0x70] sm:$0xff]
        %v534 = vld [vmem:[%s514 + $0x78] sm:$0xff]
        %v535 = vld [vmem:[%s514 + $0x80] sm:$0xff]
        %v536 = vld [vmem:[%s514 + $0x88] sm:$0xff]
        %v537 = vld [vmem:[%s514 + $0x90] sm:$0xff]
        %v538 = vld [vmem:[%s514 + $0x98] sm:$0xff]
        %v539 = vld [vmem:[%s514 + $0xa0] sm:$0xff]
        %v540 = vld [vmem:[%s514 + $0xa8] sm:$0xff]
        %v541 = vld [vmem:[%s514 + $0xb0] sm:$0xff]
        %v542 = vld [vmem:[%s514 + $0xb8] sm:$0xff]
        %v543 = vld [vmem:[%s514 + $0xc0] sm:$0xff]
        %v544 = vld [vmem:[%s514 + $0xc8] sm:$0xff]
        %v545 = vld [vmem:[%s514 + $0xd0] sm:$0xff]
        %v546 = vld [vmem:[%s514 + $0xd8] sm:$0xff]
        %v547 = vld [vmem:[%s514 + $0xe0] sm:$0xff]
        %v548 = vld [vmem:[%s514 + $0xe8] sm:$0xff]
        %v549 = vld [vmem:[%s514 + $0xf0] sm:$0xff]
        %v550 = vld [vmem:[%s514 + $0xf8] sm:$0xff]
        %v551 = vld [vmem:[%s509] sm:$0xff]
        %v552 = vld [vmem:[%s509 + $0x8] sm:$0xff]
        %v553 = vxor.u32 %v551, 2147483648
        %v554 = vxor.u32 %v552, 2147483648
        %v555 = vmul.f32 %v553, 1.442695
        %v556 = vpow.pop %v555
        %v557 = vmul.f32 %v554, 1.442695
        %v558 = vpow.pop %v557
        %v559 = vadd.f32 %v556, 1.0
        %v560 = vadd.f32 %v558, 1.0
        %v561 = vrcp.pop %v559
        %v562 = vmul.f32 1.0, %v561
        %v563 = vrcp.pop %v560
        %v564 = vmul.f32 1.0, %v563
        %v565 = vsub.f32 1.0, %v562
        %v566 = vsub.f32 1.0, %v564
        %v567 = vlaneseq
        %v568 = vshrl.u32 %v567, 7
        %v569 = vsub.s32 0, %v568
        %v570 = vrot.slane %v565, %v569
        %572 = vbcast.lane.b32.xlu0 %v570, 256
        %v573 = vpop.permute.xlu0 %572
        %s575 = sor.u32 256, 8
        %576 = vbcast.lane.b32.xlu0 %v570, %s575
        %v577 = vpop.permute.xlu0 %576
        %v578 = vlaneseq
        %v579 = vshrl.u32 %v578, 7
        %v580 = vsub.s32 1, %v579
        %v581 = vrot.slane %v565, %v580
        %583 = vbcast.lane.b32.xlu0 %v581, 256
        %v584 = vpop.permute.xlu0 %583
        %s586 = sor.u32 256, 8
        %587 = vbcast.lane.b32.xlu0 %v581, %s586
        %v588 = vpop.permute.xlu0 %587
        %v589 = vlaneseq
        %v590 = vshrl.u32 %v589, 7
        %v591 = vsub.s32 2, %v590
        %v592 = vrot.slane %v565, %v591
        %594 = vbcast.lane.b32.xlu0 %v592, 256
        %v595 = vpop.permute.xlu0 %594
        %s597 = sor.u32 256, 8
        %598 = vbcast.lane.b32.xlu0 %v592, %s597
        %v599 = vpop.permute.xlu0 %598
        %v600 = vlaneseq
        %v601 = vshrl.u32 %v600, 7
        %v602 = vsub.s32 3, %v601
        %v603 = vrot.slane %v565, %v602
        %605 = vbcast.lane.b32.xlu0 %v603, 256
        %v606 = vpop.permute.xlu0 %605
        %s608 = sor.u32 256, 8
        %609 = vbcast.lane.b32.xlu0 %v603, %s608
        %v610 = vpop.permute.xlu0 %609
        %v611 = vlaneseq
        %v612 = vshrl.u32 %v611, 7
        %v613 = vsub.s32 4, %v612
        %v614 = vrot.slane %v565, %v613
        %616 = vbcast.lane.b32.xlu0 %v614, 256
        %v617 = vpop.permute.xlu0 %616
        %s619 = sor.u32 256, 8
        %620 = vbcast.lane.b32.xlu0 %v614, %s619
        %v621 = vpop.permute.xlu0 %620
        %v622 = vlaneseq
        %v623 = vshrl.u32 %v622, 7
        %v624 = vsub.s32 5, %v623
        %v625 = vrot.slane %v565, %v624
        %627 = vbcast.lane.b32.xlu0 %v625, 256
        %v628 = vpop.permute.xlu0 %627
        %s630 = sor.u32 256, 8
        %631 = vbcast.lane.b32.xlu0 %v625, %s630
        %v632 = vpop.permute.xlu0 %631
        %v633 = vlaneseq
        %v634 = vshrl.u32 %v633, 7
        %v635 = vsub.s32 6, %v634
        %v636 = vrot.slane %v565, %v635
        %638 = vbcast.lane.b32.xlu0 %v636, 256
        %v639 = vpop.permute.xlu0 %638
        %s641 = sor.u32 256, 8
        %642 = vbcast.lane.b32.xlu0 %v636, %s641
        %v643 = vpop.permute.xlu0 %642
        %v644 = vlaneseq
        %v645 = vshrl.u32 %v644, 7
        %v646 = vsub.s32 7, %v645
        %v647 = vrot.slane %v565, %v646
        %649 = vbcast.lane.b32.xlu0 %v647, 256
        %v650 = vpop.permute.xlu0 %649
        %s652 = sor.u32 256, 8
        %653 = vbcast.lane.b32.xlu0 %v647, %s652
        %v654 = vpop.permute.xlu0 %653
        %v655 = vlaneseq
        %v656 = vshrl.u32 %v655, 7
        %v657 = vsub.s32 0, %v656
        %v658 = vrot.slane %v566, %v657
        %660 = vbcast.lane.b32.xlu0 %v658, 256
        %v661 = vpop.permute.xlu0 %660
        %s663 = sor.u32 256, 8
        %664 = vbcast.lane.b32.xlu0 %v658, %s663
        %v665 = vpop.permute.xlu0 %664
        %v666 = vlaneseq
        %v667 = vshrl.u32 %v666, 7
        %v668 = vsub.s32 1, %v667
        %v669 = vrot.slane %v566, %v668
        %671 = vbcast.lane.b32.xlu0 %v669, 256
        %v672 = vpop.permute.xlu0 %671
        %s674 = sor.u32 256, 8
        %675 = vbcast.lane.b32.xlu0 %v669, %s674
        %v676 = vpop.permute.xlu0 %675
        %v677 = vlaneseq
        %v678 = vshrl.u32 %v677, 7
        %v679 = vsub.s32 2, %v678
        %v680 = vrot.slane %v566, %v679
        %682 = vbcast.lane.b32.xlu0 %v680, 256
        %v683 = vpop.permute.xlu0 %682
        %s685 = sor.u32 256, 8
        %686 = vbcast.lane.b32.xlu0 %v680, %s685
        %v687 = vpop.permute.xlu0 %686
        %v688 = vlaneseq
        %v689 = vshrl.u32 %v688, 7
        %v690 = vsub.s32 3, %v689
        %v691 = vrot.slane %v566, %v690
        %693 = vbcast.lane.b32.xlu0 %v691, 256
        %v694 = vpop.permute.xlu0 %693
        %s696 = sor.u32 256, 8
        %697 = vbcast.lane.b32.xlu0 %v691, %s696
        %v698 = vpop.permute.xlu0 %697
        %v699 = vlaneseq
        %v700 = vshrl.u32 %v699, 7
        %v701 = vsub.s32 4, %v700
        %v702 = vrot.slane %v566, %v701
        %704 = vbcast.lane.b32.xlu0 %v702, 256
        %v705 = vpop.permute.xlu0 %704
        %s707 = sor.u32 256, 8
        %708 = vbcast.lane.b32.xlu0 %v702, %s707
        %v709 = vpop.permute.xlu0 %708
        %v710 = vlaneseq
        %v711 = vshrl.u32 %v710, 7
        %v712 = vsub.s32 5, %v711
        %v713 = vrot.slane %v566, %v712
        %715 = vbcast.lane.b32.xlu0 %v713, 256
        %v716 = vpop.permute.xlu0 %715
        %s718 = sor.u32 256, 8
        %719 = vbcast.lane.b32.xlu0 %v713, %s718
        %v720 = vpop.permute.xlu0 %719
        %v721 = vlaneseq
        %v722 = vshrl.u32 %v721, 7
        %v723 = vsub.s32 6, %v722
        %v724 = vrot.slane %v566, %v723
        %726 = vbcast.lane.b32.xlu0 %v724, 256
        %v727 = vpop.permute.xlu0 %726
        %s729 = sor.u32 256, 8
        %730 = vbcast.lane.b32.xlu0 %v724, %s729
        %v731 = vpop.permute.xlu0 %730
        %v732 = vlaneseq
        %v733 = vshrl.u32 %v732, 7
        %v734 = vsub.s32 7, %v733
        %v735 = vrot.slane %v566, %v734
        %737 = vbcast.lane.b32.xlu0 %v735, 256
        %v738 = vpop.permute.xlu0 %737
        %s740 = sor.u32 256, 8
        %741 = vbcast.lane.b32.xlu0 %v735, %s740
        %v742 = vpop.permute.xlu0 %741
        %v743 = vmul.f32 %v519, %v573
        %v744 = vmul.f32 %v520, %v577
        %v745 = vmul.f32 %v521, %v584
        %v746 = vmul.f32 %v522, %v588
        %v747 = vmul.f32 %v523, %v595
        %v748 = vmul.f32 %v524, %v599
        %v749 = vmul.f32 %v525, %v606
        %v750 = vmul.f32 %v526, %v610
        %v751 = vmul.f32 %v527, %v617
        %v752 = vmul.f32 %v528, %v621
        %v753 = vmul.f32 %v529, %v628
        %v754 = vmul.f32 %v530, %v632
        %v755 = vmul.f32 %v531, %v639
        %v756 = vmul.f32 %v532, %v643
        %v757 = vmul.f32 %v533, %v650
        %v758 = vmul.f32 %v534, %v654
        %v759 = vmul.f32 %v535, %v661
        %v760 = vmul.f32 %v536, %v665
        %v761 = vmul.f32 %v537, %v672
        %v762 = vmul.f32 %v538, %v676
        %v763 = vmul.f32 %v539, %v683
        %v764 = vmul.f32 %v540, %v687
        %v765 = vmul.f32 %v541, %v694
        %v766 = vmul.f32 %v542, %v698
        %v767 = vmul.f32 %v543, %v705
        %v768 = vmul.f32 %v544, %v709
        %v769 = vmul.f32 %v545, %v716
        %v770 = vmul.f32 %v546, %v720
        %v771 = vmul.f32 %v547, %v727
        %v772 = vmul.f32 %v548, %v731
        %v773 = vmul.f32 %v549, %v738
        %v774 = vmul.f32 %v550, %v742
        %777 = vrot.lane.b32.xlu0 %v562, 2
        %v778 = vpop.permute.xlu0 %777
        %779 = vrot.lane.b32.xlu0 %v564, 2
        %v780 = vpop.permute.xlu0 %779
        %vm783 = vcmask 146448
        %784 = vst.msk [vmem:[#allocation2 + $0x2] sm:$0xff] %vm783, %v778
        %785 = vst.msk [vmem:[#allocation2 + $0xa] sm:$0xff] %vm783, %v780
        %vm786 = vcmask 141330
        %787 = vst.msk [vmem:[#allocation2 - $0x2] sm:$0x4] %vm786, %v778
        %vm788 = vcmask 140305
        %789 = vst.msk [vmem:[#allocation2] sm:$0x2] %vm788, %v778
        %vm790 = vcmask 145430
        %791 = vst.msk [vmem:[#allocation2 + $0xc] sm:$0x40] %vm790, %v780
        %vm792 = vcmask 144405
        %793 = vst.msk [vmem:[#allocation2 + $0xe] sm:$0x20] %vm792, %v780
        %v794 = vld [vmem:[#allocation2] sm:$0xff]
        %v795 = vld [vmem:[#allocation2 + $0x8] sm:$0xff]
        %v796 = vld [vmem:[#allocation2 + $0x10] sm:$0xf]
        %800 = vrot.lane.b32.xlu0 %v794, 124
        %v801 = vpop.permute.xlu0 %800
        %802 = vrot.lane.b32.xlu0 %v795, 124
        %v803 = vpop.permute.xlu0 %802
        %804 = vrot.lane.b32.xlu0 %v796, 124
        %v805 = vpop.permute.xlu0 %804
        %vm809 = vcmask 7168
        %810 = vst.msk [vmem:[#allocation2] sm:$0xff] %vm809, %v801
        %811 = vst.msk [vmem:[#allocation2 + $0x8] sm:$0xff] %vm809, %v803
        %vm812 = vcmask 3072
        %813 = vst.msk [vmem:[#allocation2 + $0x10] sm:$0xf] %vm812, %v805
        %v814 = vld [vmem:[#allocation2] sm:$0xff]
        %v815 = vld [vmem:[#allocation2 + $0x8] sm:$0xff]
        %v816 = vld [vmem:[#allocation2 + $0x10] sm:$0xf]
        %820 = vrot.lane.b32.xlu0 %v814, 126
        %v821 = vpop.permute.xlu0 %820
        %822 = vrot.lane.b32.xlu0 %v815, 126
        %v823 = vpop.permute.xlu0 %822
        %824 = vrot.lane.b32.xlu0 %v816, 126
        %v825 = vpop.permute.xlu0 %824
        %vm829 = vcmask 15368
        %830 = vst.msk [vmem:[#allocation2] sm:$0xff] %vm829, %v821
        %831 = vst.msk [vmem:[#allocation2 + $0x8] sm:$0xff] %vm829, %v823
        %vm832 = vcmask 11272
        %833 = vst.msk [vmem:[#allocation2 + $0x10] sm:$0xf] %vm832, %v825
        %v834 = vld [vmem:[#allocation2] sm:$0xff]
        %v835 = vld [vmem:[#allocation2 + $0x8] sm:$0xff]
        %v836 = vld [vmem:[#allocation2 + $0x10] sm:$0xf]
        %840 = vrot.lane.b32.xlu0 %v834, 2
        %v841 = vpop.permute.xlu0 %840
        %842 = vrot.lane.b32.xlu0 %v835, 2
        %v843 = vpop.permute.xlu0 %842
        %844 = vrot.lane.b32.xlu0 %v836, 2
        %v845 = vpop.permute.xlu0 %844
        %vm849 = vcmask 154768
        %850 = vst.msk [vmem:[#allocation2] sm:$0xff] %vm849, %v841
        %851 = vst.msk [vmem:[#allocation2 + $0x8] sm:$0xff] %vm849, %v843
        %vm852 = vcmask 150672
        %853 = vst.msk [vmem:[#allocation2 + $0x10] sm:$0xf] %vm852, %v845
        %v854 = vld [vmem:[#allocation2] sm:$0xff]
        %v855 = vld [vmem:[#allocation2 + $0x8] sm:$0xff]
        %v856 = vld [vmem:[#allocation2 + $0x10] sm:$0xf]
        %860 = vrot.lane.b32.xlu0 %v854, 4
        %v861 = vpop.permute.xlu0 %860
        %862 = vrot.lane.b32.xlu0 %v855, 4
        %v863 = vpop.permute.xlu0 %862
        %864 = vrot.lane.b32.xlu0 %v856, 4
        %v865 = vpop.permute.xlu0 %864
        %vm869 = vcmask 162968
        %870 = vst.msk [vmem:[#allocation2] sm:$0xff] %vm869, %v861
        %871 = vst.msk [vmem:[#allocation2 + $0x8] sm:$0xff] %vm869, %v863
        %vm872 = vcmask 158872
        %873 = vst.msk [vmem:[#allocation2 + $0x10] sm:$0xf] %vm872, %v865
        %v874 = vld [vmem:[#allocation2] sm:$0xff]
        %v875 = vld [vmem:[#allocation2 + $0x8] sm:$0xff]
        %v876 = vld [vmem:[#allocation2 + $0x10] sm:$0xf]
        %v877 = vmul.f32 %v874, 4.0
        %v878 = vmul.f32 %v875, 4.0
        %v879 = vmul.f32 %v876, 4.0
        %883 = vrot.lane.b32.xlu0 %v877, 127
        %v884 = vpop.permute.xlu0 %883
        %885 = vrot.lane.b32.xlu0 %v878, 127
        %v886 = vpop.permute.xlu0 %885
        %887 = vrot.lane.b32.xlu0 %v879, 127
        %v888 = vpop.permute.xlu0 %887
        %v892 = vadd.f32 %v874, %v884
        %v893 = vadd.f32 %v875, %v886
        %v894 = vadd.f32 %v876, %v888
        %v895 = vmul.f32 %v874, 6.0
        %v896 = vmul.f32 %v875, 6.0
        %v897 = vmul.f32 %v876, 6.0
        %901 = vrot.lane.b32.xlu0 %v895, 126
        %v902 = vpop.permute.xlu0 %901
        %903 = vrot.lane.b32.xlu0 %v896, 126
        %v904 = vpop.permute.xlu0 %903
        %905 = vrot.lane.b32.xlu0 %v897, 126
        %v906 = vpop.permute.xlu0 %905
        %v910 = vadd.f32 %v892, %v902
        %v911 = vadd.f32 %v893, %v904
        %v912 = vadd.f32 %v894, %v906
        %913 = vrot.lane.b32.xlu0 %v877, 125
        %v914 = vpop.permute.xlu0 %913
        %915 = vrot.lane.b32.xlu0 %v878, 125
        %v916 = vpop.permute.xlu0 %915
        %917 = vrot.lane.b32.xlu0 %v879, 125
        %v918 = vpop.permute.xlu0 %917
        %v922 = vadd.f32 %v910, %v914
        %v923 = vadd.f32 %v911, %v916
        %v924 = vadd.f32 %v912, %v918
        %928 = vrot.lane.b32.xlu0 %v874, 124
        %v929 = vpop.permute.xlu0 %928
        %930 = vrot.lane.b32.xlu0 %v875, 124
        %v931 = vpop.permute.xlu0 %930
        %932 = vrot.lane.b32.xlu0 %v876, 124
        %v933 = vpop.permute.xlu0 %932
        %v937 = vadd.f32 %v922, %v929
        %v938 = vadd.f32 %v923, %v931
        %v939 = vadd.f32 %v924, %v933
        %v940 = vmul.f32 %v937, 4.0
        %v941 = vmul.f32 %v938, 4.0
        %v942 = vmul.f32 %v939, 4.0
        %vm946 = vcmask 1046528
        %v947 = vrot.slane %v940, 1
        %v948 = vrot.slane %v941, 1
        %v949 = vsel %vm946, %v947, %v948
        %v950 = vrot.slane %v942, 1
        %v951 = vsel %vm946, %v948, %v950
        %v954 = vadd.f32 %v937, %v949
        %v955 = vadd.f32 %v938, %v951
        %v956 = vmul.f32 %v937, 6.0
        %v957 = vmul.f32 %v938, 6.0
        %v958 = vmul.f32 %v939, 6.0
        %vm962 = vcmask 1045504
        %v963 = vrot.slane %v956, 2
        %v964 = vrot.slane %v957, 2
        %v965 = vsel %vm962, %v963, %v964
        %v966 = vrot.slane %v958, 2
        %v967 = vsel %vm962, %v964, %v966
        %v970 = vadd.f32 %v954, %v965
        %v971 = vadd.f32 %v955, %v967
        %vm972 = vcmask 1044480
        %v973 = vrot.slane %v940, 3
        %v974 = vrot.slane %v941, 3
        %v975 = vsel %vm972, %v973, %v974
        %v976 = vrot.slane %v942, 3
        %v977 = vsel %vm972, %v974, %v976
        %v980 = vadd.f32 %v970, %v975
        %v981 = vadd.f32 %v971, %v977
        %vm985 = vcmask 1043456
        %v986 = vrot.slane %v937, 4
        %v987 = vrot.slane %v938, 4
        %v988 = vsel %vm985, %v986, %v987
        %v989 = vrot.slane %v939, 4
        %v990 = vsel %vm985, %v987, %v989
        %v993 = vadd.f32 %v980, %v988
        %v994 = vadd.f32 %v981, %v990
        %v995 = vmul.f32 %v993, 0.00390625
        %v996 = vmul.f32 %v994, 0.00390625
        %v997 = vlaneseq
        %v998 = vshrl.u32 %v997, 7
        %v999 = vadd.s32 %v998, 8
        %v1000 = vlaneseq
        %v1001 = vand.u32 %v1000, 127
        %v1002 = vand.u32 %v998, 1
        %v1003 = vand.u32 %v999, 1
        %vm1004 = vcmp.eq.s32.totalorder %v1002, 0
        %vm1005 = vcmp.eq.s32.totalorder %v1003, 0
        %v1006 = vand.u32 %v1001, 1
        %vm1007 = vcmp.eq.s32.totalorder %v1006, 0
        %vm1008 = vmand %vm1004, %vm1007
        %vm1009 = vmand %vm1005, %vm1007
        %v1010 = vsel %vm1008, %v995, 0.0
        %v1011 = vsel %vm1009, %v996, 0.0
        %1014 = vrot.lane.b32.xlu0 %v1010, 2
        %v1015 = vpop.permute.xlu0 %1014
        %1016 = vrot.lane.b32.xlu0 %v1011, 2
        %v1017 = vpop.permute.xlu0 %1016
        %1020 = vst.msk [vmem:[#allocation2 + $0x2] sm:$0xff] %vm783, %v1015
        %1021 = vst.msk [vmem:[#allocation2 + $0xa] sm:$0xff] %vm783, %v1017
        %1022 = vst.msk [vmem:[#allocation2 - $0x2] sm:$0x4] %vm786, %v1015
        %1023 = vst.msk [vmem:[#allocation2] sm:$0x2] %vm788, %v1015
        %1024 = vst.msk [vmem:[#allocation2 + $0xc] sm:$0x40] %vm790, %v1017
        %1025 = vst.msk [vmem:[#allocation2 + $0xe] sm:$0x20] %vm792, %v1017
        %v1026 = vld [vmem:[#allocation2] sm:$0xff]
        %v1027 = vld [vmem:[#allocation2 + $0x8] sm:$0xff]
        %v1028 = vld [vmem:[#allocation2 + $0x10] sm:$0xf]
        %1032 = vrot.lane.b32.xlu0 %v1026, 124
        %v1033 = vpop.permute.xlu0 %1032
        %1034 = vrot.lane.b32.xlu0 %v1027, 124
        %v1035 = vpop.permute.xlu0 %1034
        %1036 = vrot.lane.b32.xlu0 %v1028, 124
        %v1037 = vpop.permute.xlu0 %1036
        %1041 = vst.msk [vmem:[#allocation2] sm:$0xff] %vm809, %v1033
        %1042 = vst.msk [vmem:[#allocation2 + $0x8] sm:$0xff] %vm809, %v1035
        %1043 = vst.msk [vmem:[#allocation2 + $0x10] sm:$0xf] %vm812, %v1037
        %v1044 = vld [vmem:[#allocation2] sm:$0xff]
        %v1045 = vld [vmem:[#allocation2 + $0x8] sm:$0xff]
        %v1046 = vld [vmem:[#allocation2 + $0x10] sm:$0xf]
        %1050 = vrot.lane.b32.xlu0 %v1044, 126
        %v1051 = vpop.permute.xlu0 %1050
        %1052 = vrot.lane.b32.xlu0 %v1045, 126
        %v1053 = vpop.permute.xlu0 %1052
        %1054 = vrot.lane.b32.xlu0 %v1046, 126
        %v1055 = vpop.permute.xlu0 %1054
        %1059 = vst.msk [vmem:[#allocation2] sm:$0xff] %vm829, %v1051
        %1060 = vst.msk [vmem:[#allocation2 + $0x8] sm:$0xff] %vm829, %v1053
        %1061 = vst.msk [vmem:[#allocation2 + $0x10] sm:$0xf] %vm832, %v1055
        %v1062 = vld [vmem:[#allocation2] sm:$0xff]
        %v1063 = vld [vmem:[#allocation2 + $0x8] sm:$0xff]
        %v1064 = vld [vmem:[#allocation2 + $0x10] sm:$0xf]
        %1068 = vrot.lane.b32.xlu0 %v1062, 2
        %v1069 = vpop.permute.xlu0 %1068
        %1070 = vrot.lane.b32.xlu0 %v1063, 2
        %v1071 = vpop.permute.xlu0 %1070
        %1072 = vrot.lane.b32.xlu0 %v1064, 2
        %v1073 = vpop.permute.xlu0 %1072
        %1077 = vst.msk [vmem:[#allocation2] sm:$0xff] %vm849, %v1069
        %1078 = vst.msk [vmem:[#allocation2 + $0x8] sm:$0xff] %vm849, %v1071
        %1079 = vst.msk [vmem:[#allocation2 + $0x10] sm:$0xf] %vm852, %v1073
        %v1080 = vld [vmem:[#allocation2] sm:$0xff]
        %v1081 = vld [vmem:[#allocation2 + $0x8] sm:$0xff]
        %v1082 = vld [vmem:[#allocation2 + $0x10] sm:$0xf]
        %1086 = vrot.lane.b32.xlu0 %v1080, 4
        %v1087 = vpop.permute.xlu0 %1086
        %1088 = vrot.lane.b32.xlu0 %v1081, 4
        %v1089 = vpop.permute.xlu0 %1088
        %1090 = vrot.lane.b32.xlu0 %v1082, 4
        %v1091 = vpop.permute.xlu0 %1090
        %1095 = vst.msk [vmem:[#allocation2] sm:$0xff] %vm869, %v1087
        %1096 = vst.msk [vmem:[#allocation2 + $0x8] sm:$0xff] %vm869, %v1089
        %1097 = vst.msk [vmem:[#allocation2 + $0x10] sm:$0xf] %vm872, %v1091
        %v1098 = vld [vmem:[#allocation2] sm:$0xff]
        %v1099 = vld [vmem:[#allocation2 + $0x8] sm:$0xff]
        %v1100 = vld [vmem:[#allocation2 + $0x10] sm:$0xf]
        %v1101 = vmul.f32 %v1098, 4.0
        %v1102 = vmul.f32 %v1099, 4.0
        %v1103 = vmul.f32 %v1100, 4.0
        %1107 = vrot.lane.b32.xlu0 %v1101, 127
        %v1108 = vpop.permute.xlu0 %1107
        %1109 = vrot.lane.b32.xlu0 %v1102, 127
        %v1110 = vpop.permute.xlu0 %1109
        %1111 = vrot.lane.b32.xlu0 %v1103, 127
        %v1112 = vpop.permute.xlu0 %1111
        %v1116 = vadd.f32 %v1098, %v1108
        %v1117 = vadd.f32 %v1099, %v1110
        %v1118 = vadd.f32 %v1100, %v1112
        %v1119 = vmul.f32 %v1098, 6.0
        %v1120 = vmul.f32 %v1099, 6.0
        %v1121 = vmul.f32 %v1100, 6.0
        %1125 = vrot.lane.b32.xlu0 %v1119, 126
        %v1126 = vpop.permute.xlu0 %1125
        %1127 = vrot.lane.b32.xlu0 %v1120, 126
        %v1128 = vpop.permute.xlu0 %1127
        %1129 = vrot.lane.b32.xlu0 %v1121, 126
        %v1130 = vpop.permute.xlu0 %1129
        %v1134 = vadd.f32 %v1116, %v1126
        %v1135 = vadd.f32 %v1117, %v1128
        %v1136 = vadd.f32 %v1118, %v1130
        %1137 = vrot.lane.b32.xlu0 %v1101, 125
        %v1138 = vpop.permute.xlu0 %1137
        %1139 = vrot.lane.b32.xlu0 %v1102, 125
        %v1140 = vpop.permute.xlu0 %1139
        %1141 = vrot.lane.b32.xlu0 %v1103, 125
        %v1142 = vpop.permute.xlu0 %1141
        %v1146 = vadd.f32 %v1134, %v1138
        %v1147 = vadd.f32 %v1135, %v1140
        %v1148 = vadd.f32 %v1136, %v1142
        %1152 = vrot.lane.b32.xlu0 %v1098, 124
        %v1153 = vpop.permute.xlu0 %1152
        %1154 = vrot.lane.b32.xlu0 %v1099, 124
        %v1155 = vpop.permute.xlu0 %1154
        %1156 = vrot.lane.b32.xlu0 %v1100, 124
        %v1157 = vpop.permute.xlu0 %1156
        %v1161 = vadd.f32 %v1146, %v1153
        %v1162 = vadd.f32 %v1147, %v1155
        %v1163 = vadd.f32 %v1148, %v1157
        %v1164 = vmul.f32 %v1161, 4.0
        %v1165 = vmul.f32 %v1162, 4.0
        %v1166 = vmul.f32 %v1163, 4.0
        %v1170 = vrot.slane %v1164, 1
        %v1171 = vrot.slane %v1165, 1
        %v1172 = vsel %vm946, %v1170, %v1171
        %v1173 = vrot.slane %v1166, 1
        %v1174 = vsel %vm946, %v1171, %v1173
        %v1177 = vadd.f32 %v1161, %v1172
        %v1178 = vadd.f32 %v1162, %v1174
        %v1179 = vmul.f32 %v1161, 6.0
        %v1180 = vmul.f32 %v1162, 6.0
        %v1181 = vmul.f32 %v1163, 6.0
        %v1185 = vrot.slane %v1179, 2
        %v1186 = vrot.slane %v1180, 2
        %v1187 = vsel %vm962, %v1185, %v1186
        %v1188 = vrot.slane %v1181, 2
        %v1189 = vsel %vm962, %v1186, %v1188
        %v1192 = vadd.f32 %v1177, %v1187
        %v1193 = vadd.f32 %v1178, %v1189
        %v1194 = vrot.slane %v1164, 3
        %v1195 = vrot.slane %v1165, 3
        %v1196 = vsel %vm972, %v1194, %v1195
        %v1197 = vrot.slane %v1166, 3
        %v1198 = vsel %vm972, %v1195, %v1197
        %v1201 = vadd.f32 %v1192, %v1196
        %v1202 = vadd.f32 %v1193, %v1198
        %v1206 = vrot.slane %v1161, 4
        %v1207 = vrot.slane %v1162, 4
        %v1208 = vsel %vm985, %v1206, %v1207
        %v1209 = vrot.slane %v1163, 4
        %v1210 = vsel %vm985, %v1207, %v1209
        %v1213 = vadd.f32 %v1201, %v1208
        %v1214 = vadd.f32 %v1202, %v1210
        %v1215 = vmul.f32 %v1213, 0.015625
        %v1216 = vmul.f32 %v1214, 0.015625
        %v1217 = vsub.f32 %v562, %v1215
        %v1218 = vsub.f32 %v564, %v1216
        %v1219 = vlaneseq
        %v1220 = vshrl.u32 %v1219, 7
        %v1221 = vsub.s32 0, %v1220
        %v1222 = vrot.slane %v1217, %v1221
        %1224 = vbcast.lane.b32.xlu0 %v1222, 256
        %v1225 = vpop.permute.xlu0 %1224
        %s1227 = sor.u32 256, 8
        %1228 = vbcast.lane.b32.xlu0 %v1222, %s1227
        %v1229 = vpop.permute.xlu0 %1228
        %v1230 = vlaneseq
        %v1231 = vshrl.u32 %v1230, 7
        %v1232 = vsub.s32 1, %v1231
        %v1233 = vrot.slane %v1217, %v1232
        %1235 = vbcast.lane.b32.xlu0 %v1233, 256
        %v1236 = vpop.permute.xlu0 %1235
        %s1238 = sor.u32 256, 8
        %1239 = vbcast.lane.b32.xlu0 %v1233, %s1238
        %v1240 = vpop.permute.xlu0 %1239
        %v1241 = vlaneseq
        %v1242 = vshrl.u32 %v1241, 7
        %v1243 = vsub.s32 2, %v1242
        %v1244 = vrot.slane %v1217, %v1243
        %1246 = vbcast.lane.b32.xlu0 %v1244, 256
        %v1247 = vpop.permute.xlu0 %1246
        %s1249 = sor.u32 256, 8
        %1250 = vbcast.lane.b32.xlu0 %v1244, %s1249
        %v1251 = vpop.permute.xlu0 %1250
        %v1252 = vlaneseq
        %v1253 = vshrl.u32 %v1252, 7
        %v1254 = vsub.s32 3, %v1253
        %v1255 = vrot.slane %v1217, %v1254
        %1257 = vbcast.lane.b32.xlu0 %v1255, 256
        %v1258 = vpop.permute.xlu0 %1257
        %s1260 = sor.u32 256, 8
        %1261 = vbcast.lane.b32.xlu0 %v1255, %s1260
        %v1262 = vpop.permute.xlu0 %1261
        %v1263 = vlaneseq
        %v1264 = vshrl.u32 %v1263, 7
        %v1265 = vsub.s32 4, %v1264
        %v1266 = vrot.slane %v1217, %v1265
        %1268 = vbcast.lane.b32.xlu0 %v1266, 256
        %v1269 = vpop.permute.xlu0 %1268
        %s1271 = sor.u32 256, 8
        %1272 = vbcast.lane.b32.xlu0 %v1266, %s1271
        %v1273 = vpop.permute.xlu0 %1272
        %v1274 = vlaneseq
        %v1275 = vshrl.u32 %v1274, 7
        %v1276 = vsub.s32 5, %v1275
        %v1277 = vrot.slane %v1217, %v1276
        %1279 = vbcast.lane.b32.xlu0 %v1277, 256
        %v1280 = vpop.permute.xlu0 %1279
        %s1282 = sor.u32 256, 8
        %1283 = vbcast.lane.b32.xlu0 %v1277, %s1282
        %v1284 = vpop.permute.xlu0 %1283
        %v1285 = vlaneseq
        %v1286 = vshrl.u32 %v1285, 7
        %v1287 = vsub.s32 6, %v1286
        %v1288 = vrot.slane %v1217, %v1287
        %1290 = vbcast.lane.b32.xlu0 %v1288, 256
        %v1291 = vpop.permute.xlu0 %1290
        %s1293 = sor.u32 256, 8
        %1294 = vbcast.lane.b32.xlu0 %v1288, %s1293
        %v1295 = vpop.permute.xlu0 %1294
        %v1296 = vlaneseq
        %v1297 = vshrl.u32 %v1296, 7
        %v1298 = vsub.s32 7, %v1297
        %v1299 = vrot.slane %v1217, %v1298
        %1301 = vbcast.lane.b32.xlu0 %v1299, 256
        %v1302 = vpop.permute.xlu0 %1301
        %s1304 = sor.u32 256, 8
        %1305 = vbcast.lane.b32.xlu0 %v1299, %s1304
        %v1306 = vpop.permute.xlu0 %1305
        %v1307 = vlaneseq
        %v1308 = vshrl.u32 %v1307, 7
        %v1309 = vsub.s32 0, %v1308
        %v1310 = vrot.slane %v1218, %v1309
        %1312 = vbcast.lane.b32.xlu0 %v1310, 256
        %v1313 = vpop.permute.xlu0 %1312
        %s1315 = sor.u32 256, 8
        %1316 = vbcast.lane.b32.xlu0 %v1310, %s1315
        %v1317 = vpop.permute.xlu0 %1316
        %v1318 = vlaneseq
        %v1319 = vshrl.u32 %v1318, 7
        %v1320 = vsub.s32 1, %v1319
        %v1321 = vrot.slane %v1218, %v1320
        %1323 = vbcast.lane.b32.xlu0 %v1321, 256
        %v1324 = vpop.permute.xlu0 %1323
        %s1326 = sor.u32 256, 8
        %1327 = vbcast.lane.b32.xlu0 %v1321, %s1326
        %v1328 = vpop.permute.xlu0 %1327
        %v1329 = vlaneseq
        %v1330 = vshrl.u32 %v1329, 7
        %v1331 = vsub.s32 2, %v1330
        %v1332 = vrot.slane %v1218, %v1331
        %1334 = vbcast.lane.b32.xlu0 %v1332, 256
        %v1335 = vpop.permute.xlu0 %1334
        %s1337 = sor.u32 256, 8
        %1338 = vbcast.lane.b32.xlu0 %v1332, %s1337
        %v1339 = vpop.permute.xlu0 %1338
        %v1340 = vlaneseq
        %v1341 = vshrl.u32 %v1340, 7
        %v1342 = vsub.s32 3, %v1341
        %v1343 = vrot.slane %v1218, %v1342
        %1345 = vbcast.lane.b32.xlu0 %v1343, 256
        %v1346 = vpop.permute.xlu0 %1345
        %s1348 = sor.u32 256, 8
        %1349 = vbcast.lane.b32.xlu0 %v1343, %s1348
        %v1350 = vpop.permute.xlu0 %1349
        %v1351 = vlaneseq
        %v1352 = vshrl.u32 %v1351, 7
        %v1353 = vsub.s32 4, %v1352
        %v1354 = vrot.slane %v1218, %v1353
        %1356 = vbcast.lane.b32.xlu0 %v1354, 256
        %v1357 = vpop.permute.xlu0 %1356
        %s1359 = sor.u32 256, 8
        %1360 = vbcast.lane.b32.xlu0 %v1354, %s1359
        %v1361 = vpop.permute.xlu0 %1360
        %v1362 = vlaneseq
        %v1363 = vshrl.u32 %v1362, 7
        %v1364 = vsub.s32 5, %v1363
        %v1365 = vrot.slane %v1218, %v1364
        %1367 = vbcast.lane.b32.xlu0 %v1365, 256
        %v1368 = vpop.permute.xlu0 %1367
        %s1370 = sor.u32 256, 8
        %1371 = vbcast.lane.b32.xlu0 %v1365, %s1370
        %v1372 = vpop.permute.xlu0 %1371
        %v1373 = vlaneseq
        %v1374 = vshrl.u32 %v1373, 7
        %v1375 = vsub.s32 6, %v1374
        %v1376 = vrot.slane %v1218, %v1375
        %1378 = vbcast.lane.b32.xlu0 %v1376, 256
        %v1379 = vpop.permute.xlu0 %1378
        %s1381 = sor.u32 256, 8
        %1382 = vbcast.lane.b32.xlu0 %v1376, %s1381
        %v1383 = vpop.permute.xlu0 %1382
        %v1384 = vlaneseq
        %v1385 = vshrl.u32 %v1384, 7
        %v1386 = vsub.s32 7, %v1385
        %v1387 = vrot.slane %v1218, %v1386
        %1389 = vbcast.lane.b32.xlu0 %v1387, 256
        %v1390 = vpop.permute.xlu0 %1389
        %s1392 = sor.u32 256, 8
        %1393 = vbcast.lane.b32.xlu0 %v1387, %s1392
        %v1394 = vpop.permute.xlu0 %1393
        %v1395 = vmul.f32 %v519, %v1225
        %v1396 = vmul.f32 %v520, %v1229
        %v1397 = vmul.f32 %v521, %v1236
        %v1398 = vmul.f32 %v522, %v1240
        %v1399 = vmul.f32 %v523, %v1247
        %v1400 = vmul.f32 %v524, %v1251
        %v1401 = vmul.f32 %v525, %v1258
        %v1402 = vmul.f32 %v526, %v1262
        %v1403 = vmul.f32 %v527, %v1269
        %v1404 = vmul.f32 %v528, %v1273
        %v1405 = vmul.f32 %v529, %v1280
        %v1406 = vmul.f32 %v530, %v1284
        %v1407 = vmul.f32 %v531, %v1291
        %v1408 = vmul.f32 %v532, %v1295
        %v1409 = vmul.f32 %v533, %v1302
        %v1410 = vmul.f32 %v534, %v1306
        %v1411 = vmul.f32 %v535, %v1313
        %v1412 = vmul.f32 %v536, %v1317
        %v1413 = vmul.f32 %v537, %v1324
        %v1414 = vmul.f32 %v538, %v1328
        %v1415 = vmul.f32 %v539, %v1335
        %v1416 = vmul.f32 %v540, %v1339
        %v1417 = vmul.f32 %v541, %v1346
        %v1418 = vmul.f32 %v542, %v1350
        %v1419 = vmul.f32 %v543, %v1357
        %v1420 = vmul.f32 %v544, %v1361
        %v1421 = vmul.f32 %v545, %v1368
        %v1422 = vmul.f32 %v546, %v1372
        %v1423 = vmul.f32 %v547, %v1379
        %v1424 = vmul.f32 %v548, %v1383
        %v1425 = vmul.f32 %v549, %v1390
        %v1426 = vmul.f32 %v550, %v1394
        %v1427 = vld [vmem:[%s518] sm:$0xff]
        %v1428 = vld [vmem:[%s3] sm:$0xff]
        %v1429 = vld [vmem:[%s3 + $0x8] sm:$0xff]
        %vm1430 = vcmask 64512
        %v1432 = vsel %vm1430, %v1428, 0
        %v1435 = vsel %vm1430, %v1429, 0
        %1437 = vmatprep.subr.mxu0 0.0
        %1438 = vmatpush1.msra.mxu0 %v1427
        %1439 = vmatprep.subr.mxu0 0.0
        %1440 = vmatpush1.msra.mxu0 0.0
        %1441 = vmatprep.subr.mxu0 0.0
        %1442 = vmatpush1.msra.mxu0 0.0
        %1443 = vmatprep.subr.mxu0 0.0
        %1444 = vmatpush1.msra.mxu0 0.0
        %1445 = vmatprep.subr.mxu0 0.0
        %1446 = vmatpush1.msra.mxu0 0.0
        %1447 = vmatprep.subr.mxu0 0.0
        %1448 = vmatpush1.msra.mxu0 0.0
        %1449 = vmatprep.subr.mxu0 0.0
        %1450 = vmatpush1.msra.mxu0 0.0
        %1451 = vmatprep.subr.mxu0 0.0
        %1452 = vmatpush1.msra.mxu0 0.0
        %1453 = vmatprep.subr.mxu0 0.0
        %1454 = vmatpush1.msra.mxu0 0.0
        %1455 = vmatprep.subr.mxu0 0.0
        %1456 = vmatpush1.msra.mxu0 0.0
        %1457 = vmatprep.subr.mxu0 0.0
        %1458 = vmatpush1.msra.mxu0 0.0
        %1459 = vmatprep.subr.mxu0 0.0
        %1460 = vmatpush1.msra.mxu0 0.0
        %1461 = vmatprep.subr.mxu0 0.0
        %1462 = vmatpush1.msra.mxu0 0.0
        %1463 = vmatprep.subr.mxu0 0.0
        %1464 = vmatpush1.msra.mxu0 0.0
        %1465 = vmatprep.subr.mxu0 0.0
        %1466 = vmatpush1.msra.mxu0 0.0
        %1467 = vmatprep.subr.mxu0 0.0
        %1468 = vmatpush1.msra.mxu0 0.0
        %1469 = vmatprep.subr.mxu0 0.0
        %1470 = vmatpush1.msra.mxu0 0.0
        %1471 = vmatprep.subr.mxu0 0.0
        %1472 = vmatpush1.msra.mxu0 0.0
        %1473 = vmatprep.subr.mxu0 0.0
        %1474 = vmatpush1.msra.mxu0 0.0
        %1475 = vmatprep.subr.mxu0 0.0
        %1476 = vmatpush1.msra.mxu0 0.0
        %1477 = vmatprep.subr.mxu0 0.0
        %1478 = vmatpush1.msra.mxu0 0.0
        %1479 = vmatprep.subr.mxu0 0.0
        %1480 = vmatpush1.msra.mxu0 0.0
        %1481 = vmatprep.subr.mxu0 0.0
        %1482 = vmatpush1.msra.mxu0 0.0
        %1483 = vmatprep.subr.mxu0 0.0
        %1484 = vmatpush1.msra.mxu0 0.0
        %1485 = vmatprep.subr.mxu0 0.0
        %1486 = vmatpush1.msra.mxu0 0.0
        %1487 = vmatprep.subr.mxu0 0.0
        %1488 = vmatpush1.msra.mxu0 0.0
        %1489 = vmatprep.subr.mxu0 0.0
        %1490 = vmatpush1.msra.mxu0 0.0
        %1491 = vmatprep.subr.mxu0 0.0
        %1492 = vmatpush1.msra.mxu0 0.0
        %1493 = vmatprep.subr.mxu0 0.0
        %1494 = vmatpush1.msra.mxu0 0.0
        %1495 = vmatprep.subr.mxu0 0.0
        %1496 = vmatpush1.msra.mxu0 0.0
        %1497 = vmatprep.subr.mxu0 0.0
        %1498 = vmatpush1.msra.mxu0 0.0
        %1499 = vmatprep.subr.mxu0 0.0
        %1500 = vmatpush1.msra.mxu0 0.0
        %1501 = vmatprep.mubr.f32.mxu0 0.0
        %1502 = vmatmul.mubr.f32.gmra.mrb[0].mxu0 %v1432
        %v1503 = vpop.f32.mrb[0].mxu0
        %v1504 = vadd.f32 0.0, %v1503
        %v1505 = vpop.f32.mrb[0].mxu0
        %1506 = vmatprep.mubr.f32.mxu0 0.0
        %1507 = vmatmul.mubr.f32.gmra.mrb[0].mxu0 %v1435
        %v1508 = vpop.f32.mrb[0].mxu0
        %v1509 = vadd.f32 0.0, %v1508
        %v1510 = vpop.f32.mrb[0].mxu0
        %1511 = vdwg.mxu0
        %v1512 = vld [vmem:[%s4] sm:$0xff]
        %v1514 = vsel %vm1430, %v1504, 0
        %v1517 = vsel %vm1430, %v1509, 0
        %1519 = vmatprep.subr.mxu0 0.0
        %1520 = vmatpush1.msra.mxu0 %v1512
        %1521 = vmatprep.subr.mxu0 0.0
        %1522 = vmatpush1.msra.mxu0 0.0
        %1523 = vmatprep.subr.mxu0 0.0
        %1524 = vmatpush1.msra.mxu0 0.0
        %1525 = vmatprep.subr.mxu0 0.0
        %1526 = vmatpush1.msra.mxu0 0.0
        %1527 = vmatprep.subr.mxu0 0.0
        %1528 = vmatpush1.msra.mxu0 0.0
        %1529 = vmatprep.subr.mxu0 0.0
        %1530 = vmatpush1.msra.mxu0 0.0
        %1531 = vmatprep.subr.mxu0 0.0
        %1532 = vmatpush1.msra.mxu0 0.0
        %1533 = vmatprep.subr.mxu0 0.0
        %1534 = vmatpush1.msra.mxu0 0.0
        %1535 = vmatprep.subr.mxu0 0.0
        %1536 = vmatpush1.msra.mxu0 0.0
        %1537 = vmatprep.subr.mxu0 0.0
        %1538 = vmatpush1.msra.mxu0 0.0
        %1539 = vmatprep.subr.mxu0 0.0
        %1540 = vmatpush1.msra.mxu0 0.0
        %1541 = vmatprep.subr.mxu0 0.0
        %1542 = vmatpush1.msra.mxu0 0.0
        %1543 = vmatprep.subr.mxu0 0.0
        %1544 = vmatpush1.msra.mxu0 0.0
        %1545 = vmatprep.subr.mxu0 0.0
        %1546 = vmatpush1.msra.mxu0 0.0
        %1547 = vmatprep.subr.mxu0 0.0
        %1548 = vmatpush1.msra.mxu0 0.0
        %1549 = vmatprep.subr.mxu0 0.0
        %1550 = vmatpush1.msra.mxu0 0.0
        %1551 = vmatprep.subr.mxu0 0.0
        %1552 = vmatpush1.msra.mxu0 0.0
        %1553 = vmatprep.subr.mxu0 0.0
        %1554 = vmatpush1.msra.mxu0 0.0
        %1555 = vmatprep.subr.mxu0 0.0
        %1556 = vmatpush1.msra.mxu0 0.0
        %1557 = vmatprep.subr.mxu0 0.0
        %1558 = vmatpush1.msra.mxu0 0.0
        %1559 = vmatprep.subr.mxu0 0.0
        %1560 = vmatpush1.msra.mxu0 0.0
        %1561 = vmatprep.subr.mxu0 0.0
        %1562 = vmatpush1.msra.mxu0 0.0
        %1563 = vmatprep.subr.mxu0 0.0
        %1564 = vmatpush1.msra.mxu0 0.0
        %1565 = vmatprep.subr.mxu0 0.0
        %1566 = vmatpush1.msra.mxu0 0.0
        %1567 = vmatprep.subr.mxu0 0.0
        %1568 = vmatpush1.msra.mxu0 0.0
        %1569 = vmatprep.subr.mxu0 0.0
        %1570 = vmatpush1.msra.mxu0 0.0
        %1571 = vmatprep.subr.mxu0 0.0
        %1572 = vmatpush1.msra.mxu0 0.0
        %1573 = vmatprep.subr.mxu0 0.0
        %1574 = vmatpush1.msra.mxu0 0.0
        %1575 = vmatprep.subr.mxu0 0.0
        %1576 = vmatpush1.msra.mxu0 0.0
        %1577 = vmatprep.subr.mxu0 0.0
        %1578 = vmatpush1.msra.mxu0 0.0
        %1579 = vmatprep.subr.mxu0 0.0
        %1580 = vmatpush1.msra.mxu0 0.0
        %1581 = vmatprep.subr.mxu0 0.0
        %1582 = vmatpush1.msra.mxu0 0.0
        %1583 = vmatprep.mubr.f32.mxu0 0.0
        %1584 = vmatmul.mubr.f32.gmra.mrb[0].mxu0 %v1514
        %v1585 = vpop.f32.mrb[0].mxu0
        %v1586 = vadd.f32 0.0, %v1585
        %v1587 = vpop.f32.mrb[0].mxu0
        %1588 = vmatprep.mubr.f32.mxu0 0.0
        %1589 = vmatmul.mubr.f32.gmra.mrb[0].mxu0 %v1517
        %v1590 = vpop.f32.mrb[0].mxu0
        %v1591 = vadd.f32 0.0, %v1590
        %v1592 = vpop.f32.mrb[0].mxu0
        %1593 = vdwg.mxu0
        %v1594 = vlaneseq
        %v1595 = vshrl.u32 %v1594, 7
        %v1596 = vsub.s32 0, %v1595
        %v1597 = vrot.slane %v1586, %v1596
        %1599 = vbcast.lane.b32.xlu0 %v1597, 256
        %v1600 = vpop.permute.xlu0 %1599
        %s1602 = sor.u32 256, 8
        %1603 = vbcast.lane.b32.xlu0 %v1597, %s1602
        %v1604 = vpop.permute.xlu0 %1603
        %v1605 = vlaneseq
        %v1606 = vshrl.u32 %v1605, 7
        %v1607 = vsub.s32 1, %v1606
        %v1608 = vrot.slane %v1586, %v1607
        %1610 = vbcast.lane.b32.xlu0 %v1608, 256
        %v1611 = vpop.permute.xlu0 %1610
        %s1613 = sor.u32 256, 8
        %1614 = vbcast.lane.b32.xlu0 %v1608, %s1613
        %v1615 = vpop.permute.xlu0 %1614
        %v1616 = vlaneseq
        %v1617 = vshrl.u32 %v1616, 7
        %v1618 = vsub.s32 2, %v1617
        %v1619 = vrot.slane %v1586, %v1618
        %1621 = vbcast.lane.b32.xlu0 %v1619, 256
        %v1622 = vpop.permute.xlu0 %1621
        %s1624 = sor.u32 256, 8
        %1625 = vbcast.lane.b32.xlu0 %v1619, %s1624
        %v1626 = vpop.permute.xlu0 %1625
        %v1627 = vlaneseq
        %v1628 = vshrl.u32 %v1627, 7
        %v1629 = vsub.s32 3, %v1628
        %v1630 = vrot.slane %v1586, %v1629
        %1632 = vbcast.lane.b32.xlu0 %v1630, 256
        %v1633 = vpop.permute.xlu0 %1632
        %s1635 = sor.u32 256, 8
        %1636 = vbcast.lane.b32.xlu0 %v1630, %s1635
        %v1637 = vpop.permute.xlu0 %1636
        %v1638 = vlaneseq
        %v1639 = vshrl.u32 %v1638, 7
        %v1640 = vsub.s32 4, %v1639
        %v1641 = vrot.slane %v1586, %v1640
        %1643 = vbcast.lane.b32.xlu0 %v1641, 256
        %v1644 = vpop.permute.xlu0 %1643
        %s1646 = sor.u32 256, 8
        %1647 = vbcast.lane.b32.xlu0 %v1641, %s1646
        %v1648 = vpop.permute.xlu0 %1647
        %v1649 = vlaneseq
        %v1650 = vshrl.u32 %v1649, 7
        %v1651 = vsub.s32 5, %v1650
        %v1652 = vrot.slane %v1586, %v1651
        %1654 = vbcast.lane.b32.xlu0 %v1652, 256
        %v1655 = vpop.permute.xlu0 %1654
        %s1657 = sor.u32 256, 8
        %1658 = vbcast.lane.b32.xlu0 %v1652, %s1657
        %v1659 = vpop.permute.xlu0 %1658
        %v1660 = vlaneseq
        %v1661 = vshrl.u32 %v1660, 7
        %v1662 = vsub.s32 6, %v1661
        %v1663 = vrot.slane %v1586, %v1662
        %1665 = vbcast.lane.b32.xlu0 %v1663, 256
        %v1666 = vpop.permute.xlu0 %1665
        %s1668 = sor.u32 256, 8
        %1669 = vbcast.lane.b32.xlu0 %v1663, %s1668
        %v1670 = vpop.permute.xlu0 %1669
        %v1671 = vlaneseq
        %v1672 = vshrl.u32 %v1671, 7
        %v1673 = vsub.s32 7, %v1672
        %v1674 = vrot.slane %v1586, %v1673
        %1676 = vbcast.lane.b32.xlu0 %v1674, 256
        %v1677 = vpop.permute.xlu0 %1676
        %s1679 = sor.u32 256, 8
        %1680 = vbcast.lane.b32.xlu0 %v1674, %s1679
        %v1681 = vpop.permute.xlu0 %1680
        %v1682 = vlaneseq
        %v1683 = vshrl.u32 %v1682, 7
        %v1684 = vsub.s32 0, %v1683
        %v1685 = vrot.slane %v1591, %v1684
        %1687 = vbcast.lane.b32.xlu0 %v1685, 256
        %v1688 = vpop.permute.xlu0 %1687
        %s1690 = sor.u32 256, 8
        %1691 = vbcast.lane.b32.xlu0 %v1685, %s1690
        %v1692 = vpop.permute.xlu0 %1691
        %v1693 = vlaneseq
        %v1694 = vshrl.u32 %v1693, 7
        %v1695 = vsub.s32 1, %v1694
        %v1696 = vrot.slane %v1591, %v1695
        %1698 = vbcast.lane.b32.xlu0 %v1696, 256
        %v1699 = vpop.permute.xlu0 %1698
        %s1701 = sor.u32 256, 8
        %1702 = vbcast.lane.b32.xlu0 %v1696, %s1701
        %v1703 = vpop.permute.xlu0 %1702
        %v1704 = vlaneseq
        %v1705 = vshrl.u32 %v1704, 7
        %v1706 = vsub.s32 2, %v1705
        %v1707 = vrot.slane %v1591, %v1706
        %1709 = vbcast.lane.b32.xlu0 %v1707, 256
        %v1710 = vpop.permute.xlu0 %1709
        %s1712 = sor.u32 256, 8
        %1713 = vbcast.lane.b32.xlu0 %v1707, %s1712
        %v1714 = vpop.permute.xlu0 %1713
        %v1715 = vlaneseq
        %v1716 = vshrl.u32 %v1715, 7
        %v1717 = vsub.s32 3, %v1716
        %v1718 = vrot.slane %v1591, %v1717
        %1720 = vbcast.lane.b32.xlu0 %v1718, 256
        %v1721 = vpop.permute.xlu0 %1720
        %s1723 = sor.u32 256, 8
        %1724 = vbcast.lane.b32.xlu0 %v1718, %s1723
        %v1725 = vpop.permute.xlu0 %1724
        %v1726 = vlaneseq
        %v1727 = vshrl.u32 %v1726, 7
        %v1728 = vsub.s32 4, %v1727
        %v1729 = vrot.slane %v1591, %v1728
        %1731 = vbcast.lane.b32.xlu0 %v1729, 256
        %v1732 = vpop.permute.xlu0 %1731
        %s1734 = sor.u32 256, 8
        %1735 = vbcast.lane.b32.xlu0 %v1729, %s1734
        %v1736 = vpop.permute.xlu0 %1735
        %v1737 = vlaneseq
        %v1738 = vshrl.u32 %v1737, 7
        %v1739 = vsub.s32 5, %v1738
        %v1740 = vrot.slane %v1591, %v1739
        %1742 = vbcast.lane.b32.xlu0 %v1740, 256
        %v1743 = vpop.permute.xlu0 %1742
        %s1745 = sor.u32 256, 8
        %1746 = vbcast.lane.b32.xlu0 %v1740, %s1745
        %v1747 = vpop.permute.xlu0 %1746
        %v1748 = vlaneseq
        %v1749 = vshrl.u32 %v1748, 7
        %v1750 = vsub.s32 6, %v1749
        %v1751 = vrot.slane %v1591, %v1750
        %1753 = vbcast.lane.b32.xlu0 %v1751, 256
        %v1754 = vpop.permute.xlu0 %1753
        %s1756 = sor.u32 256, 8
        %1757 = vbcast.lane.b32.xlu0 %v1751, %s1756
        %v1758 = vpop.permute.xlu0 %1757
        %v1759 = vlaneseq
        %v1760 = vshrl.u32 %v1759, 7
        %v1761 = vsub.s32 7, %v1760
        %v1762 = vrot.slane %v1591, %v1761
        %1764 = vbcast.lane.b32.xlu0 %v1762, 256
        %v1765 = vpop.permute.xlu0 %1764
        %s1767 = sor.u32 256, 8
        %1768 = vbcast.lane.b32.xlu0 %v1762, %s1767
        %v1769 = vpop.permute.xlu0 %1768
        %v1770 = vmul.f32 %v519, %v1600
        %v1771 = vmul.f32 %v520, %v1604
        %v1772 = vmul.f32 %v521, %v1611
        %v1773 = vmul.f32 %v522, %v1615
        %v1774 = vmul.f32 %v523, %v1622
        %v1775 = vmul.f32 %v524, %v1626
        %v1776 = vmul.f32 %v525, %v1633
        %v1777 = vmul.f32 %v526, %v1637
        %v1778 = vmul.f32 %v527, %v1644
        %v1779 = vmul.f32 %v528, %v1648
        %v1780 = vmul.f32 %v529, %v1655
        %v1781 = vmul.f32 %v530, %v1659
        %v1782 = vmul.f32 %v531, %v1666
        %v1783 = vmul.f32 %v532, %v1670
        %v1784 = vmul.f32 %v533, %v1677
        %v1785 = vmul.f32 %v534, %v1681
        %v1786 = vmul.f32 %v535, %v1688
        %v1787 = vmul.f32 %v536, %v1692
        %v1788 = vmul.f32 %v537, %v1699
        %v1789 = vmul.f32 %v538, %v1703
        %v1790 = vmul.f32 %v539, %v1710
        %v1791 = vmul.f32 %v540, %v1714
        %v1792 = vmul.f32 %v541, %v1721
        %v1793 = vmul.f32 %v542, %v1725
        %v1794 = vmul.f32 %v543, %v1732
        %v1795 = vmul.f32 %v544, %v1736
        %v1796 = vmul.f32 %v545, %v1743
        %v1797 = vmul.f32 %v546, %v1747
        %v1798 = vmul.f32 %v547, %v1754
        %v1799 = vmul.f32 %v548, %v1758
        %v1800 = vmul.f32 %v549, %v1765
        %v1801 = vmul.f32 %v550, %v1769
        %vm1802 = vcmask 392192
        %1803 = vst.msk [vmem:[#allocation3] sm:$0xff] %vm1802, 0.0
        %1804 = vst.msk [vmem:[#allocation3 + $0x8] sm:$0xff] %vm1802, 0.0
        %vm1805 = vcmask 386048
        %1806 = vst.msk [vmem:[#allocation3 + $0x10] sm:$0x3] %vm1805, 0.0
        %s1807 = scalar_lea.vmem [#allocation3], 408
        %1808 = vst.msk [vmem:[%s1807] sm:$0xff] %vm1802, 0.0
        %1809 = vst.msk [vmem:[%s1807 + $0x8] sm:$0xff] %vm1802, 0.0
        %1810 = vst.msk [vmem:[%s1807 + $0x10] sm:$0x3] %vm1805, 0.0
        %s1811 = scalar_lea.vmem [#allocation3], 24
        %vm1812 = vcmask 385024
        %1813 = vst.msk [vmem:[%s1811] sm:$0x1] %vm1812, 0.0
        %1814 = vst.msk [vmem:[%s1811 + $0x18] sm:$0x1] %vm1812, 0.0
        %1815 = vst.msk [vmem:[%s1811 + $0x30] sm:$0x1] %vm1812, 0.0
        %1816 = vst.msk [vmem:[%s1811 + $0x48] sm:$0x1] %vm1812, 0.0
        %1817 = vst.msk [vmem:[%s1811 + $0x60] sm:$0x1] %vm1812, 0.0
        %1818 = vst.msk [vmem:[%s1811 + $0x78] sm:$0x1] %vm1812, 0.0
        %1819 = vst.msk [vmem:[%s1811 + $0x90] sm:$0x1] %vm1812, 0.0
        %1820 = vst.msk [vmem:[%s1811 + $0xa8] sm:$0x1] %vm1812, 0.0
        %1821 = vst.msk [vmem:[%s1811 + $0xc0] sm:$0x1] %vm1812, 0.0
        %1822 = vst.msk [vmem:[%s1811 + $0xd8] sm:$0x1] %vm1812, 0.0
        %1823 = vst.msk [vmem:[%s1811 + $0xf0] sm:$0x1] %vm1812, 0.0
        %1824 = vst.msk [vmem:[%s1811 + $0x108] sm:$0x1] %vm1812, 0.0
        %1825 = vst.msk [vmem:[%s1811 + $0x120] sm:$0x1] %vm1812, 0.0
        %1826 = vst.msk [vmem:[%s1811 + $0x138] sm:$0x1] %vm1812, 0.0
        %1827 = vst.msk [vmem:[%s1811 + $0x150] sm:$0x1] %vm1812, 0.0
        %1828 = vst.msk [vmem:[%s1811 + $0x168] sm:$0x1] %vm1812, 0.0
        %1829 = vst.msk [vmem:[%s1811 + $0x11] sm:$0x1] %vm1812, 0.0
        %1830 = vst.msk [vmem:[%s1811 + $0x29] sm:$0x1] %vm1812, 0.0
        %1831 = vst.msk [vmem:[%s1811 + $0x41] sm:$0x1] %vm1812, 0.0
        %1832 = vst.msk [vmem:[%s1811 + $0x59] sm:$0x1] %vm1812, 0.0
        %1833 = vst.msk [vmem:[%s1811 + $0x71] sm:$0x1] %vm1812, 0.0
        %1834 = vst.msk [vmem:[%s1811 + $0x89] sm:$0x1] %vm1812, 0.0
        %1835 = vst.msk [vmem:[%s1811 + $0xa1] sm:$0x1] %vm1812, 0.0
        %1836 = vst.msk [vmem:[%s1811 + $0xb9] sm:$0x1] %vm1812, 0.0
        %1837 = vst.msk [vmem:[%s1811 + $0xd1] sm:$0x1] %vm1812, 0.0
        %1838 = vst.msk [vmem:[%s1811 + $0xe9] sm:$0x1] %vm1812, 0.0
        %1839 = vst.msk [vmem:[%s1811 + $0x101] sm:$0x1] %vm1812, 0.0
        %1840 = vst.msk [vmem:[%s1811 + $0x119] sm:$0x1] %vm1812, 0.0
        %1841 = vst.msk [vmem:[%s1811 + $0x131] sm:$0x1] %vm1812, 0.0
        %1842 = vst.msk [vmem:[%s1811 + $0x149] sm:$0x1] %vm1812, 0.0
        %1843 = vst.msk [vmem:[%s1811 + $0x161] sm:$0x1] %vm1812, 0.0
        %1844 = vst.msk [vmem:[%s1811 + $0x179] sm:$0x1] %vm1812, 0.0
        %vm1845 = vcmask 130048
        %1846 = vst.msk [vmem:[%s1811 + $0x1] sm:$0xff] %vm1845, %v743
        %1847 = vst.msk [vmem:[%s1811 + $0x9] sm:$0xff] %vm1845, %v744
        %1848 = vst.msk [vmem:[%s1811 + $0x19] sm:$0xff] %vm1845, %v745
        %1849 = vst.msk [vmem:[%s1811 + $0x21] sm:$0xff] %vm1845, %v746
        %1850 = vst.msk [vmem:[%s1811 + $0x31] sm:$0xff] %vm1845, %v747
        %1851 = vst.msk [vmem:[%s1811 + $0x39] sm:$0xff] %vm1845, %v748
        %1852 = vst.msk [vmem:[%s1811 + $0x49] sm:$0xff] %vm1845, %v749
        %1853 = vst.msk [vmem:[%s1811 + $0x51] sm:$0xff] %vm1845, %v750
        %1854 = vst.msk [vmem:[%s1811 + $0x61] sm:$0xff] %vm1845, %v751
        %1855 = vst.msk [vmem:[%s1811 + $0x69] sm:$0xff] %vm1845, %v752
        %1856 = vst.msk [vmem:[%s1811 + $0x79] sm:$0xff] %vm1845, %v753
        %1857 = vst.msk [vmem:[%s1811 + $0x81] sm:$0xff] %vm1845, %v754
        %1858 = vst.msk [vmem:[%s1811 + $0x91] sm:$0xff] %vm1845, %v755
        %1859 = vst.msk [vmem:[%s1811 + $0x99] sm:$0xff] %vm1845, %v756
        %1860 = vst.msk [vmem:[%s1811 + $0xa9] sm:$0xff] %vm1845, %v757
        %1861 = vst.msk [vmem:[%s1811 + $0xb1] sm:$0xff] %vm1845, %v758
        %1862 = vst.msk [vmem:[%s1811 + $0xc1] sm:$0xff] %vm1845, %v759
        %1863 = vst.msk [vmem:[%s1811 + $0xc9] sm:$0xff] %vm1845, %v760
        %1864 = vst.msk [vmem:[%s1811 + $0xd9] sm:$0xff] %vm1845, %v761
        %1865 = vst.msk [vmem:[%s1811 + $0xe1] sm:$0xff] %vm1845, %v762
        %1866 = vst.msk [vmem:[%s1811 + $0xf1] sm:$0xff] %vm1845, %v763
        %1867 = vst.msk [vmem:[%s1811 + $0xf9] sm:$0xff] %vm1845, %v764
        %1868 = vst.msk [vmem:[%s1811 + $0x109] sm:$0xff] %vm1845, %v765
        %1869 = vst.msk [vmem:[%s1811 + $0x111] sm:$0xff] %vm1845, %v766
        %1870 = vst.msk [vmem:[%s1811 + $0x121] sm:$0xff] %vm1845, %v767
        %1871 = vst.msk [vmem:[%s1811 + $0x129] sm:$0xff] %vm1845, %v768
        %1872 = vst.msk [vmem:[%s1811 + $0x139] sm:$0xff] %vm1845, %v769
        %1873 = vst.msk [vmem:[%s1811 + $0x141] sm:$0xff] %vm1845, %v770
        %1874 = vst.msk [vmem:[%s1811 + $0x151] sm:$0xff] %vm1845, %v771
        %1875 = vst.msk [vmem:[%s1811 + $0x159] sm:$0xff] %vm1845, %v772
        %1876 = vst.msk [vmem:[%s1811 + $0x169] sm:$0xff] %vm1845, %v773
        %1877 = vst.msk [vmem:[%s1811 + $0x171] sm:$0xff] %vm1845, %v774
        %1910 = vrot.lane.b32.xlu0 %v1395, 16
        %v1911 = vpop.permute.xlu0 %1910
        %1912 = vrot.lane.b32.xlu0 %v1396, 16
        %v1913 = vpop.permute.xlu0 %1912
        %1914 = vrot.lane.b32.xlu0 %v1397, 16
        %v1915 = vpop.permute.xlu0 %1914
        %1916 = vrot.lane.b32.xlu0 %v1398, 16
        %v1917 = vpop.permute.xlu0 %1916
        %1918 = vrot.lane.b32.xlu0 %v1399, 16
        %v1919 = vpop.permute.xlu0 %1918
        %1920 = vrot.lane.b32.xlu0 %v1400, 16
        %v1921 = vpop.permute.xlu0 %1920
        %1922 = vrot.lane.b32.xlu0 %v1401, 16
        %v1923 = vpop.permute.xlu0 %1922
        %1924 = vrot.lane.b32.xlu0 %v1402, 16
        %v1925 = vpop.permute.xlu0 %1924
        %1926 = vrot.lane.b32.xlu0 %v1403, 16
        %v1927 = vpop.permute.xlu0 %1926
        %1928 = vrot.lane.b32.xlu0 %v1404, 16
        %v1929 = vpop.permute.xlu0 %1928
        %1930 = vrot.lane.b32.xlu0 %v1405, 16
        %v1931 = vpop.permute.xlu0 %1930
        %1932 = vrot.lane.b32.xlu0 %v1406, 16
        %v1933 = vpop.permute.xlu0 %1932
        %1934 = vrot.lane.b32.xlu0 %v1407, 16
        %v1935 = vpop.permute.xlu0 %1934
        %1936 = vrot.lane.b32.xlu0 %v1408, 16
        %v1937 = vpop.permute.xlu0 %1936
        %1938 = vrot.lane.b32.xlu0 %v1409, 16
        %v1939 = vpop.permute.xlu0 %1938
        %1940 = vrot.lane.b32.xlu0 %v1410, 16
        %v1941 = vpop.permute.xlu0 %1940
        %1942 = vrot.lane.b32.xlu0 %v1411, 16
        %v1943 = vpop.permute.xlu0 %1942
        %1944 = vrot.lane.b32.xlu0 %v1412, 16
        %v1945 = vpop.permute.xlu0 %1944
        %1946 = vrot.lane.b32.xlu0 %v1413, 16
        %v1947 = vpop.permute.xlu0 %1946
        %1948 = vrot.lane.b32.xlu0 %v1414, 16
        %v1949 = vpop.permute.xlu0 %1948
        %1950 = vrot.lane.b32.xlu0 %v1415, 16
        %v1951 = vpop.permute.xlu0 %1950
        %1952 = vrot.lane.b32.xlu0 %v1416, 16
        %v1953 = vpop.permute.xlu0 %1952
        %1954 = vrot.lane.b32.xlu0 %v1417, 16
        %v1955 = vpop.permute.xlu0 %1954
        %1956 = vrot.lane.b32.xlu0 %v1418, 16
        %v1957 = vpop.permute.xlu0 %1956
        %1958 = vrot.lane.b32.xlu0 %v1419, 16
        %v1959 = vpop.permute.xlu0 %1958
        %1960 = vrot.lane.b32.xlu0 %v1420, 16
        %v1961 = vpop.permute.xlu0 %1960
        %1962 = vrot.lane.b32.xlu0 %v1421, 16
        %v1963 = vpop.permute.xlu0 %1962
        %1964 = vrot.lane.b32.xlu0 %v1422, 16
        %v1965 = vpop.permute.xlu0 %1964
        %1966 = vrot.lane.b32.xlu0 %v1423, 16
        %v1967 = vpop.permute.xlu0 %1966
        %1968 = vrot.lane.b32.xlu0 %v1424, 16
        %v1969 = vpop.permute.xlu0 %1968
        %1970 = vrot.lane.b32.xlu0 %v1425, 16
        %v1971 = vpop.permute.xlu0 %1970
        %1972 = vrot.lane.b32.xlu0 %v1426, 16
        %v1973 = vpop.permute.xlu0 %1972
        %vm2006 = vcmask 261248
        %2007 = vst.msk [vmem:[%s1811 + $0x1] sm:$0xff] %vm2006, %v1911
        %2008 = vst.msk [vmem:[%s1811 + $0x9] sm:$0xff] %vm2006, %v1913
        %2009 = vst.msk [vmem:[%s1811 + $0x19] sm:$0xff] %vm2006, %v1915
        %2010 = vst.msk [vmem:[%s1811 + $0x21] sm:$0xff] %vm2006, %v1917
        %2011 = vst.msk [vmem:[%s1811 + $0x31] sm:$0xff] %vm2006, %v1919
        %2012 = vst.msk [vmem:[%s1811 + $0x39] sm:$0xff] %vm2006, %v1921
        %2013 = vst.msk [vmem:[%s1811 + $0x49] sm:$0xff] %vm2006, %v1923
        %2014 = vst.msk [vmem:[%s1811 + $0x51] sm:$0xff] %vm2006, %v1925
        %2015 = vst.msk [vmem:[%s1811 + $0x61] sm:$0xff] %vm2006, %v1927
        %2016 = vst.msk [vmem:[%s1811 + $0x69] sm:$0xff] %vm2006, %v1929
        %2017 = vst.msk [vmem:[%s1811 + $0x79] sm:$0xff] %vm2006, %v1931
        %2018 = vst.msk [vmem:[%s1811 + $0x81] sm:$0xff] %vm2006, %v1933
        %2019 = vst.msk [vmem:[%s1811 + $0x91] sm:$0xff] %vm2006, %v1935
        %2020 = vst.msk [vmem:[%s1811 + $0x99] sm:$0xff] %vm2006, %v1937
        %2021 = vst.msk [vmem:[%s1811 + $0xa9] sm:$0xff] %vm2006, %v1939
        %2022 = vst.msk [vmem:[%s1811 + $0xb1] sm:$0xff] %vm2006, %v1941
        %2023 = vst.msk [vmem:[%s1811 + $0xc1] sm:$0xff] %vm2006, %v1943
        %2024 = vst.msk [vmem:[%s1811 + $0xc9] sm:$0xff] %vm2006, %v1945
        %2025 = vst.msk [vmem:[%s1811 + $0xd9] sm:$0xff] %vm2006, %v1947
        %2026 = vst.msk [vmem:[%s1811 + $0xe1] sm:$0xff] %vm2006, %v1949
        %2027 = vst.msk [vmem:[%s1811 + $0xf1] sm:$0xff] %vm2006, %v1951
        %2028 = vst.msk [vmem:[%s1811 + $0xf9] sm:$0xff] %vm2006, %v1953
        %2029 = vst.msk [vmem:[%s1811 + $0x109] sm:$0xff] %vm2006, %v1955
        %2030 = vst.msk [vmem:[%s1811 + $0x111] sm:$0xff] %vm2006, %v1957
        %2031 = vst.msk [vmem:[%s1811 + $0x121] sm:$0xff] %vm2006, %v1959
        %2032 = vst.msk [vmem:[%s1811 + $0x129] sm:$0xff] %vm2006, %v1961
        %2033 = vst.msk [vmem:[%s1811 + $0x139] sm:$0xff] %vm2006, %v1963
        %2034 = vst.msk [vmem:[%s1811 + $0x141] sm:$0xff] %vm2006, %v1965
        %2035 = vst.msk [vmem:[%s1811 + $0x151] sm:$0xff] %vm2006, %v1967
        %2036 = vst.msk [vmem:[%s1811 + $0x159] sm:$0xff] %vm2006, %v1969
        %2037 = vst.msk [vmem:[%s1811 + $0x169] sm:$0xff] %vm2006, %v1971
        %2038 = vst.msk [vmem:[%s1811 + $0x171] sm:$0xff] %vm2006, %v1973
        %2071 = vrot.lane.b32.xlu0 %v1770, 32
        %v2072 = vpop.permute.xlu0 %2071
        %2073 = vrot.lane.b32.xlu0 %v1771, 32
        %v2074 = vpop.permute.xlu0 %2073
        %2075 = vrot.lane.b32.xlu0 %v1772, 32
        %v2076 = vpop.permute.xlu0 %2075
        %2077 = vrot.lane.b32.xlu0 %v1773, 32
        %v2078 = vpop.permute.xlu0 %2077
        %2079 = vrot.lane.b32.xlu0 %v1774, 32
        %v2080 = vpop.permute.xlu0 %2079
        %2081 = vrot.lane.b32.xlu0 %v1775, 32
        %v2082 = vpop.permute.xlu0 %2081
        %2083 = vrot.lane.b32.xlu0 %v1776, 32
        %v2084 = vpop.permute.xlu0 %2083
        %2085 = vrot.lane.b32.xlu0 %v1777, 32
        %v2086 = vpop.permute.xlu0 %2085
        %2087 = vrot.lane.b32.xlu0 %v1778, 32
        %v2088 = vpop.permute.xlu0 %2087
        %2089 = vrot.lane.b32.xlu0 %v1779, 32
        %v2090 = vpop.permute.xlu0 %2089
        %2091 = vrot.lane.b32.xlu0 %v1780, 32
        %v2092 = vpop.permute.xlu0 %2091
        %2093 = vrot.lane.b32.xlu0 %v1781, 32
        %v2094 = vpop.permute.xlu0 %2093
        %2095 = vrot.lane.b32.xlu0 %v1782, 32
        %v2096 = vpop.permute.xlu0 %2095
        %2097 = vrot.lane.b32.xlu0 %v1783, 32
        %v2098 = vpop.permute.xlu0 %2097
        %2099 = vrot.lane.b32.xlu0 %v1784, 32
        %v2100 = vpop.permute.xlu0 %2099
        %2101 = vrot.lane.b32.xlu0 %v1785, 32
        %v2102 = vpop.permute.xlu0 %2101
        %2103 = vrot.lane.b32.xlu0 %v1786, 32
        %v2104 = vpop.permute.xlu0 %2103
        %2105 = vrot.lane.b32.xlu0 %v1787, 32
        %v2106 = vpop.permute.xlu0 %2105
        %2107 = vrot.lane.b32.xlu0 %v1788, 32
        %v2108 = vpop.permute.xlu0 %2107
        %2109 = vrot.lane.b32.xlu0 %v1789, 32
        %v2110 = vpop.permute.xlu0 %2109
        %2111 = vrot.lane.b32.xlu0 %v1790, 32
        %v2112 = vpop.permute.xlu0 %2111
        %2113 = vrot.lane.b32.xlu0 %v1791, 32
        %v2114 = vpop.permute.xlu0 %2113
        %2115 = vrot.lane.b32.xlu0 %v1792, 32
        %v2116 = vpop.permute.xlu0 %2115
        %2117 = vrot.lane.b32.xlu0 %v1793, 32
        %v2118 = vpop.permute.xlu0 %2117
        %2119 = vrot.lane.b32.xlu0 %v1794, 32
        %v2120 = vpop.permute.xlu0 %2119
        %2121 = vrot.lane.b32.xlu0 %v1795, 32
        %v2122 = vpop.permute.xlu0 %2121
        %2123 = vrot.lane.b32.xlu0 %v1796, 32
        %v2124 = vpop.permute.xlu0 %2123
        %2125 = vrot.lane.b32.xlu0 %v1797, 32
        %v2126 = vpop.permute.xlu0 %2125
        %2127 = vrot.lane.b32.xlu0 %v1798, 32
        %v2128 = vpop.permute.xlu0 %2127
        %2129 = vrot.lane.b32.xlu0 %v1799, 32
        %v2130 = vpop.permute.xlu0 %2129
        %2131 = vrot.lane.b32.xlu0 %v1800, 32
        %v2132 = vpop.permute.xlu0 %2131
        %2133 = vrot.lane.b32.xlu0 %v1801, 32
        %v2134 = vpop.permute.xlu0 %2133
        %vm2167 = vcmask 392448
        %2168 = vst.msk [vmem:[%s1811 + $0x1] sm:$0xff] %vm2167, %v2072
        %2169 = vst.msk [vmem:[%s1811 + $0x9] sm:$0xff] %vm2167, %v2074
        %2170 = vst.msk [vmem:[%s1811 + $0x19] sm:$0xff] %vm2167, %v2076
        %2171 = vst.msk [vmem:[%s1811 + $0x21] sm:$0xff] %vm2167, %v2078
        %2172 = vst.msk [vmem:[%s1811 + $0x31] sm:$0xff] %vm2167, %v2080
        %2173 = vst.msk [vmem:[%s1811 + $0x39] sm:$0xff] %vm2167, %v2082
        %2174 = vst.msk [vmem:[%s1811 + $0x49] sm:$0xff] %vm2167, %v2084
        %2175 = vst.msk [vmem:[%s1811 + $0x51] sm:$0xff] %vm2167, %v2086
        %2176 = vst.msk [vmem:[%s1811 + $0x61] sm:$0xff] %vm2167, %v2088
        %2177 = vst.msk [vmem:[%s1811 + $0x69] sm:$0xff] %vm2167, %v2090
        %2178 = vst.msk [vmem:[%s1811 + $0x79] sm:$0xff] %vm2167, %v2092
        %2179 = vst.msk [vmem:[%s1811 + $0x81] sm:$0xff] %vm2167, %v2094
        %2180 = vst.msk [vmem:[%s1811 + $0x91] sm:$0xff] %vm2167, %v2096
        %2181 = vst.msk [vmem:[%s1811 + $0x99] sm:$0xff] %vm2167, %v2098
        %2182 = vst.msk [vmem:[%s1811 + $0xa9] sm:$0xff] %vm2167, %v2100
        %2183 = vst.msk [vmem:[%s1811 + $0xb1] sm:$0xff] %vm2167, %v2102
        %2184 = vst.msk [vmem:[%s1811 + $0xc1] sm:$0xff] %vm2167, %v2104
        %2185 = vst.msk [vmem:[%s1811 + $0xc9] sm:$0xff] %vm2167, %v2106
        %2186 = vst.msk [vmem:[%s1811 + $0xd9] sm:$0xff] %vm2167, %v2108
        %2187 = vst.msk [vmem:[%s1811 + $0xe1] sm:$0xff] %vm2167, %v2110
        %2188 = vst.msk [vmem:[%s1811 + $0xf1] sm:$0xff] %vm2167, %v2112
        %2189 = vst.msk [vmem:[%s1811 + $0xf9] sm:$0xff] %vm2167, %v2114
        %2190 = vst.msk [vmem:[%s1811 + $0x109] sm:$0xff] %vm2167, %v2116
        %2191 = vst.msk [vmem:[%s1811 + $0x111] sm:$0xff] %vm2167, %v2118
        %2192 = vst.msk [vmem:[%s1811 + $0x121] sm:$0xff] %vm2167, %v2120
        %2193 = vst.msk [vmem:[%s1811 + $0x129] sm:$0xff] %vm2167, %v2122
        %2194 = vst.msk [vmem:[%s1811 + $0x139] sm:$0xff] %vm2167, %v2124
        %2195 = vst.msk [vmem:[%s1811 + $0x141] sm:$0xff] %vm2167, %v2126
        %2196 = vst.msk [vmem:[%s1811 + $0x151] sm:$0xff] %vm2167, %v2128
        %2197 = vst.msk [vmem:[%s1811 + $0x159] sm:$0xff] %vm2167, %v2130
        %2198 = vst.msk [vmem:[%s1811 + $0x169] sm:$0xff] %vm2167, %v2132
        %2199 = vst.msk [vmem:[%s1811 + $0x171] sm:$0xff] %vm2167, %v2134
        %v2200 = vld [vmem:[#allocation3] sm:$0xff]
        %v2201 = vld [vmem:[#allocation3 + $0x8] sm:$0xff]
        %v2202 = vld [vmem:[#allocation3 + $0x18] sm:$0xff]
        %v2203 = vld [vmem:[#allocation3 + $0x20] sm:$0xff]
        %v2204 = vld [vmem:[#allocation3 + $0x30] sm:$0xff]
        %v2205 = vld [vmem:[#allocation3 + $0x38] sm:$0xff]
        %v2206 = vld [vmem:[#allocation3 + $0x48] sm:$0xff]
        %v2207 = vld [vmem:[#allocation3 + $0x50] sm:$0xff]
        %v2208 = vld [vmem:[#allocation3 + $0x60] sm:$0xff]
        %v2209 = vld [vmem:[#allocation3 + $0x68] sm:$0xff]
        %v2210 = vld [vmem:[#allocation3 + $0x78] sm:$0xff]
        %v2211 = vld [vmem:[#allocation3 + $0x80] sm:$0xff]
        %v2212 = vld [vmem:[#allocation3 + $0x90] sm:$0xff]
        %v2213 = vld [vmem:[#allocation3 + $0x98] sm:$0xff]
        %v2214 = vld [vmem:[#allocation3 + $0xa8] sm:$0xff]
        %v2215 = vld [vmem:[#allocation3 + $0xb0] sm:$0xff]
        %v2216 = vld [vmem:[#allocation3 + $0xc0] sm:$0xff]
        %v2217 = vld [vmem:[#allocation3 + $0xc8] sm:$0xff]
        %v2218 = vld [vmem:[#allocation3 + $0xd8] sm:$0xff]
        %v2219 = vld [vmem:[#allocation3 + $0xe0] sm:$0xff]
        %v2220 = vld [vmem:[#allocation3 + $0xf0] sm:$0xff]
        %v2221 = vld [vmem:[#allocation3 + $0xf8] sm:$0xff]
        %v2222 = vld [vmem:[#allocation3 + $0x108] sm:$0xff]
        %v2223 = vld [vmem:[#allocation3 + $0x110] sm:$0xff]
        %v2224 = vld [vmem:[#allocation3 + $0x120] sm:$0xff]
        %v2225 = vld [vmem:[#allocation3 + $0x128] sm:$0xff]
        %v2226 = vld [vmem:[#allocation3 + $0x138] sm:$0xff]
        %v2227 = vld [vmem:[#allocation3 + $0x140] sm:$0xff]
        %v2228 = vld [vmem:[#allocation3 + $0x150] sm:$0xff]
        %v2229 = vld [vmem:[#allocation3 + $0x158] sm:$0xff]
        %v2230 = vld [vmem:[#allocation3 + $0x168] sm:$0xff]
        %v2231 = vld [vmem:[#allocation3 + $0x170] sm:$0xff]
        %v2232 = vld [vmem:[%s5] sm:$0xff]
        %v2233 = vld [vmem:[%s5 + $0x8] sm:$0xff]
        %v2234 = vld [vmem:[%s5 + $0x10] sm:$0xff]
        %v2235 = vld [vmem:[%s5 + $0x18] sm:$0xff]
        %v2236 = vld [vmem:[%s5 + $0x20] sm:$0xff]
        %v2237 = vld [vmem:[%s5 + $0x28] sm:$0xff]
        %v2238 = vld [vmem:[#allocation3 + $0x1] sm:$0xff]
        %v2239 = vld [vmem:[#allocation3 + $0x9] sm:$0xff]
        %v2240 = vld [vmem:[#allocation3 + $0x19] sm:$0xff]
        %v2241 = vld [vmem:[#allocation3 + $0x21] sm:$0xff]
        %v2242 = vld [vmem:[#allocation3 + $0x31] sm:$0xff]
        %v2243 = vld [vmem:[#allocation3 + $0x39] sm:$0xff]
        %v2244 = vld [vmem:[#allocation3 + $0x49] sm:$0xff]
        %v2245 = vld [vmem:[#allocation3 + $0x51] sm:$0xff]
        %v2246 = vld [vmem:[#allocation3 + $0x61] sm:$0xff]
        %v2247 = vld [vmem:[#allocation3 + $0x69] sm:$0xff]
        %v2248 = vld [vmem:[#allocation3 + $0x79] sm:$0xff]
        %v2249 = vld [vmem:[#allocation3 + $0x81] sm:$0xff]
        %v2250 = vld [vmem:[#allocation3 + $0x91] sm:$0xff]
        %v2251 = vld [vmem:[#allocation3 + $0x99] sm:$0xff]
        %v2252 = vld [vmem:[#allocation3 + $0xa9] sm:$0xff]
        %v2253 = vld [vmem:[#allocation3 + $0xb1] sm:$0xff]
        %v2254 = vld [vmem:[#allocation3 + $0xc1] sm:$0xff]
        %v2255 = vld [vmem:[#allocation3 + $0xc9] sm:$0xff]
        %v2256 = vld [vmem:[#allocation3 + $0xd9] sm:$0xff]
        %v2257 = vld [vmem:[#allocation3 + $0xe1] sm:$0xff]
        %v2258 = vld [vmem:[#allocation3 + $0xf1] sm:$0xff]
        %v2259 = vld [vmem:[#allocation3 + $0xf9] sm:$0xff]
        %v2260 = vld [vmem:[#allocation3 + $0x109] sm:$0xff]
        %v2261 = vld [vmem:[#allocation3 + $0x111] sm:$0xff]
        %v2262 = vld [vmem:[#allocation3 + $0x121] sm:$0xff]
        %v2263 = vld [vmem:[#allocation3 + $0x129] sm:$0xff]
        %v2264 = vld [vmem:[#allocation3 + $0x139] sm:$0xff]
        %v2265 = vld [vmem:[#allocation3 + $0x141] sm:$0xff]
        %v2266 = vld [vmem:[#allocation3 + $0x151] sm:$0xff]
        %v2267 = vld [vmem:[#allocation3 + $0x159] sm:$0xff]
        %v2268 = vld [vmem:[#allocation3 + $0x169] sm:$0xff]
        %v2269 = vld [vmem:[#allocation3 + $0x171] sm:$0xff]
        %s2270 = scalar_lea.vmem %s5, 48
        %v2271 = vld [vmem:[%s2270] sm:$0xff]
        %v2272 = vld [vmem:[%s2270 + $0x8] sm:$0xff]
        %v2273 = vld [vmem:[%s2270 + $0x10] sm:$0xff]
        %v2274 = vld [vmem:[%s2270 + $0x18] sm:$0xff]
        %v2275 = vld [vmem:[%s2270 + $0x20] sm:$0xff]
        %v2276 = vld [vmem:[%s2270 + $0x28] sm:$0xff]
        %v2278 = vsel %vm1802, %v2238, 0
        %v2281 = vsel %vm1802, %v2239, 0
        %v2284 = vsel %vm1802, %v2240, 0
        %v2287 = vsel %vm1802, %v2241, 0
        %v2290 = vsel %vm1802, %v2242, 0
        %v2293 = vsel %vm1802, %v2243, 0
        %v2296 = vsel %vm1802, %v2244, 0
        %v2299 = vsel %vm1802, %v2245, 0
        %v2302 = vsel %vm1802, %v2246, 0
        %v2305 = vsel %vm1802, %v2247, 0
        %v2308 = vsel %vm1802, %v2248, 0
        %v2311 = vsel %vm1802, %v2249, 0
        %v2314 = vsel %vm1802, %v2250, 0
        %v2317 = vsel %vm1802, %v2251, 0
        %v2320 = vsel %vm1802, %v2252, 0
        %v2323 = vsel %vm1802, %v2253, 0
        %v2326 = vsel %vm1802, %v2254, 0
        %v2329 = vsel %vm1802, %v2255, 0
        %v2332 = vsel %vm1802, %v2256, 0
        %v2335 = vsel %vm1802, %v2257, 0
        %v2338 = vsel %vm1802, %v2258, 0
        %v2341 = vsel %vm1802, %v2259, 0
        %v2344 = vsel %vm1802, %v2260, 0
        %v2347 = vsel %vm1802, %v2261, 0
        %v2350 = vsel %vm1802, %v2262, 0
        %v2353 = vsel %vm1802, %v2263, 0
        %v2356 = vsel %vm1802, %v2264, 0
        %v2359 = vsel %vm1802, %v2265, 0
        %v2362 = vsel %vm1802, %v2266, 0
        %v2365 = vsel %vm1802, %v2267, 0
        %v2368 = vsel %vm1802, %v2268, 0
        %v2371 = vsel %vm1802, %v2269, 0
        %2373 = vmatprep.subr.mxu0 0.0
        %2374 = vmatpush1.msra.mxu0 %v2271
        %2375 = vmatprep.subr.mxu0 0.0
        %2376 = vmatpush1.msra.mxu0 %v2272
        %2377 = vmatprep.subr.mxu0 0.0
        %2378 = vmatpush1.msra.mxu0 %v2273
        %2379 = vmatprep.subr.mxu0 0.0
        %2380 = vmatpush1.msra.mxu0 %v2274
        %2381 = vmatprep.subr.mxu0 0.0
        %2382 = vmatpush1.msra.mxu0 %v2275
        %2383 = vmatprep.subr.mxu0 0.0
        %2384 = vmatpush1.msra.mxu0 %v2276
        %2385 = vmatprep.subr.mxu0 0.0
        %2386 = vmatpush1.msra.mxu0 0.0
        %2387 = vmatprep.subr.mxu0 0.0
        %2388 = vmatpush1.msra.mxu0 0.0
        %2389 = vmatprep.subr.mxu0 0.0
        %2390 = vmatpush1.msra.mxu0 0.0
        %2391 = vmatprep.subr.mxu0 0.0
        %2392 = vmatpush1.msra.mxu0 0.0
        %2393 = vmatprep.subr.mxu0 0.0
        %2394 = vmatpush1.msra.mxu0 0.0
        %2395 = vmatprep.subr.mxu0 0.0
        %2396 = vmatpush1.msra.mxu0 0.0
        %2397 = vmatprep.subr.mxu0 0.0
        %2398 = vmatpush1.msra.mxu0 0.0
        %2399 = vmatprep.subr.mxu0 0.0
        %2400 = vmatpush1.msra.mxu0 0.0
        %2401 = vmatprep.subr.mxu0 0.0
        %2402 = vmatpush1.msra.mxu0 0.0
        %2403 = vmatprep.subr.mxu0 0.0
        %2404 = vmatpush1.msra.mxu0 0.0
        %2405 = vmatprep.subr.mxu0 0.0
        %2406 = vmatpush1.msra.mxu0 0.0
        %2407 = vmatprep.subr.mxu0 0.0
        %2408 = vmatpush1.msra.mxu0 0.0
        %2409 = vmatprep.subr.mxu0 0.0
        %2410 = vmatpush1.msra.mxu0 0.0
        %2411 = vmatprep.subr.mxu0 0.0
        %2412 = vmatpush1.msra.mxu0 0.0
        %2413 = vmatprep.subr.mxu0 0.0
        %2414 = vmatpush1.msra.mxu0 0.0
        %2415 = vmatprep.subr.mxu0 0.0
        %2416 = vmatpush1.msra.mxu0 0.0
        %2417 = vmatprep.subr.mxu0 0.0
        %2418 = vmatpush1.msra.mxu0 0.0
        %2419 = vmatprep.subr.mxu0 0.0
        %2420 = vmatpush1.msra.mxu0 0.0
        %2421 = vmatprep.subr.mxu0 0.0
        %2422 = vmatpush1.msra.mxu0 0.0
        %2423 = vmatprep.subr.mxu0 0.0
        %2424 = vmatpush1.msra.mxu0 0.0
        %2425 = vmatprep.subr.mxu0 0.0
        %2426 = vmatpush1.msra.mxu0 0.0
        %2427 = vmatprep.subr.mxu0 0.0
        %2428 = vmatpush1.msra.mxu0 0.0
        %2429 = vmatprep.subr.mxu0 0.0
        %2430 = vmatpush1.msra.mxu0 0.0
        %2431 = vmatprep.subr.mxu0 0.0
        %2432 = vmatpush1.msra.mxu0 0.0
        %2433 = vmatprep.subr.mxu0 0.0
        %2434 = vmatpush1.msra.mxu0 0.0
        %2435 = vmatprep.subr.mxu0 0.0
        %2436 = vmatpush1.msra.mxu0 0.0
        %2437 = vmatprep.mubr.f32.mxu0 0.0
        %2438 = vmatmul.mubr.f32.gmra.mrb[0].mxu0 %v2278
        %v2439 = vpop.f32.mrb[0].mxu0
        %v2440 = vadd.f32 0.0, %v2439
        %v2441 = vpop.f32.mrb[0].mxu0
        %2442 = vmatprep.mubr.f32.mxu0 0.0
        %2443 = vmatmul.mubr.f32.gmra.mrb[0].mxu0 %v2281
        %v2444 = vpop.f32.mrb[0].mxu0
        %v2445 = vadd.f32 0.0, %v2444
        %v2446 = vpop.f32.mrb[0].mxu0
        %2447 = vmatprep.mubr.f32.mxu0 0.0
        %2448 = vmatmul.mubr.f32.gmra.mrb[0].mxu0 %v2284
        %v2449 = vpop.f32.mrb[0].mxu0
        %v2450 = vadd.f32 0.0, %v2449
        %v2451 = vpop.f32.mrb[0].mxu0
        %2452 = vmatprep.mubr.f32.mxu0 0.0
        %2453 = vmatmul.mubr.f32.gmra.mrb[0].mxu0 %v2287
        %v2454 = vpop.f32.mrb[0].mxu0
        %v2455 = vadd.f32 0.0, %v2454
        %v2456 = vpop.f32.mrb[0].mxu0
        %2457 = vmatprep.mubr.f32.mxu0 0.0
        %2458 = vmatmul.mubr.f32.gmra.mrb[0].mxu0 %v2290
        %v2459 = vpop.f32.mrb[0].mxu0
        %v2460 = vadd.f32 0.0, %v2459
        %v2461 = vpop.f32.mrb[0].mxu0
        %2462 = vmatprep.mubr.f32.mxu0 0.0
        %2463 = vmatmul.mubr.f32.gmra.mrb[0].mxu0 %v2293
        %v2464 = vpop.f32.mrb[0].mxu0
        %v2465 = vadd.f32 0.0, %v2464
        %v2466 = vpop.f32.mrb[0].mxu0
        %2467 = vmatprep.mubr.f32.mxu0 0.0
        %2468 = vmatmul.mubr.f32.gmra.mrb[0].mxu0 %v2296
        %v2469 = vpop.f32.mrb[0].mxu0
        %v2470 = vadd.f32 0.0, %v2469
        %v2471 = vpop.f32.mrb[0].mxu0
        %2472 = vmatprep.mubr.f32.mxu0 0.0
        %2473 = vmatmul.mubr.f32.gmra.mrb[0].mxu0 %v2299
        %v2474 = vpop.f32.mrb[0].mxu0
        %v2475 = vadd.f32 0.0, %v2474
        %v2476 = vpop.f32.mrb[0].mxu0
        %2477 = vmatprep.mubr.f32.mxu0 0.0
        %2478 = vmatmul.mubr.f32.gmra.mrb[0].mxu0 %v2302
        %v2479 = vpop.f32.mrb[0].mxu0
        %v2480 = vadd.f32 0.0, %v2479
        %v2481 = vpop.f32.mrb[0].mxu0
        %2482 = vmatprep.mubr.f32.mxu0 0.0
        %2483 = vmatmul.mubr.f32.gmra.mrb[0].mxu0 %v2305
        %v2484 = vpop.f32.mrb[0].mxu0
        %v2485 = vadd.f32 0.0, %v2484
        %v2486 = vpop.f32.mrb[0].mxu0
        %2487 = vmatprep.mubr.f32.mxu0 0.0
        %2488 = vmatmul.mubr.f32.gmra.mrb[0].mxu0 %v2308
        %v2489 = vpop.f32.mrb[0].mxu0
        %v2490 = vadd.f32 0.0, %v2489
        %v2491 = vpop.f32.mrb[0].mxu0
        %2492 = vmatprep.mubr.f32.mxu0 0.0
        %2493 = vmatmul.mubr.f32.gmra.mrb[0].mxu0 %v2311
        %v2494 = vpop.f32.mrb[0].mxu0
        %v2495 = vadd.f32 0.0, %v2494
        %v2496 = vpop.f32.mrb[0].mxu0
        %2497 = vmatprep.mubr.f32.mxu0 0.0
        %2498 = vmatmul.mubr.f32.gmra.mrb[0].mxu0 %v2314
        %v2499 = vpop.f32.mrb[0].mxu0
        %v2500 = vadd.f32 0.0, %v2499
        %v2501 = vpop.f32.mrb[0].mxu0
        %2502 = vmatprep.mubr.f32.mxu0 0.0
        %2503 = vmatmul.mubr.f32.gmra.mrb[0].mxu0 %v2317
        %v2504 = vpop.f32.mrb[0].mxu0
        %v2505 = vadd.f32 0.0, %v2504
        %v2506 = vpop.f32.mrb[0].mxu0
        %2507 = vmatprep.mubr.f32.mxu0 0.0
        %2508 = vmatmul.mubr.f32.gmra.mrb[0].mxu0 %v2320
        %v2509 = vpop.f32.mrb[0].mxu0
        %v2510 = vadd.f32 0.0, %v2509
        %v2511 = vpop.f32.mrb[0].mxu0
        %2512 = vmatprep.mubr.f32.mxu0 0.0
        %2513 = vmatmul.mubr.f32.gmra.mrb[0].mxu0 %v2323
        %v2514 = vpop.f32.mrb[0].mxu0
        %v2515 = vadd.f32 0.0, %v2514
        %v2516 = vpop.f32.mrb[0].mxu0
        %2517 = vmatprep.mubr.f32.mxu0 0.0
        %2518 = vmatmul.mubr.f32.gmra.mrb[0].mxu0 %v2326
        %v2519 = vpop.f32.mrb[0].mxu0
        %v2520 = vadd.f32 0.0, %v2519
        %v2521 = vpop.f32.mrb[0].mxu0
        %2522 = vmatprep.mubr.f32.mxu0 0.0
        %2523 = vmatmul.mubr.f32.gmra.mrb[0].mxu0 %v2329
        %v2524 = vpop.f32.mrb[0].mxu0
        %v2525 = vadd.f32 0.0, %v2524
        %v2526 = vpop.f32.mrb[0].mxu0
        %2527 = vmatprep.mubr.f32.mxu0 0.0
        %2528 = vmatmul.mubr.f32.gmra.mrb[0].mxu0 %v2332
        %v2529 = vpop.f32.mrb[0].mxu0
        %v2530 = vadd.f32 0.0, %v2529
        %v2531 = vpop.f32.mrb[0].mxu0
        %2532 = vmatprep.mubr.f32.mxu0 0.0
        %2533 = vmatmul.mubr.f32.gmra.mrb[0].mxu0 %v2335
        %v2534 = vpop.f32.mrb[0].mxu0
        %v2535 = vadd.f32 0.0, %v2534
        %v2536 = vpop.f32.mrb[0].mxu0
        %2537 = vmatprep.mubr.f32.mxu0 0.0
        %2538 = vmatmul.mubr.f32.gmra.mrb[0].mxu0 %v2338
        %v2539 = vpop.f32.mrb[0].mxu0
        %v2540 = vadd.f32 0.0, %v2539
        %v2541 = vpop.f32.mrb[0].mxu0
        %2542 = vmatprep.mubr.f32.mxu0 0.0
        %2543 = vmatmul.mubr.f32.gmra.mrb[0].mxu0 %v2341
        %v2544 = vpop.f32.mrb[0].mxu0
        %v2545 = vadd.f32 0.0, %v2544
        %v2546 = vpop.f32.mrb[0].mxu0
        %2547 = vmatprep.mubr.f32.mxu0 0.0
        %2548 = vmatmul.mubr.f32.gmra.mrb[0].mxu0 %v2344
        %v2549 = vpop.f32.mrb[0].mxu0
        %v2550 = vadd.f32 0.0, %v2549
        %v2551 = vpop.f32.mrb[0].mxu0
        %2552 = vmatprep.mubr.f32.mxu0 0.0
        %2553 = vmatmul.mubr.f32.gmra.mrb[0].mxu0 %v2347
        %v2554 = vpop.f32.mrb[0].mxu0
        %v2555 = vadd.f32 0.0, %v2554
        %v2556 = vpop.f32.mrb[0].mxu0
        %2557 = vmatprep.mubr.f32.mxu0 0.0
        %2558 = vmatmul.mubr.f32.gmra.mrb[0].mxu0 %v2350
        %v2559 = vpop.f32.mrb[0].mxu0
        %v2560 = vadd.f32 0.0, %v2559
        %v2561 = vpop.f32.mrb[0].mxu0
        %2562 = vmatprep.mubr.f32.mxu0 0.0
        %2563 = vmatmul.mubr.f32.gmra.mrb[0].mxu0 %v2353
        %v2564 = vpop.f32.mrb[0].mxu0
        %v2565 = vadd.f32 0.0, %v2564
        %v2566 = vpop.f32.mrb[0].mxu0
        %2567 = vmatprep.mubr.f32.mxu0 0.0
        %2568 = vmatmul.mubr.f32.gmra.mrb[0].mxu0 %v2356
        %v2569 = vpop.f32.mrb[0].mxu0
        %v2570 = vadd.f32 0.0, %v2569
        %v2571 = vpop.f32.mrb[0].mxu0
        %2572 = vmatprep.mubr.f32.mxu0 0.0
        %2573 = vmatmul.mubr.f32.gmra.mrb[0].mxu0 %v2359
        %v2574 = vpop.f32.mrb[0].mxu0
        %v2575 = vadd.f32 0.0, %v2574
        %v2576 = vpop.f32.mrb[0].mxu0
        %2577 = vmatprep.mubr.f32.mxu0 0.0
        %2578 = vmatmul.mubr.f32.gmra.mrb[0].mxu0 %v2362
        %v2579 = vpop.f32.mrb[0].mxu0
        %v2580 = vadd.f32 0.0, %v2579
        %v2581 = vpop.f32.mrb[0].mxu0
        %2582 = vmatprep.mubr.f32.mxu0 0.0
        %2583 = vmatmul.mubr.f32.gmra.mrb[0].mxu0 %v2365
        %v2584 = vpop.f32.mrb[0].mxu0
        %v2585 = vadd.f32 0.0, %v2584
        %v2586 = vpop.f32.mrb[0].mxu0
        %2587 = vmatprep.mubr.f32.mxu0 0.0
        %2588 = vmatmul.mubr.f32.gmra.mrb[0].mxu0 %v2368
        %v2589 = vpop.f32.mrb[0].mxu0
        %v2590 = vadd.f32 0.0, %v2589
        %v2591 = vpop.f32.mrb[0].mxu0
        %2592 = vmatprep.mubr.f32.mxu0 0.0
        %2593 = vmatmul.mubr.f32.gmra.mrb[0].mxu0 %v2371
        %v2594 = vpop.f32.mrb[0].mxu0
        %v2595 = vadd.f32 0.0, %v2594
        %v2596 = vpop.f32.mrb[0].mxu0
        %2597 = vdwg.mxu0
        %v2599 = vsel %vm1802, %v2200, 0
        %v2602 = vsel %vm1802, %v2201, 0
        %v2605 = vsel %vm1802, %v2202, 0
        %v2608 = vsel %vm1802, %v2203, 0
        %v2611 = vsel %vm1802, %v2204, 0
        %v2614 = vsel %vm1802, %v2205, 0
        %v2617 = vsel %vm1802, %v2206, 0
        %v2620 = vsel %vm1802, %v2207, 0
        %v2623 = vsel %vm1802, %v2208, 0
        %v2626 = vsel %vm1802, %v2209, 0
        %v2629 = vsel %vm1802, %v2210, 0
        %v2632 = vsel %vm1802, %v2211, 0
        %v2635 = vsel %vm1802, %v2212, 0
        %v2638 = vsel %vm1802, %v2213, 0
        %v2641 = vsel %vm1802, %v2214, 0
        %v2644 = vsel %vm1802, %v2215, 0
        %v2647 = vsel %vm1802, %v2216, 0
        %v2650 = vsel %vm1802, %v2217, 0
        %v2653 = vsel %vm1802, %v2218, 0
        %v2656 = vsel %vm1802, %v2219, 0
        %v2659 = vsel %vm1802, %v2220, 0
        %v2662 = vsel %vm1802, %v2221, 0
        %v2665 = vsel %vm1802, %v2222, 0
        %v2668 = vsel %vm1802, %v2223, 0
        %v2671 = vsel %vm1802, %v2224, 0
        %v2674 = vsel %vm1802, %v2225, 0
        %v2677 = vsel %vm1802, %v2226, 0
        %v2680 = vsel %vm1802, %v2227, 0
        %v2683 = vsel %vm1802, %v2228, 0
        %v2686 = vsel %vm1802, %v2229, 0
        %v2689 = vsel %vm1802, %v2230, 0
        %v2692 = vsel %vm1802, %v2231, 0
        %2694 = vmatprep.subr.mxu0 0.0
        %2695 = vmatpush1.msra.mxu0 %v2232
        %2696 = vmatprep.subr.mxu0 0.0
        %2697 = vmatpush1.msra.mxu0 %v2233
        %2698 = vmatprep.subr.mxu0 0.0
        %2699 = vmatpush1.msra.mxu0 %v2234
        %2700 = vmatprep.subr.mxu0 0.0
        %2701 = vmatpush1.msra.mxu0 %v2235
        %2702 = vmatprep.subr.mxu0 0.0
        %2703 = vmatpush1.msra.mxu0 %v2236
        %2704 = vmatprep.subr.mxu0 0.0
        %2705 = vmatpush1.msra.mxu0 %v2237
        %2706 = vmatprep.subr.mxu0 0.0
        %2707 = vmatpush1.msra.mxu0 0.0
        %2708 = vmatprep.subr.mxu0 0.0
        %2709 = vmatpush1.msra.mxu0 0.0
        %2710 = vmatprep.subr.mxu0 0.0
        %2711 = vmatpush1.msra.mxu0 0.0
        %2712 = vmatprep.subr.mxu0 0.0
        %2713 = vmatpush1.msra.mxu0 0.0
        %2714 = vmatprep.subr.mxu0 0.0
        %2715 = vmatpush1.msra.mxu0 0.0
        %2716 = vmatprep.subr.mxu0 0.0
        %2717 = vmatpush1.msra.mxu0 0.0
        %2718 = vmatprep.subr.mxu0 0.0
        %2719 = vmatpush1.msra.mxu0 0.0
        %2720 = vmatprep.subr.mxu0 0.0
        %2721 = vmatpush1.msra.mxu0 0.0
        %2722 = vmatprep.subr.mxu0 0.0
        %2723 = vmatpush1.msra.mxu0 0.0
        %2724 = vmatprep.subr.mxu0 0.0
        %2725 = vmatpush1.msra.mxu0 0.0
        %2726 = vmatprep.subr.mxu0 0.0
        %2727 = vmatpush1.msra.mxu0 0.0
        %2728 = vmatprep.subr.mxu0 0.0
        %2729 = vmatpush1.msra.mxu0 0.0
        %2730 = vmatprep.subr.mxu0 0.0
        %2731 = vmatpush1.msra.mxu0 0.0
        %2732 = vmatprep.subr.mxu0 0.0
        %2733 = vmatpush1.msra.mxu0 0.0
        %2734 = vmatprep.subr.mxu0 0.0
        %2735 = vmatpush1.msra.mxu0 0.0
        %2736 = vmatprep.subr.mxu0 0.0
        %2737 = vmatpush1.msra.mxu0 0.0
        %2738 = vmatprep.subr.mxu0 0.0
        %2739 = vmatpush1.msra.mxu0 0.0
        %2740 = vmatprep.subr.mxu0 0.0
        %2741 = vmatpush1.msra.mxu0 0.0
        %2742 = vmatprep.subr.mxu0 0.0
        %2743 = vmatpush1.msra.mxu0 0.0
        %2744 = vmatprep.subr.mxu0 0.0
        %2745 = vmatpush1.msra.mxu0 0.0
        %2746 = vmatprep.subr.mxu0 0.0
        %2747 = vmatpush1.msra.mxu0 0.0
        %2748 = vmatprep.subr.mxu0 0.0
        %2749 = vmatpush1.msra.mxu0 0.0
        %2750 = vmatprep.subr.mxu0 0.0
        %2751 = vmatpush1.msra.mxu0 0.0
        %2752 = vmatprep.subr.mxu0 0.0
        %2753 = vmatpush1.msra.mxu0 0.0
        %2754 = vmatprep.subr.mxu0 0.0
        %2755 = vmatpush1.msra.mxu0 0.0
        %2756 = vmatprep.subr.mxu0 0.0
        %2757 = vmatpush1.msra.mxu0 0.0
        %2758 = vmatprep.mubr.f32.mxu0 0.0
        %2759 = vmatmul.mubr.f32.gmra.mrb[0].mxu0 %v2599
        %v2760 = vpop.f32.mrb[0].mxu0
        %v2761 = vadd.f32 %v2440, %v2760
        %v2762 = vpop.f32.mrb[0].mxu0
        %2763 = vmatprep.mubr.f32.mxu0 0.0
        %2764 = vmatmul.mubr.f32.gmra.mrb[0].mxu0 %v2602
        %v2765 = vpop.f32.mrb[0].mxu0
        %v2766 = vadd.f32 %v2445, %v2765
        %v2767 = vpop.f32.mrb[0].mxu0
        %2768 = vmatprep.mubr.f32.mxu0 0.0
        %2769 = vmatmul.mubr.f32.gmra.mrb[0].mxu0 %v2605
        %v2770 = vpop.f32.mrb[0].mxu0
        %v2771 = vadd.f32 %v2450, %v2770
        %v2772 = vpop.f32.mrb[0].mxu0
        %2773 = vmatprep.mubr.f32.mxu0 0.0
        %2774 = vmatmul.mubr.f32.gmra.mrb[0].mxu0 %v2608
        %v2775 = vpop.f32.mrb[0].mxu0
        %v2776 = vadd.f32 %v2455, %v2775
        %v2777 = vpop.f32.mrb[0].mxu0
        %2778 = vmatprep.mubr.f32.mxu0 0.0
        %2779 = vmatmul.mubr.f32.gmra.mrb[0].mxu0 %v2611
        %v2780 = vpop.f32.mrb[0].mxu0
        %v2781 = vadd.f32 %v2460, %v2780
        %v2782 = vpop.f32.mrb[0].mxu0
        %2783 = vmatprep.mubr.f32.mxu0 0.0
        %2784 = vmatmul.mubr.f32.gmra.mrb[0].mxu0 %v2614
        %v2785 = vpop.f32.mrb[0].mxu0
        %v2786 = vadd.f32 %v2465, %v2785
        %v2787 = vpop.f32.mrb[0].mxu0
        %2788 = vmatprep.mubr.f32.mxu0 0.0
        %2789 = vmatmul.mubr.f32.gmra.mrb[0].mxu0 %v2617
        %v2790 = vpop.f32.mrb[0].mxu0
        %v2791 = vadd.f32 %v2470, %v2790
        %v2792 = vpop.f32.mrb[0].mxu0
        %2793 = vmatprep.mubr.f32.mxu0 0.0
        %2794 = vmatmul.mubr.f32.gmra.mrb[0].mxu0 %v2620
        %v2795 = vpop.f32.mrb[0].mxu0
        %v2796 = vadd.f32 %v2475, %v2795
        %v2797 = vpop.f32.mrb[0].mxu0
        %2798 = vmatprep.mubr.f32.mxu0 0.0
        %2799 = vmatmul.mubr.f32.gmra.mrb[0].mxu0 %v2623
        %v2800 = vpop.f32.mrb[0].mxu0
        %v2801 = vadd.f32 %v2480, %v2800
        %v2802 = vpop.f32.mrb[0].mxu0
        %2803 = vmatprep.mubr.f32.mxu0 0.0
        %2804 = vmatmul.mubr.f32.gmra.mrb[0].mxu0 %v2626
        %v2805 = vpop.f32.mrb[0].mxu0
        %v2806 = vadd.f32 %v2485, %v2805
        %v2807 = vpop.f32.mrb[0].mxu0
        %2808 = vmatprep.mubr.f32.mxu0 0.0
        %2809 = vmatmul.mubr.f32.gmra.mrb[0].mxu0 %v2629
        %v2810 = vpop.f32.mrb[0].mxu0
        %v2811 = vadd.f32 %v2490, %v2810
        %v2812 = vpop.f32.mrb[0].mxu0
        %2813 = vmatprep.mubr.f32.mxu0 0.0
        %2814 = vmatmul.mubr.f32.gmra.mrb[0].mxu0 %v2632
        %v2815 = vpop.f32.mrb[0].mxu0
        %v2816 = vadd.f32 %v2495, %v2815
        %v2817 = vpop.f32.mrb[0].mxu0
        %2818 = vmatprep.mubr.f32.mxu0 0.0
        %2819 = vmatmul.mubr.f32.gmra.mrb[0].mxu0 %v2635
        %v2820 = vpop.f32.mrb[0].mxu0
        %v2821 = vadd.f32 %v2500, %v2820
        %v2822 = vpop.f32.mrb[0].mxu0
        %2823 = vmatprep.mubr.f32.mxu0 0.0
        %2824 = vmatmul.mubr.f32.gmra.mrb[0].mxu0 %v2638
        %v2825 = vpop.f32.mrb[0].mxu0
        %v2826 = vadd.f32 %v2505, %v2825
        %v2827 = vpop.f32.mrb[0].mxu0
        %2828 = vmatprep.mubr.f32.mxu0 0.0
        %2829 = vmatmul.mubr.f32.gmra.mrb[0].mxu0 %v2641
        %v2830 = vpop.f32.mrb[0].mxu0
        %v2831 = vadd.f32 %v2510, %v2830
        %v2832 = vpop.f32.mrb[0].mxu0
        %2833 = vmatprep.mubr.f32.mxu0 0.0
        %2834 = vmatmul.mubr.f32.gmra.mrb[0].mxu0 %v2644
        %v2835 = vpop.f32.mrb[0].mxu0
        %v2836 = vadd.f32 %v2515, %v2835
        %v2837 = vpop.f32.mrb[0].mxu0
        %2838 = vmatprep.mubr.f32.mxu0 0.0
        %2839 = vmatmul.mubr.f32.gmra.mrb[0].mxu0 %v2647
        %v2840 = vpop.f32.mrb[0].mxu0
        %v2841 = vadd.f32 %v2520, %v2840
        %v2842 = vpop.f32.mrb[0].mxu0
        %2843 = vmatprep.mubr.f32.mxu0 0.0
        %2844 = vmatmul.mubr.f32.gmra.mrb[0].mxu0 %v2650
        %v2845 = vpop.f32.mrb[0].mxu0
        %v2846 = vadd.f32 %v2525, %v2845
        %v2847 = vpop.f32.mrb[0].mxu0
        %2848 = vmatprep.mubr.f32.mxu0 0.0
        %2849 = vmatmul.mubr.f32.gmra.mrb[0].mxu0 %v2653
        %v2850 = vpop.f32.mrb[0].mxu0
        %v2851 = vadd.f32 %v2530, %v2850
        %v2852 = vpop.f32.mrb[0].mxu0
        %2853 = vmatprep.mubr.f32.mxu0 0.0
        %2854 = vmatmul.mubr.f32.gmra.mrb[0].mxu0 %v2656
        %v2855 = vpop.f32.mrb[0].mxu0
        %v2856 = vadd.f32 %v2535, %v2855
        %v2857 = vpop.f32.mrb[0].mxu0
        %2858 = vmatprep.mubr.f32.mxu0 0.0
        %2859 = vmatmul.mubr.f32.gmra.mrb[0].mxu0 %v2659
        %v2860 = vpop.f32.mrb[0].mxu0
        %v2861 = vadd.f32 %v2540, %v2860
        %v2862 = vpop.f32.mrb[0].mxu0
        %2863 = vmatprep.mubr.f32.mxu0 0.0
        %2864 = vmatmul.mubr.f32.gmra.mrb[0].mxu0 %v2662
        %v2865 = vpop.f32.mrb[0].mxu0
        %v2866 = vadd.f32 %v2545, %v2865
        %v2867 = vpop.f32.mrb[0].mxu0
        %2868 = vmatprep.mubr.f32.mxu0 0.0
        %2869 = vmatmul.mubr.f32.gmra.mrb[0].mxu0 %v2665
        %v2870 = vpop.f32.mrb[0].mxu0
        %v2871 = vadd.f32 %v2550, %v2870
        %v2872 = vpop.f32.mrb[0].mxu0
        %2873 = vmatprep.mubr.f32.mxu0 0.0
        %2874 = vmatmul.mubr.f32.gmra.mrb[0].mxu0 %v2668
        %v2875 = vpop.f32.mrb[0].mxu0
        %v2876 = vadd.f32 %v2555, %v2875
        %v2877 = vpop.f32.mrb[0].mxu0
        %2878 = vmatprep.mubr.f32.mxu0 0.0
        %2879 = vmatmul.mubr.f32.gmra.mrb[0].mxu0 %v2671
        %v2880 = vpop.f32.mrb[0].mxu0
        %v2881 = vadd.f32 %v2560, %v2880
        %v2882 = vpop.f32.mrb[0].mxu0
        %2883 = vmatprep.mubr.f32.mxu0 0.0
        %2884 = vmatmul.mubr.f32.gmra.mrb[0].mxu0 %v2674
        %v2885 = vpop.f32.mrb[0].mxu0
        %v2886 = vadd.f32 %v2565, %v2885
        %v2887 = vpop.f32.mrb[0].mxu0
        %2888 = vmatprep.mubr.f32.mxu0 0.0
        %2889 = vmatmul.mubr.f32.gmra.mrb[0].mxu0 %v2677
        %v2890 = vpop.f32.mrb[0].mxu0
        %v2891 = vadd.f32 %v2570, %v2890
        %v2892 = vpop.f32.mrb[0].mxu0
        %2893 = vmatprep.mubr.f32.mxu0 0.0
        %2894 = vmatmul.mubr.f32.gmra.mrb[0].mxu0 %v2680
        %v2895 = vpop.f32.mrb[0].mxu0
        %v2896 = vadd.f32 %v2575, %v2895
        %v2897 = vpop.f32.mrb[0].mxu0
        %2898 = vmatprep.mubr.f32.mxu0 0.0
        %2899 = vmatmul.mubr.f32.gmra.mrb[0].mxu0 %v2683
        %v2900 = vpop.f32.mrb[0].mxu0
        %v2901 = vadd.f32 %v2580, %v2900
        %v2902 = vpop.f32.mrb[0].mxu0
        %2903 = vmatprep.mubr.f32.mxu0 0.0
        %2904 = vmatmul.mubr.f32.gmra.mrb[0].mxu0 %v2686
        %v2905 = vpop.f32.mrb[0].mxu0
        %v2906 = vadd.f32 %v2585, %v2905
        %v2907 = vpop.f32.mrb[0].mxu0
        %2908 = vmatprep.mubr.f32.mxu0 0.0
        %2909 = vmatmul.mubr.f32.gmra.mrb[0].mxu0 %v2689
        %v2910 = vpop.f32.mrb[0].mxu0
        %v2911 = vadd.f32 %v2590, %v2910
        %v2912 = vpop.f32.mrb[0].mxu0
        %2913 = vmatprep.mubr.f32.mxu0 0.0
        %2914 = vmatmul.mubr.f32.gmra.mrb[0].mxu0 %v2692
        %v2915 = vpop.f32.mrb[0].mxu0
        %v2916 = vadd.f32 %v2595, %v2915
        %v2917 = vpop.f32.mrb[0].mxu0
        %2918 = vdwg.mxu0
        %v2919 = vld [vmem:[#allocation3 + $0x2] sm:$0xff]
        %v2920 = vld [vmem:[#allocation3 + $0xa] sm:$0xff]
        %v2921 = vld [vmem:[#allocation3 + $0x1a] sm:$0xff]
        %v2922 = vld [vmem:[#allocation3 + $0x22] sm:$0xff]
        %v2923 = vld [vmem:[#allocation3 + $0x32] sm:$0xff]
        %v2924 = vld [vmem:[#allocation3 + $0x3a] sm:$0xff]
        %v2925 = vld [vmem:[#allocation3 + $0x4a] sm:$0xff]
        %v2926 = vld [vmem:[#allocation3 + $0x52] sm:$0xff]
        %v2927 = vld [vmem:[#allocation3 + $0x62] sm:$0xff]
        %v2928 = vld [vmem:[#allocation3 + $0x6a] sm:$0xff]
        %v2929 = vld [vmem:[#allocation3 + $0x7a] sm:$0xff]
        %v2930 = vld [vmem:[#allocation3 + $0x82] sm:$0xff]
        %v2931 = vld [vmem:[#allocation3 + $0x92] sm:$0xff]
        %v2932 = vld [vmem:[#allocation3 + $0x9a] sm:$0xff]
        %v2933 = vld [vmem:[#allocation3 + $0xaa] sm:$0xff]
        %v2934 = vld [vmem:[#allocation3 + $0xb2] sm:$0xff]
        %v2935 = vld [vmem:[#allocation3 + $0xc2] sm:$0xff]
        %v2936 = vld [vmem:[#allocation3 + $0xca] sm:$0xff]
        %v2937 = vld [vmem:[#allocation3 + $0xda] sm:$0xff]
        %v2938 = vld [vmem:[#allocation3 + $0xe2] sm:$0xff]
        %v2939 = vld [vmem:[#allocation3 + $0xf2] sm:$0xff]
        %v2940 = vld [vmem:[#allocation3 + $0xfa] sm:$0xff]
        %v2941 = vld [vmem:[#allocation3 + $0x10a] sm:$0xff]
        %v2942 = vld [vmem:[#allocation3 + $0x112] sm:$0xff]
        %v2943 = vld [vmem:[#allocation3 + $0x122] sm:$0xff]
        %v2944 = vld [vmem:[#allocation3 + $0x12a] sm:$0xff]
        %v2945 = vld [vmem:[#allocation3 + $0x13a] sm:$0xff]
        %v2946 = vld [vmem:[#allocation3 + $0x142] sm:$0xff]
        %v2947 = vld [vmem:[#allocation3 + $0x152] sm:$0xff]
        %v2948 = vld [vmem:[#allocation3 + $0x15a] sm:$0xff]
        %v2949 = vld [vmem:[#allocation3 + $0x16a] sm:$0xff]
        %v2950 = vld [vmem:[#allocation3 + $0x172] sm:$0xff]
        %s2951 = scalar_lea.vmem %s5, 96
        %v2952 = vld [vmem:[%s2951] sm:$0xff]
        %v2953 = vld [vmem:[%s2951 + $0x8] sm:$0xff]
        %v2954 = vld [vmem:[%s2951 + $0x10] sm:$0xff]
        %v2955 = vld [vmem:[%s2951 + $0x18] sm:$0xff]
        %v2956 = vld [vmem:[%s2951 + $0x20] sm:$0xff]
        %v2957 = vld [vmem:[%s2951 + $0x28] sm:$0xff]
        %v2959 = vsel %vm1802, %v2919, 0
        %v2962 = vsel %vm1802, %v2920, 0
        %v2965 = vsel %vm1802, %v2921, 0
        %v2968 = vsel %vm1802, %v2922, 0
        %v2971 = vsel %vm1802, %v2923, 0
        %v2974 = vsel %vm1802, %v2924, 0
        %v2977 = vsel %vm1802, %v2925, 0
        %v2980 = vsel %vm1802, %v2926, 0
        %v2983 = vsel %vm1802, %v2927, 0
        %v2986 = vsel %vm1802, %v2928, 0
        %v2989 = vsel %vm1802, %v2929, 0
        %v2992 = vsel %vm1802, %v2930, 0
        %v2995 = vsel %vm1802, %v2931, 0
        %v2998 = vsel %vm1802, %v2932, 0
        %v3001 = vsel %vm1802, %v2933, 0
        %v3004 = vsel %vm1802, %v2934, 0
        %v3007 = vsel %vm1802, %v2935, 0
        %v3010 = vsel %vm1802, %v2936, 0
        %v3013 = vsel %vm1802, %v2937, 0
        %v3016 = vsel %vm1802, %v2938, 0
        %v3019 = vsel %vm1802, %v2939, 0
        %v3022 = vsel %vm1802, %v2940, 0
        %v3025 = vsel %vm1802, %v2941, 0
        %v3028 = vsel %vm1802, %v2942, 0
        %v3031 = vsel %vm1802, %v2943, 0
        %v3034 = vsel %vm1802, %v2944, 0
        %v3037 = vsel %vm1802, %v2945, 0
        %v3040 = vsel %vm1802, %v2946, 0
        %v3043 = vsel %vm1802, %v2947, 0
        %v3046 = vsel %vm1802, %v2948, 0
        %v3049 = vsel %vm1802, %v2949, 0
        %v3052 = vsel %vm1802, %v2950, 0
        %3054 = vmatprep.subr.mxu0 0.0
        %3055 = vmatpush1.msra.mxu0 %v2952
        %3056 = vmatprep.subr.mxu0 0.0
        %3057 = vmatpush1.msra.mxu0 %v2953
        %3058 = vmatprep.subr.mxu0 0.0
        %3059 = vmatpush1.msra.mxu0 %v2954
        %3060 = vmatprep.subr.mxu0 0.0
        %3061 = vmatpush1.msra.mxu0 %v2955
        %3062 = vmatprep.subr.mxu0 0.0
        %3063 = vmatpush1.msra.mxu0 %v2956
        %3064 = vmatprep.subr.mxu0 0.0
        %3065 = vmatpush1.msra.mxu0 %v2957
        %3066 = vmatprep.subr.mxu0 0.0
        %3067 = vmatpush1.msra.mxu0 0.0
        %3068 = vmatprep.subr.mxu0 0.0
        %3069 = vmatpush1.msra.mxu0 0.0
        %3070 = vmatprep.subr.mxu0 0.0
        %3071 = vmatpush1.msra.mxu0 0.0
        %3072 = vmatprep.subr.mxu0 0.0
        %3073 = vmatpush1.msra.mxu0 0.0
        %3074 = vmatprep.subr.mxu0 0.0
        %3075 = vmatpush1.msra.mxu0 0.0
        %3076 = vmatprep.subr.mxu0 0.0
        %3077 = vmatpush1.msra.mxu0 0.0
        %3078 = vmatprep.subr.mxu0 0.0
        %3079 = vmatpush1.msra.mxu0 0.0
        %3080 = vmatprep.subr.mxu0 0.0
        %3081 = vmatpush1.msra.mxu0 0.0
        %3082 = vmatprep.subr.mxu0 0.0
        %3083 = vmatpush1.msra.mxu0 0.0
        %3084 = vmatprep.subr.mxu0 0.0
        %3085 = vmatpush1.msra.mxu0 0.0
        %3086 = vmatprep.subr.mxu0 0.0
        %3087 = vmatpush1.msra.mxu0 0.0
        %3088 = vmatprep.subr.mxu0 0.0
        %3089 = vmatpush1.msra.mxu0 0.0
        %3090 = vmatprep.subr.mxu0 0.0
        %3091 = vmatpush1.msra.mxu0 0.0
        %3092 = vmatprep.subr.mxu0 0.0
        %3093 = vmatpush1.msra.mxu0 0.0
        %3094 = vmatprep.subr.mxu0 0.0
        %3095 = vmatpush1.msra.mxu0 0.0
        %3096 = vmatprep.subr.mxu0 0.0
        %3097 = vmatpush1.msra.mxu0 0.0
        %3098 = vmatprep.subr.mxu0 0.0
        %3099 = vmatpush1.msra.mxu0 0.0
        %3100 = vmatprep.subr.mxu0 0.0
        %3101 = vmatpush1.msra.mxu0 0.0
        %3102 = vmatprep.subr.mxu0 0.0
        %3103 = vmatpush1.msra.mxu0 0.0
        %3104 = vmatprep.subr.mxu0 0.0
        %3105 = vmatpush1.msra.mxu0 0.0
        %3106 = vmatprep.subr.mxu0 0.0
        %3107 = vmatpush1.msra.mxu0 0.0
        %3108 = vmatprep.subr.mxu0 0.0
        %3109 = vmatpush1.msra.mxu0 0.0
        %3110 = vmatprep.subr.mxu0 0.0
        %3111 = vmatpush1.msra.mxu0 0.0
        %3112 = vmatprep.subr.mxu0 0.0
        %3113 = vmatpush1.msra.mxu0 0.0
        %3114 = vmatprep.subr.mxu0 0.0
        %3115 = vmatpush1.msra.mxu0 0.0
        %3116 = vmatprep.subr.mxu0 0.0
        %3117 = vmatpush1.msra.mxu0 0.0
        %3118 = vmatprep.mubr.f32.mxu0 0.0
        %3119 = vmatmul.mubr.f32.gmra.mrb[0].mxu0 %v2959
        %v3120 = vpop.f32.mrb[0].mxu0
        %v3121 = vadd.f32 0.0, %v3120
        %v3122 = vpop.f32.mrb[0].mxu0
        %3123 = vmatprep.mubr.f32.mxu0 0.0
        %3124 = vmatmul.mubr.f32.gmra.mrb[0].mxu0 %v2962
        %v3125 = vpop.f32.mrb[0].mxu0
        %v3126 = vadd.f32 0.0, %v3125
        %v3127 = vpop.f32.mrb[0].mxu0
        %3128 = vmatprep.mubr.f32.mxu0 0.0
        %3129 = vmatmul.mubr.f32.gmra.mrb[0].mxu0 %v2965
        %v3130 = vpop.f32.mrb[0].mxu0
        %v3131 = vadd.f32 0.0, %v3130
        %v3132 = vpop.f32.mrb[0].mxu0
        %3133 = vmatprep.mubr.f32.mxu0 0.0
        %3134 = vmatmul.mubr.f32.gmra.mrb[0].mxu0 %v2968
        %v3135 = vpop.f32.mrb[0].mxu0
        %v3136 = vadd.f32 0.0, %v3135
        %v3137 = vpop.f32.mrb[0].mxu0
        %3138 = vmatprep.mubr.f32.mxu0 0.0
        %3139 = vmatmul.mubr.f32.gmra.mrb[0].mxu0 %v2971
        %v3140 = vpop.f32.mrb[0].mxu0
        %v3141 = vadd.f32 0.0, %v3140
        %v3142 = vpop.f32.mrb[0].mxu0
        %3143 = vmatprep.mubr.f32.mxu0 0.0
        %3144 = vmatmul.mubr.f32.gmra.mrb[0].mxu0 %v2974
        %v3145 = vpop.f32.mrb[0].mxu0
        %v3146 = vadd.f32 0.0, %v3145
        %v3147 = vpop.f32.mrb[0].mxu0
        %3148 = vmatprep.mubr.f32.mxu0 0.0
        %3149 = vmatmul.mubr.f32.gmra.mrb[0].mxu0 %v2977
        %v3150 = vpop.f32.mrb[0].mxu0
        %v3151 = vadd.f32 0.0, %v3150
        %v3152 = vpop.f32.mrb[0].mxu0
        %3153 = vmatprep.mubr.f32.mxu0 0.0
        %3154 = vmatmul.mubr.f32.gmra.mrb[0].mxu0 %v2980
        %v3155 = vpop.f32.mrb[0].mxu0
        %v3156 = vadd.f32 0.0, %v3155
        %v3157 = vpop.f32.mrb[0].mxu0
        %3158 = vmatprep.mubr.f32.mxu0 0.0
        %3159 = vmatmul.mubr.f32.gmra.mrb[0].mxu0 %v2983
        %v3160 = vpop.f32.mrb[0].mxu0
        %v3161 = vadd.f32 0.0, %v3160
        %v3162 = vpop.f32.mrb[0].mxu0
        %3163 = vmatprep.mubr.f32.mxu0 0.0
        %3164 = vmatmul.mubr.f32.gmra.mrb[0].mxu0 %v2986
        %v3165 = vpop.f32.mrb[0].mxu0
        %v3166 = vadd.f32 0.0, %v3165
        %v3167 = vpop.f32.mrb[0].mxu0
        %3168 = vmatprep.mubr.f32.mxu0 0.0
        %3169 = vmatmul.mubr.f32.gmra.mrb[0].mxu0 %v2989
        %v3170 = vpop.f32.mrb[0].mxu0
        %v3171 = vadd.f32 0.0, %v3170
        %v3172 = vpop.f32.mrb[0].mxu0
        %3173 = vmatprep.mubr.f32.mxu0 0.0
        %3174 = vmatmul.mubr.f32.gmra.mrb[0].mxu0 %v2992
        %v3175 = vpop.f32.mrb[0].mxu0
        %v3176 = vadd.f32 0.0, %v3175
        %v3177 = vpop.f32.mrb[0].mxu0
        %3178 = vmatprep.mubr.f32.mxu0 0.0
        %3179 = vmatmul.mubr.f32.gmra.mrb[0].mxu0 %v2995
        %v3180 = vpop.f32.mrb[0].mxu0
        %v3181 = vadd.f32 0.0, %v3180
        %v3182 = vpop.f32.mrb[0].mxu0
        %3183 = vmatprep.mubr.f32.mxu0 0.0
        %3184 = vmatmul.mubr.f32.gmra.mrb[0].mxu0 %v2998
        %v3185 = vpop.f32.mrb[0].mxu0
        %v3186 = vadd.f32 0.0, %v3185
        %v3187 = vpop.f32.mrb[0].mxu0
        %3188 = vmatprep.mubr.f32.mxu0 0.0
        %3189 = vmatmul.mubr.f32.gmra.mrb[0].mxu0 %v3001
        %v3190 = vpop.f32.mrb[0].mxu0
        %v3191 = vadd.f32 0.0, %v3190
        %v3192 = vpop.f32.mrb[0].mxu0
        %3193 = vmatprep.mubr.f32.mxu0 0.0
        %3194 = vmatmul.mubr.f32.gmra.mrb[0].mxu0 %v3004
        %v3195 = vpop.f32.mrb[0].mxu0
        %v3196 = vadd.f32 0.0, %v3195
        %v3197 = vpop.f32.mrb[0].mxu0
        %3198 = vmatprep.mubr.f32.mxu0 0.0
        %3199 = vmatmul.mubr.f32.gmra.mrb[0].mxu0 %v3007
        %v3200 = vpop.f32.mrb[0].mxu0
        %v3201 = vadd.f32 0.0, %v3200
        %v3202 = vpop.f32.mrb[0].mxu0
        %3203 = vmatprep.mubr.f32.mxu0 0.0
        %3204 = vmatmul.mubr.f32.gmra.mrb[0].mxu0 %v3010
        %v3205 = vpop.f32.mrb[0].mxu0
        %v3206 = vadd.f32 0.0, %v3205
        %v3207 = vpop.f32.mrb[0].mxu0
        %3208 = vmatprep.mubr.f32.mxu0 0.0
        %3209 = vmatmul.mubr.f32.gmra.mrb[0].mxu0 %v3013
        %v3210 = vpop.f32.mrb[0].mxu0
        %v3211 = vadd.f32 0.0, %v3210
        %v3212 = vpop.f32.mrb[0].mxu0
        %3213 = vmatprep.mubr.f32.mxu0 0.0
        %3214 = vmatmul.mubr.f32.gmra.mrb[0].mxu0 %v3016
        %v3215 = vpop.f32.mrb[0].mxu0
        %v3216 = vadd.f32 0.0, %v3215
        %v3217 = vpop.f32.mrb[0].mxu0
        %3218 = vmatprep.mubr.f32.mxu0 0.0
        %3219 = vmatmul.mubr.f32.gmra.mrb[0].mxu0 %v3019
        %v3220 = vpop.f32.mrb[0].mxu0
        %v3221 = vadd.f32 0.0, %v3220
        %v3222 = vpop.f32.mrb[0].mxu0
        %3223 = vmatprep.mubr.f32.mxu0 0.0
        %3224 = vmatmul.mubr.f32.gmra.mrb[0].mxu0 %v3022
        %v3225 = vpop.f32.mrb[0].mxu0
        %v3226 = vadd.f32 0.0, %v3225
        %v3227 = vpop.f32.mrb[0].mxu0
        %3228 = vmatprep.mubr.f32.mxu0 0.0
        %3229 = vmatmul.mubr.f32.gmra.mrb[0].mxu0 %v3025
        %v3230 = vpop.f32.mrb[0].mxu0
        %v3231 = vadd.f32 0.0, %v3230
        %v3232 = vpop.f32.mrb[0].mxu0
        %3233 = vmatprep.mubr.f32.mxu0 0.0
        %3234 = vmatmul.mubr.f32.gmra.mrb[0].mxu0 %v3028
        %v3235 = vpop.f32.mrb[0].mxu0
        %v3236 = vadd.f32 0.0, %v3235
        %v3237 = vpop.f32.mrb[0].mxu0
        %3238 = vmatprep.mubr.f32.mxu0 0.0
        %3239 = vmatmul.mubr.f32.gmra.mrb[0].mxu0 %v3031
        %v3240 = vpop.f32.mrb[0].mxu0
        %v3241 = vadd.f32 0.0, %v3240
        %v3242 = vpop.f32.mrb[0].mxu0
        %3243 = vmatprep.mubr.f32.mxu0 0.0
        %3244 = vmatmul.mubr.f32.gmra.mrb[0].mxu0 %v3034
        %v3245 = vpop.f32.mrb[0].mxu0
        %v3246 = vadd.f32 0.0, %v3245
        %v3247 = vpop.f32.mrb[0].mxu0
        %3248 = vmatprep.mubr.f32.mxu0 0.0
        %3249 = vmatmul.mubr.f32.gmra.mrb[0].mxu0 %v3037
        %v3250 = vpop.f32.mrb[0].mxu0
        %v3251 = vadd.f32 0.0, %v3250
        %v3252 = vpop.f32.mrb[0].mxu0
        %3253 = vmatprep.mubr.f32.mxu0 0.0
        %3254 = vmatmul.mubr.f32.gmra.mrb[0].mxu0 %v3040
        %v3255 = vpop.f32.mrb[0].mxu0
        %v3256 = vadd.f32 0.0, %v3255
        %v3257 = vpop.f32.mrb[0].mxu0
        %3258 = vmatprep.mubr.f32.mxu0 0.0
        %3259 = vmatmul.mubr.f32.gmra.mrb[0].mxu0 %v3043
        %v3260 = vpop.f32.mrb[0].mxu0
        %v3261 = vadd.f32 0.0, %v3260
        %v3262 = vpop.f32.mrb[0].mxu0
        %3263 = vmatprep.mubr.f32.mxu0 0.0
        %3264 = vmatmul.mubr.f32.gmra.mrb[0].mxu0 %v3046
        %v3265 = vpop.f32.mrb[0].mxu0
        %v3266 = vadd.f32 0.0, %v3265
        %v3267 = vpop.f32.mrb[0].mxu0
        %3268 = vmatprep.mubr.f32.mxu0 0.0
        %3269 = vmatmul.mubr.f32.gmra.mrb[0].mxu0 %v3049
        %v3270 = vpop.f32.mrb[0].mxu0
        %v3271 = vadd.f32 0.0, %v3270
        %v3272 = vpop.f32.mrb[0].mxu0
        %3273 = vmatprep.mubr.f32.mxu0 0.0
        %3274 = vmatmul.mubr.f32.gmra.mrb[0].mxu0 %v3052
        %v3275 = vpop.f32.mrb[0].mxu0
        %v3276 = vadd.f32 0.0, %v3275
        %v3277 = vpop.f32.mrb[0].mxu0
        %3278 = vdwg.mxu0
        %v3279 = vadd.f32 %v2761, %v3121
        %v3280 = vadd.f32 %v2766, %v3126
        %v3281 = vadd.f32 %v2771, %v3131
        %v3282 = vadd.f32 %v2776, %v3136
        %v3283 = vadd.f32 %v2781, %v3141
        %v3284 = vadd.f32 %v2786, %v3146
        %v3285 = vadd.f32 %v2791, %v3151
        %v3286 = vadd.f32 %v2796, %v3156
        %v3287 = vadd.f32 %v2801, %v3161
        %v3288 = vadd.f32 %v2806, %v3166
        %v3289 = vadd.f32 %v2811, %v3171
        %v3290 = vadd.f32 %v2816, %v3176
        %v3291 = vadd.f32 %v2821, %v3181
        %v3292 = vadd.f32 %v2826, %v3186
        %v3293 = vadd.f32 %v2831, %v3191
        %v3294 = vadd.f32 %v2836, %v3196
        %v3295 = vadd.f32 %v2841, %v3201
        %v3296 = vadd.f32 %v2846, %v3206
        %v3297 = vadd.f32 %v2851, %v3211
        %v3298 = vadd.f32 %v2856, %v3216
        %v3299 = vadd.f32 %v2861, %v3221
        %v3300 = vadd.f32 %v2866, %v3226
        %v3301 = vadd.f32 %v2871, %v3231
        %v3302 = vadd.f32 %v2876, %v3236
        %v3303 = vadd.f32 %v2881, %v3241
        %v3304 = vadd.f32 %v2886, %v3246
        %v3305 = vadd.f32 %v2891, %v3251
        %v3306 = vadd.f32 %v2896, %v3256
        %v3307 = vadd.f32 %v2901, %v3261
        %v3308 = vadd.f32 %v2906, %v3266
        %v3309 = vadd.f32 %v2911, %v3271
        %v3310 = vadd.f32 %v2916, %v3276
        %v3311 = vld [vmem:[%s1811] sm:$0xff]
        %v3312 = vld [vmem:[%s1811 + $0x8] sm:$0xff]
        %v3313 = vld [vmem:[%s1811 + $0x18] sm:$0xff]
        %v3314 = vld [vmem:[%s1811 + $0x20] sm:$0xff]
        %v3315 = vld [vmem:[%s1811 + $0x30] sm:$0xff]
        %v3316 = vld [vmem:[%s1811 + $0x38] sm:$0xff]
        %v3317 = vld [vmem:[%s1811 + $0x48] sm:$0xff]
        %v3318 = vld [vmem:[%s1811 + $0x50] sm:$0xff]
        %v3319 = vld [vmem:[%s1811 + $0x60] sm:$0xff]
        %v3320 = vld [vmem:[%s1811 + $0x68] sm:$0xff]
        %v3321 = vld [vmem:[%s1811 + $0x78] sm:$0xff]
        %v3322 = vld [vmem:[%s1811 + $0x80] sm:$0xff]
        %v3323 = vld [vmem:[%s1811 + $0x90] sm:$0xff]
        %v3324 = vld [vmem:[%s1811 + $0x98] sm:$0xff]
        %v3325 = vld [vmem:[%s1811 + $0xa8] sm:$0xff]
        %v3326 = vld [vmem:[%s1811 + $0xb0] sm:$0xff]
        %v3327 = vld [vmem:[%s1811 + $0xc0] sm:$0xff]
        %v3328 = vld [vmem:[%s1811 + $0xc8] sm:$0xff]
        %v3329 = vld [vmem:[%s1811 + $0xd8] sm:$0xff]
        %v3330 = vld [vmem:[%s1811 + $0xe0] sm:$0xff]
        %v3331 = vld [vmem:[%s1811 + $0xf0] sm:$0xff]
        %v3332 = vld [vmem:[%s1811 + $0xf8] sm:$0xff]
        %v3333 = vld [vmem:[%s1811 + $0x108] sm:$0xff]
        %v3334 = vld [vmem:[%s1811 + $0x110] sm:$0xff]
        %v3335 = vld [vmem:[%s1811 + $0x120] sm:$0xff]
        %v3336 = vld [vmem:[%s1811 + $0x128] sm:$0xff]
        %v3337 = vld [vmem:[%s1811 + $0x138] sm:$0xff]
        %v3338 = vld [vmem:[%s1811 + $0x140] sm:$0xff]
        %v3339 = vld [vmem:[%s1811 + $0x150] sm:$0xff]
        %v3340 = vld [vmem:[%s1811 + $0x158] sm:$0xff]
        %v3341 = vld [vmem:[%s1811 + $0x168] sm:$0xff]
        %v3342 = vld [vmem:[%s1811 + $0x170] sm:$0xff]
        %s3343 = scalar_lea.vmem %s5, 144
        %v3344 = vld [vmem:[%s3343] sm:$0xff]
        %v3345 = vld [vmem:[%s3343 + $0x8] sm:$0xff]
        %v3346 = vld [vmem:[%s3343 + $0x10] sm:$0xff]
        %v3347 = vld [vmem:[%s3343 + $0x18] sm:$0xff]
        %v3348 = vld [vmem:[%s3343 + $0x20] sm:$0xff]
        %v3349 = vld [vmem:[%s3343 + $0x28] sm:$0xff]
        %v3351 = vsel %vm1802, %v3311, 0
        %v3354 = vsel %vm1802, %v3312, 0
        %v3357 = vsel %vm1802, %v3313, 0
        %v3360 = vsel %vm1802, %v3314, 0
        %v3363 = vsel %vm1802, %v3315, 0
        %v3366 = vsel %vm1802, %v3316, 0
        %v3369 = vsel %vm1802, %v3317, 0
        %v3372 = vsel %vm1802, %v3318, 0
        %v3375 = vsel %vm1802, %v3319, 0
        %v3378 = vsel %vm1802, %v3320, 0
        %v3381 = vsel %vm1802, %v3321, 0
        %v3384 = vsel %vm1802, %v3322, 0
        %v3387 = vsel %vm1802, %v3323, 0
        %v3390 = vsel %vm1802, %v3324, 0
        %v3393 = vsel %vm1802, %v3325, 0
        %v3396 = vsel %vm1802, %v3326, 0
        %v3399 = vsel %vm1802, %v3327, 0
        %v3402 = vsel %vm1802, %v3328, 0
        %v3405 = vsel %vm1802, %v3329, 0
        %v3408 = vsel %vm1802, %v3330, 0
        %v3411 = vsel %vm1802, %v3331, 0
        %v3414 = vsel %vm1802, %v3332, 0
        %v3417 = vsel %vm1802, %v3333, 0
        %v3420 = vsel %vm1802, %v3334, 0
        %v3423 = vsel %vm1802, %v3335, 0
        %v3426 = vsel %vm1802, %v3336, 0
        %v3429 = vsel %vm1802, %v3337, 0
        %v3432 = vsel %vm1802, %v3338, 0
        %v3435 = vsel %vm1802, %v3339, 0
        %v3438 = vsel %vm1802, %v3340, 0
        %v3441 = vsel %vm1802, %v3341, 0
        %v3444 = vsel %vm1802, %v3342, 0
        %3446 = vmatprep.subr.mxu0 0.0
        %3447 = vmatpush1.msra.mxu0 %v3344
        %3448 = vmatprep.subr.mxu0 0.0
        %3449 = vmatpush1.msra.mxu0 %v3345
        %3450 = vmatprep.subr.mxu0 0.0
        %3451 = vmatpush1.msra.mxu0 %v3346
        %3452 = vmatprep.subr.mxu0 0.0
        %3453 = vmatpush1.msra.mxu0 %v3347
        %3454 = vmatprep.subr.mxu0 0.0
        %3455 = vmatpush1.msra.mxu0 %v3348
        %3456 = vmatprep.subr.mxu0 0.0
        %3457 = vmatpush1.msra.mxu0 %v3349
        %3458 = vmatprep.subr.mxu0 0.0
        %3459 = vmatpush1.msra.mxu0 0.0
        %3460 = vmatprep.subr.mxu0 0.0
        %3461 = vmatpush1.msra.mxu0 0.0
        %3462 = vmatprep.subr.mxu0 0.0
        %3463 = vmatpush1.msra.mxu0 0.0
        %3464 = vmatprep.subr.mxu0 0.0
        %3465 = vmatpush1.msra.mxu0 0.0
        %3466 = vmatprep.subr.mxu0 0.0
        %3467 = vmatpush1.msra.mxu0 0.0
        %3468 = vmatprep.subr.mxu0 0.0
        %3469 = vmatpush1.msra.mxu0 0.0
        %3470 = vmatprep.subr.mxu0 0.0
        %3471 = vmatpush1.msra.mxu0 0.0
        %3472 = vmatprep.subr.mxu0 0.0
        %3473 = vmatpush1.msra.mxu0 0.0
        %3474 = vmatprep.subr.mxu0 0.0
        %3475 = vmatpush1.msra.mxu0 0.0
        %3476 = vmatprep.subr.mxu0 0.0
        %3477 = vmatpush1.msra.mxu0 0.0
        %3478 = vmatprep.subr.mxu0 0.0
        %3479 = vmatpush1.msra.mxu0 0.0
        %3480 = vmatprep.subr.mxu0 0.0
        %3481 = vmatpush1.msra.mxu0 0.0
        %3482 = vmatprep.subr.mxu0 0.0
        %3483 = vmatpush1.msra.mxu0 0.0
        %3484 = vmatprep.subr.mxu0 0.0
        %3485 = vmatpush1.msra.mxu0 0.0
        %3486 = vmatprep.subr.mxu0 0.0
        %3487 = vmatpush1.msra.mxu0 0.0
        %3488 = vmatprep.subr.mxu0 0.0
        %3489 = vmatpush1.msra.mxu0 0.0
        %3490 = vmatprep.subr.mxu0 0.0
        %3491 = vmatpush1.msra.mxu0 0.0
        %3492 = vmatprep.subr.mxu0 0.0
        %3493 = vmatpush1.msra.mxu0 0.0
        %3494 = vmatprep.subr.mxu0 0.0
        %3495 = vmatpush1.msra.mxu0 0.0
        %3496 = vmatprep.subr.mxu0 0.0
        %3497 = vmatpush1.msra.mxu0 0.0
        %3498 = vmatprep.subr.mxu0 0.0
        %3499 = vmatpush1.msra.mxu0 0.0
        %3500 = vmatprep.subr.mxu0 0.0
        %3501 = vmatpush1.msra.mxu0 0.0
        %3502 = vmatprep.subr.mxu0 0.0
        %3503 = vmatpush1.msra.mxu0 0.0
        %3504 = vmatprep.subr.mxu0 0.0
        %3505 = vmatpush1.msra.mxu0 0.0
        %3506 = vmatprep.subr.mxu0 0.0
        %3507 = vmatpush1.msra.mxu0 0.0
        %3508 = vmatprep.subr.mxu0 0.0
        %3509 = vmatpush1.msra.mxu0 0.0
        %3510 = vmatprep.mubr.f32.mxu0 0.0
        %3511 = vmatmul.mubr.f32.gmra.mrb[0].mxu0 %v3351
        %v3512 = vpop.f32.mrb[0].mxu0
        %v3513 = vadd.f32 0.0, %v3512
        %v3514 = vpop.f32.mrb[0].mxu0
        %3515 = vmatprep.mubr.f32.mxu0 0.0
        %3516 = vmatmul.mubr.f32.gmra.mrb[0].mxu0 %v3354
        %v3517 = vpop.f32.mrb[0].mxu0
        %v3518 = vadd.f32 0.0, %v3517
        %v3519 = vpop.f32.mrb[0].mxu0
        %3520 = vmatprep.mubr.f32.mxu0 0.0
        %3521 = vmatmul.mubr.f32.gmra.mrb[0].mxu0 %v3357
        %v3522 = vpop.f32.mrb[0].mxu0
        %v3523 = vadd.f32 0.0, %v3522
        %v3524 = vpop.f32.mrb[0].mxu0
        %3525 = vmatprep.mubr.f32.mxu0 0.0
        %3526 = vmatmul.mubr.f32.gmra.mrb[0].mxu0 %v3360
        %v3527 = vpop.f32.mrb[0].mxu0
        %v3528 = vadd.f32 0.0, %v3527
        %v3529 = vpop.f32.mrb[0].mxu0
        %3530 = vmatprep.mubr.f32.mxu0 0.0
        %3531 = vmatmul.mubr.f32.gmra.mrb[0].mxu0 %v3363
        %v3532 = vpop.f32.mrb[0].mxu0
        %v3533 = vadd.f32 0.0, %v3532
        %v3534 = vpop.f32.mrb[0].mxu0
        %3535 = vmatprep.mubr.f32.mxu0 0.0
        %3536 = vmatmul.mubr.f32.gmra.mrb[0].mxu0 %v3366
        %v3537 = vpop.f32.mrb[0].mxu0
        %v3538 = vadd.f32 0.0, %v3537
        %v3539 = vpop.f32.mrb[0].mxu0
        %3540 = vmatprep.mubr.f32.mxu0 0.0
        %3541 = vmatmul.mubr.f32.gmra.mrb[0].mxu0 %v3369
        %v3542 = vpop.f32.mrb[0].mxu0
        %v3543 = vadd.f32 0.0, %v3542
        %v3544 = vpop.f32.mrb[0].mxu0
        %3545 = vmatprep.mubr.f32.mxu0 0.0
        %3546 = vmatmul.mubr.f32.gmra.mrb[0].mxu0 %v3372
        %v3547 = vpop.f32.mrb[0].mxu0
        %v3548 = vadd.f32 0.0, %v3547
        %v3549 = vpop.f32.mrb[0].mxu0
        %3550 = vmatprep.mubr.f32.mxu0 0.0
        %3551 = vmatmul.mubr.f32.gmra.mrb[0].mxu0 %v3375
        %v3552 = vpop.f32.mrb[0].mxu0
        %v3553 = vadd.f32 0.0, %v3552
        %v3554 = vpop.f32.mrb[0].mxu0
        %3555 = vmatprep.mubr.f32.mxu0 0.0
        %3556 = vmatmul.mubr.f32.gmra.mrb[0].mxu0 %v3378
        %v3557 = vpop.f32.mrb[0].mxu0
        %v3558 = vadd.f32 0.0, %v3557
        %v3559 = vpop.f32.mrb[0].mxu0
        %3560 = vmatprep.mubr.f32.mxu0 0.0
        %3561 = vmatmul.mubr.f32.gmra.mrb[0].mxu0 %v3381
        %v3562 = vpop.f32.mrb[0].mxu0
        %v3563 = vadd.f32 0.0, %v3562
        %v3564 = vpop.f32.mrb[0].mxu0
        %3565 = vmatprep.mubr.f32.mxu0 0.0
        %3566 = vmatmul.mubr.f32.gmra.mrb[0].mxu0 %v3384
        %v3567 = vpop.f32.mrb[0].mxu0
        %v3568 = vadd.f32 0.0, %v3567
        %v3569 = vpop.f32.mrb[0].mxu0
        %3570 = vmatprep.mubr.f32.mxu0 0.0
        %3571 = vmatmul.mubr.f32.gmra.mrb[0].mxu0 %v3387
        %v3572 = vpop.f32.mrb[0].mxu0
        %v3573 = vadd.f32 0.0, %v3572
        %v3574 = vpop.f32.mrb[0].mxu0
        %3575 = vmatprep.mubr.f32.mxu0 0.0
        %3576 = vmatmul.mubr.f32.gmra.mrb[0].mxu0 %v3390
        %v3577 = vpop.f32.mrb[0].mxu0
        %v3578 = vadd.f32 0.0, %v3577
        %v3579 = vpop.f32.mrb[0].mxu0
        %3580 = vmatprep.mubr.f32.mxu0 0.0
        %3581 = vmatmul.mubr.f32.gmra.mrb[0].mxu0 %v3393
        %v3582 = vpop.f32.mrb[0].mxu0
        %v3583 = vadd.f32 0.0, %v3582
        %v3584 = vpop.f32.mrb[0].mxu0
        %3585 = vmatprep.mubr.f32.mxu0 0.0
        %3586 = vmatmul.mubr.f32.gmra.mrb[0].mxu0 %v3396
        %v3587 = vpop.f32.mrb[0].mxu0
        %v3588 = vadd.f32 0.0, %v3587
        %v3589 = vpop.f32.mrb[0].mxu0
        %3590 = vmatprep.mubr.f32.mxu0 0.0
        %3591 = vmatmul.mubr.f32.gmra.mrb[0].mxu0 %v3399
        %v3592 = vpop.f32.mrb[0].mxu0
        %v3593 = vadd.f32 0.0, %v3592
        %v3594 = vpop.f32.mrb[0].mxu0
        %3595 = vmatprep.mubr.f32.mxu0 0.0
        %3596 = vmatmul.mubr.f32.gmra.mrb[0].mxu0 %v3402
        %v3597 = vpop.f32.mrb[0].mxu0
        %v3598 = vadd.f32 0.0, %v3597
        %v3599 = vpop.f32.mrb[0].mxu0
        %3600 = vmatprep.mubr.f32.mxu0 0.0
        %3601 = vmatmul.mubr.f32.gmra.mrb[0].mxu0 %v3405
        %v3602 = vpop.f32.mrb[0].mxu0
        %v3603 = vadd.f32 0.0, %v3602
        %v3604 = vpop.f32.mrb[0].mxu0
        %3605 = vmatprep.mubr.f32.mxu0 0.0
        %3606 = vmatmul.mubr.f32.gmra.mrb[0].mxu0 %v3408
        %v3607 = vpop.f32.mrb[0].mxu0
        %v3608 = vadd.f32 0.0, %v3607
        %v3609 = vpop.f32.mrb[0].mxu0
        %3610 = vmatprep.mubr.f32.mxu0 0.0
        %3611 = vmatmul.mubr.f32.gmra.mrb[0].mxu0 %v3411
        %v3612 = vpop.f32.mrb[0].mxu0
        %v3613 = vadd.f32 0.0, %v3612
        %v3614 = vpop.f32.mrb[0].mxu0
        %3615 = vmatprep.mubr.f32.mxu0 0.0
        %3616 = vmatmul.mubr.f32.gmra.mrb[0].mxu0 %v3414
        %v3617 = vpop.f32.mrb[0].mxu0
        %v3618 = vadd.f32 0.0, %v3617
        %v3619 = vpop.f32.mrb[0].mxu0
        %3620 = vmatprep.mubr.f32.mxu0 0.0
        %3621 = vmatmul.mubr.f32.gmra.mrb[0].mxu0 %v3417
        %v3622 = vpop.f32.mrb[0].mxu0
        %v3623 = vadd.f32 0.0, %v3622
        %v3624 = vpop.f32.mrb[0].mxu0
        %3625 = vmatprep.mubr.f32.mxu0 0.0
        %3626 = vmatmul.mubr.f32.gmra.mrb[0].mxu0 %v3420
        %v3627 = vpop.f32.mrb[0].mxu0
        %v3628 = vadd.f32 0.0, %v3627
        %v3629 = vpop.f32.mrb[0].mxu0
        %3630 = vmatprep.mubr.f32.mxu0 0.0
        %3631 = vmatmul.mubr.f32.gmra.mrb[0].mxu0 %v3423
        %v3632 = vpop.f32.mrb[0].mxu0
        %v3633 = vadd.f32 0.0, %v3632
        %v3634 = vpop.f32.mrb[0].mxu0
        %3635 = vmatprep.mubr.f32.mxu0 0.0
        %3636 = vmatmul.mubr.f32.gmra.mrb[0].mxu0 %v3426
        %v3637 = vpop.f32.mrb[0].mxu0
        %v3638 = vadd.f32 0.0, %v3637
        %v3639 = vpop.f32.mrb[0].mxu0
        %3640 = vmatprep.mubr.f32.mxu0 0.0
        %3641 = vmatmul.mubr.f32.gmra.mrb[0].mxu0 %v3429
        %v3642 = vpop.f32.mrb[0].mxu0
        %v3643 = vadd.f32 0.0, %v3642
        %v3644 = vpop.f32.mrb[0].mxu0
        %3645 = vmatprep.mubr.f32.mxu0 0.0
        %3646 = vmatmul.mubr.f32.gmra.mrb[0].mxu0 %v3432
        %v3647 = vpop.f32.mrb[0].mxu0
        %v3648 = vadd.f32 0.0, %v3647
        %v3649 = vpop.f32.mrb[0].mxu0
        %3650 = vmatprep.mubr.f32.mxu0 0.0
        %3651 = vmatmul.mubr.f32.gmra.mrb[0].mxu0 %v3435
        %v3652 = vpop.f32.mrb[0].mxu0
        %v3653 = vadd.f32 0.0, %v3652
        %v3654 = vpop.f32.mrb[0].mxu0
        %3655 = vmatprep.mubr.f32.mxu0 0.0
        %3656 = vmatmul.mubr.f32.gmra.mrb[0].mxu0 %v3438
        %v3657 = vpop.f32.mrb[0].mxu0
        %v3658 = vadd.f32 0.0, %v3657
        %v3659 = vpop.f32.mrb[0].mxu0
        %3660 = vmatprep.mubr.f32.mxu0 0.0
        %3661 = vmatmul.mubr.f32.gmra.mrb[0].mxu0 %v3441
        %v3662 = vpop.f32.mrb[0].mxu0
        %v3663 = vadd.f32 0.0, %v3662
        %v3664 = vpop.f32.mrb[0].mxu0
        %3665 = vmatprep.mubr.f32.mxu0 0.0
        %3666 = vmatmul.mubr.f32.gmra.mrb[0].mxu0 %v3444
        %v3667 = vpop.f32.mrb[0].mxu0
        %v3668 = vadd.f32 0.0, %v3667
        %v3669 = vpop.f32.mrb[0].mxu0
        %3670 = vdwg.mxu0
        %v3671 = vadd.f32 %v3279, %v3513
        %v3672 = vadd.f32 %v3280, %v3518
        %v3673 = vadd.f32 %v3281, %v3523
        %v3674 = vadd.f32 %v3282, %v3528
        %v3675 = vadd.f32 %v3283, %v3533
        %v3676 = vadd.f32 %v3284, %v3538
        %v3677 = vadd.f32 %v3285, %v3543
        %v3678 = vadd.f32 %v3286, %v3548
        %v3679 = vadd.f32 %v3287, %v3553
        %v3680 = vadd.f32 %v3288, %v3558
        %v3681 = vadd.f32 %v3289, %v3563
        %v3682 = vadd.f32 %v3290, %v3568
        %v3683 = vadd.f32 %v3291, %v3573
        %v3684 = vadd.f32 %v3292, %v3578
        %v3685 = vadd.f32 %v3293, %v3583
        %v3686 = vadd.f32 %v3294, %v3588
        %v3687 = vadd.f32 %v3295, %v3593
        %v3688 = vadd.f32 %v3296, %v3598
        %v3689 = vadd.f32 %v3297, %v3603
        %v3690 = vadd.f32 %v3298, %v3608
        %v3691 = vadd.f32 %v3299, %v3613
        %v3692 = vadd.f32 %v3300, %v3618
        %v3693 = vadd.f32 %v3301, %v3623
        %v3694 = vadd.f32 %v3302, %v3628
        %v3695 = vadd.f32 %v3303, %v3633
        %v3696 = vadd.f32 %v3304, %v3638
        %v3697 = vadd.f32 %v3305, %v3643
        %v3698 = vadd.f32 %v3306, %v3648
        %v3699 = vadd.f32 %v3307, %v3653
        %v3700 = vadd.f32 %v3308, %v3658
        %v3701 = vadd.f32 %v3309, %v3663
        %v3702 = vadd.f32 %v3310, %v3668
        %v3703 = vld [vmem:[%s1811 + $0x1] sm:$0xff]
        %v3704 = vld [vmem:[%s1811 + $0x9] sm:$0xff]
        %v3705 = vld [vmem:[%s1811 + $0x19] sm:$0xff]
        %v3706 = vld [vmem:[%s1811 + $0x21] sm:$0xff]
        %v3707 = vld [vmem:[%s1811 + $0x31] sm:$0xff]
        %v3708 = vld [vmem:[%s1811 + $0x39] sm:$0xff]
        %v3709 = vld [vmem:[%s1811 + $0x49] sm:$0xff]
        %v3710 = vld [vmem:[%s1811 + $0x51] sm:$0xff]
        %v3711 = vld [vmem:[%s1811 + $0x61] sm:$0xff]
        %v3712 = vld [vmem:[%s1811 + $0x69] sm:$0xff]
        %v3713 = vld [vmem:[%s1811 + $0x79] sm:$0xff]
        %v3714 = vld [vmem:[%s1811 + $0x81] sm:$0xff]
        %v3715 = vld [vmem:[%s1811 + $0x91] sm:$0xff]
        %v3716 = vld [vmem:[%s1811 + $0x99] sm:$0xff]
        %v3717 = vld [vmem:[%s1811 + $0xa9] sm:$0xff]
        %v3718 = vld [vmem:[%s1811 + $0xb1] sm:$0xff]
        %v3719 = vld [vmem:[%s1811 + $0xc1] sm:$0xff]
        %v3720 = vld [vmem:[%s1811 + $0xc9] sm:$0xff]
        %v3721 = vld [vmem:[%s1811 + $0xd9] sm:$0xff]
        %v3722 = vld [vmem:[%s1811 + $0xe1] sm:$0xff]
        %v3723 = vld [vmem:[%s1811 + $0xf1] sm:$0xff]
        %v3724 = vld [vmem:[%s1811 + $0xf9] sm:$0xff]
        %v3725 = vld [vmem:[%s1811 + $0x109] sm:$0xff]
        %v3726 = vld [vmem:[%s1811 + $0x111] sm:$0xff]
        %v3727 = vld [vmem:[%s1811 + $0x121] sm:$0xff]
        %v3728 = vld [vmem:[%s1811 + $0x129] sm:$0xff]
        %v3729 = vld [vmem:[%s1811 + $0x139] sm:$0xff]
        %v3730 = vld [vmem:[%s1811 + $0x141] sm:$0xff]
        %v3731 = vld [vmem:[%s1811 + $0x151] sm:$0xff]
        %v3732 = vld [vmem:[%s1811 + $0x159] sm:$0xff]
        %v3733 = vld [vmem:[%s1811 + $0x169] sm:$0xff]
        %v3734 = vld [vmem:[%s1811 + $0x171] sm:$0xff]
        %s3735 = scalar_lea.vmem %s5, 192
        %v3736 = vld [vmem:[%s3735] sm:$0xff]
        %v3737 = vld [vmem:[%s3735 + $0x8] sm:$0xff]
        %v3738 = vld [vmem:[%s3735 + $0x10] sm:$0xff]
        %v3739 = vld [vmem:[%s3735 + $0x18] sm:$0xff]
        %v3740 = vld [vmem:[%s3735 + $0x20] sm:$0xff]
        %v3741 = vld [vmem:[%s3735 + $0x28] sm:$0xff]
        %v3743 = vsel %vm1802, %v3703, 0
        %v3746 = vsel %vm1802, %v3704, 0
        %v3749 = vsel %vm1802, %v3705, 0
        %v3752 = vsel %vm1802, %v3706, 0
        %v3755 = vsel %vm1802, %v3707, 0
        %v3758 = vsel %vm1802, %v3708, 0
        %v3761 = vsel %vm1802, %v3709, 0
        %v3764 = vsel %vm1802, %v3710, 0
        %v3767 = vsel %vm1802, %v3711, 0
        %v3770 = vsel %vm1802, %v3712, 0
        %v3773 = vsel %vm1802, %v3713, 0
        %v3776 = vsel %vm1802, %v3714, 0
        %v3779 = vsel %vm1802, %v3715, 0
        %v3782 = vsel %vm1802, %v3716, 0
        %v3785 = vsel %vm1802, %v3717, 0
        %v3788 = vsel %vm1802, %v3718, 0
        %v3791 = vsel %vm1802, %v3719, 0
        %v3794 = vsel %vm1802, %v3720, 0
        %v3797 = vsel %vm1802, %v3721, 0
        %v3800 = vsel %vm1802, %v3722, 0
        %v3803 = vsel %vm1802, %v3723, 0
        %v3806 = vsel %vm1802, %v3724, 0
        %v3809 = vsel %vm1802, %v3725, 0
        %v3812 = vsel %vm1802, %v3726, 0
        %v3815 = vsel %vm1802, %v3727, 0
        %v3818 = vsel %vm1802, %v3728, 0
        %v3821 = vsel %vm1802, %v3729, 0
        %v3824 = vsel %vm1802, %v3730, 0
        %v3827 = vsel %vm1802, %v3731, 0
        %v3830 = vsel %vm1802, %v3732, 0
        %v3833 = vsel %vm1802, %v3733, 0
        %v3836 = vsel %vm1802, %v3734, 0
        %3838 = vmatprep.subr.mxu0 0.0
        %3839 = vmatpush1.msra.mxu0 %v3736
        %3840 = vmatprep.subr.mxu0 0.0
        %3841 = vmatpush1.msra.mxu0 %v3737
        %3842 = vmatprep.subr.mxu0 0.0
        %3843 = vmatpush1.msra.mxu0 %v3738
        %3844 = vmatprep.subr.mxu0 0.0
        %3845 = vmatpush1.msra.mxu0 %v3739
        %3846 = vmatprep.subr.mxu0 0.0
        %3847 = vmatpush1.msra.mxu0 %v3740
        %3848 = vmatprep.subr.mxu0 0.0
        %3849 = vmatpush1.msra.mxu0 %v3741
        %3850 = vmatprep.subr.mxu0 0.0
        %3851 = vmatpush1.msra.mxu0 0.0
        %3852 = vmatprep.subr.mxu0 0.0
        %3853 = vmatpush1.msra.mxu0 0.0
        %3854 = vmatprep.subr.mxu0 0.0
        %3855 = vmatpush1.msra.mxu0 0.0
        %3856 = vmatprep.subr.mxu0 0.0
        %3857 = vmatpush1.msra.mxu0 0.0
        %3858 = vmatprep.subr.mxu0 0.0
        %3859 = vmatpush1.msra.mxu0 0.0
        %3860 = vmatprep.subr.mxu0 0.0
        %3861 = vmatpush1.msra.mxu0 0.0
        %3862 = vmatprep.subr.mxu0 0.0
        %3863 = vmatpush1.msra.mxu0 0.0
        %3864 = vmatprep.subr.mxu0 0.0
        %3865 = vmatpush1.msra.mxu0 0.0
        %3866 = vmatprep.subr.mxu0 0.0
        %3867 = vmatpush1.msra.mxu0 0.0
        %3868 = vmatprep.subr.mxu0 0.0
        %3869 = vmatpush1.msra.mxu0 0.0
        %3870 = vmatprep.subr.mxu0 0.0
        %3871 = vmatpush1.msra.mxu0 0.0
        %3872 = vmatprep.subr.mxu0 0.0
        %3873 = vmatpush1.msra.mxu0 0.0
        %3874 = vmatprep.subr.mxu0 0.0
        %3875 = vmatpush1.msra.mxu0 0.0
        %3876 = vmatprep.subr.mxu0 0.0
        %3877 = vmatpush1.msra.mxu0 0.0
        %3878 = vmatprep.subr.mxu0 0.0
        %3879 = vmatpush1.msra.mxu0 0.0
        %3880 = vmatprep.subr.mxu0 0.0
        %3881 = vmatpush1.msra.mxu0 0.0
        %3882 = vmatprep.subr.mxu0 0.0
        %3883 = vmatpush1.msra.mxu0 0.0
        %3884 = vmatprep.subr.mxu0 0.0
        %3885 = vmatpush1.msra.mxu0 0.0
        %3886 = vmatprep.subr.mxu0 0.0
        %3887 = vmatpush1.msra.mxu0 0.0
        %3888 = vmatprep.subr.mxu0 0.0
        %3889 = vmatpush1.msra.mxu0 0.0
        %3890 = vmatprep.subr.mxu0 0.0
        %3891 = vmatpush1.msra.mxu0 0.0
        %3892 = vmatprep.subr.mxu0 0.0
        %3893 = vmatpush1.msra.mxu0 0.0
        %3894 = vmatprep.subr.mxu0 0.0
        %3895 = vmatpush1.msra.mxu0 0.0
        %3896 = vmatprep.subr.mxu0 0.0
        %3897 = vmatpush1.msra.mxu0 0.0
        %3898 = vmatprep.subr.mxu0 0.0
        %3899 = vmatpush1.msra.mxu0 0.0
        %3900 = vmatprep.subr.mxu0 0.0
        %3901 = vmatpush1.msra.mxu0 0.0
        %3902 = vmatprep.mubr.f32.mxu0 0.0
        %3903 = vmatmul.mubr.f32.gmra.mrb[0].mxu0 %v3743
        %v3904 = vpop.f32.mrb[0].mxu0
        %v3905 = vadd.f32 0.0, %v3904
        %v3906 = vpop.f32.mrb[0].mxu0
        %3907 = vmatprep.mubr.f32.mxu0 0.0
        %3908 = vmatmul.mubr.f32.gmra.mrb[0].mxu0 %v3746
        %v3909 = vpop.f32.mrb[0].mxu0
        %v3910 = vadd.f32 0.0, %v3909
        %v3911 = vpop.f32.mrb[0].mxu0
        %3912 = vmatprep.mubr.f32.mxu0 0.0
        %3913 = vmatmul.mubr.f32.gmra.mrb[0].mxu0 %v3749
        %v3914 = vpop.f32.mrb[0].mxu0
        %v3915 = vadd.f32 0.0, %v3914
        %v3916 = vpop.f32.mrb[0].mxu0
        %3917 = vmatprep.mubr.f32.mxu0 0.0
        %3918 = vmatmul.mubr.f32.gmra.mrb[0].mxu0 %v3752
        %v3919 = vpop.f32.mrb[0].mxu0
        %v3920 = vadd.f32 0.0, %v3919
        %v3921 = vpop.f32.mrb[0].mxu0
        %3922 = vmatprep.mubr.f32.mxu0 0.0
        %3923 = vmatmul.mubr.f32.gmra.mrb[0].mxu0 %v3755
        %v3924 = vpop.f32.mrb[0].mxu0
        %v3925 = vadd.f32 0.0, %v3924
        %v3926 = vpop.f32.mrb[0].mxu0
        %3927 = vmatprep.mubr.f32.mxu0 0.0
        %3928 = vmatmul.mubr.f32.gmra.mrb[0].mxu0 %v3758
        %v3929 = vpop.f32.mrb[0].mxu0
        %v3930 = vadd.f32 0.0, %v3929
        %v3931 = vpop.f32.mrb[0].mxu0
        %3932 = vmatprep.mubr.f32.mxu0 0.0
        %3933 = vmatmul.mubr.f32.gmra.mrb[0].mxu0 %v3761
        %v3934 = vpop.f32.mrb[0].mxu0
        %v3935 = vadd.f32 0.0, %v3934
        %v3936 = vpop.f32.mrb[0].mxu0
        %3937 = vmatprep.mubr.f32.mxu0 0.0
        %3938 = vmatmul.mubr.f32.gmra.mrb[0].mxu0 %v3764
        %v3939 = vpop.f32.mrb[0].mxu0
        %v3940 = vadd.f32 0.0, %v3939
        %v3941 = vpop.f32.mrb[0].mxu0
        %3942 = vmatprep.mubr.f32.mxu0 0.0
        %3943 = vmatmul.mubr.f32.gmra.mrb[0].mxu0 %v3767
        %v3944 = vpop.f32.mrb[0].mxu0
        %v3945 = vadd.f32 0.0, %v3944
        %v3946 = vpop.f32.mrb[0].mxu0
        %3947 = vmatprep.mubr.f32.mxu0 0.0
        %3948 = vmatmul.mubr.f32.gmra.mrb[0].mxu0 %v3770
        %v3949 = vpop.f32.mrb[0].mxu0
        %v3950 = vadd.f32 0.0, %v3949
        %v3951 = vpop.f32.mrb[0].mxu0
        %3952 = vmatprep.mubr.f32.mxu0 0.0
        %3953 = vmatmul.mubr.f32.gmra.mrb[0].mxu0 %v3773
        %v3954 = vpop.f32.mrb[0].mxu0
        %v3955 = vadd.f32 0.0, %v3954
        %v3956 = vpop.f32.mrb[0].mxu0
        %3957 = vmatprep.mubr.f32.mxu0 0.0
        %3958 = vmatmul.mubr.f32.gmra.mrb[0].mxu0 %v3776
        %v3959 = vpop.f32.mrb[0].mxu0
        %v3960 = vadd.f32 0.0, %v3959
        %v3961 = vpop.f32.mrb[0].mxu0
        %3962 = vmatprep.mubr.f32.mxu0 0.0
        %3963 = vmatmul.mubr.f32.gmra.mrb[0].mxu0 %v3779
        %v3964 = vpop.f32.mrb[0].mxu0
        %v3965 = vadd.f32 0.0, %v3964
        %v3966 = vpop.f32.mrb[0].mxu0
        %3967 = vmatprep.mubr.f32.mxu0 0.0
        %3968 = vmatmul.mubr.f32.gmra.mrb[0].mxu0 %v3782
        %v3969 = vpop.f32.mrb[0].mxu0
        %v3970 = vadd.f32 0.0, %v3969
        %v3971 = vpop.f32.mrb[0].mxu0
        %3972 = vmatprep.mubr.f32.mxu0 0.0
        %3973 = vmatmul.mubr.f32.gmra.mrb[0].mxu0 %v3785
        %v3974 = vpop.f32.mrb[0].mxu0
        %v3975 = vadd.f32 0.0, %v3974
        %v3976 = vpop.f32.mrb[0].mxu0
        %3977 = vmatprep.mubr.f32.mxu0 0.0
        %3978 = vmatmul.mubr.f32.gmra.mrb[0].mxu0 %v3788
        %v3979 = vpop.f32.mrb[0].mxu0
        %v3980 = vadd.f32 0.0, %v3979
        %v3981 = vpop.f32.mrb[0].mxu0
        %3982 = vmatprep.mubr.f32.mxu0 0.0
        %3983 = vmatmul.mubr.f32.gmra.mrb[0].mxu0 %v3791
        %v3984 = vpop.f32.mrb[0].mxu0
        %v3985 = vadd.f32 0.0, %v3984
        %v3986 = vpop.f32.mrb[0].mxu0
        %3987 = vmatprep.mubr.f32.mxu0 0.0
        %3988 = vmatmul.mubr.f32.gmra.mrb[0].mxu0 %v3794
        %v3989 = vpop.f32.mrb[0].mxu0
        %v3990 = vadd.f32 0.0, %v3989
        %v3991 = vpop.f32.mrb[0].mxu0
        %3992 = vmatprep.mubr.f32.mxu0 0.0
        %3993 = vmatmul.mubr.f32.gmra.mrb[0].mxu0 %v3797
        %v3994 = vpop.f32.mrb[0].mxu0
        %v3995 = vadd.f32 0.0, %v3994
        %v3996 = vpop.f32.mrb[0].mxu0
        %3997 = vmatprep.mubr.f32.mxu0 0.0
        %3998 = vmatmul.mubr.f32.gmra.mrb[0].mxu0 %v3800
        %v3999 = vpop.f32.mrb[0].mxu0
        %v4000 = vadd.f32 0.0, %v3999
        %v4001 = vpop.f32.mrb[0].mxu0
        %4002 = vmatprep.mubr.f32.mxu0 0.0
        %4003 = vmatmul.mubr.f32.gmra.mrb[0].mxu0 %v3803
        %v4004 = vpop.f32.mrb[0].mxu0
        %v4005 = vadd.f32 0.0, %v4004
        %v4006 = vpop.f32.mrb[0].mxu0
        %4007 = vmatprep.mubr.f32.mxu0 0.0
        %4008 = vmatmul.mubr.f32.gmra.mrb[0].mxu0 %v3806
        %v4009 = vpop.f32.mrb[0].mxu0
        %v4010 = vadd.f32 0.0, %v4009
        %v4011 = vpop.f32.mrb[0].mxu0
        %4012 = vmatprep.mubr.f32.mxu0 0.0
        %4013 = vmatmul.mubr.f32.gmra.mrb[0].mxu0 %v3809
        %v4014 = vpop.f32.mrb[0].mxu0
        %v4015 = vadd.f32 0.0, %v4014
        %v4016 = vpop.f32.mrb[0].mxu0
        %4017 = vmatprep.mubr.f32.mxu0 0.0
        %4018 = vmatmul.mubr.f32.gmra.mrb[0].mxu0 %v3812
        %v4019 = vpop.f32.mrb[0].mxu0
        %v4020 = vadd.f32 0.0, %v4019
        %v4021 = vpop.f32.mrb[0].mxu0
        %4022 = vmatprep.mubr.f32.mxu0 0.0
        %4023 = vmatmul.mubr.f32.gmra.mrb[0].mxu0 %v3815
        %v4024 = vpop.f32.mrb[0].mxu0
        %v4025 = vadd.f32 0.0, %v4024
        %v4026 = vpop.f32.mrb[0].mxu0
        %4027 = vmatprep.mubr.f32.mxu0 0.0
        %4028 = vmatmul.mubr.f32.gmra.mrb[0].mxu0 %v3818
        %v4029 = vpop.f32.mrb[0].mxu0
        %v4030 = vadd.f32 0.0, %v4029
        %v4031 = vpop.f32.mrb[0].mxu0
        %4032 = vmatprep.mubr.f32.mxu0 0.0
        %4033 = vmatmul.mubr.f32.gmra.mrb[0].mxu0 %v3821
        %v4034 = vpop.f32.mrb[0].mxu0
        %v4035 = vadd.f32 0.0, %v4034
        %v4036 = vpop.f32.mrb[0].mxu0
        %4037 = vmatprep.mubr.f32.mxu0 0.0
        %4038 = vmatmul.mubr.f32.gmra.mrb[0].mxu0 %v3824
        %v4039 = vpop.f32.mrb[0].mxu0
        %v4040 = vadd.f32 0.0, %v4039
        %v4041 = vpop.f32.mrb[0].mxu0
        %4042 = vmatprep.mubr.f32.mxu0 0.0
        %4043 = vmatmul.mubr.f32.gmra.mrb[0].mxu0 %v3827
        %v4044 = vpop.f32.mrb[0].mxu0
        %v4045 = vadd.f32 0.0, %v4044
        %v4046 = vpop.f32.mrb[0].mxu0
        %4047 = vmatprep.mubr.f32.mxu0 0.0
        %4048 = vmatmul.mubr.f32.gmra.mrb[0].mxu0 %v3830
        %v4049 = vpop.f32.mrb[0].mxu0
        %v4050 = vadd.f32 0.0, %v4049
        %v4051 = vpop.f32.mrb[0].mxu0
        %4052 = vmatprep.mubr.f32.mxu0 0.0
        %4053 = vmatmul.mubr.f32.gmra.mrb[0].mxu0 %v3833
        %v4054 = vpop.f32.mrb[0].mxu0
        %v4055 = vadd.f32 0.0, %v4054
        %v4056 = vpop.f32.mrb[0].mxu0
        %4057 = vmatprep.mubr.f32.mxu0 0.0
        %4058 = vmatmul.mubr.f32.gmra.mrb[0].mxu0 %v3836
        %v4059 = vpop.f32.mrb[0].mxu0
        %v4060 = vadd.f32 0.0, %v4059
        %v4061 = vpop.f32.mrb[0].mxu0
        %4062 = vdwg.mxu0
        %v4063 = vadd.f32 %v3671, %v3905
        %v4064 = vadd.f32 %v3672, %v3910
        %v4065 = vadd.f32 %v3673, %v3915
        %v4066 = vadd.f32 %v3674, %v3920
        %v4067 = vadd.f32 %v3675, %v3925
        %v4068 = vadd.f32 %v3676, %v3930
        %v4069 = vadd.f32 %v3677, %v3935
        %v4070 = vadd.f32 %v3678, %v3940
        %v4071 = vadd.f32 %v3679, %v3945
        %v4072 = vadd.f32 %v3680, %v3950
        %v4073 = vadd.f32 %v3681, %v3955
        %v4074 = vadd.f32 %v3682, %v3960
        %v4075 = vadd.f32 %v3683, %v3965
        %v4076 = vadd.f32 %v3684, %v3970
        %v4077 = vadd.f32 %v3685, %v3975
        %v4078 = vadd.f32 %v3686, %v3980
        %v4079 = vadd.f32 %v3687, %v3985
        %v4080 = vadd.f32 %v3688, %v3990
        %v4081 = vadd.f32 %v3689, %v3995
        %v4082 = vadd.f32 %v3690, %v4000
        %v4083 = vadd.f32 %v3691, %v4005
        %v4084 = vadd.f32 %v3692, %v4010
        %v4085 = vadd.f32 %v3693, %v4015
        %v4086 = vadd.f32 %v3694, %v4020
        %v4087 = vadd.f32 %v3695, %v4025
        %v4088 = vadd.f32 %v3696, %v4030
        %v4089 = vadd.f32 %v3697, %v4035
        %v4090 = vadd.f32 %v3698, %v4040
        %v4091 = vadd.f32 %v3699, %v4045
        %v4092 = vadd.f32 %v3700, %v4050
        %v4093 = vadd.f32 %v3701, %v4055
        %v4094 = vadd.f32 %v3702, %v4060
        %v4095 = vld [vmem:[%s1811 + $0x2] sm:$0xff]
        %v4096 = vld [vmem:[%s1811 + $0xa] sm:$0xff]
        %v4097 = vld [vmem:[%s1811 + $0x1a] sm:$0xff]
        %v4098 = vld [vmem:[%s1811 + $0x22] sm:$0xff]
        %v4099 = vld [vmem:[%s1811 + $0x32] sm:$0xff]
        %v4100 = vld [vmem:[%s1811 + $0x3a] sm:$0xff]
        %v4101 = vld [vmem:[%s1811 + $0x4a] sm:$0xff]
        %v4102 = vld [vmem:[%s1811 + $0x52] sm:$0xff]
        %v4103 = vld [vmem:[%s1811 + $0x62] sm:$0xff]
        %v4104 = vld [vmem:[%s1811 + $0x6a] sm:$0xff]
        %v4105 = vld [vmem:[%s1811 + $0x7a] sm:$0xff]
        %v4106 = vld [vmem:[%s1811 + $0x82] sm:$0xff]
        %v4107 = vld [vmem:[%s1811 + $0x92] sm:$0xff]
        %v4108 = vld [vmem:[%s1811 + $0x9a] sm:$0xff]
        %v4109 = vld [vmem:[%s1811 + $0xaa] sm:$0xff]
        %v4110 = vld [vmem:[%s1811 + $0xb2] sm:$0xff]
        %v4111 = vld [vmem:[%s1811 + $0xc2] sm:$0xff]
        %v4112 = vld [vmem:[%s1811 + $0xca] sm:$0xff]
        %v4113 = vld [vmem:[%s1811 + $0xda] sm:$0xff]
        %v4114 = vld [vmem:[%s1811 + $0xe2] sm:$0xff]
        %v4115 = vld [vmem:[%s1811 + $0xf2] sm:$0xff]
        %v4116 = vld [vmem:[%s1811 + $0xfa] sm:$0xff]
        %v4117 = vld [vmem:[%s1811 + $0x10a] sm:$0xff]
        %v4118 = vld [vmem:[%s1811 + $0x112] sm:$0xff]
        %v4119 = vld [vmem:[%s1811 + $0x122] sm:$0xff]
        %v4120 = vld [vmem:[%s1811 + $0x12a] sm:$0xff]
        %v4121 = vld [vmem:[%s1811 + $0x13a] sm:$0xff]
        %v4122 = vld [vmem:[%s1811 + $0x142] sm:$0xff]
        %v4123 = vld [vmem:[%s1811 + $0x152] sm:$0xff]
        %v4124 = vld [vmem:[%s1811 + $0x15a] sm:$0xff]
        %v4125 = vld [vmem:[%s1811 + $0x16a] sm:$0xff]
        %v4126 = vld [vmem:[%s1811 + $0x172] sm:$0xff]
        %s4127 = scalar_lea.vmem %s5, 240
        %v4128 = vld [vmem:[%s4127] sm:$0xff]
        %v4129 = vld [vmem:[%s4127 + $0x8] sm:$0xff]
        %v4130 = vld [vmem:[%s4127 + $0x10] sm:$0xff]
        %v4131 = vld [vmem:[%s4127 + $0x18] sm:$0xff]
        %v4132 = vld [vmem:[%s4127 + $0x20] sm:$0xff]
        %v4133 = vld [vmem:[%s4127 + $0x28] sm:$0xff]
        %v4135 = vsel %vm1802, %v4095, 0
        %v4138 = vsel %vm1802, %v4096, 0
        %v4141 = vsel %vm1802, %v4097, 0
        %v4144 = vsel %vm1802, %v4098, 0
        %v4147 = vsel %vm1802, %v4099, 0
        %v4150 = vsel %vm1802, %v4100, 0
        %v4153 = vsel %vm1802, %v4101, 0
        %v4156 = vsel %vm1802, %v4102, 0
        %v4159 = vsel %vm1802, %v4103, 0
        %v4162 = vsel %vm1802, %v4104, 0
        %v4165 = vsel %vm1802, %v4105, 0
        %v4168 = vsel %vm1802, %v4106, 0
        %v4171 = vsel %vm1802, %v4107, 0
        %v4174 = vsel %vm1802, %v4108, 0
        %v4177 = vsel %vm1802, %v4109, 0
        %v4180 = vsel %vm1802, %v4110, 0
        %v4183 = vsel %vm1802, %v4111, 0
        %v4186 = vsel %vm1802, %v4112, 0
        %v4189 = vsel %vm1802, %v4113, 0
        %v4192 = vsel %vm1802, %v4114, 0
        %v4195 = vsel %vm1802, %v4115, 0
        %v4198 = vsel %vm1802, %v4116, 0
        %v4201 = vsel %vm1802, %v4117, 0
        %v4204 = vsel %vm1802, %v4118, 0
        %v4207 = vsel %vm1802, %v4119, 0
        %v4210 = vsel %vm1802, %v4120, 0
        %v4213 = vsel %vm1802, %v4121, 0
        %v4216 = vsel %vm1802, %v4122, 0
        %v4219 = vsel %vm1802, %v4123, 0
        %v4222 = vsel %vm1802, %v4124, 0
        %v4225 = vsel %vm1802, %v4125, 0
        %v4228 = vsel %vm1802, %v4126, 0
        %4230 = vmatprep.subr.mxu0 0.0
        %4231 = vmatpush1.msra.mxu0 %v4128
        %4232 = vmatprep.subr.mxu0 0.0
        %4233 = vmatpush1.msra.mxu0 %v4129
        %4234 = vmatprep.subr.mxu0 0.0
        %4235 = vmatpush1.msra.mxu0 %v4130
        %4236 = vmatprep.subr.mxu0 0.0
        %4237 = vmatpush1.msra.mxu0 %v4131
        %4238 = vmatprep.subr.mxu0 0.0
        %4239 = vmatpush1.msra.mxu0 %v4132
        %4240 = vmatprep.subr.mxu0 0.0
        %4241 = vmatpush1.msra.mxu0 %v4133
        %4242 = vmatprep.subr.mxu0 0.0
        %4243 = vmatpush1.msra.mxu0 0.0
        %4244 = vmatprep.subr.mxu0 0.0
        %4245 = vmatpush1.msra.mxu0 0.0
        %4246 = vmatprep.subr.mxu0 0.0
        %4247 = vmatpush1.msra.mxu0 0.0
        %4248 = vmatprep.subr.mxu0 0.0
        %4249 = vmatpush1.msra.mxu0 0.0
        %4250 = vmatprep.subr.mxu0 0.0
        %4251 = vmatpush1.msra.mxu0 0.0
        %4252 = vmatprep.subr.mxu0 0.0
        %4253 = vmatpush1.msra.mxu0 0.0
        %4254 = vmatprep.subr.mxu0 0.0
        %4255 = vmatpush1.msra.mxu0 0.0
        %4256 = vmatprep.subr.mxu0 0.0
        %4257 = vmatpush1.msra.mxu0 0.0
        %4258 = vmatprep.subr.mxu0 0.0
        %4259 = vmatpush1.msra.mxu0 0.0
        %4260 = vmatprep.subr.mxu0 0.0
        %4261 = vmatpush1.msra.mxu0 0.0
        %4262 = vmatprep.subr.mxu0 0.0
        %4263 = vmatpush1.msra.mxu0 0.0
        %4264 = vmatprep.subr.mxu0 0.0
        %4265 = vmatpush1.msra.mxu0 0.0
        %4266 = vmatprep.subr.mxu0 0.0
        %4267 = vmatpush1.msra.mxu0 0.0
        %4268 = vmatprep.subr.mxu0 0.0
        %4269 = vmatpush1.msra.mxu0 0.0
        %4270 = vmatprep.subr.mxu0 0.0
        %4271 = vmatpush1.msra.mxu0 0.0
        %4272 = vmatprep.subr.mxu0 0.0
        %4273 = vmatpush1.msra.mxu0 0.0
        %4274 = vmatprep.subr.mxu0 0.0
        %4275 = vmatpush1.msra.mxu0 0.0
        %4276 = vmatprep.subr.mxu0 0.0
        %4277 = vmatpush1.msra.mxu0 0.0
        %4278 = vmatprep.subr.mxu0 0.0
        %4279 = vmatpush1.msra.mxu0 0.0
        %4280 = vmatprep.subr.mxu0 0.0
        %4281 = vmatpush1.msra.mxu0 0.0
        %4282 = vmatprep.subr.mxu0 0.0
        %4283 = vmatpush1.msra.mxu0 0.0
        %4284 = vmatprep.subr.mxu0 0.0
        %4285 = vmatpush1.msra.mxu0 0.0
        %4286 = vmatprep.subr.mxu0 0.0
        %4287 = vmatpush1.msra.mxu0 0.0
        %4288 = vmatprep.subr.mxu0 0.0
        %4289 = vmatpush1.msra.mxu0 0.0
        %4290 = vmatprep.subr.mxu0 0.0
        %4291 = vmatpush1.msra.mxu0 0.0
        %4292 = vmatprep.subr.mxu0 0.0
        %4293 = vmatpush1.msra.mxu0 0.0
        %4294 = vmatprep.mubr.f32.mxu0 0.0
        %4295 = vmatmul.mubr.f32.gmra.mrb[0].mxu0 %v4135
        %v4296 = vpop.f32.mrb[0].mxu0
        %v4297 = vadd.f32 0.0, %v4296
        %v4298 = vpop.f32.mrb[0].mxu0
        %4299 = vmatprep.mubr.f32.mxu0 0.0
        %4300 = vmatmul.mubr.f32.gmra.mrb[0].mxu0 %v4138
        %v4301 = vpop.f32.mrb[0].mxu0
        %v4302 = vadd.f32 0.0, %v4301
        %v4303 = vpop.f32.mrb[0].mxu0
        %4304 = vmatprep.mubr.f32.mxu0 0.0
        %4305 = vmatmul.mubr.f32.gmra.mrb[0].mxu0 %v4141
        %v4306 = vpop.f32.mrb[0].mxu0
        %v4307 = vadd.f32 0.0, %v4306
        %v4308 = vpop.f32.mrb[0].mxu0
        %4309 = vmatprep.mubr.f32.mxu0 0.0
        %4310 = vmatmul.mubr.f32.gmra.mrb[0].mxu0 %v4144
        %v4311 = vpop.f32.mrb[0].mxu0
        %v4312 = vadd.f32 0.0, %v4311
        %v4313 = vpop.f32.mrb[0].mxu0
        %4314 = vmatprep.mubr.f32.mxu0 0.0
        %4315 = vmatmul.mubr.f32.gmra.mrb[0].mxu0 %v4147
        %v4316 = vpop.f32.mrb[0].mxu0
        %v4317 = vadd.f32 0.0, %v4316
        %v4318 = vpop.f32.mrb[0].mxu0
        %4319 = vmatprep.mubr.f32.mxu0 0.0
        %4320 = vmatmul.mubr.f32.gmra.mrb[0].mxu0 %v4150
        %v4321 = vpop.f32.mrb[0].mxu0
        %v4322 = vadd.f32 0.0, %v4321
        %v4323 = vpop.f32.mrb[0].mxu0
        %4324 = vmatprep.mubr.f32.mxu0 0.0
        %4325 = vmatmul.mubr.f32.gmra.mrb[0].mxu0 %v4153
        %v4326 = vpop.f32.mrb[0].mxu0
        %v4327 = vadd.f32 0.0, %v4326
        %v4328 = vpop.f32.mrb[0].mxu0
        %4329 = vmatprep.mubr.f32.mxu0 0.0
        %4330 = vmatmul.mubr.f32.gmra.mrb[0].mxu0 %v4156
        %v4331 = vpop.f32.mrb[0].mxu0
        %v4332 = vadd.f32 0.0, %v4331
        %v4333 = vpop.f32.mrb[0].mxu0
        %4334 = vmatprep.mubr.f32.mxu0 0.0
        %4335 = vmatmul.mubr.f32.gmra.mrb[0].mxu0 %v4159
        %v4336 = vpop.f32.mrb[0].mxu0
        %v4337 = vadd.f32 0.0, %v4336
        %v4338 = vpop.f32.mrb[0].mxu0
        %4339 = vmatprep.mubr.f32.mxu0 0.0
        %4340 = vmatmul.mubr.f32.gmra.mrb[0].mxu0 %v4162
        %v4341 = vpop.f32.mrb[0].mxu0
        %v4342 = vadd.f32 0.0, %v4341
        %v4343 = vpop.f32.mrb[0].mxu0
        %4344 = vmatprep.mubr.f32.mxu0 0.0
        %4345 = vmatmul.mubr.f32.gmra.mrb[0].mxu0 %v4165
        %v4346 = vpop.f32.mrb[0].mxu0
        %v4347 = vadd.f32 0.0, %v4346
        %v4348 = vpop.f32.mrb[0].mxu0
        %4349 = vmatprep.mubr.f32.mxu0 0.0
        %4350 = vmatmul.mubr.f32.gmra.mrb[0].mxu0 %v4168
        %v4351 = vpop.f32.mrb[0].mxu0
        %v4352 = vadd.f32 0.0, %v4351
        %v4353 = vpop.f32.mrb[0].mxu0
        %4354 = vmatprep.mubr.f32.mxu0 0.0
        %4355 = vmatmul.mubr.f32.gmra.mrb[0].mxu0 %v4171
        %v4356 = vpop.f32.mrb[0].mxu0
        %v4357 = vadd.f32 0.0, %v4356
        %v4358 = vpop.f32.mrb[0].mxu0
        %4359 = vmatprep.mubr.f32.mxu0 0.0
        %4360 = vmatmul.mubr.f32.gmra.mrb[0].mxu0 %v4174
        %v4361 = vpop.f32.mrb[0].mxu0
        %v4362 = vadd.f32 0.0, %v4361
        %v4363 = vpop.f32.mrb[0].mxu0
        %4364 = vmatprep.mubr.f32.mxu0 0.0
        %4365 = vmatmul.mubr.f32.gmra.mrb[0].mxu0 %v4177
        %v4366 = vpop.f32.mrb[0].mxu0
        %v4367 = vadd.f32 0.0, %v4366
        %v4368 = vpop.f32.mrb[0].mxu0
        %4369 = vmatprep.mubr.f32.mxu0 0.0
        %4370 = vmatmul.mubr.f32.gmra.mrb[0].mxu0 %v4180
        %v4371 = vpop.f32.mrb[0].mxu0
        %v4372 = vadd.f32 0.0, %v4371
        %v4373 = vpop.f32.mrb[0].mxu0
        %4374 = vmatprep.mubr.f32.mxu0 0.0
        %4375 = vmatmul.mubr.f32.gmra.mrb[0].mxu0 %v4183
        %v4376 = vpop.f32.mrb[0].mxu0
        %v4377 = vadd.f32 0.0, %v4376
        %v4378 = vpop.f32.mrb[0].mxu0
        %4379 = vmatprep.mubr.f32.mxu0 0.0
        %4380 = vmatmul.mubr.f32.gmra.mrb[0].mxu0 %v4186
        %v4381 = vpop.f32.mrb[0].mxu0
        %v4382 = vadd.f32 0.0, %v4381
        %v4383 = vpop.f32.mrb[0].mxu0
        %4384 = vmatprep.mubr.f32.mxu0 0.0
        %4385 = vmatmul.mubr.f32.gmra.mrb[0].mxu0 %v4189
        %v4386 = vpop.f32.mrb[0].mxu0
        %v4387 = vadd.f32 0.0, %v4386
        %v4388 = vpop.f32.mrb[0].mxu0
        %4389 = vmatprep.mubr.f32.mxu0 0.0
        %4390 = vmatmul.mubr.f32.gmra.mrb[0].mxu0 %v4192
        %v4391 = vpop.f32.mrb[0].mxu0
        %v4392 = vadd.f32 0.0, %v4391
        %v4393 = vpop.f32.mrb[0].mxu0
        %4394 = vmatprep.mubr.f32.mxu0 0.0
        %4395 = vmatmul.mubr.f32.gmra.mrb[0].mxu0 %v4195
        %v4396 = vpop.f32.mrb[0].mxu0
        %v4397 = vadd.f32 0.0, %v4396
        %v4398 = vpop.f32.mrb[0].mxu0
        %4399 = vmatprep.mubr.f32.mxu0 0.0
        %4400 = vmatmul.mubr.f32.gmra.mrb[0].mxu0 %v4198
        %v4401 = vpop.f32.mrb[0].mxu0
        %v4402 = vadd.f32 0.0, %v4401
        %v4403 = vpop.f32.mrb[0].mxu0
        %4404 = vmatprep.mubr.f32.mxu0 0.0
        %4405 = vmatmul.mubr.f32.gmra.mrb[0].mxu0 %v4201
        %v4406 = vpop.f32.mrb[0].mxu0
        %v4407 = vadd.f32 0.0, %v4406
        %v4408 = vpop.f32.mrb[0].mxu0
        %4409 = vmatprep.mubr.f32.mxu0 0.0
        %4410 = vmatmul.mubr.f32.gmra.mrb[0].mxu0 %v4204
        %v4411 = vpop.f32.mrb[0].mxu0
        %v4412 = vadd.f32 0.0, %v4411
        %v4413 = vpop.f32.mrb[0].mxu0
        %4414 = vmatprep.mubr.f32.mxu0 0.0
        %4415 = vmatmul.mubr.f32.gmra.mrb[0].mxu0 %v4207
        %v4416 = vpop.f32.mrb[0].mxu0
        %v4417 = vadd.f32 0.0, %v4416
        %v4418 = vpop.f32.mrb[0].mxu0
        %4419 = vmatprep.mubr.f32.mxu0 0.0
        %4420 = vmatmul.mubr.f32.gmra.mrb[0].mxu0 %v4210
        %v4421 = vpop.f32.mrb[0].mxu0
        %v4422 = vadd.f32 0.0, %v4421
        %v4423 = vpop.f32.mrb[0].mxu0
        %4424 = vmatprep.mubr.f32.mxu0 0.0
        %4425 = vmatmul.mubr.f32.gmra.mrb[0].mxu0 %v4213
        %v4426 = vpop.f32.mrb[0].mxu0
        %v4427 = vadd.f32 0.0, %v4426
        %v4428 = vpop.f32.mrb[0].mxu0
        %4429 = vmatprep.mubr.f32.mxu0 0.0
        %4430 = vmatmul.mubr.f32.gmra.mrb[0].mxu0 %v4216
        %v4431 = vpop.f32.mrb[0].mxu0
        %v4432 = vadd.f32 0.0, %v4431
        %v4433 = vpop.f32.mrb[0].mxu0
        %4434 = vmatprep.mubr.f32.mxu0 0.0
        %4435 = vmatmul.mubr.f32.gmra.mrb[0].mxu0 %v4219
        %v4436 = vpop.f32.mrb[0].mxu0
        %v4437 = vadd.f32 0.0, %v4436
        %v4438 = vpop.f32.mrb[0].mxu0
        %4439 = vmatprep.mubr.f32.mxu0 0.0
        %4440 = vmatmul.mubr.f32.gmra.mrb[0].mxu0 %v4222
        %v4441 = vpop.f32.mrb[0].mxu0
        %v4442 = vadd.f32 0.0, %v4441
        %v4443 = vpop.f32.mrb[0].mxu0
        %4444 = vmatprep.mubr.f32.mxu0 0.0
        %4445 = vmatmul.mubr.f32.gmra.mrb[0].mxu0 %v4225
        %v4446 = vpop.f32.mrb[0].mxu0
        %v4447 = vadd.f32 0.0, %v4446
        %v4448 = vpop.f32.mrb[0].mxu0
        %4449 = vmatprep.mubr.f32.mxu0 0.0
        %4450 = vmatmul.mubr.f32.gmra.mrb[0].mxu0 %v4228
        %v4451 = vpop.f32.mrb[0].mxu0
        %v4452 = vadd.f32 0.0, %v4451
        %v4453 = vpop.f32.mrb[0].mxu0
        %4454 = vdwg.mxu0
        %v4455 = vadd.f32 %v4063, %v4297
        %v4456 = vadd.f32 %v4064, %v4302
        %v4457 = vadd.f32 %v4065, %v4307
        %v4458 = vadd.f32 %v4066, %v4312
        %v4459 = vadd.f32 %v4067, %v4317
        %v4460 = vadd.f32 %v4068, %v4322
        %v4461 = vadd.f32 %v4069, %v4327
        %v4462 = vadd.f32 %v4070, %v4332
        %v4463 = vadd.f32 %v4071, %v4337
        %v4464 = vadd.f32 %v4072, %v4342
        %v4465 = vadd.f32 %v4073, %v4347
        %v4466 = vadd.f32 %v4074, %v4352
        %v4467 = vadd.f32 %v4075, %v4357
        %v4468 = vadd.f32 %v4076, %v4362
        %v4469 = vadd.f32 %v4077, %v4367
        %v4470 = vadd.f32 %v4078, %v4372
        %v4471 = vadd.f32 %v4079, %v4377
        %v4472 = vadd.f32 %v4080, %v4382
        %v4473 = vadd.f32 %v4081, %v4387
        %v4474 = vadd.f32 %v4082, %v4392
        %v4475 = vadd.f32 %v4083, %v4397
        %v4476 = vadd.f32 %v4084, %v4402
        %v4477 = vadd.f32 %v4085, %v4407
        %v4478 = vadd.f32 %v4086, %v4412
        %v4479 = vadd.f32 %v4087, %v4417
        %v4480 = vadd.f32 %v4088, %v4422
        %v4481 = vadd.f32 %v4089, %v4427
        %v4482 = vadd.f32 %v4090, %v4432
        %v4483 = vadd.f32 %v4091, %v4437
        %v4484 = vadd.f32 %v4092, %v4442
        %v4485 = vadd.f32 %v4093, %v4447
        %v4486 = vadd.f32 %v4094, %v4452
        %s4487 = scalar_lea.vmem [#allocation3], 48
        %v4488 = vld [vmem:[%s4487] sm:$0xff]
        %v4489 = vld [vmem:[%s4487 + $0x8] sm:$0xff]
        %v4490 = vld [vmem:[%s4487 + $0x18] sm:$0xff]
        %v4491 = vld [vmem:[%s4487 + $0x20] sm:$0xff]
        %v4492 = vld [vmem:[%s4487 + $0x30] sm:$0xff]
        %v4493 = vld [vmem:[%s4487 + $0x38] sm:$0xff]
        %v4494 = vld [vmem:[%s4487 + $0x48] sm:$0xff]
        %v4495 = vld [vmem:[%s4487 + $0x50] sm:$0xff]
        %v4496 = vld [vmem:[%s4487 + $0x60] sm:$0xff]
        %v4497 = vld [vmem:[%s4487 + $0x68] sm:$0xff]
        %v4498 = vld [vmem:[%s4487 + $0x78] sm:$0xff]
        %v4499 = vld [vmem:[%s4487 + $0x80] sm:$0xff]
        %v4500 = vld [vmem:[%s4487 + $0x90] sm:$0xff]
        %v4501 = vld [vmem:[%s4487 + $0x98] sm:$0xff]
        %v4502 = vld [vmem:[%s4487 + $0xa8] sm:$0xff]
        %v4503 = vld [vmem:[%s4487 + $0xb0] sm:$0xff]
        %v4504 = vld [vmem:[%s4487 + $0xc0] sm:$0xff]
        %v4505 = vld [vmem:[%s4487 + $0xc8] sm:$0xff]
        %v4506 = vld [vmem:[%s4487 + $0xd8] sm:$0xff]
        %v4507 = vld [vmem:[%s4487 + $0xe0] sm:$0xff]
        %v4508 = vld [vmem:[%s4487 + $0xf0] sm:$0xff]
        %v4509 = vld [vmem:[%s4487 + $0xf8] sm:$0xff]
        %v4510 = vld [vmem:[%s4487 + $0x108] sm:$0xff]
        %v4511 = vld [vmem:[%s4487 + $0x110] sm:$0xff]
        %v4512 = vld [vmem:[%s4487 + $0x120] sm:$0xff]
        %v4513 = vld [vmem:[%s4487 + $0x128] sm:$0xff]
        %v4514 = vld [vmem:[%s4487 + $0x138] sm:$0xff]
        %v4515 = vld [vmem:[%s4487 + $0x140] sm:$0xff]
        %v4516 = vld [vmem:[%s4487 + $0x150] sm:$0xff]
        %v4517 = vld [vmem:[%s4487 + $0x158] sm:$0xff]
        %v4518 = vld [vmem:[%s4487 + $0x168] sm:$0xff]
        %v4519 = vld [vmem:[%s4487 + $0x170] sm:$0xff]
        %s4520 = scalar_lea.vmem %s5, 288
        %v4521 = vld [vmem:[%s4520] sm:$0xff]
        %v4522 = vld [vmem:[%s4520 + $0x8] sm:$0xff]
        %v4523 = vld [vmem:[%s4520 + $0x10] sm:$0xff]
        %v4524 = vld [vmem:[%s4520 + $0x18] sm:$0xff]
        %v4525 = vld [vmem:[%s4520 + $0x20] sm:$0xff]
        %v4526 = vld [vmem:[%s4520 + $0x28] sm:$0xff]
        %v4528 = vsel %vm1802, %v4488, 0
        %v4531 = vsel %vm1802, %v4489, 0
        %v4534 = vsel %vm1802, %v4490, 0
        %v4537 = vsel %vm1802, %v4491, 0
        %v4540 = vsel %vm1802, %v4492, 0
        %v4543 = vsel %vm1802, %v4493, 0
        %v4546 = vsel %vm1802, %v4494, 0
        %v4549 = vsel %vm1802, %v4495, 0
        %v4552 = vsel %vm1802, %v4496, 0
        %v4555 = vsel %vm1802, %v4497, 0
        %v4558 = vsel %vm1802, %v4498, 0
        %v4561 = vsel %vm1802, %v4499, 0
        %v4564 = vsel %vm1802, %v4500, 0
        %v4567 = vsel %vm1802, %v4501, 0
        %v4570 = vsel %vm1802, %v4502, 0
        %v4573 = vsel %vm1802, %v4503, 0
        %v4576 = vsel %vm1802, %v4504, 0
        %v4579 = vsel %vm1802, %v4505, 0
        %v4582 = vsel %vm1802, %v4506, 0
        %v4585 = vsel %vm1802, %v4507, 0
        %v4588 = vsel %vm1802, %v4508, 0
        %v4591 = vsel %vm1802, %v4509, 0
        %v4594 = vsel %vm1802, %v4510, 0
        %v4597 = vsel %vm1802, %v4511, 0
        %v4600 = vsel %vm1802, %v4512, 0
        %v4603 = vsel %vm1802, %v4513, 0
        %v4606 = vsel %vm1802, %v4514, 0
        %v4609 = vsel %vm1802, %v4515, 0
        %v4612 = vsel %vm1802, %v4516, 0
        %v4615 = vsel %vm1802, %v4517, 0
        %v4618 = vsel %vm1802, %v4518, 0
        %v4621 = vsel %vm1802, %v4519, 0
        %4623 = vmatprep.subr.mxu0 0.0
        %4624 = vmatpush1.msra.mxu0 %v4521
        %4625 = vmatprep.subr.mxu0 0.0
        %4626 = vmatpush1.msra.mxu0 %v4522
        %4627 = vmatprep.subr.mxu0 0.0
        %4628 = vmatpush1.msra.mxu0 %v4523
        %4629 = vmatprep.subr.mxu0 0.0
        %4630 = vmatpush1.msra.mxu0 %v4524
        %4631 = vmatprep.subr.mxu0 0.0
        %4632 = vmatpush1.msra.mxu0 %v4525
        %4633 = vmatprep.subr.mxu0 0.0
        %4634 = vmatpush1.msra.mxu0 %v4526
        %4635 = vmatprep.subr.mxu0 0.0
        %4636 = vmatpush1.msra.mxu0 0.0
        %4637 = vmatprep.subr.mxu0 0.0
        %4638 = vmatpush1.msra.mxu0 0.0
        %4639 = vmatprep.subr.mxu0 0.0
        %4640 = vmatpush1.msra.mxu0 0.0
        %4641 = vmatprep.subr.mxu0 0.0
        %4642 = vmatpush1.msra.mxu0 0.0
        %4643 = vmatprep.subr.mxu0 0.0
        %4644 = vmatpush1.msra.mxu0 0.0
        %4645 = vmatprep.subr.mxu0 0.0
        %4646 = vmatpush1.msra.mxu0 0.0
        %4647 = vmatprep.subr.mxu0 0.0
        %4648 = vmatpush1.msra.mxu0 0.0
        %4649 = vmatprep.subr.mxu0 0.0
        %4650 = vmatpush1.msra.mxu0 0.0
        %4651 = vmatprep.subr.mxu0 0.0
        %4652 = vmatpush1.msra.mxu0 0.0
        %4653 = vmatprep.subr.mxu0 0.0
        %4654 = vmatpush1.msra.mxu0 0.0
        %4655 = vmatprep.subr.mxu0 0.0
        %4656 = vmatpush1.msra.mxu0 0.0
        %4657 = vmatprep.subr.mxu0 0.0
        %4658 = vmatpush1.msra.mxu0 0.0
        %4659 = vmatprep.subr.mxu0 0.0
        %4660 = vmatpush1.msra.mxu0 0.0
        %4661 = vmatprep.subr.mxu0 0.0
        %4662 = vmatpush1.msra.mxu0 0.0
        %4663 = vmatprep.subr.mxu0 0.0
        %4664 = vmatpush1.msra.mxu0 0.0
        %4665 = vmatprep.subr.mxu0 0.0
        %4666 = vmatpush1.msra.mxu0 0.0
        %4667 = vmatprep.subr.mxu0 0.0
        %4668 = vmatpush1.msra.mxu0 0.0
        %4669 = vmatprep.subr.mxu0 0.0
        %4670 = vmatpush1.msra.mxu0 0.0
        %4671 = vmatprep.subr.mxu0 0.0
        %4672 = vmatpush1.msra.mxu0 0.0
        %4673 = vmatprep.subr.mxu0 0.0
        %4674 = vmatpush1.msra.mxu0 0.0
        %4675 = vmatprep.subr.mxu0 0.0
        %4676 = vmatpush1.msra.mxu0 0.0
        %4677 = vmatprep.subr.mxu0 0.0
        %4678 = vmatpush1.msra.mxu0 0.0
        %4679 = vmatprep.subr.mxu0 0.0
        %4680 = vmatpush1.msra.mxu0 0.0
        %4681 = vmatprep.subr.mxu0 0.0
        %4682 = vmatpush1.msra.mxu0 0.0
        %4683 = vmatprep.subr.mxu0 0.0
        %4684 = vmatpush1.msra.mxu0 0.0
        %4685 = vmatprep.subr.mxu0 0.0
        %4686 = vmatpush1.msra.mxu0 0.0
        %4687 = vmatprep.mubr.f32.mxu0 0.0
        %4688 = vmatmul.mubr.f32.gmra.mrb[0].mxu0 %v4528
        %v4689 = vpop.f32.mrb[0].mxu0
        %v4690 = vadd.f32 0.0, %v4689
        %v4691 = vpop.f32.mrb[0].mxu0
        %4692 = vmatprep.mubr.f32.mxu0 0.0
        %4693 = vmatmul.mubr.f32.gmra.mrb[0].mxu0 %v4531
        %v4694 = vpop.f32.mrb[0].mxu0
        %v4695 = vadd.f32 0.0, %v4694
        %v4696 = vpop.f32.mrb[0].mxu0
        %4697 = vmatprep.mubr.f32.mxu0 0.0
        %4698 = vmatmul.mubr.f32.gmra.mrb[0].mxu0 %v4534
        %v4699 = vpop.f32.mrb[0].mxu0
        %v4700 = vadd.f32 0.0, %v4699
        %v4701 = vpop.f32.mrb[0].mxu0
        %4702 = vmatprep.mubr.f32.mxu0 0.0
        %4703 = vmatmul.mubr.f32.gmra.mrb[0].mxu0 %v4537
        %v4704 = vpop.f32.mrb[0].mxu0
        %v4705 = vadd.f32 0.0, %v4704
        %v4706 = vpop.f32.mrb[0].mxu0
        %4707 = vmatprep.mubr.f32.mxu0 0.0
        %4708 = vmatmul.mubr.f32.gmra.mrb[0].mxu0 %v4540
        %v4709 = vpop.f32.mrb[0].mxu0
        %v4710 = vadd.f32 0.0, %v4709
        %v4711 = vpop.f32.mrb[0].mxu0
        %4712 = vmatprep.mubr.f32.mxu0 0.0
        %4713 = vmatmul.mubr.f32.gmra.mrb[0].mxu0 %v4543
        %v4714 = vpop.f32.mrb[0].mxu0
        %v4715 = vadd.f32 0.0, %v4714
        %v4716 = vpop.f32.mrb[0].mxu0
        %4717 = vmatprep.mubr.f32.mxu0 0.0
        %4718 = vmatmul.mubr.f32.gmra.mrb[0].mxu0 %v4546
        %v4719 = vpop.f32.mrb[0].mxu0
        %v4720 = vadd.f32 0.0, %v4719
        %v4721 = vpop.f32.mrb[0].mxu0
        %4722 = vmatprep.mubr.f32.mxu0 0.0
        %4723 = vmatmul.mubr.f32.gmra.mrb[0].mxu0 %v4549
        %v4724 = vpop.f32.mrb[0].mxu0
        %v4725 = vadd.f32 0.0, %v4724
        %v4726 = vpop.f32.mrb[0].mxu0
        %4727 = vmatprep.mubr.f32.mxu0 0.0
        %4728 = vmatmul.mubr.f32.gmra.mrb[0].mxu0 %v4552
        %v4729 = vpop.f32.mrb[0].mxu0
        %v4730 = vadd.f32 0.0, %v4729
        %v4731 = vpop.f32.mrb[0].mxu0
        %4732 = vmatprep.mubr.f32.mxu0 0.0
        %4733 = vmatmul.mubr.f32.gmra.mrb[0].mxu0 %v4555
        %v4734 = vpop.f32.mrb[0].mxu0
        %v4735 = vadd.f32 0.0, %v4734
        %v4736 = vpop.f32.mrb[0].mxu0
        %4737 = vmatprep.mubr.f32.mxu0 0.0
        %4738 = vmatmul.mubr.f32.gmra.mrb[0].mxu0 %v4558
        %v4739 = vpop.f32.mrb[0].mxu0
        %v4740 = vadd.f32 0.0, %v4739
        %v4741 = vpop.f32.mrb[0].mxu0
        %4742 = vmatprep.mubr.f32.mxu0 0.0
        %4743 = vmatmul.mubr.f32.gmra.mrb[0].mxu0 %v4561
        %v4744 = vpop.f32.mrb[0].mxu0
        %v4745 = vadd.f32 0.0, %v4744
        %v4746 = vpop.f32.mrb[0].mxu0
        %4747 = vmatprep.mubr.f32.mxu0 0.0
        %4748 = vmatmul.mubr.f32.gmra.mrb[0].mxu0 %v4564
        %v4749 = vpop.f32.mrb[0].mxu0
        %v4750 = vadd.f32 0.0, %v4749
        %v4751 = vpop.f32.mrb[0].mxu0
        %4752 = vmatprep.mubr.f32.mxu0 0.0
        %4753 = vmatmul.mubr.f32.gmra.mrb[0].mxu0 %v4567
        %v4754 = vpop.f32.mrb[0].mxu0
        %v4755 = vadd.f32 0.0, %v4754
        %v4756 = vpop.f32.mrb[0].mxu0
        %4757 = vmatprep.mubr.f32.mxu0 0.0
        %4758 = vmatmul.mubr.f32.gmra.mrb[0].mxu0 %v4570
        %v4759 = vpop.f32.mrb[0].mxu0
        %v4760 = vadd.f32 0.0, %v4759
        %v4761 = vpop.f32.mrb[0].mxu0
        %4762 = vmatprep.mubr.f32.mxu0 0.0
        %4763 = vmatmul.mubr.f32.gmra.mrb[0].mxu0 %v4573
        %v4764 = vpop.f32.mrb[0].mxu0
        %v4765 = vadd.f32 0.0, %v4764
        %v4766 = vpop.f32.mrb[0].mxu0
        %4767 = vmatprep.mubr.f32.mxu0 0.0
        %4768 = vmatmul.mubr.f32.gmra.mrb[0].mxu0 %v4576
        %v4769 = vpop.f32.mrb[0].mxu0
        %v4770 = vadd.f32 0.0, %v4769
        %v4771 = vpop.f32.mrb[0].mxu0
        %4772 = vmatprep.mubr.f32.mxu0 0.0
        %4773 = vmatmul.mubr.f32.gmra.mrb[0].mxu0 %v4579
        %v4774 = vpop.f32.mrb[0].mxu0
        %v4775 = vadd.f32 0.0, %v4774
        %v4776 = vpop.f32.mrb[0].mxu0
        %4777 = vmatprep.mubr.f32.mxu0 0.0
        %4778 = vmatmul.mubr.f32.gmra.mrb[0].mxu0 %v4582
        %v4779 = vpop.f32.mrb[0].mxu0
        %v4780 = vadd.f32 0.0, %v4779
        %v4781 = vpop.f32.mrb[0].mxu0
        %4782 = vmatprep.mubr.f32.mxu0 0.0
        %4783 = vmatmul.mubr.f32.gmra.mrb[0].mxu0 %v4585
        %v4784 = vpop.f32.mrb[0].mxu0
        %v4785 = vadd.f32 0.0, %v4784
        %v4786 = vpop.f32.mrb[0].mxu0
        %4787 = vmatprep.mubr.f32.mxu0 0.0
        %4788 = vmatmul.mubr.f32.gmra.mrb[0].mxu0 %v4588
        %v4789 = vpop.f32.mrb[0].mxu0
        %v4790 = vadd.f32 0.0, %v4789
        %v4791 = vpop.f32.mrb[0].mxu0
        %4792 = vmatprep.mubr.f32.mxu0 0.0
        %4793 = vmatmul.mubr.f32.gmra.mrb[0].mxu0 %v4591
        %v4794 = vpop.f32.mrb[0].mxu0
        %v4795 = vadd.f32 0.0, %v4794
        %v4796 = vpop.f32.mrb[0].mxu0
        %4797 = vmatprep.mubr.f32.mxu0 0.0
        %4798 = vmatmul.mubr.f32.gmra.mrb[0].mxu0 %v4594
        %v4799 = vpop.f32.mrb[0].mxu0
        %v4800 = vadd.f32 0.0, %v4799
        %v4801 = vpop.f32.mrb[0].mxu0
        %4802 = vmatprep.mubr.f32.mxu0 0.0
        %4803 = vmatmul.mubr.f32.gmra.mrb[0].mxu0 %v4597
        %v4804 = vpop.f32.mrb[0].mxu0
        %v4805 = vadd.f32 0.0, %v4804
        %v4806 = vpop.f32.mrb[0].mxu0
        %4807 = vmatprep.mubr.f32.mxu0 0.0
        %4808 = vmatmul.mubr.f32.gmra.mrb[0].mxu0 %v4600
        %v4809 = vpop.f32.mrb[0].mxu0
        %v4810 = vadd.f32 0.0, %v4809
        %v4811 = vpop.f32.mrb[0].mxu0
        %4812 = vmatprep.mubr.f32.mxu0 0.0
        %4813 = vmatmul.mubr.f32.gmra.mrb[0].mxu0 %v4603
        %v4814 = vpop.f32.mrb[0].mxu0
        %v4815 = vadd.f32 0.0, %v4814
        %v4816 = vpop.f32.mrb[0].mxu0
        %4817 = vmatprep.mubr.f32.mxu0 0.0
        %4818 = vmatmul.mubr.f32.gmra.mrb[0].mxu0 %v4606
        %v4819 = vpop.f32.mrb[0].mxu0
        %v4820 = vadd.f32 0.0, %v4819
        %v4821 = vpop.f32.mrb[0].mxu0
        %4822 = vmatprep.mubr.f32.mxu0 0.0
        %4823 = vmatmul.mubr.f32.gmra.mrb[0].mxu0 %v4609
        %v4824 = vpop.f32.mrb[0].mxu0
        %v4825 = vadd.f32 0.0, %v4824
        %v4826 = vpop.f32.mrb[0].mxu0
        %4827 = vmatprep.mubr.f32.mxu0 0.0
        %4828 = vmatmul.mubr.f32.gmra.mrb[0].mxu0 %v4612
        %v4829 = vpop.f32.mrb[0].mxu0
        %v4830 = vadd.f32 0.0, %v4829
        %v4831 = vpop.f32.mrb[0].mxu0
        %4832 = vmatprep.mubr.f32.mxu0 0.0
        %4833 = vmatmul.mubr.f32.gmra.mrb[0].mxu0 %v4615
        %v4834 = vpop.f32.mrb[0].mxu0
        %v4835 = vadd.f32 0.0, %v4834
        %v4836 = vpop.f32.mrb[0].mxu0
        %4837 = vmatprep.mubr.f32.mxu0 0.0
        %4838 = vmatmul.mubr.f32.gmra.mrb[0].mxu0 %v4618
        %v4839 = vpop.f32.mrb[0].mxu0
        %v4840 = vadd.f32 0.0, %v4839
        %v4841 = vpop.f32.mrb[0].mxu0
        %4842 = vmatprep.mubr.f32.mxu0 0.0
        %4843 = vmatmul.mubr.f32.gmra.mrb[0].mxu0 %v4621
        %v4844 = vpop.f32.mrb[0].mxu0
        %v4845 = vadd.f32 0.0, %v4844
        %v4846 = vpop.f32.mrb[0].mxu0
        %4847 = vdwg.mxu0
        %v4848 = vadd.f32 %v4455, %v4690
        %v4849 = vadd.f32 %v4456, %v4695
        %v4850 = vadd.f32 %v4457, %v4700
        %v4851 = vadd.f32 %v4458, %v4705
        %v4852 = vadd.f32 %v4459, %v4710
        %v4853 = vadd.f32 %v4460, %v4715
        %v4854 = vadd.f32 %v4461, %v4720
        %v4855 = vadd.f32 %v4462, %v4725
        %v4856 = vadd.f32 %v4463, %v4730
        %v4857 = vadd.f32 %v4464, %v4735
        %v4858 = vadd.f32 %v4465, %v4740
        %v4859 = vadd.f32 %v4466, %v4745
        %v4860 = vadd.f32 %v4467, %v4750
        %v4861 = vadd.f32 %v4468, %v4755
        %v4862 = vadd.f32 %v4469, %v4760
        %v4863 = vadd.f32 %v4470, %v4765
        %v4864 = vadd.f32 %v4471, %v4770
        %v4865 = vadd.f32 %v4472, %v4775
        %v4866 = vadd.f32 %v4473, %v4780
        %v4867 = vadd.f32 %v4474, %v4785
        %v4868 = vadd.f32 %v4475, %v4790
        %v4869 = vadd.f32 %v4476, %v4795
        %v4870 = vadd.f32 %v4477, %v4800
        %v4871 = vadd.f32 %v4478, %v4805
        %v4872 = vadd.f32 %v4479, %v4810
        %v4873 = vadd.f32 %v4480, %v4815
        %v4874 = vadd.f32 %v4481, %v4820
        %v4875 = vadd.f32 %v4482, %v4825
        %v4876 = vadd.f32 %v4483, %v4830
        %v4877 = vadd.f32 %v4484, %v4835
        %v4878 = vadd.f32 %v4485, %v4840
        %v4879 = vadd.f32 %v4486, %v4845
        %v4880 = vld [vmem:[%s4487 + $0x1] sm:$0xff]
        %v4881 = vld [vmem:[%s4487 + $0x9] sm:$0xff]
        %v4882 = vld [vmem:[%s4487 + $0x19] sm:$0xff]
        %v4883 = vld [vmem:[%s4487 + $0x21] sm:$0xff]
        %v4884 = vld [vmem:[%s4487 + $0x31] sm:$0xff]
        %v4885 = vld [vmem:[%s4487 + $0x39] sm:$0xff]
        %v4886 = vld [vmem:[%s4487 + $0x49] sm:$0xff]
        %v4887 = vld [vmem:[%s4487 + $0x51] sm:$0xff]
        %v4888 = vld [vmem:[%s4487 + $0x61] sm:$0xff]
        %v4889 = vld [vmem:[%s4487 + $0x69] sm:$0xff]
        %v4890 = vld [vmem:[%s4487 + $0x79] sm:$0xff]
        %v4891 = vld [vmem:[%s4487 + $0x81] sm:$0xff]
        %v4892 = vld [vmem:[%s4487 + $0x91] sm:$0xff]
        %v4893 = vld [vmem:[%s4487 + $0x99] sm:$0xff]
        %v4894 = vld [vmem:[%s4487 + $0xa9] sm:$0xff]
        %v4895 = vld [vmem:[%s4487 + $0xb1] sm:$0xff]
        %v4896 = vld [vmem:[%s4487 + $0xc1] sm:$0xff]
        %v4897 = vld [vmem:[%s4487 + $0xc9] sm:$0xff]
        %v4898 = vld [vmem:[%s4487 + $0xd9] sm:$0xff]
        %v4899 = vld [vmem:[%s4487 + $0xe1] sm:$0xff]
        %v4900 = vld [vmem:[%s4487 + $0xf1] sm:$0xff]
        %v4901 = vld [vmem:[%s4487 + $0xf9] sm:$0xff]
        %v4902 = vld [vmem:[%s4487 + $0x109] sm:$0xff]
        %v4903 = vld [vmem:[%s4487 + $0x111] sm:$0xff]
        %v4904 = vld [vmem:[%s4487 + $0x121] sm:$0xff]
        %v4905 = vld [vmem:[%s4487 + $0x129] sm:$0xff]
        %v4906 = vld [vmem:[%s4487 + $0x139] sm:$0xff]
        %v4907 = vld [vmem:[%s4487 + $0x141] sm:$0xff]
        %v4908 = vld [vmem:[%s4487 + $0x151] sm:$0xff]
        %v4909 = vld [vmem:[%s4487 + $0x159] sm:$0xff]
        %v4910 = vld [vmem:[%s4487 + $0x169] sm:$0xff]
        %v4911 = vld [vmem:[%s4487 + $0x171] sm:$0xff]
        %s4912 = scalar_lea.vmem %s5, 336
        %v4913 = vld [vmem:[%s4912] sm:$0xff]
        %v4914 = vld [vmem:[%s4912 + $0x8] sm:$0xff]
        %v4915 = vld [vmem:[%s4912 + $0x10] sm:$0xff]
        %v4916 = vld [vmem:[%s4912 + $0x18] sm:$0xff]
        %v4917 = vld [vmem:[%s4912 + $0x20] sm:$0xff]
        %v4918 = vld [vmem:[%s4912 + $0x28] sm:$0xff]
        %v4920 = vsel %vm1802, %v4880, 0
        %v4923 = vsel %vm1802, %v4881, 0
        %v4926 = vsel %vm1802, %v4882, 0
        %v4929 = vsel %vm1802, %v4883, 0
        %v4932 = vsel %vm1802, %v4884, 0
        %v4935 = vsel %vm1802, %v4885, 0
        %v4938 = vsel %vm1802, %v4886, 0
        %v4941 = vsel %vm1802, %v4887, 0
        %v4944 = vsel %vm1802, %v4888, 0
        %v4947 = vsel %vm1802, %v4889, 0
        %v4950 = vsel %vm1802, %v4890, 0
        %v4953 = vsel %vm1802, %v4891, 0
        %v4956 = vsel %vm1802, %v4892, 0
        %v4959 = vsel %vm1802, %v4893, 0
        %v4962 = vsel %vm1802, %v4894, 0
        %v4965 = vsel %vm1802, %v4895, 0
        %v4968 = vsel %vm1802, %v4896, 0
        %v4971 = vsel %vm1802, %v4897, 0
        %v4974 = vsel %vm1802, %v4898, 0
        %v4977 = vsel %vm1802, %v4899, 0
        %v4980 = vsel %vm1802, %v4900, 0
        %v4983 = vsel %vm1802, %v4901, 0
        %v4986 = vsel %vm1802, %v4902, 0
        %v4989 = vsel %vm1802, %v4903, 0
        %v4992 = vsel %vm1802, %v4904, 0
        %v4995 = vsel %vm1802, %v4905, 0
        %v4998 = vsel %vm1802, %v4906, 0
        %v5001 = vsel %vm1802, %v4907, 0
        %v5004 = vsel %vm1802, %v4908, 0
        %v5007 = vsel %vm1802, %v4909, 0
        %v5010 = vsel %vm1802, %v4910, 0
        %v5013 = vsel %vm1802, %v4911, 0
        %5015 = vmatprep.subr.mxu0 0.0
        %5016 = vmatpush1.msra.mxu0 %v4913
        %5017 = vmatprep.subr.mxu0 0.0
        %5018 = vmatpush1.msra.mxu0 %v4914
        %5019 = vmatprep.subr.mxu0 0.0
        %5020 = vmatpush1.msra.mxu0 %v4915
        %5021 = vmatprep.subr.mxu0 0.0
        %5022 = vmatpush1.msra.mxu0 %v4916
        %5023 = vmatprep.subr.mxu0 0.0
        %5024 = vmatpush1.msra.mxu0 %v4917
        %5025 = vmatprep.subr.mxu0 0.0
        %5026 = vmatpush1.msra.mxu0 %v4918
        %5027 = vmatprep.subr.mxu0 0.0
        %5028 = vmatpush1.msra.mxu0 0.0
        %5029 = vmatprep.subr.mxu0 0.0
        %5030 = vmatpush1.msra.mxu0 0.0
        %5031 = vmatprep.subr.mxu0 0.0
        %5032 = vmatpush1.msra.mxu0 0.0
        %5033 = vmatprep.subr.mxu0 0.0
        %5034 = vmatpush1.msra.mxu0 0.0
        %5035 = vmatprep.subr.mxu0 0.0
        %5036 = vmatpush1.msra.mxu0 0.0
        %5037 = vmatprep.subr.mxu0 0.0
        %5038 = vmatpush1.msra.mxu0 0.0
        %5039 = vmatprep.subr.mxu0 0.0
        %5040 = vmatpush1.msra.mxu0 0.0
        %5041 = vmatprep.subr.mxu0 0.0
        %5042 = vmatpush1.msra.mxu0 0.0
        %5043 = vmatprep.subr.mxu0 0.0
        %5044 = vmatpush1.msra.mxu0 0.0
        %5045 = vmatprep.subr.mxu0 0.0
        %5046 = vmatpush1.msra.mxu0 0.0
        %5047 = vmatprep.subr.mxu0 0.0
        %5048 = vmatpush1.msra.mxu0 0.0
        %5049 = vmatprep.subr.mxu0 0.0
        %5050 = vmatpush1.msra.mxu0 0.0
        %5051 = vmatprep.subr.mxu0 0.0
        %5052 = vmatpush1.msra.mxu0 0.0
        %5053 = vmatprep.subr.mxu0 0.0
        %5054 = vmatpush1.msra.mxu0 0.0
        %5055 = vmatprep.subr.mxu0 0.0
        %5056 = vmatpush1.msra.mxu0 0.0
        %5057 = vmatprep.subr.mxu0 0.0
        %5058 = vmatpush1.msra.mxu0 0.0
        %5059 = vmatprep.subr.mxu0 0.0
        %5060 = vmatpush1.msra.mxu0 0.0
        %5061 = vmatprep.subr.mxu0 0.0
        %5062 = vmatpush1.msra.mxu0 0.0
        %5063 = vmatprep.subr.mxu0 0.0
        %5064 = vmatpush1.msra.mxu0 0.0
        %5065 = vmatprep.subr.mxu0 0.0
        %5066 = vmatpush1.msra.mxu0 0.0
        %5067 = vmatprep.subr.mxu0 0.0
        %5068 = vmatpush1.msra.mxu0 0.0
        %5069 = vmatprep.subr.mxu0 0.0
        %5070 = vmatpush1.msra.mxu0 0.0
        %5071 = vmatprep.subr.mxu0 0.0
        %5072 = vmatpush1.msra.mxu0 0.0
        %5073 = vmatprep.subr.mxu0 0.0
        %5074 = vmatpush1.msra.mxu0 0.0
        %5075 = vmatprep.subr.mxu0 0.0
        %5076 = vmatpush1.msra.mxu0 0.0
        %5077 = vmatprep.subr.mxu0 0.0
        %5078 = vmatpush1.msra.mxu0 0.0
        %5079 = vmatprep.mubr.f32.mxu0 0.0
        %5080 = vmatmul.mubr.f32.gmra.mrb[0].mxu0 %v4920
        %v5081 = vpop.f32.mrb[0].mxu0
        %v5082 = vadd.f32 0.0, %v5081
        %v5083 = vpop.f32.mrb[0].mxu0
        %5084 = vmatprep.mubr.f32.mxu0 0.0
        %5085 = vmatmul.mubr.f32.gmra.mrb[0].mxu0 %v4923
        %v5086 = vpop.f32.mrb[0].mxu0
        %v5087 = vadd.f32 0.0, %v5086
        %v5088 = vpop.f32.mrb[0].mxu0
        %5089 = vmatprep.mubr.f32.mxu0 0.0
        %5090 = vmatmul.mubr.f32.gmra.mrb[0].mxu0 %v4926
        %v5091 = vpop.f32.mrb[0].mxu0
        %v5092 = vadd.f32 0.0, %v5091
        %v5093 = vpop.f32.mrb[0].mxu0
        %5094 = vmatprep.mubr.f32.mxu0 0.0
        %5095 = vmatmul.mubr.f32.gmra.mrb[0].mxu0 %v4929
        %v5096 = vpop.f32.mrb[0].mxu0
        %v5097 = vadd.f32 0.0, %v5096
        %v5098 = vpop.f32.mrb[0].mxu0
        %5099 = vmatprep.mubr.f32.mxu0 0.0
        %5100 = vmatmul.mubr.f32.gmra.mrb[0].mxu0 %v4932
        %v5101 = vpop.f32.mrb[0].mxu0
        %v5102 = vadd.f32 0.0, %v5101
        %v5103 = vpop.f32.mrb[0].mxu0
        %5104 = vmatprep.mubr.f32.mxu0 0.0
        %5105 = vmatmul.mubr.f32.gmra.mrb[0].mxu0 %v4935
        %v5106 = vpop.f32.mrb[0].mxu0
        %v5107 = vadd.f32 0.0, %v5106
        %v5108 = vpop.f32.mrb[0].mxu0
        %5109 = vmatprep.mubr.f32.mxu0 0.0
        %5110 = vmatmul.mubr.f32.gmra.mrb[0].mxu0 %v4938
        %v5111 = vpop.f32.mrb[0].mxu0
        %v5112 = vadd.f32 0.0, %v5111
        %v5113 = vpop.f32.mrb[0].mxu0
        %5114 = vmatprep.mubr.f32.mxu0 0.0
        %5115 = vmatmul.mubr.f32.gmra.mrb[0].mxu0 %v4941
        %v5116 = vpop.f32.mrb[0].mxu0
        %v5117 = vadd.f32 0.0, %v5116
        %v5118 = vpop.f32.mrb[0].mxu0
        %5119 = vmatprep.mubr.f32.mxu0 0.0
        %5120 = vmatmul.mubr.f32.gmra.mrb[0].mxu0 %v4944
        %v5121 = vpop.f32.mrb[0].mxu0
        %v5122 = vadd.f32 0.0, %v5121
        %v5123 = vpop.f32.mrb[0].mxu0
        %5124 = vmatprep.mubr.f32.mxu0 0.0
        %5125 = vmatmul.mubr.f32.gmra.mrb[0].mxu0 %v4947
        %v5126 = vpop.f32.mrb[0].mxu0
        %v5127 = vadd.f32 0.0, %v5126
        %v5128 = vpop.f32.mrb[0].mxu0
        %5129 = vmatprep.mubr.f32.mxu0 0.0
        %5130 = vmatmul.mubr.f32.gmra.mrb[0].mxu0 %v4950
        %v5131 = vpop.f32.mrb[0].mxu0
        %v5132 = vadd.f32 0.0, %v5131
        %v5133 = vpop.f32.mrb[0].mxu0
        %5134 = vmatprep.mubr.f32.mxu0 0.0
        %5135 = vmatmul.mubr.f32.gmra.mrb[0].mxu0 %v4953
        %v5136 = vpop.f32.mrb[0].mxu0
        %v5137 = vadd.f32 0.0, %v5136
        %v5138 = vpop.f32.mrb[0].mxu0
        %5139 = vmatprep.mubr.f32.mxu0 0.0
        %5140 = vmatmul.mubr.f32.gmra.mrb[0].mxu0 %v4956
        %v5141 = vpop.f32.mrb[0].mxu0
        %v5142 = vadd.f32 0.0, %v5141
        %v5143 = vpop.f32.mrb[0].mxu0
        %5144 = vmatprep.mubr.f32.mxu0 0.0
        %5145 = vmatmul.mubr.f32.gmra.mrb[0].mxu0 %v4959
        %v5146 = vpop.f32.mrb[0].mxu0
        %v5147 = vadd.f32 0.0, %v5146
        %v5148 = vpop.f32.mrb[0].mxu0
        %5149 = vmatprep.mubr.f32.mxu0 0.0
        %5150 = vmatmul.mubr.f32.gmra.mrb[0].mxu0 %v4962
        %v5151 = vpop.f32.mrb[0].mxu0
        %v5152 = vadd.f32 0.0, %v5151
        %v5153 = vpop.f32.mrb[0].mxu0
        %5154 = vmatprep.mubr.f32.mxu0 0.0
        %5155 = vmatmul.mubr.f32.gmra.mrb[0].mxu0 %v4965
        %v5156 = vpop.f32.mrb[0].mxu0
        %v5157 = vadd.f32 0.0, %v5156
        %v5158 = vpop.f32.mrb[0].mxu0
        %5159 = vmatprep.mubr.f32.mxu0 0.0
        %5160 = vmatmul.mubr.f32.gmra.mrb[0].mxu0 %v4968
        %v5161 = vpop.f32.mrb[0].mxu0
        %v5162 = vadd.f32 0.0, %v5161
        %v5163 = vpop.f32.mrb[0].mxu0
        %5164 = vmatprep.mubr.f32.mxu0 0.0
        %5165 = vmatmul.mubr.f32.gmra.mrb[0].mxu0 %v4971
        %v5166 = vpop.f32.mrb[0].mxu0
        %v5167 = vadd.f32 0.0, %v5166
        %v5168 = vpop.f32.mrb[0].mxu0
        %5169 = vmatprep.mubr.f32.mxu0 0.0
        %5170 = vmatmul.mubr.f32.gmra.mrb[0].mxu0 %v4974
        %v5171 = vpop.f32.mrb[0].mxu0
        %v5172 = vadd.f32 0.0, %v5171
        %v5173 = vpop.f32.mrb[0].mxu0
        %5174 = vmatprep.mubr.f32.mxu0 0.0
        %5175 = vmatmul.mubr.f32.gmra.mrb[0].mxu0 %v4977
        %v5176 = vpop.f32.mrb[0].mxu0
        %v5177 = vadd.f32 0.0, %v5176
        %v5178 = vpop.f32.mrb[0].mxu0
        %5179 = vmatprep.mubr.f32.mxu0 0.0
        %5180 = vmatmul.mubr.f32.gmra.mrb[0].mxu0 %v4980
        %v5181 = vpop.f32.mrb[0].mxu0
        %v5182 = vadd.f32 0.0, %v5181
        %v5183 = vpop.f32.mrb[0].mxu0
        %5184 = vmatprep.mubr.f32.mxu0 0.0
        %5185 = vmatmul.mubr.f32.gmra.mrb[0].mxu0 %v4983
        %v5186 = vpop.f32.mrb[0].mxu0
        %v5187 = vadd.f32 0.0, %v5186
        %v5188 = vpop.f32.mrb[0].mxu0
        %5189 = vmatprep.mubr.f32.mxu0 0.0
        %5190 = vmatmul.mubr.f32.gmra.mrb[0].mxu0 %v4986
        %v5191 = vpop.f32.mrb[0].mxu0
        %v5192 = vadd.f32 0.0, %v5191
        %v5193 = vpop.f32.mrb[0].mxu0
        %5194 = vmatprep.mubr.f32.mxu0 0.0
        %5195 = vmatmul.mubr.f32.gmra.mrb[0].mxu0 %v4989
        %v5196 = vpop.f32.mrb[0].mxu0
        %v5197 = vadd.f32 0.0, %v5196
        %v5198 = vpop.f32.mrb[0].mxu0
        %5199 = vmatprep.mubr.f32.mxu0 0.0
        %5200 = vmatmul.mubr.f32.gmra.mrb[0].mxu0 %v4992
        %v5201 = vpop.f32.mrb[0].mxu0
        %v5202 = vadd.f32 0.0, %v5201
        %v5203 = vpop.f32.mrb[0].mxu0
        %5204 = vmatprep.mubr.f32.mxu0 0.0
        %5205 = vmatmul.mubr.f32.gmra.mrb[0].mxu0 %v4995
        %v5206 = vpop.f32.mrb[0].mxu0
        %v5207 = vadd.f32 0.0, %v5206
        %v5208 = vpop.f32.mrb[0].mxu0
        %5209 = vmatprep.mubr.f32.mxu0 0.0
        %5210 = vmatmul.mubr.f32.gmra.mrb[0].mxu0 %v4998
        %v5211 = vpop.f32.mrb[0].mxu0
        %v5212 = vadd.f32 0.0, %v5211
        %v5213 = vpop.f32.mrb[0].mxu0
        %5214 = vmatprep.mubr.f32.mxu0 0.0
        %5215 = vmatmul.mubr.f32.gmra.mrb[0].mxu0 %v5001
        %v5216 = vpop.f32.mrb[0].mxu0
        %v5217 = vadd.f32 0.0, %v5216
        %v5218 = vpop.f32.mrb[0].mxu0
        %5219 = vmatprep.mubr.f32.mxu0 0.0
        %5220 = vmatmul.mubr.f32.gmra.mrb[0].mxu0 %v5004
        %v5221 = vpop.f32.mrb[0].mxu0
        %v5222 = vadd.f32 0.0, %v5221
        %v5223 = vpop.f32.mrb[0].mxu0
        %5224 = vmatprep.mubr.f32.mxu0 0.0
        %5225 = vmatmul.mubr.f32.gmra.mrb[0].mxu0 %v5007
        %v5226 = vpop.f32.mrb[0].mxu0
        %v5227 = vadd.f32 0.0, %v5226
        %v5228 = vpop.f32.mrb[0].mxu0
        %5229 = vmatprep.mubr.f32.mxu0 0.0
        %5230 = vmatmul.mubr.f32.gmra.mrb[0].mxu0 %v5010
        %v5231 = vpop.f32.mrb[0].mxu0
        %v5232 = vadd.f32 0.0, %v5231
        %v5233 = vpop.f32.mrb[0].mxu0
        %5234 = vmatprep.mubr.f32.mxu0 0.0
        %5235 = vmatmul.mubr.f32.gmra.mrb[0].mxu0 %v5013
        %v5236 = vpop.f32.mrb[0].mxu0
        %v5237 = vadd.f32 0.0, %v5236
        %v5238 = vpop.f32.mrb[0].mxu0
        %5239 = vdwg.mxu0
        %v5240 = vadd.f32 %v4848, %v5082
        %v5241 = vadd.f32 %v4849, %v5087
        %v5242 = vadd.f32 %v4850, %v5092
        %v5243 = vadd.f32 %v4851, %v5097
        %v5244 = vadd.f32 %v4852, %v5102
        %v5245 = vadd.f32 %v4853, %v5107
        %v5246 = vadd.f32 %v4854, %v5112
        %v5247 = vadd.f32 %v4855, %v5117
        %v5248 = vadd.f32 %v4856, %v5122
        %v5249 = vadd.f32 %v4857, %v5127
        %v5250 = vadd.f32 %v4858, %v5132
        %v5251 = vadd.f32 %v4859, %v5137
        %v5252 = vadd.f32 %v4860, %v5142
        %v5253 = vadd.f32 %v4861, %v5147
        %v5254 = vadd.f32 %v4862, %v5152
        %v5255 = vadd.f32 %v4863, %v5157
        %v5256 = vadd.f32 %v4864, %v5162
        %v5257 = vadd.f32 %v4865, %v5167
        %v5258 = vadd.f32 %v4866, %v5172
        %v5259 = vadd.f32 %v4867, %v5177
        %v5260 = vadd.f32 %v4868, %v5182
        %v5261 = vadd.f32 %v4869, %v5187
        %v5262 = vadd.f32 %v4870, %v5192
        %v5263 = vadd.f32 %v4871, %v5197
        %v5264 = vadd.f32 %v4872, %v5202
        %v5265 = vadd.f32 %v4873, %v5207
        %v5266 = vadd.f32 %v4874, %v5212
        %v5267 = vadd.f32 %v4875, %v5217
        %v5268 = vadd.f32 %v4876, %v5222
        %v5269 = vadd.f32 %v4877, %v5227
        %v5270 = vadd.f32 %v4878, %v5232
        %v5271 = vadd.f32 %v4879, %v5237
        %v5272 = vld [vmem:[%s4487 + $0x2] sm:$0xff]
        %v5273 = vld [vmem:[%s4487 + $0xa] sm:$0xff]
        %v5274 = vld [vmem:[%s4487 + $0x1a] sm:$0xff]
        %v5275 = vld [vmem:[%s4487 + $0x22] sm:$0xff]
        %v5276 = vld [vmem:[%s4487 + $0x32] sm:$0xff]
        %v5277 = vld [vmem:[%s4487 + $0x3a] sm:$0xff]
        %v5278 = vld [vmem:[%s4487 + $0x4a] sm:$0xff]
        %v5279 = vld [vmem:[%s4487 + $0x52] sm:$0xff]
        %v5280 = vld [vmem:[%s4487 + $0x62] sm:$0xff]
        %v5281 = vld [vmem:[%s4487 + $0x6a] sm:$0xff]
        %v5282 = vld [vmem:[%s4487 + $0x7a] sm:$0xff]
        %v5283 = vld [vmem:[%s4487 + $0x82] sm:$0xff]
        %v5284 = vld [vmem:[%s4487 + $0x92] sm:$0xff]
        %v5285 = vld [vmem:[%s4487 + $0x9a] sm:$0xff]
        %v5286 = vld [vmem:[%s4487 + $0xaa] sm:$0xff]
        %v5287 = vld [vmem:[%s4487 + $0xb2] sm:$0xff]
        %v5288 = vld [vmem:[%s4487 + $0xc2] sm:$0xff]
        %v5289 = vld [vmem:[%s4487 + $0xca] sm:$0xff]
        %v5290 = vld [vmem:[%s4487 + $0xda] sm:$0xff]
        %v5291 = vld [vmem:[%s4487 + $0xe2] sm:$0xff]
        %v5292 = vld [vmem:[%s4487 + $0xf2] sm:$0xff]
        %v5293 = vld [vmem:[%s4487 + $0xfa] sm:$0xff]
        %v5294 = vld [vmem:[%s4487 + $0x10a] sm:$0xff]
        %v5295 = vld [vmem:[%s4487 + $0x112] sm:$0xff]
        %v5296 = vld [vmem:[%s4487 + $0x122] sm:$0xff]
        %v5297 = vld [vmem:[%s4487 + $0x12a] sm:$0xff]
        %v5298 = vld [vmem:[%s4487 + $0x13a] sm:$0xff]
        %v5299 = vld [vmem:[%s4487 + $0x142] sm:$0xff]
        %v5300 = vld [vmem:[%s4487 + $0x152] sm:$0xff]
        %v5301 = vld [vmem:[%s4487 + $0x15a] sm:$0xff]
        %v5302 = vld [vmem:[%s4487 + $0x16a] sm:$0xff]
        %v5303 = vld [vmem:[%s4487 + $0x172] sm:$0xff]
        %s5304 = scalar_lea.vmem %s5, 384
        %v5305 = vld [vmem:[%s5304] sm:$0xff]
        %v5306 = vld [vmem:[%s5304 + $0x8] sm:$0xff]
        %v5307 = vld [vmem:[%s5304 + $0x10] sm:$0xff]
        %v5308 = vld [vmem:[%s5304 + $0x18] sm:$0xff]
        %v5309 = vld [vmem:[%s5304 + $0x20] sm:$0xff]
        %v5310 = vld [vmem:[%s5304 + $0x28] sm:$0xff]
        %v5312 = vsel %vm1802, %v5272, 0
        %v5315 = vsel %vm1802, %v5273, 0
        %v5318 = vsel %vm1802, %v5274, 0
        %v5321 = vsel %vm1802, %v5275, 0
        %v5324 = vsel %vm1802, %v5276, 0
        %v5327 = vsel %vm1802, %v5277, 0
        %v5330 = vsel %vm1802, %v5278, 0
        %v5333 = vsel %vm1802, %v5279, 0
        %v5336 = vsel %vm1802, %v5280, 0
        %v5339 = vsel %vm1802, %v5281, 0
        %v5342 = vsel %vm1802, %v5282, 0
        %v5345 = vsel %vm1802, %v5283, 0
        %v5348 = vsel %vm1802, %v5284, 0
        %v5351 = vsel %vm1802, %v5285, 0
        %v5354 = vsel %vm1802, %v5286, 0
        %v5357 = vsel %vm1802, %v5287, 0
        %v5360 = vsel %vm1802, %v5288, 0
        %v5363 = vsel %vm1802, %v5289, 0
        %v5366 = vsel %vm1802, %v5290, 0
        %v5369 = vsel %vm1802, %v5291, 0
        %v5372 = vsel %vm1802, %v5292, 0
        %v5375 = vsel %vm1802, %v5293, 0
        %v5378 = vsel %vm1802, %v5294, 0
        %v5381 = vsel %vm1802, %v5295, 0
        %v5384 = vsel %vm1802, %v5296, 0
        %v5387 = vsel %vm1802, %v5297, 0
        %v5390 = vsel %vm1802, %v5298, 0
        %v5393 = vsel %vm1802, %v5299, 0
        %v5396 = vsel %vm1802, %v5300, 0
        %v5399 = vsel %vm1802, %v5301, 0
        %v5402 = vsel %vm1802, %v5302, 0
        %v5405 = vsel %vm1802, %v5303, 0
        %5407 = vmatprep.subr.mxu0 0.0
        %5408 = vmatpush1.msra.mxu0 %v5305
        %5409 = vmatprep.subr.mxu0 0.0
        %5410 = vmatpush1.msra.mxu0 %v5306
        %5411 = vmatprep.subr.mxu0 0.0
        %5412 = vmatpush1.msra.mxu0 %v5307
        %5413 = vmatprep.subr.mxu0 0.0
        %5414 = vmatpush1.msra.mxu0 %v5308
        %5415 = vmatprep.subr.mxu0 0.0
        %5416 = vmatpush1.msra.mxu0 %v5309
        %5417 = vmatprep.subr.mxu0 0.0
        %5418 = vmatpush1.msra.mxu0 %v5310
        %5419 = vmatprep.subr.mxu0 0.0
        %5420 = vmatpush1.msra.mxu0 0.0
        %5421 = vmatprep.subr.mxu0 0.0
        %5422 = vmatpush1.msra.mxu0 0.0
        %5423 = vmatprep.subr.mxu0 0.0
        %5424 = vmatpush1.msra.mxu0 0.0
        %5425 = vmatprep.subr.mxu0 0.0
        %5426 = vmatpush1.msra.mxu0 0.0
        %5427 = vmatprep.subr.mxu0 0.0
        %5428 = vmatpush1.msra.mxu0 0.0
        %5429 = vmatprep.subr.mxu0 0.0
        %5430 = vmatpush1.msra.mxu0 0.0
        %5431 = vmatprep.subr.mxu0 0.0
        %5432 = vmatpush1.msra.mxu0 0.0
        %5433 = vmatprep.subr.mxu0 0.0
        %5434 = vmatpush1.msra.mxu0 0.0
        %5435 = vmatprep.subr.mxu0 0.0
        %5436 = vmatpush1.msra.mxu0 0.0
        %5437 = vmatprep.subr.mxu0 0.0
        %5438 = vmatpush1.msra.mxu0 0.0
        %5439 = vmatprep.subr.mxu0 0.0
        %5440 = vmatpush1.msra.mxu0 0.0
        %5441 = vmatprep.subr.mxu0 0.0
        %5442 = vmatpush1.msra.mxu0 0.0
        %5443 = vmatprep.subr.mxu0 0.0
        %5444 = vmatpush1.msra.mxu0 0.0
        %5445 = vmatprep.subr.mxu0 0.0
        %5446 = vmatpush1.msra.mxu0 0.0
        %5447 = vmatprep.subr.mxu0 0.0
        %5448 = vmatpush1.msra.mxu0 0.0
        %5449 = vmatprep.subr.mxu0 0.0
        %5450 = vmatpush1.msra.mxu0 0.0
        %5451 = vmatprep.subr.mxu0 0.0
        %5452 = vmatpush1.msra.mxu0 0.0
        %5453 = vmatprep.subr.mxu0 0.0
        %5454 = vmatpush1.msra.mxu0 0.0
        %5455 = vmatprep.subr.mxu0 0.0
        %5456 = vmatpush1.msra.mxu0 0.0
        %5457 = vmatprep.subr.mxu0 0.0
        %5458 = vmatpush1.msra.mxu0 0.0
        %5459 = vmatprep.subr.mxu0 0.0
        %5460 = vmatpush1.msra.mxu0 0.0
        %5461 = vmatprep.subr.mxu0 0.0
        %5462 = vmatpush1.msra.mxu0 0.0
        %5463 = vmatprep.subr.mxu0 0.0
        %5464 = vmatpush1.msra.mxu0 0.0
        %5465 = vmatprep.subr.mxu0 0.0
        %5466 = vmatpush1.msra.mxu0 0.0
        %5467 = vmatprep.subr.mxu0 0.0
        %5468 = vmatpush1.msra.mxu0 0.0
        %5469 = vmatprep.subr.mxu0 0.0
        %5470 = vmatpush1.msra.mxu0 0.0
        %5471 = vmatprep.mubr.f32.mxu0 0.0
        %5472 = vmatmul.mubr.f32.gmra.mrb[0].mxu0 %v5312
        %v5473 = vpop.f32.mrb[0].mxu0
        %v5474 = vadd.f32 0.0, %v5473
        %v5475 = vpop.f32.mrb[0].mxu0
        %5476 = vmatprep.mubr.f32.mxu0 0.0
        %5477 = vmatmul.mubr.f32.gmra.mrb[0].mxu0 %v5315
        %v5478 = vpop.f32.mrb[0].mxu0
        %v5479 = vadd.f32 0.0, %v5478
        %v5480 = vpop.f32.mrb[0].mxu0
        %5481 = vmatprep.mubr.f32.mxu0 0.0
        %5482 = vmatmul.mubr.f32.gmra.mrb[0].mxu0 %v5318
        %v5483 = vpop.f32.mrb[0].mxu0
        %v5484 = vadd.f32 0.0, %v5483
        %v5485 = vpop.f32.mrb[0].mxu0
        %5486 = vmatprep.mubr.f32.mxu0 0.0
        %5487 = vmatmul.mubr.f32.gmra.mrb[0].mxu0 %v5321
        %v5488 = vpop.f32.mrb[0].mxu0
        %v5489 = vadd.f32 0.0, %v5488
        %v5490 = vpop.f32.mrb[0].mxu0
        %5491 = vmatprep.mubr.f32.mxu0 0.0
        %5492 = vmatmul.mubr.f32.gmra.mrb[0].mxu0 %v5324
        %v5493 = vpop.f32.mrb[0].mxu0
        %v5494 = vadd.f32 0.0, %v5493
        %v5495 = vpop.f32.mrb[0].mxu0
        %5496 = vmatprep.mubr.f32.mxu0 0.0
        %5497 = vmatmul.mubr.f32.gmra.mrb[0].mxu0 %v5327
        %v5498 = vpop.f32.mrb[0].mxu0
        %v5499 = vadd.f32 0.0, %v5498
        %v5500 = vpop.f32.mrb[0].mxu0
        %5501 = vmatprep.mubr.f32.mxu0 0.0
        %5502 = vmatmul.mubr.f32.gmra.mrb[0].mxu0 %v5330
        %v5503 = vpop.f32.mrb[0].mxu0
        %v5504 = vadd.f32 0.0, %v5503
        %v5505 = vpop.f32.mrb[0].mxu0
        %5506 = vmatprep.mubr.f32.mxu0 0.0
        %5507 = vmatmul.mubr.f32.gmra.mrb[0].mxu0 %v5333
        %v5508 = vpop.f32.mrb[0].mxu0
        %v5509 = vadd.f32 0.0, %v5508
        %v5510 = vpop.f32.mrb[0].mxu0
        %5511 = vmatprep.mubr.f32.mxu0 0.0
        %5512 = vmatmul.mubr.f32.gmra.mrb[0].mxu0 %v5336
        %v5513 = vpop.f32.mrb[0].mxu0
        %v5514 = vadd.f32 0.0, %v5513
        %v5515 = vpop.f32.mrb[0].mxu0
        %5516 = vmatprep.mubr.f32.mxu0 0.0
        %5517 = vmatmul.mubr.f32.gmra.mrb[0].mxu0 %v5339
        %v5518 = vpop.f32.mrb[0].mxu0
        %v5519 = vadd.f32 0.0, %v5518
        %v5520 = vpop.f32.mrb[0].mxu0
        %5521 = vmatprep.mubr.f32.mxu0 0.0
        %5522 = vmatmul.mubr.f32.gmra.mrb[0].mxu0 %v5342
        %v5523 = vpop.f32.mrb[0].mxu0
        %v5524 = vadd.f32 0.0, %v5523
        %v5525 = vpop.f32.mrb[0].mxu0
        %5526 = vmatprep.mubr.f32.mxu0 0.0
        %5527 = vmatmul.mubr.f32.gmra.mrb[0].mxu0 %v5345
        %v5528 = vpop.f32.mrb[0].mxu0
        %v5529 = vadd.f32 0.0, %v5528
        %v5530 = vpop.f32.mrb[0].mxu0
        %5531 = vmatprep.mubr.f32.mxu0 0.0
        %5532 = vmatmul.mubr.f32.gmra.mrb[0].mxu0 %v5348
        %v5533 = vpop.f32.mrb[0].mxu0
        %v5534 = vadd.f32 0.0, %v5533
        %v5535 = vpop.f32.mrb[0].mxu0
        %5536 = vmatprep.mubr.f32.mxu0 0.0
        %5537 = vmatmul.mubr.f32.gmra.mrb[0].mxu0 %v5351
        %v5538 = vpop.f32.mrb[0].mxu0
        %v5539 = vadd.f32 0.0, %v5538
        %v5540 = vpop.f32.mrb[0].mxu0
        %5541 = vmatprep.mubr.f32.mxu0 0.0
        %5542 = vmatmul.mubr.f32.gmra.mrb[0].mxu0 %v5354
        %v5543 = vpop.f32.mrb[0].mxu0
        %v5544 = vadd.f32 0.0, %v5543
        %v5545 = vpop.f32.mrb[0].mxu0
        %5546 = vmatprep.mubr.f32.mxu0 0.0
        %5547 = vmatmul.mubr.f32.gmra.mrb[0].mxu0 %v5357
        %v5548 = vpop.f32.mrb[0].mxu0
        %v5549 = vadd.f32 0.0, %v5548
        %v5550 = vpop.f32.mrb[0].mxu0
        %5551 = vmatprep.mubr.f32.mxu0 0.0
        %5552 = vmatmul.mubr.f32.gmra.mrb[0].mxu0 %v5360
        %v5553 = vpop.f32.mrb[0].mxu0
        %v5554 = vadd.f32 0.0, %v5553
        %v5555 = vpop.f32.mrb[0].mxu0
        %5556 = vmatprep.mubr.f32.mxu0 0.0
        %5557 = vmatmul.mubr.f32.gmra.mrb[0].mxu0 %v5363
        %v5558 = vpop.f32.mrb[0].mxu0
        %v5559 = vadd.f32 0.0, %v5558
        %v5560 = vpop.f32.mrb[0].mxu0
        %5561 = vmatprep.mubr.f32.mxu0 0.0
        %5562 = vmatmul.mubr.f32.gmra.mrb[0].mxu0 %v5366
        %v5563 = vpop.f32.mrb[0].mxu0
        %v5564 = vadd.f32 0.0, %v5563
        %v5565 = vpop.f32.mrb[0].mxu0
        %5566 = vmatprep.mubr.f32.mxu0 0.0
        %5567 = vmatmul.mubr.f32.gmra.mrb[0].mxu0 %v5369
        %v5568 = vpop.f32.mrb[0].mxu0
        %v5569 = vadd.f32 0.0, %v5568
        %v5570 = vpop.f32.mrb[0].mxu0
        %5571 = vmatprep.mubr.f32.mxu0 0.0
        %5572 = vmatmul.mubr.f32.gmra.mrb[0].mxu0 %v5372
        %v5573 = vpop.f32.mrb[0].mxu0
        %v5574 = vadd.f32 0.0, %v5573
        %v5575 = vpop.f32.mrb[0].mxu0
        %5576 = vmatprep.mubr.f32.mxu0 0.0
        %5577 = vmatmul.mubr.f32.gmra.mrb[0].mxu0 %v5375
        %v5578 = vpop.f32.mrb[0].mxu0
        %v5579 = vadd.f32 0.0, %v5578
        %v5580 = vpop.f32.mrb[0].mxu0
        %5581 = vmatprep.mubr.f32.mxu0 0.0
        %5582 = vmatmul.mubr.f32.gmra.mrb[0].mxu0 %v5378
        %v5583 = vpop.f32.mrb[0].mxu0
        %v5584 = vadd.f32 0.0, %v5583
        %v5585 = vpop.f32.mrb[0].mxu0
        %5586 = vmatprep.mubr.f32.mxu0 0.0
        %5587 = vmatmul.mubr.f32.gmra.mrb[0].mxu0 %v5381
        %v5588 = vpop.f32.mrb[0].mxu0
        %v5589 = vadd.f32 0.0, %v5588
        %v5590 = vpop.f32.mrb[0].mxu0
        %5591 = vmatprep.mubr.f32.mxu0 0.0
        %5592 = vmatmul.mubr.f32.gmra.mrb[0].mxu0 %v5384
        %v5593 = vpop.f32.mrb[0].mxu0
        %v5594 = vadd.f32 0.0, %v5593
        %v5595 = vpop.f32.mrb[0].mxu0
        %5596 = vmatprep.mubr.f32.mxu0 0.0
        %5597 = vmatmul.mubr.f32.gmra.mrb[0].mxu0 %v5387
        %v5598 = vpop.f32.mrb[0].mxu0
        %v5599 = vadd.f32 0.0, %v5598
        %v5600 = vpop.f32.mrb[0].mxu0
        %5601 = vmatprep.mubr.f32.mxu0 0.0
        %5602 = vmatmul.mubr.f32.gmra.mrb[0].mxu0 %v5390
        %v5603 = vpop.f32.mrb[0].mxu0
        %v5604 = vadd.f32 0.0, %v5603
        %v5605 = vpop.f32.mrb[0].mxu0
        %5606 = vmatprep.mubr.f32.mxu0 0.0
        %5607 = vmatmul.mubr.f32.gmra.mrb[0].mxu0 %v5393
        %v5608 = vpop.f32.mrb[0].mxu0
        %v5609 = vadd.f32 0.0, %v5608
        %v5610 = vpop.f32.mrb[0].mxu0
        %5611 = vmatprep.mubr.f32.mxu0 0.0
        %5612 = vmatmul.mubr.f32.gmra.mrb[0].mxu0 %v5396
        %v5613 = vpop.f32.mrb[0].mxu0
        %v5614 = vadd.f32 0.0, %v5613
        %v5615 = vpop.f32.mrb[0].mxu0
        %5616 = vmatprep.mubr.f32.mxu0 0.0
        %5617 = vmatmul.mubr.f32.gmra.mrb[0].mxu0 %v5399
        %v5618 = vpop.f32.mrb[0].mxu0
        %v5619 = vadd.f32 0.0, %v5618
        %v5620 = vpop.f32.mrb[0].mxu0
        %5621 = vmatprep.mubr.f32.mxu0 0.0
        %5622 = vmatmul.mubr.f32.gmra.mrb[0].mxu0 %v5402
        %v5623 = vpop.f32.mrb[0].mxu0
        %v5624 = vadd.f32 0.0, %v5623
        %v5625 = vpop.f32.mrb[0].mxu0
        %5626 = vmatprep.mubr.f32.mxu0 0.0
        %5627 = vmatmul.mubr.f32.gmra.mrb[0].mxu0 %v5405
        %v5628 = vpop.f32.mrb[0].mxu0
        %v5629 = vadd.f32 0.0, %v5628
        %v5630 = vpop.f32.mrb[0].mxu0
        %5631 = vdwg.mxu0
        %v5632 = vadd.f32 %v5240, %v5474
        %v5633 = vadd.f32 %v5241, %v5479
        %v5634 = vadd.f32 %v5242, %v5484
        %v5635 = vadd.f32 %v5243, %v5489
        %v5636 = vadd.f32 %v5244, %v5494
        %v5637 = vadd.f32 %v5245, %v5499
        %v5638 = vadd.f32 %v5246, %v5504
        %v5639 = vadd.f32 %v5247, %v5509
        %v5640 = vadd.f32 %v5248, %v5514
        %v5641 = vadd.f32 %v5249, %v5519
        %v5642 = vadd.f32 %v5250, %v5524
        %v5643 = vadd.f32 %v5251, %v5529
        %v5644 = vadd.f32 %v5252, %v5534
        %v5645 = vadd.f32 %v5253, %v5539
        %v5646 = vadd.f32 %v5254, %v5544
        %v5647 = vadd.f32 %v5255, %v5549
        %v5648 = vadd.f32 %v5256, %v5554
        %v5649 = vadd.f32 %v5257, %v5559
        %v5650 = vadd.f32 %v5258, %v5564
        %v5651 = vadd.f32 %v5259, %v5569
        %v5652 = vadd.f32 %v5260, %v5574
        %v5653 = vadd.f32 %v5261, %v5579
        %v5654 = vadd.f32 %v5262, %v5584
        %v5655 = vadd.f32 %v5263, %v5589
        %v5656 = vadd.f32 %v5264, %v5594
        %v5657 = vadd.f32 %v5265, %v5599
        %v5658 = vadd.f32 %v5266, %v5604
        %v5659 = vadd.f32 %v5267, %v5609
        %v5660 = vadd.f32 %v5268, %v5614
        %v5661 = vadd.f32 %v5269, %v5619
        %v5662 = vadd.f32 %v5270, %v5624
        %v5663 = vadd.f32 %v5271, %v5629
        %v5664 = vld [vmem:[%s6] sm:$0x1]
        %v5665 = vlaneseq
        %v5666 = vshrl.u32 %v5665, 7
        %v5667 = vsub.s32 0, %v5666
        %v5668 = vrot.slane %v5664, %v5667
        %v5669 = vadd.f32 %v5632, %v5668
        %v5670 = vadd.f32 %v5633, %v5668
        %v5671 = vadd.f32 %v5634, %v5668
        %v5672 = vadd.f32 %v5635, %v5668
        %v5673 = vadd.f32 %v5636, %v5668
        %v5674 = vadd.f32 %v5637, %v5668
        %v5675 = vadd.f32 %v5638, %v5668
        %v5676 = vadd.f32 %v5639, %v5668
        %v5677 = vadd.f32 %v5640, %v5668
        %v5678 = vadd.f32 %v5641, %v5668
        %v5679 = vadd.f32 %v5642, %v5668
        %v5680 = vadd.f32 %v5643, %v5668
        %v5681 = vadd.f32 %v5644, %v5668
        %v5682 = vadd.f32 %v5645, %v5668
        %v5683 = vadd.f32 %v5646, %v5668
        %v5684 = vadd.f32 %v5647, %v5668
        %v5685 = vadd.f32 %v5648, %v5668
        %v5686 = vadd.f32 %v5649, %v5668
        %v5687 = vadd.f32 %v5650, %v5668
        %v5688 = vadd.f32 %v5651, %v5668
        %v5689 = vadd.f32 %v5652, %v5668
        %v5690 = vadd.f32 %v5653, %v5668
        %v5691 = vadd.f32 %v5654, %v5668
        %v5692 = vadd.f32 %v5655, %v5668
        %v5693 = vadd.f32 %v5656, %v5668
        %v5694 = vadd.f32 %v5657, %v5668
        %v5695 = vadd.f32 %v5658, %v5668
        %v5696 = vadd.f32 %v5659, %v5668
        %v5697 = vadd.f32 %v5660, %v5668
        %v5698 = vadd.f32 %v5661, %v5668
        %v5699 = vadd.f32 %v5662, %v5668
        %v5700 = vadd.f32 %v5663, %v5668
        %v5701 = vld [vmem:[%s6 + $0x1] sm:$0x1]
        %v5702 = vlaneseq
        %v5703 = vshrl.u32 %v5702, 7
        %v5704 = vsub.s32 0, %v5703
        %v5705 = vrot.slane %v5701, %v5704
        %v5706 = vmul.f32 %v5669, %v5705
        %v5707 = vmul.f32 %v5670, %v5705
        %v5708 = vmul.f32 %v5671, %v5705
        %v5709 = vmul.f32 %v5672, %v5705
        %v5710 = vmul.f32 %v5673, %v5705
        %v5711 = vmul.f32 %v5674, %v5705
        %v5712 = vmul.f32 %v5675, %v5705
        %v5713 = vmul.f32 %v5676, %v5705
        %v5714 = vmul.f32 %v5677, %v5705
        %v5715 = vmul.f32 %v5678, %v5705
        %v5716 = vmul.f32 %v5679, %v5705
        %v5717 = vmul.f32 %v5680, %v5705
        %v5718 = vmul.f32 %v5681, %v5705
        %v5719 = vmul.f32 %v5682, %v5705
        %v5720 = vmul.f32 %v5683, %v5705
        %v5721 = vmul.f32 %v5684, %v5705
        %v5722 = vmul.f32 %v5685, %v5705
        %v5723 = vmul.f32 %v5686, %v5705
        %v5724 = vmul.f32 %v5687, %v5705
        %v5725 = vmul.f32 %v5688, %v5705
        %v5726 = vmul.f32 %v5689, %v5705
        %v5727 = vmul.f32 %v5690, %v5705
        %v5728 = vmul.f32 %v5691, %v5705
        %v5729 = vmul.f32 %v5692, %v5705
        %v5730 = vmul.f32 %v5693, %v5705
        %v5731 = vmul.f32 %v5694, %v5705
        %v5732 = vmul.f32 %v5695, %v5705
        %v5733 = vmul.f32 %v5696, %v5705
        %v5734 = vmul.f32 %v5697, %v5705
        %v5735 = vmul.f32 %v5698, %v5705
        %v5736 = vmul.f32 %v5699, %v5705
        %v5737 = vmul.f32 %v5700, %v5705
        %v5738 = vld [vmem:[%s6 + $0x2] sm:$0x1]
        %v5739 = vlaneseq
        %v5740 = vshrl.u32 %v5739, 7
        %v5741 = vsub.s32 0, %v5740
        %v5742 = vrot.slane %v5738, %v5741
        %v5743 = vadd.f32 %v5706, %v5742
        %v5744 = vadd.f32 %v5707, %v5742
        %v5745 = vadd.f32 %v5708, %v5742
        %v5746 = vadd.f32 %v5709, %v5742
        %v5747 = vadd.f32 %v5710, %v5742
        %v5748 = vadd.f32 %v5711, %v5742
        %v5749 = vadd.f32 %v5712, %v5742
        %v5750 = vadd.f32 %v5713, %v5742
        %v5751 = vadd.f32 %v5714, %v5742
        %v5752 = vadd.f32 %v5715, %v5742
        %v5753 = vadd.f32 %v5716, %v5742
        %v5754 = vadd.f32 %v5717, %v5742
        %v5755 = vadd.f32 %v5718, %v5742
        %v5756 = vadd.f32 %v5719, %v5742
        %v5757 = vadd.f32 %v5720, %v5742
        %v5758 = vadd.f32 %v5721, %v5742
        %v5759 = vadd.f32 %v5722, %v5742
        %v5760 = vadd.f32 %v5723, %v5742
        %v5761 = vadd.f32 %v5724, %v5742
        %v5762 = vadd.f32 %v5725, %v5742
        %v5763 = vadd.f32 %v5726, %v5742
        %v5764 = vadd.f32 %v5727, %v5742
        %v5765 = vadd.f32 %v5728, %v5742
        %v5766 = vadd.f32 %v5729, %v5742
        %v5767 = vadd.f32 %v5730, %v5742
        %v5768 = vadd.f32 %v5731, %v5742
        %v5769 = vadd.f32 %v5732, %v5742
        %v5770 = vadd.f32 %v5733, %v5742
        %v5771 = vadd.f32 %v5734, %v5742
        %v5772 = vadd.f32 %v5735, %v5742
        %v5773 = vadd.f32 %v5736, %v5742
        %v5774 = vadd.f32 %v5737, %v5742
        %v5775 = vmax.f32 %v5743, 0.0
        %v5776 = vmax.f32 %v5744, 0.0
        %v5777 = vmax.f32 %v5745, 0.0
        %v5778 = vmax.f32 %v5746, 0.0
        %v5779 = vmax.f32 %v5747, 0.0
        %v5780 = vmax.f32 %v5748, 0.0
        %v5781 = vmax.f32 %v5749, 0.0
        %v5782 = vmax.f32 %v5750, 0.0
        %v5783 = vmax.f32 %v5751, 0.0
        %v5784 = vmax.f32 %v5752, 0.0
        %v5785 = vmax.f32 %v5753, 0.0
        %v5786 = vmax.f32 %v5754, 0.0
        %v5787 = vmax.f32 %v5755, 0.0
        %v5788 = vmax.f32 %v5756, 0.0
        %v5789 = vmax.f32 %v5757, 0.0
        %v5790 = vmax.f32 %v5758, 0.0
        %v5791 = vmax.f32 %v5759, 0.0
        %v5792 = vmax.f32 %v5760, 0.0
        %v5793 = vmax.f32 %v5761, 0.0
        %v5794 = vmax.f32 %v5762, 0.0
        %v5795 = vmax.f32 %v5763, 0.0
        %v5796 = vmax.f32 %v5764, 0.0
        %v5797 = vmax.f32 %v5765, 0.0
        %v5798 = vmax.f32 %v5766, 0.0
        %v5799 = vmax.f32 %v5767, 0.0
        %v5800 = vmax.f32 %v5768, 0.0
        %v5801 = vmax.f32 %v5769, 0.0
        %v5802 = vmax.f32 %v5770, 0.0
        %v5803 = vmax.f32 %v5771, 0.0
        %v5804 = vmax.f32 %v5772, 0.0
        %v5805 = vmax.f32 %v5773, 0.0
        %v5806 = vmax.f32 %v5774, 0.0
        %vm5807 = vcmask 72704
        %5808 = vst.msk [vmem:[#allocation4] sm:$0xff] %vm5807, 0.0
        %5809 = vst.msk [vmem:[#allocation4 + $0x8] sm:$0xff] %vm5807, 0.0
        %vm5810 = vcmask 66560
        %5811 = vst.msk [vmem:[#allocation4 + $0x10] sm:$0x3] %vm5810, 0.0
        %s5812 = scalar_lea.vmem [#allocation4], 408
        %5813 = vst.msk [vmem:[%s5812] sm:$0xff] %vm5807, 0.0
        %5814 = vst.msk [vmem:[%s5812 + $0x8] sm:$0xff] %vm5807, 0.0
        %5815 = vst.msk [vmem:[%s5812 + $0x10] sm:$0x3] %vm5810, 0.0
        %s5816 = scalar_lea.vmem [#allocation4], 24
        %vm5817 = vcmask 65536
        %5818 = vst.msk [vmem:[%s5816] sm:$0x1] %vm5817, 0.0
        %5819 = vst.msk [vmem:[%s5816 + $0x18] sm:$0x1] %vm5817, 0.0
        %5820 = vst.msk [vmem:[%s5816 + $0x30] sm:$0x1] %vm5817, 0.0
        %5821 = vst.msk [vmem:[%s5816 + $0x48] sm:$0x1] %vm5817, 0.0
        %5822 = vst.msk [vmem:[%s5816 + $0x60] sm:$0x1] %vm5817, 0.0
        %5823 = vst.msk [vmem:[%s5816 + $0x78] sm:$0x1] %vm5817, 0.0
        %5824 = vst.msk [vmem:[%s5816 + $0x90] sm:$0x1] %vm5817, 0.0
        %5825 = vst.msk [vmem:[%s5816 + $0xa8] sm:$0x1] %vm5817, 0.0
        %5826 = vst.msk [vmem:[%s5816 + $0xc0] sm:$0x1] %vm5817, 0.0
        %5827 = vst.msk [vmem:[%s5816 + $0xd8] sm:$0x1] %vm5817, 0.0
        %5828 = vst.msk [vmem:[%s5816 + $0xf0] sm:$0x1] %vm5817, 0.0
        %5829 = vst.msk [vmem:[%s5816 + $0x108] sm:$0x1] %vm5817, 0.0
        %5830 = vst.msk [vmem:[%s5816 + $0x120] sm:$0x1] %vm5817, 0.0
        %5831 = vst.msk [vmem:[%s5816 + $0x138] sm:$0x1] %vm5817, 0.0
        %5832 = vst.msk [vmem:[%s5816 + $0x150] sm:$0x1] %vm5817, 0.0
        %5833 = vst.msk [vmem:[%s5816 + $0x168] sm:$0x1] %vm5817, 0.0
        %5834 = vst.msk [vmem:[%s5816 + $0x11] sm:$0x1] %vm5817, 0.0
        %5835 = vst.msk [vmem:[%s5816 + $0x29] sm:$0x1] %vm5817, 0.0
        %5836 = vst.msk [vmem:[%s5816 + $0x41] sm:$0x1] %vm5817, 0.0
        %5837 = vst.msk [vmem:[%s5816 + $0x59] sm:$0x1] %vm5817, 0.0
        %5838 = vst.msk [vmem:[%s5816 + $0x71] sm:$0x1] %vm5817, 0.0
        %5839 = vst.msk [vmem:[%s5816 + $0x89] sm:$0x1] %vm5817, 0.0
        %5840 = vst.msk [vmem:[%s5816 + $0xa1] sm:$0x1] %vm5817, 0.0
        %5841 = vst.msk [vmem:[%s5816 + $0xb9] sm:$0x1] %vm5817, 0.0
        %5842 = vst.msk [vmem:[%s5816 + $0xd1] sm:$0x1] %vm5817, 0.0
        %5843 = vst.msk [vmem:[%s5816 + $0xe9] sm:$0x1] %vm5817, 0.0
        %5844 = vst.msk [vmem:[%s5816 + $0x101] sm:$0x1] %vm5817, 0.0
        %5845 = vst.msk [vmem:[%s5816 + $0x119] sm:$0x1] %vm5817, 0.0
        %5846 = vst.msk [vmem:[%s5816 + $0x131] sm:$0x1] %vm5817, 0.0
        %5847 = vst.msk [vmem:[%s5816 + $0x149] sm:$0x1] %vm5817, 0.0
        %5848 = vst.msk [vmem:[%s5816 + $0x161] sm:$0x1] %vm5817, 0.0
        %5849 = vst.msk [vmem:[%s5816 + $0x179] sm:$0x1] %vm5817, 0.0
        %v5850 = vld [vmem:[%s7] sm:$0xff]
        %v5851 = vld [vmem:[%s7 + $0x8] sm:$0xff]
        %v5853 = vsel %vm1845, %v5775, 0
        %v5856 = vsel %vm1845, %v5776, 0
        %v5859 = vsel %vm1845, %v5777, 0
        %v5862 = vsel %vm1845, %v5778, 0
        %v5865 = vsel %vm1845, %v5779, 0
        %v5868 = vsel %vm1845, %v5780, 0
        %v5871 = vsel %vm1845, %v5781, 0
        %v5874 = vsel %vm1845, %v5782, 0
        %v5877 = vsel %vm1845, %v5783, 0
        %v5880 = vsel %vm1845, %v5784, 0
        %v5883 = vsel %vm1845, %v5785, 0
        %v5886 = vsel %vm1845, %v5786, 0
        %v5889 = vsel %vm1845, %v5787, 0
        %v5892 = vsel %vm1845, %v5788, 0
        %v5895 = vsel %vm1845, %v5789, 0
        %v5898 = vsel %vm1845, %v5790, 0
        %v5901 = vsel %vm1845, %v5791, 0
        %v5904 = vsel %vm1845, %v5792, 0
        %v5907 = vsel %vm1845, %v5793, 0
        %v5910 = vsel %vm1845, %v5794, 0
        %v5913 = vsel %vm1845, %v5795, 0
        %v5916 = vsel %vm1845, %v5796, 0
        %v5919 = vsel %vm1845, %v5797, 0
        %v5922 = vsel %vm1845, %v5798, 0
        %v5925 = vsel %vm1845, %v5799, 0
        %v5928 = vsel %vm1845, %v5800, 0
        %v5931 = vsel %vm1845, %v5801, 0
        %v5934 = vsel %vm1845, %v5802, 0
        %v5937 = vsel %vm1845, %v5803, 0
        %v5940 = vsel %vm1845, %v5804, 0
        %v5943 = vsel %vm1845, %v5805, 0
        %v5946 = vsel %vm1845, %v5806, 0
        %5948 = vmatprep.subr.mxu0 0.0
        %5949 = vmatpush1.msra.mxu0 %v5850
        %5950 = vmatprep.subr.mxu0 0.0
        %5951 = vmatpush1.msra.mxu0 %v5851
        %5952 = vmatprep.subr.mxu0 0.0
        %5953 = vmatpush1.msra.mxu0 0.0
        %5954 = vmatprep.subr.mxu0 0.0
        %5955 = vmatpush1.msra.mxu0 0.0
        %5956 = vmatprep.subr.mxu0 0.0
        %5957 = vmatpush1.msra.mxu0 0.0
        %5958 = vmatprep.subr.mxu0 0.0
        %5959 = vmatpush1.msra.mxu0 0.0
        %5960 = vmatprep.subr.mxu0 0.0
        %5961 = vmatpush1.msra.mxu0 0.0
        %5962 = vmatprep.subr.mxu0 0.0
        %5963 = vmatpush1.msra.mxu0 0.0
        %5964 = vmatprep.subr.mxu0 0.0
        %5965 = vmatpush1.msra.mxu0 0.0
        %5966 = vmatprep.subr.mxu0 0.0
        %5967 = vmatpush1.msra.mxu0 0.0
        %5968 = vmatprep.subr.mxu0 0.0
        %5969 = vmatpush1.msra.mxu0 0.0
        %5970 = vmatprep.subr.mxu0 0.0
        %5971 = vmatpush1.msra.mxu0 0.0
        %5972 = vmatprep.subr.mxu0 0.0
        %5973 = vmatpush1.msra.mxu0 0.0
        %5974 = vmatprep.subr.mxu0 0.0
        %5975 = vmatpush1.msra.mxu0 0.0
        %5976 = vmatprep.subr.mxu0 0.0
        %5977 = vmatpush1.msra.mxu0 0.0
        %5978 = vmatprep.subr.mxu0 0.0
        %5979 = vmatpush1.msra.mxu0 0.0
        %5980 = vmatprep.subr.mxu0 0.0
        %5981 = vmatpush1.msra.mxu0 0.0
        %5982 = vmatprep.subr.mxu0 0.0
        %5983 = vmatpush1.msra.mxu0 0.0
        %5984 = vmatprep.subr.mxu0 0.0
        %5985 = vmatpush1.msra.mxu0 0.0
        %5986 = vmatprep.subr.mxu0 0.0
        %5987 = vmatpush1.msra.mxu0 0.0
        %5988 = vmatprep.subr.mxu0 0.0
        %5989 = vmatpush1.msra.mxu0 0.0
        %5990 = vmatprep.subr.mxu0 0.0
        %5991 = vmatpush1.msra.mxu0 0.0
        %5992 = vmatprep.subr.mxu0 0.0
        %5993 = vmatpush1.msra.mxu0 0.0
        %5994 = vmatprep.subr.mxu0 0.0
        %5995 = vmatpush1.msra.mxu0 0.0
        %5996 = vmatprep.subr.mxu0 0.0
        %5997 = vmatpush1.msra.mxu0 0.0
        %5998 = vmatprep.subr.mxu0 0.0
        %5999 = vmatpush1.msra.mxu0 0.0
        %6000 = vmatprep.subr.mxu0 0.0
        %6001 = vmatpush1.msra.mxu0 0.0
        %6002 = vmatprep.subr.mxu0 0.0
        %6003 = vmatpush1.msra.mxu0 0.0
        %6004 = vmatprep.subr.mxu0 0.0
        %6005 = vmatpush1.msra.mxu0 0.0
        %6006 = vmatprep.subr.mxu0 0.0
        %6007 = vmatpush1.msra.mxu0 0.0
        %6008 = vmatprep.subr.mxu0 0.0
        %6009 = vmatpush1.msra.mxu0 0.0
        %6010 = vmatprep.subr.mxu0 0.0
        %6011 = vmatpush1.msra.mxu0 0.0
        %6012 = vmatprep.mubr.f32.mxu0 0.0
        %6013 = vmatmul.mubr.f32.gmra.mrb[0].mxu0 %v5853
        %v6014 = vpop.f32.mrb[0].mxu0
        %v6015 = vadd.f32 0.0, %v6014
        %v6016 = vpop.f32.mrb[0].mxu0
        %6017 = vmatprep.mubr.f32.mxu0 0.0
        %6018 = vmatmul.mubr.f32.gmra.mrb[0].mxu0 %v5856
        %v6019 = vpop.f32.mrb[0].mxu0
        %v6020 = vadd.f32 0.0, %v6019
        %v6021 = vpop.f32.mrb[0].mxu0
        %6022 = vmatprep.mubr.f32.mxu0 0.0
        %6023 = vmatmul.mubr.f32.gmra.mrb[0].mxu0 %v5859
        %v6024 = vpop.f32.mrb[0].mxu0
        %v6025 = vadd.f32 0.0, %v6024
        %v6026 = vpop.f32.mrb[0].mxu0
        %6027 = vmatprep.mubr.f32.mxu0 0.0
        %6028 = vmatmul.mubr.f32.gmra.mrb[0].mxu0 %v5862
        %v6029 = vpop.f32.mrb[0].mxu0
        %v6030 = vadd.f32 0.0, %v6029
        %v6031 = vpop.f32.mrb[0].mxu0
        %6032 = vmatprep.mubr.f32.mxu0 0.0
        %6033 = vmatmul.mubr.f32.gmra.mrb[0].mxu0 %v5865
        %v6034 = vpop.f32.mrb[0].mxu0
        %v6035 = vadd.f32 0.0, %v6034
        %v6036 = vpop.f32.mrb[0].mxu0
        %6037 = vmatprep.mubr.f32.mxu0 0.0
        %6038 = vmatmul.mubr.f32.gmra.mrb[0].mxu0 %v5868
        %v6039 = vpop.f32.mrb[0].mxu0
        %v6040 = vadd.f32 0.0, %v6039
        %v6041 = vpop.f32.mrb[0].mxu0
        %6042 = vmatprep.mubr.f32.mxu0 0.0
        %6043 = vmatmul.mubr.f32.gmra.mrb[0].mxu0 %v5871
        %v6044 = vpop.f32.mrb[0].mxu0
        %v6045 = vadd.f32 0.0, %v6044
        %v6046 = vpop.f32.mrb[0].mxu0
        %6047 = vmatprep.mubr.f32.mxu0 0.0
        %6048 = vmatmul.mubr.f32.gmra.mrb[0].mxu0 %v5874
        %v6049 = vpop.f32.mrb[0].mxu0
        %v6050 = vadd.f32 0.0, %v6049
        %v6051 = vpop.f32.mrb[0].mxu0
        %6052 = vmatprep.mubr.f32.mxu0 0.0
        %6053 = vmatmul.mubr.f32.gmra.mrb[0].mxu0 %v5877
        %v6054 = vpop.f32.mrb[0].mxu0
        %v6055 = vadd.f32 0.0, %v6054
        %v6056 = vpop.f32.mrb[0].mxu0
        %6057 = vmatprep.mubr.f32.mxu0 0.0
        %6058 = vmatmul.mubr.f32.gmra.mrb[0].mxu0 %v5880
        %v6059 = vpop.f32.mrb[0].mxu0
        %v6060 = vadd.f32 0.0, %v6059
        %v6061 = vpop.f32.mrb[0].mxu0
        %6062 = vmatprep.mubr.f32.mxu0 0.0
        %6063 = vmatmul.mubr.f32.gmra.mrb[0].mxu0 %v5883
        %v6064 = vpop.f32.mrb[0].mxu0
        %v6065 = vadd.f32 0.0, %v6064
        %v6066 = vpop.f32.mrb[0].mxu0
        %6067 = vmatprep.mubr.f32.mxu0 0.0
        %6068 = vmatmul.mubr.f32.gmra.mrb[0].mxu0 %v5886
        %v6069 = vpop.f32.mrb[0].mxu0
        %v6070 = vadd.f32 0.0, %v6069
        %v6071 = vpop.f32.mrb[0].mxu0
        %6072 = vmatprep.mubr.f32.mxu0 0.0
        %6073 = vmatmul.mubr.f32.gmra.mrb[0].mxu0 %v5889
        %v6074 = vpop.f32.mrb[0].mxu0
        %v6075 = vadd.f32 0.0, %v6074
        %v6076 = vpop.f32.mrb[0].mxu0
        %6077 = vmatprep.mubr.f32.mxu0 0.0
        %6078 = vmatmul.mubr.f32.gmra.mrb[0].mxu0 %v5892
        %v6079 = vpop.f32.mrb[0].mxu0
        %v6080 = vadd.f32 0.0, %v6079
        %v6081 = vpop.f32.mrb[0].mxu0
        %6082 = vmatprep.mubr.f32.mxu0 0.0
        %6083 = vmatmul.mubr.f32.gmra.mrb[0].mxu0 %v5895
        %v6084 = vpop.f32.mrb[0].mxu0
        %v6085 = vadd.f32 0.0, %v6084
        %v6086 = vpop.f32.mrb[0].mxu0
        %6087 = vmatprep.mubr.f32.mxu0 0.0
        %6088 = vmatmul.mubr.f32.gmra.mrb[0].mxu0 %v5898
        %v6089 = vpop.f32.mrb[0].mxu0
        %v6090 = vadd.f32 0.0, %v6089
        %v6091 = vpop.f32.mrb[0].mxu0
        %6092 = vmatprep.mubr.f32.mxu0 0.0
        %6093 = vmatmul.mubr.f32.gmra.mrb[0].mxu0 %v5901
        %v6094 = vpop.f32.mrb[0].mxu0
        %v6095 = vadd.f32 0.0, %v6094
        %v6096 = vpop.f32.mrb[0].mxu0
        %6097 = vmatprep.mubr.f32.mxu0 0.0
        %6098 = vmatmul.mubr.f32.gmra.mrb[0].mxu0 %v5904
        %v6099 = vpop.f32.mrb[0].mxu0
        %v6100 = vadd.f32 0.0, %v6099
        %v6101 = vpop.f32.mrb[0].mxu0
        %6102 = vmatprep.mubr.f32.mxu0 0.0
        %6103 = vmatmul.mubr.f32.gmra.mrb[0].mxu0 %v5907
        %v6104 = vpop.f32.mrb[0].mxu0
        %v6105 = vadd.f32 0.0, %v6104
        %v6106 = vpop.f32.mrb[0].mxu0
        %6107 = vmatprep.mubr.f32.mxu0 0.0
        %6108 = vmatmul.mubr.f32.gmra.mrb[0].mxu0 %v5910
        %v6109 = vpop.f32.mrb[0].mxu0
        %v6110 = vadd.f32 0.0, %v6109
        %v6111 = vpop.f32.mrb[0].mxu0
        %6112 = vmatprep.mubr.f32.mxu0 0.0
        %6113 = vmatmul.mubr.f32.gmra.mrb[0].mxu0 %v5913
        %v6114 = vpop.f32.mrb[0].mxu0
        %v6115 = vadd.f32 0.0, %v6114
        %v6116 = vpop.f32.mrb[0].mxu0
        %6117 = vmatprep.mubr.f32.mxu0 0.0
        %6118 = vmatmul.mubr.f32.gmra.mrb[0].mxu0 %v5916
        %v6119 = vpop.f32.mrb[0].mxu0
        %v6120 = vadd.f32 0.0, %v6119
        %v6121 = vpop.f32.mrb[0].mxu0
        %6122 = vmatprep.mubr.f32.mxu0 0.0
        %6123 = vmatmul.mubr.f32.gmra.mrb[0].mxu0 %v5919
        %v6124 = vpop.f32.mrb[0].mxu0
        %v6125 = vadd.f32 0.0, %v6124
        %v6126 = vpop.f32.mrb[0].mxu0
        %6127 = vmatprep.mubr.f32.mxu0 0.0
        %6128 = vmatmul.mubr.f32.gmra.mrb[0].mxu0 %v5922
        %v6129 = vpop.f32.mrb[0].mxu0
        %v6130 = vadd.f32 0.0, %v6129
        %v6131 = vpop.f32.mrb[0].mxu0
        %6132 = vmatprep.mubr.f32.mxu0 0.0
        %6133 = vmatmul.mubr.f32.gmra.mrb[0].mxu0 %v5925
        %v6134 = vpop.f32.mrb[0].mxu0
        %v6135 = vadd.f32 0.0, %v6134
        %v6136 = vpop.f32.mrb[0].mxu0
        %6137 = vmatprep.mubr.f32.mxu0 0.0
        %6138 = vmatmul.mubr.f32.gmra.mrb[0].mxu0 %v5928
        %v6139 = vpop.f32.mrb[0].mxu0
        %v6140 = vadd.f32 0.0, %v6139
        %v6141 = vpop.f32.mrb[0].mxu0
        %6142 = vmatprep.mubr.f32.mxu0 0.0
        %6143 = vmatmul.mubr.f32.gmra.mrb[0].mxu0 %v5931
        %v6144 = vpop.f32.mrb[0].mxu0
        %v6145 = vadd.f32 0.0, %v6144
        %v6146 = vpop.f32.mrb[0].mxu0
        %6147 = vmatprep.mubr.f32.mxu0 0.0
        %6148 = vmatmul.mubr.f32.gmra.mrb[0].mxu0 %v5934
        %v6149 = vpop.f32.mrb[0].mxu0
        %v6150 = vadd.f32 0.0, %v6149
        %v6151 = vpop.f32.mrb[0].mxu0
        %6152 = vmatprep.mubr.f32.mxu0 0.0
        %6153 = vmatmul.mubr.f32.gmra.mrb[0].mxu0 %v5937
        %v6154 = vpop.f32.mrb[0].mxu0
        %v6155 = vadd.f32 0.0, %v6154
        %v6156 = vpop.f32.mrb[0].mxu0
        %6157 = vmatprep.mubr.f32.mxu0 0.0
        %6158 = vmatmul.mubr.f32.gmra.mrb[0].mxu0 %v5940
        %v6159 = vpop.f32.mrb[0].mxu0
        %v6160 = vadd.f32 0.0, %v6159
        %v6161 = vpop.f32.mrb[0].mxu0
        %6162 = vmatprep.mubr.f32.mxu0 0.0
        %6163 = vmatmul.mubr.f32.gmra.mrb[0].mxu0 %v5943
        %v6164 = vpop.f32.mrb[0].mxu0
        %v6165 = vadd.f32 0.0, %v6164
        %v6166 = vpop.f32.mrb[0].mxu0
        %6167 = vmatprep.mubr.f32.mxu0 0.0
        %6168 = vmatmul.mubr.f32.gmra.mrb[0].mxu0 %v5946
        %v6169 = vpop.f32.mrb[0].mxu0
        %v6170 = vadd.f32 0.0, %v6169
        %v6171 = vpop.f32.mrb[0].mxu0
        %6172 = vdwg.mxu0
        %6173 = vst.msk [vmem:[%s5816 + $0x1] sm:$0xff] %vm5807, %v6015
        %6174 = vst.msk [vmem:[%s5816 + $0x9] sm:$0xff] %vm5807, %v6020
        %6175 = vst.msk [vmem:[%s5816 + $0x19] sm:$0xff] %vm5807, %v6025
        %6176 = vst.msk [vmem:[%s5816 + $0x21] sm:$0xff] %vm5807, %v6030
        %6177 = vst.msk [vmem:[%s5816 + $0x31] sm:$0xff] %vm5807, %v6035
        %6178 = vst.msk [vmem:[%s5816 + $0x39] sm:$0xff] %vm5807, %v6040
        %6179 = vst.msk [vmem:[%s5816 + $0x49] sm:$0xff] %vm5807, %v6045
        %6180 = vst.msk [vmem:[%s5816 + $0x51] sm:$0xff] %vm5807, %v6050
        %6181 = vst.msk [vmem:[%s5816 + $0x61] sm:$0xff] %vm5807, %v6055
        %6182 = vst.msk [vmem:[%s5816 + $0x69] sm:$0xff] %vm5807, %v6060
        %6183 = vst.msk [vmem:[%s5816 + $0x79] sm:$0xff] %vm5807, %v6065
        %6184 = vst.msk [vmem:[%s5816 + $0x81] sm:$0xff] %vm5807, %v6070
        %6185 = vst.msk [vmem:[%s5816 + $0x91] sm:$0xff] %vm5807, %v6075
        %6186 = vst.msk [vmem:[%s5816 + $0x99] sm:$0xff] %vm5807, %v6080
        %6187 = vst.msk [vmem:[%s5816 + $0xa9] sm:$0xff] %vm5807, %v6085
        %6188 = vst.msk [vmem:[%s5816 + $0xb1] sm:$0xff] %vm5807, %v6090
        %6189 = vst.msk [vmem:[%s5816 + $0xc1] sm:$0xff] %vm5807, %v6095
        %6190 = vst.msk [vmem:[%s5816 + $0xc9] sm:$0xff] %vm5807, %v6100
        %6191 = vst.msk [vmem:[%s5816 + $0xd9] sm:$0xff] %vm5807, %v6105
        %6192 = vst.msk [vmem:[%s5816 + $0xe1] sm:$0xff] %vm5807, %v6110
        %6193 = vst.msk [vmem:[%s5816 + $0xf1] sm:$0xff] %vm5807, %v6115
        %6194 = vst.msk [vmem:[%s5816 + $0xf9] sm:$0xff] %vm5807, %v6120
        %6195 = vst.msk [vmem:[%s5816 + $0x109] sm:$0xff] %vm5807, %v6125
        %6196 = vst.msk [vmem:[%s5816 + $0x111] sm:$0xff] %vm5807, %v6130
        %6197 = vst.msk [vmem:[%s5816 + $0x121] sm:$0xff] %vm5807, %v6135
        %6198 = vst.msk [vmem:[%s5816 + $0x129] sm:$0xff] %vm5807, %v6140
        %6199 = vst.msk [vmem:[%s5816 + $0x139] sm:$0xff] %vm5807, %v6145
        %6200 = vst.msk [vmem:[%s5816 + $0x141] sm:$0xff] %vm5807, %v6150
        %6201 = vst.msk [vmem:[%s5816 + $0x151] sm:$0xff] %vm5807, %v6155
        %6202 = vst.msk [vmem:[%s5816 + $0x159] sm:$0xff] %vm5807, %v6160
        %6203 = vst.msk [vmem:[%s5816 + $0x169] sm:$0xff] %vm5807, %v6165
        %6204 = vst.msk [vmem:[%s5816 + $0x171] sm:$0xff] %vm5807, %v6170
        %v6205 = vld [vmem:[#allocation4] sm:$0xff]
        %v6206 = vld [vmem:[#allocation4 + $0x8] sm:$0xff]
        %v6207 = vld [vmem:[#allocation4 + $0x18] sm:$0xff]
        %v6208 = vld [vmem:[#allocation4 + $0x20] sm:$0xff]
        %v6209 = vld [vmem:[#allocation4 + $0x30] sm:$0xff]
        %v6210 = vld [vmem:[#allocation4 + $0x38] sm:$0xff]
        %v6211 = vld [vmem:[#allocation4 + $0x48] sm:$0xff]
        %v6212 = vld [vmem:[#allocation4 + $0x50] sm:$0xff]
        %v6213 = vld [vmem:[#allocation4 + $0x60] sm:$0xff]
        %v6214 = vld [vmem:[#allocation4 + $0x68] sm:$0xff]
        %v6215 = vld [vmem:[#allocation4 + $0x78] sm:$0xff]
        %v6216 = vld [vmem:[#allocation4 + $0x80] sm:$0xff]
        %v6217 = vld [vmem:[#allocation4 + $0x90] sm:$0xff]
        %v6218 = vld [vmem:[#allocation4 + $0x98] sm:$0xff]
        %v6219 = vld [vmem:[#allocation4 + $0xa8] sm:$0xff]
        %v6220 = vld [vmem:[#allocation4 + $0xb0] sm:$0xff]
        %v6221 = vld [vmem:[#allocation4 + $0xc0] sm:$0xff]
        %v6222 = vld [vmem:[#allocation4 + $0xc8] sm:$0xff]
        %v6223 = vld [vmem:[#allocation4 + $0xd8] sm:$0xff]
        %v6224 = vld [vmem:[#allocation4 + $0xe0] sm:$0xff]
        %v6225 = vld [vmem:[#allocation4 + $0xf0] sm:$0xff]
        %v6226 = vld [vmem:[#allocation4 + $0xf8] sm:$0xff]
        %v6227 = vld [vmem:[#allocation4 + $0x108] sm:$0xff]
        %v6228 = vld [vmem:[#allocation4 + $0x110] sm:$0xff]
        %v6229 = vld [vmem:[#allocation4 + $0x120] sm:$0xff]
        %v6230 = vld [vmem:[#allocation4 + $0x128] sm:$0xff]
        %v6231 = vld [vmem:[#allocation4 + $0x138] sm:$0xff]
        %v6232 = vld [vmem:[#allocation4 + $0x140] sm:$0xff]
        %v6233 = vld [vmem:[#allocation4 + $0x150] sm:$0xff]
        %v6234 = vld [vmem:[#allocation4 + $0x158] sm:$0xff]
        %v6235 = vld [vmem:[#allocation4 + $0x168] sm:$0xff]
        %v6236 = vld [vmem:[#allocation4 + $0x170] sm:$0xff]
        %v6237 = vadd.f32 %v6205, 0.0
        %v6238 = vadd.f32 %v6206, 0.0
        %v6239 = vadd.f32 %v6207, 0.0
        %v6240 = vadd.f32 %v6208, 0.0
        %v6241 = vadd.f32 %v6209, 0.0
        %v6242 = vadd.f32 %v6210, 0.0
        %v6243 = vadd.f32 %v6211, 0.0
        %v6244 = vadd.f32 %v6212, 0.0
        %v6245 = vadd.f32 %v6213, 0.0
        %v6246 = vadd.f32 %v6214, 0.0
        %v6247 = vadd.f32 %v6215, 0.0
        %v6248 = vadd.f32 %v6216, 0.0
        %v6249 = vadd.f32 %v6217, 0.0
        %v6250 = vadd.f32 %v6218, 0.0
        %v6251 = vadd.f32 %v6219, 0.0
        %v6252 = vadd.f32 %v6220, 0.0
        %v6253 = vadd.f32 %v6221, 0.0
        %v6254 = vadd.f32 %v6222, 0.0
        %v6255 = vadd.f32 %v6223, 0.0
        %v6256 = vadd.f32 %v6224, 0.0
        %v6257 = vadd.f32 %v6225, 0.0
        %v6258 = vadd.f32 %v6226, 0.0
        %v6259 = vadd.f32 %v6227, 0.0
        %v6260 = vadd.f32 %v6228, 0.0
        %v6261 = vadd.f32 %v6229, 0.0
        %v6262 = vadd.f32 %v6230, 0.0
        %v6263 = vadd.f32 %v6231, 0.0
        %v6264 = vadd.f32 %v6232, 0.0
        %v6265 = vadd.f32 %v6233, 0.0
        %v6266 = vadd.f32 %v6234, 0.0
        %v6267 = vadd.f32 %v6235, 0.0
        %v6268 = vadd.f32 %v6236, 0.0
        %v6269 = vld [vmem:[#allocation4 + $0x1] sm:$0xff]
        %v6270 = vld [vmem:[#allocation4 + $0x9] sm:$0xff]
        %v6271 = vld [vmem:[#allocation4 + $0x19] sm:$0xff]
        %v6272 = vld [vmem:[#allocation4 + $0x21] sm:$0xff]
        %v6273 = vld [vmem:[#allocation4 + $0x31] sm:$0xff]
        %v6274 = vld [vmem:[#allocation4 + $0x39] sm:$0xff]
        %v6275 = vld [vmem:[#allocation4 + $0x49] sm:$0xff]
        %v6276 = vld [vmem:[#allocation4 + $0x51] sm:$0xff]
        %v6277 = vld [vmem:[#allocation4 + $0x61] sm:$0xff]
        %v6278 = vld [vmem:[#allocation4 + $0x69] sm:$0xff]
        %v6279 = vld [vmem:[#allocation4 + $0x79] sm:$0xff]
        %v6280 = vld [vmem:[#allocation4 + $0x81] sm:$0xff]
        %v6281 = vld [vmem:[#allocation4 + $0x91] sm:$0xff]
        %v6282 = vld [vmem:[#allocation4 + $0x99] sm:$0xff]
        %v6283 = vld [vmem:[#allocation4 + $0xa9] sm:$0xff]
        %v6284 = vld [vmem:[#allocation4 + $0xb1] sm:$0xff]
        %v6285 = vld [vmem:[#allocation4 + $0xc1] sm:$0xff]
        %v6286 = vld [vmem:[#allocation4 + $0xc9] sm:$0xff]
        %v6287 = vld [vmem:[#allocation4 + $0xd9] sm:$0xff]
        %v6288 = vld [vmem:[#allocation4 + $0xe1] sm:$0xff]
        %v6289 = vld [vmem:[#allocation4 + $0xf1] sm:$0xff]
        %v6290 = vld [vmem:[#allocation4 + $0xf9] sm:$0xff]
        %v6291 = vld [vmem:[#allocation4 + $0x109] sm:$0xff]
        %v6292 = vld [vmem:[#allocation4 + $0x111] sm:$0xff]
        %v6293 = vld [vmem:[#allocation4 + $0x121] sm:$0xff]
        %v6294 = vld [vmem:[#allocation4 + $0x129] sm:$0xff]
        %v6295 = vld [vmem:[#allocation4 + $0x139] sm:$0xff]
        %v6296 = vld [vmem:[#allocation4 + $0x141] sm:$0xff]
        %v6297 = vld [vmem:[#allocation4 + $0x151] sm:$0xff]
        %v6298 = vld [vmem:[#allocation4 + $0x159] sm:$0xff]
        %v6299 = vld [vmem:[#allocation4 + $0x169] sm:$0xff]
        %v6300 = vld [vmem:[#allocation4 + $0x171] sm:$0xff]
        %6333 = vrot.lane.b32.xlu0 %v6269, 127
        %v6334 = vpop.permute.xlu0 %6333
        %6335 = vrot.lane.b32.xlu0 %v6270, 127
        %v6336 = vpop.permute.xlu0 %6335
        %6337 = vrot.lane.b32.xlu0 %v6271, 127
        %v6338 = vpop.permute.xlu0 %6337
        %6339 = vrot.lane.b32.xlu0 %v6272, 127
        %v6340 = vpop.permute.xlu0 %6339
        %6341 = vrot.lane.b32.xlu0 %v6273, 127
        %v6342 = vpop.permute.xlu0 %6341
        %6343 = vrot.lane.b32.xlu0 %v6274, 127
        %v6344 = vpop.permute.xlu0 %6343
        %6345 = vrot.lane.b32.xlu0 %v6275, 127
        %v6346 = vpop.permute.xlu0 %6345
        %6347 = vrot.lane.b32.xlu0 %v6276, 127
        %v6348 = vpop.permute.xlu0 %6347
        %6349 = vrot.lane.b32.xlu0 %v6277, 127
        %v6350 = vpop.permute.xlu0 %6349
        %6351 = vrot.lane.b32.xlu0 %v6278, 127
        %v6352 = vpop.permute.xlu0 %6351
        %6353 = vrot.lane.b32.xlu0 %v6279, 127
        %v6354 = vpop.permute.xlu0 %6353
        %6355 = vrot.lane.b32.xlu0 %v6280, 127
        %v6356 = vpop.permute.xlu0 %6355
        %6357 = vrot.lane.b32.xlu0 %v6281, 127
        %v6358 = vpop.permute.xlu0 %6357
        %6359 = vrot.lane.b32.xlu0 %v6282, 127
        %v6360 = vpop.permute.xlu0 %6359
        %6361 = vrot.lane.b32.xlu0 %v6283, 127
        %v6362 = vpop.permute.xlu0 %6361
        %6363 = vrot.lane.b32.xlu0 %v6284, 127
        %v6364 = vpop.permute.xlu0 %6363
        %6365 = vrot.lane.b32.xlu0 %v6285, 127
        %v6366 = vpop.permute.xlu0 %6365
        %6367 = vrot.lane.b32.xlu0 %v6286, 127
        %v6368 = vpop.permute.xlu0 %6367
        %6369 = vrot.lane.b32.xlu0 %v6287, 127
        %v6370 = vpop.permute.xlu0 %6369
        %6371 = vrot.lane.b32.xlu0 %v6288, 127
        %v6372 = vpop.permute.xlu0 %6371
        %6373 = vrot.lane.b32.xlu0 %v6289, 127
        %v6374 = vpop.permute.xlu0 %6373
        %6375 = vrot.lane.b32.xlu0 %v6290, 127
        %v6376 = vpop.permute.xlu0 %6375
        %6377 = vrot.lane.b32.xlu0 %v6291, 127
        %v6378 = vpop.permute.xlu0 %6377
        %6379 = vrot.lane.b32.xlu0 %v6292, 127
        %v6380 = vpop.permute.xlu0 %6379
        %6381 = vrot.lane.b32.xlu0 %v6293, 127
        %v6382 = vpop.permute.xlu0 %6381
        %6383 = vrot.lane.b32.xlu0 %v6294, 127
        %v6384 = vpop.permute.xlu0 %6383
        %6385 = vrot.lane.b32.xlu0 %v6295, 127
        %v6386 = vpop.permute.xlu0 %6385
        %6387 = vrot.lane.b32.xlu0 %v6296, 127
        %v6388 = vpop.permute.xlu0 %6387
        %6389 = vrot.lane.b32.xlu0 %v6297, 127
        %v6390 = vpop.permute.xlu0 %6389
        %6391 = vrot.lane.b32.xlu0 %v6298, 127
        %v6392 = vpop.permute.xlu0 %6391
        %6393 = vrot.lane.b32.xlu0 %v6299, 127
        %v6394 = vpop.permute.xlu0 %6393
        %6395 = vrot.lane.b32.xlu0 %v6300, 127
        %v6396 = vpop.permute.xlu0 %6395
        %v6429 = vadd.f32 %v6237, %v6334
        %v6430 = vadd.f32 %v6238, %v6336
        %v6431 = vadd.f32 %v6239, %v6338
        %v6432 = vadd.f32 %v6240, %v6340
        %v6433 = vadd.f32 %v6241, %v6342
        %v6434 = vadd.f32 %v6242, %v6344
        %v6435 = vadd.f32 %v6243, %v6346
        %v6436 = vadd.f32 %v6244, %v6348
        %v6437 = vadd.f32 %v6245, %v6350
        %v6438 = vadd.f32 %v6246, %v6352
        %v6439 = vadd.f32 %v6247, %v6354
        %v6440 = vadd.f32 %v6248, %v6356
        %v6441 = vadd.f32 %v6249, %v6358
        %v6442 = vadd.f32 %v6250, %v6360
        %v6443 = vadd.f32 %v6251, %v6362
        %v6444 = vadd.f32 %v6252, %v6364
        %v6445 = vadd.f32 %v6253, %v6366
        %v6446 = vadd.f32 %v6254, %v6368
        %v6447 = vadd.f32 %v6255, %v6370
        %v6448 = vadd.f32 %v6256, %v6372
        %v6449 = vadd.f32 %v6257, %v6374
        %v6450 = vadd.f32 %v6258, %v6376
        %v6451 = vadd.f32 %v6259, %v6378
        %v6452 = vadd.f32 %v6260, %v6380
        %v6453 = vadd.f32 %v6261, %v6382
        %v6454 = vadd.f32 %v6262, %v6384
        %v6455 = vadd.f32 %v6263, %v6386
        %v6456 = vadd.f32 %v6264, %v6388
        %v6457 = vadd.f32 %v6265, %v6390
        %v6458 = vadd.f32 %v6266, %v6392
        %v6459 = vadd.f32 %v6267, %v6394
        %v6460 = vadd.f32 %v6268, %v6396
        %v6461 = vld [vmem:[#allocation4 + $0x2] sm:$0xff]
        %v6462 = vld [vmem:[#allocation4 + $0xa] sm:$0xff]
        %v6463 = vld [vmem:[#allocation4 + $0x1a] sm:$0xff]
        %v6464 = vld [vmem:[#allocation4 + $0x22] sm:$0xff]
        %v6465 = vld [vmem:[#allocation4 + $0x32] sm:$0xff]
        %v6466 = vld [vmem:[#allocation4 + $0x3a] sm:$0xff]
        %v6467 = vld [vmem:[#allocation4 + $0x4a] sm:$0xff]
        %v6468 = vld [vmem:[#allocation4 + $0x52] sm:$0xff]
        %v6469 = vld [vmem:[#allocation4 + $0x62] sm:$0xff]
        %v6470 = vld [vmem:[#allocation4 + $0x6a] sm:$0xff]
        %v6471 = vld [vmem:[#allocation4 + $0x7a] sm:$0xff]
        %v6472 = vld [vmem:[#allocation4 + $0x82] sm:$0xff]
        %v6473 = vld [vmem:[#allocation4 + $0x92] sm:$0xff]
        %v6474 = vld [vmem:[#allocation4 + $0x9a] sm:$0xff]
        %v6475 = vld [vmem:[#allocation4 + $0xaa] sm:$0xff]
        %v6476 = vld [vmem:[#allocation4 + $0xb2] sm:$0xff]
        %v6477 = vld [vmem:[#allocation4 + $0xc2] sm:$0xff]
        %v6478 = vld [vmem:[#allocation4 + $0xca] sm:$0xff]
        %v6479 = vld [vmem:[#allocation4 + $0xda] sm:$0xff]
        %v6480 = vld [vmem:[#allocation4 + $0xe2] sm:$0xff]
        %v6481 = vld [vmem:[#allocation4 + $0xf2] sm:$0xff]
        %v6482 = vld [vmem:[#allocation4 + $0xfa] sm:$0xff]
        %v6483 = vld [vmem:[#allocation4 + $0x10a] sm:$0xff]
        %v6484 = vld [vmem:[#allocation4 + $0x112] sm:$0xff]
        %v6485 = vld [vmem:[#allocation4 + $0x122] sm:$0xff]
        %v6486 = vld [vmem:[#allocation4 + $0x12a] sm:$0xff]
        %v6487 = vld [vmem:[#allocation4 + $0x13a] sm:$0xff]
        %v6488 = vld [vmem:[#allocation4 + $0x142] sm:$0xff]
        %v6489 = vld [vmem:[#allocation4 + $0x152] sm:$0xff]
        %v6490 = vld [vmem:[#allocation4 + $0x15a] sm:$0xff]
        %v6491 = vld [vmem:[#allocation4 + $0x16a] sm:$0xff]
        %v6492 = vld [vmem:[#allocation4 + $0x172] sm:$0xff]
        %6525 = vrot.lane.b32.xlu0 %v6461, 126
        %v6526 = vpop.permute.xlu0 %6525
        %6527 = vrot.lane.b32.xlu0 %v6462, 126
        %v6528 = vpop.permute.xlu0 %6527
        %6529 = vrot.lane.b32.xlu0 %v6463, 126
        %v6530 = vpop.permute.xlu0 %6529
        %6531 = vrot.lane.b32.xlu0 %v6464, 126
        %v6532 = vpop.permute.xlu0 %6531
        %6533 = vrot.lane.b32.xlu0 %v6465, 126
        %v6534 = vpop.permute.xlu0 %6533
        %6535 = vrot.lane.b32.xlu0 %v6466, 126
        %v6536 = vpop.permute.xlu0 %6535
        %6537 = vrot.lane.b32.xlu0 %v6467, 126
        %v6538 = vpop.permute.xlu0 %6537
        %6539 = vrot.lane.b32.xlu0 %v6468, 126
        %v6540 = vpop.permute.xlu0 %6539
        %6541 = vrot.lane.b32.xlu0 %v6469, 126
        %v6542 = vpop.permute.xlu0 %6541
        %6543 = vrot.lane.b32.xlu0 %v6470, 126
        %v6544 = vpop.permute.xlu0 %6543
        %6545 = vrot.lane.b32.xlu0 %v6471, 126
        %v6546 = vpop.permute.xlu0 %6545
        %6547 = vrot.lane.b32.xlu0 %v6472, 126
        %v6548 = vpop.permute.xlu0 %6547
        %6549 = vrot.lane.b32.xlu0 %v6473, 126
        %v6550 = vpop.permute.xlu0 %6549
        %6551 = vrot.lane.b32.xlu0 %v6474, 126
        %v6552 = vpop.permute.xlu0 %6551
        %6553 = vrot.lane.b32.xlu0 %v6475, 126
        %v6554 = vpop.permute.xlu0 %6553
        %6555 = vrot.lane.b32.xlu0 %v6476, 126
        %v6556 = vpop.permute.xlu0 %6555
        %6557 = vrot.lane.b32.xlu0 %v6477, 126
        %v6558 = vpop.permute.xlu0 %6557
        %6559 = vrot.lane.b32.xlu0 %v6478, 126
        %v6560 = vpop.permute.xlu0 %6559
        %6561 = vrot.lane.b32.xlu0 %v6479, 126
        %v6562 = vpop.permute.xlu0 %6561
        %6563 = vrot.lane.b32.xlu0 %v6480, 126
        %v6564 = vpop.permute.xlu0 %6563
        %6565 = vrot.lane.b32.xlu0 %v6481, 126
        %v6566 = vpop.permute.xlu0 %6565
        %6567 = vrot.lane.b32.xlu0 %v6482, 126
        %v6568 = vpop.permute.xlu0 %6567
        %6569 = vrot.lane.b32.xlu0 %v6483, 126
        %v6570 = vpop.permute.xlu0 %6569
        %6571 = vrot.lane.b32.xlu0 %v6484, 126
        %v6572 = vpop.permute.xlu0 %6571
        %6573 = vrot.lane.b32.xlu0 %v6485, 126
        %v6574 = vpop.permute.xlu0 %6573
        %6575 = vrot.lane.b32.xlu0 %v6486, 126
        %v6576 = vpop.permute.xlu0 %6575
        %6577 = vrot.lane.b32.xlu0 %v6487, 126
        %v6578 = vpop.permute.xlu0 %6577
        %6579 = vrot.lane.b32.xlu0 %v6488, 126
        %v6580 = vpop.permute.xlu0 %6579
        %6581 = vrot.lane.b32.xlu0 %v6489, 126
        %v6582 = vpop.permute.xlu0 %6581
        %6583 = vrot.lane.b32.xlu0 %v6490, 126
        %v6584 = vpop.permute.xlu0 %6583
        %6585 = vrot.lane.b32.xlu0 %v6491, 126
        %v6586 = vpop.permute.xlu0 %6585
        %6587 = vrot.lane.b32.xlu0 %v6492, 126
        %v6588 = vpop.permute.xlu0 %6587
        %v6621 = vadd.f32 %v6429, %v6526
        %v6622 = vadd.f32 %v6430, %v6528
        %v6623 = vadd.f32 %v6431, %v6530
        %v6624 = vadd.f32 %v6432, %v6532
        %v6625 = vadd.f32 %v6433, %v6534
        %v6626 = vadd.f32 %v6434, %v6536
        %v6627 = vadd.f32 %v6435, %v6538
        %v6628 = vadd.f32 %v6436, %v6540
        %v6629 = vadd.f32 %v6437, %v6542
        %v6630 = vadd.f32 %v6438, %v6544
        %v6631 = vadd.f32 %v6439, %v6546
        %v6632 = vadd.f32 %v6440, %v6548
        %v6633 = vadd.f32 %v6441, %v6550
        %v6634 = vadd.f32 %v6442, %v6552
        %v6635 = vadd.f32 %v6443, %v6554
        %v6636 = vadd.f32 %v6444, %v6556
        %v6637 = vadd.f32 %v6445, %v6558
        %v6638 = vadd.f32 %v6446, %v6560
        %v6639 = vadd.f32 %v6447, %v6562
        %v6640 = vadd.f32 %v6448, %v6564
        %v6641 = vadd.f32 %v6449, %v6566
        %v6642 = vadd.f32 %v6450, %v6568
        %v6643 = vadd.f32 %v6451, %v6570
        %v6644 = vadd.f32 %v6452, %v6572
        %v6645 = vadd.f32 %v6453, %v6574
        %v6646 = vadd.f32 %v6454, %v6576
        %v6647 = vadd.f32 %v6455, %v6578
        %v6648 = vadd.f32 %v6456, %v6580
        %v6649 = vadd.f32 %v6457, %v6582
        %v6650 = vadd.f32 %v6458, %v6584
        %v6651 = vadd.f32 %v6459, %v6586
        %v6652 = vadd.f32 %v6460, %v6588
        %v6653 = vld [vmem:[%s5816] sm:$0xff]
        %v6654 = vld [vmem:[%s5816 + $0x8] sm:$0xff]
        %v6655 = vld [vmem:[%s5816 + $0x18] sm:$0xff]
        %v6656 = vld [vmem:[%s5816 + $0x20] sm:$0xff]
        %v6657 = vld [vmem:[%s5816 + $0x30] sm:$0xff]
        %v6658 = vld [vmem:[%s5816 + $0x38] sm:$0xff]
        %v6659 = vld [vmem:[%s5816 + $0x48] sm:$0xff]
        %v6660 = vld [vmem:[%s5816 + $0x50] sm:$0xff]
        %v6661 = vld [vmem:[%s5816 + $0x60] sm:$0xff]
        %v6662 = vld [vmem:[%s5816 + $0x68] sm:$0xff]
        %v6663 = vld [vmem:[%s5816 + $0x78] sm:$0xff]
        %v6664 = vld [vmem:[%s5816 + $0x80] sm:$0xff]
        %v6665 = vld [vmem:[%s5816 + $0x90] sm:$0xff]
        %v6666 = vld [vmem:[%s5816 + $0x98] sm:$0xff]
        %v6667 = vld [vmem:[%s5816 + $0xa8] sm:$0xff]
        %v6668 = vld [vmem:[%s5816 + $0xb0] sm:$0xff]
        %v6669 = vld [vmem:[%s5816 + $0xc0] sm:$0xff]
        %v6670 = vld [vmem:[%s5816 + $0xc8] sm:$0xff]
        %v6671 = vld [vmem:[%s5816 + $0xd8] sm:$0xff]
        %v6672 = vld [vmem:[%s5816 + $0xe0] sm:$0xff]
        %v6673 = vld [vmem:[%s5816 + $0xf0] sm:$0xff]
        %v6674 = vld [vmem:[%s5816 + $0xf8] sm:$0xff]
        %v6675 = vld [vmem:[%s5816 + $0x108] sm:$0xff]
        %v6676 = vld [vmem:[%s5816 + $0x110] sm:$0xff]
        %v6677 = vld [vmem:[%s5816 + $0x120] sm:$0xff]
        %v6678 = vld [vmem:[%s5816 + $0x128] sm:$0xff]
        %v6679 = vld [vmem:[%s5816 + $0x138] sm:$0xff]
        %v6680 = vld [vmem:[%s5816 + $0x140] sm:$0xff]
        %v6681 = vld [vmem:[%s5816 + $0x150] sm:$0xff]
        %v6682 = vld [vmem:[%s5816 + $0x158] sm:$0xff]
        %v6683 = vld [vmem:[%s5816 + $0x168] sm:$0xff]
        %v6684 = vld [vmem:[%s5816 + $0x170] sm:$0xff]
        %6717 = vrot.lane.b32.xlu0 %v6653, 125
        %v6718 = vpop.permute.xlu0 %6717
        %6719 = vrot.lane.b32.xlu0 %v6654, 125
        %v6720 = vpop.permute.xlu0 %6719
        %6721 = vrot.lane.b32.xlu0 %v6655, 125
        %v6722 = vpop.permute.xlu0 %6721
        %6723 = vrot.lane.b32.xlu0 %v6656, 125
        %v6724 = vpop.permute.xlu0 %6723
        %6725 = vrot.lane.b32.xlu0 %v6657, 125
        %v6726 = vpop.permute.xlu0 %6725
        %6727 = vrot.lane.b32.xlu0 %v6658, 125
        %v6728 = vpop.permute.xlu0 %6727
        %6729 = vrot.lane.b32.xlu0 %v6659, 125
        %v6730 = vpop.permute.xlu0 %6729
        %6731 = vrot.lane.b32.xlu0 %v6660, 125
        %v6732 = vpop.permute.xlu0 %6731
        %6733 = vrot.lane.b32.xlu0 %v6661, 125
        %v6734 = vpop.permute.xlu0 %6733
        %6735 = vrot.lane.b32.xlu0 %v6662, 125
        %v6736 = vpop.permute.xlu0 %6735
        %6737 = vrot.lane.b32.xlu0 %v6663, 125
        %v6738 = vpop.permute.xlu0 %6737
        %6739 = vrot.lane.b32.xlu0 %v6664, 125
        %v6740 = vpop.permute.xlu0 %6739
        %6741 = vrot.lane.b32.xlu0 %v6665, 125
        %v6742 = vpop.permute.xlu0 %6741
        %6743 = vrot.lane.b32.xlu0 %v6666, 125
        %v6744 = vpop.permute.xlu0 %6743
        %6745 = vrot.lane.b32.xlu0 %v6667, 125
        %v6746 = vpop.permute.xlu0 %6745
        %6747 = vrot.lane.b32.xlu0 %v6668, 125
        %v6748 = vpop.permute.xlu0 %6747
        %6749 = vrot.lane.b32.xlu0 %v6669, 125
        %v6750 = vpop.permute.xlu0 %6749
        %6751 = vrot.lane.b32.xlu0 %v6670, 125
        %v6752 = vpop.permute.xlu0 %6751
        %6753 = vrot.lane.b32.xlu0 %v6671, 125
        %v6754 = vpop.permute.xlu0 %6753
        %6755 = vrot.lane.b32.xlu0 %v6672, 125
        %v6756 = vpop.permute.xlu0 %6755
        %6757 = vrot.lane.b32.xlu0 %v6673, 125
        %v6758 = vpop.permute.xlu0 %6757
        %6759 = vrot.lane.b32.xlu0 %v6674, 125
        %v6760 = vpop.permute.xlu0 %6759
        %6761 = vrot.lane.b32.xlu0 %v6675, 125
        %v6762 = vpop.permute.xlu0 %6761
        %6763 = vrot.lane.b32.xlu0 %v6676, 125
        %v6764 = vpop.permute.xlu0 %6763
        %6765 = vrot.lane.b32.xlu0 %v6677, 125
        %v6766 = vpop.permute.xlu0 %6765
        %6767 = vrot.lane.b32.xlu0 %v6678, 125
        %v6768 = vpop.permute.xlu0 %6767
        %6769 = vrot.lane.b32.xlu0 %v6679, 125
        %v6770 = vpop.permute.xlu0 %6769
        %6771 = vrot.lane.b32.xlu0 %v6680, 125
        %v6772 = vpop.permute.xlu0 %6771
        %6773 = vrot.lane.b32.xlu0 %v6681, 125
        %v6774 = vpop.permute.xlu0 %6773
        %6775 = vrot.lane.b32.xlu0 %v6682, 125
        %v6776 = vpop.permute.xlu0 %6775
        %6777 = vrot.lane.b32.xlu0 %v6683, 125
        %v6778 = vpop.permute.xlu0 %6777
        %6779 = vrot.lane.b32.xlu0 %v6684, 125
        %v6780 = vpop.permute.xlu0 %6779
        %v6813 = vadd.f32 %v6621, %v6718
        %v6814 = vadd.f32 %v6622, %v6720
        %v6815 = vadd.f32 %v6623, %v6722
        %v6816 = vadd.f32 %v6624, %v6724
        %v6817 = vadd.f32 %v6625, %v6726
        %v6818 = vadd.f32 %v6626, %v6728
        %v6819 = vadd.f32 %v6627, %v6730
        %v6820 = vadd.f32 %v6628, %v6732
        %v6821 = vadd.f32 %v6629, %v6734
        %v6822 = vadd.f32 %v6630, %v6736
        %v6823 = vadd.f32 %v6631, %v6738
        %v6824 = vadd.f32 %v6632, %v6740
        %v6825 = vadd.f32 %v6633, %v6742
        %v6826 = vadd.f32 %v6634, %v6744
        %v6827 = vadd.f32 %v6635, %v6746
        %v6828 = vadd.f32 %v6636, %v6748
        %v6829 = vadd.f32 %v6637, %v6750
        %v6830 = vadd.f32 %v6638, %v6752
        %v6831 = vadd.f32 %v6639, %v6754
        %v6832 = vadd.f32 %v6640, %v6756
        %v6833 = vadd.f32 %v6641, %v6758
        %v6834 = vadd.f32 %v6642, %v6760
        %v6835 = vadd.f32 %v6643, %v6762
        %v6836 = vadd.f32 %v6644, %v6764
        %v6837 = vadd.f32 %v6645, %v6766
        %v6838 = vadd.f32 %v6646, %v6768
        %v6839 = vadd.f32 %v6647, %v6770
        %v6840 = vadd.f32 %v6648, %v6772
        %v6841 = vadd.f32 %v6649, %v6774
        %v6842 = vadd.f32 %v6650, %v6776
        %v6843 = vadd.f32 %v6651, %v6778
        %v6844 = vadd.f32 %v6652, %v6780
        %v6845 = vld [vmem:[%s5816 + $0x1] sm:$0xff]
        %v6846 = vld [vmem:[%s5816 + $0x9] sm:$0xff]
        %v6847 = vld [vmem:[%s5816 + $0x19] sm:$0xff]
        %v6848 = vld [vmem:[%s5816 + $0x21] sm:$0xff]
        %v6849 = vld [vmem:[%s5816 + $0x31] sm:$0xff]
        %v6850 = vld [vmem:[%s5816 + $0x39] sm:$0xff]
        %v6851 = vld [vmem:[%s5816 + $0x49] sm:$0xff]
        %v6852 = vld [vmem:[%s5816 + $0x51] sm:$0xff]
        %v6853 = vld [vmem:[%s5816 + $0x61] sm:$0xff]
        %v6854 = vld [vmem:[%s5816 + $0x69] sm:$0xff]
        %v6855 = vld [vmem:[%s5816 + $0x79] sm:$0xff]
        %v6856 = vld [vmem:[%s5816 + $0x81] sm:$0xff]
        %v6857 = vld [vmem:[%s5816 + $0x91] sm:$0xff]
        %v6858 = vld [vmem:[%s5816 + $0x99] sm:$0xff]
        %v6859 = vld [vmem:[%s5816 + $0xa9] sm:$0xff]
        %v6860 = vld [vmem:[%s5816 + $0xb1] sm:$0xff]
        %v6861 = vld [vmem:[%s5816 + $0xc1] sm:$0xff]
        %v6862 = vld [vmem:[%s5816 + $0xc9] sm:$0xff]
        %v6863 = vld [vmem:[%s5816 + $0xd9] sm:$0xff]
        %v6864 = vld [vmem:[%s5816 + $0xe1] sm:$0xff]
        %v6865 = vld [vmem:[%s5816 + $0xf1] sm:$0xff]
        %v6866 = vld [vmem:[%s5816 + $0xf9] sm:$0xff]
        %v6867 = vld [vmem:[%s5816 + $0x109] sm:$0xff]
        %v6868 = vld [vmem:[%s5816 + $0x111] sm:$0xff]
        %v6869 = vld [vmem:[%s5816 + $0x121] sm:$0xff]
        %v6870 = vld [vmem:[%s5816 + $0x129] sm:$0xff]
        %v6871 = vld [vmem:[%s5816 + $0x139] sm:$0xff]
        %v6872 = vld [vmem:[%s5816 + $0x141] sm:$0xff]
        %v6873 = vld [vmem:[%s5816 + $0x151] sm:$0xff]
        %v6874 = vld [vmem:[%s5816 + $0x159] sm:$0xff]
        %v6875 = vld [vmem:[%s5816 + $0x169] sm:$0xff]
        %v6876 = vld [vmem:[%s5816 + $0x171] sm:$0xff]
        %6909 = vrot.lane.b32.xlu0 %v6845, 124
        %v6910 = vpop.permute.xlu0 %6909
        %6911 = vrot.lane.b32.xlu0 %v6846, 124
        %v6912 = vpop.permute.xlu0 %6911
        %6913 = vrot.lane.b32.xlu0 %v6847, 124
        %v6914 = vpop.permute.xlu0 %6913
        %6915 = vrot.lane.b32.xlu0 %v6848, 124
        %v6916 = vpop.permute.xlu0 %6915
        %6917 = vrot.lane.b32.xlu0 %v6849, 124
        %v6918 = vpop.permute.xlu0 %6917
        %6919 = vrot.lane.b32.xlu0 %v6850, 124
        %v6920 = vpop.permute.xlu0 %6919
        %6921 = vrot.lane.b32.xlu0 %v6851, 124
        %v6922 = vpop.permute.xlu0 %6921
        %6923 = vrot.lane.b32.xlu0 %v6852, 124
        %v6924 = vpop.permute.xlu0 %6923
        %6925 = vrot.lane.b32.xlu0 %v6853, 124
        %v6926 = vpop.permute.xlu0 %6925
        %6927 = vrot.lane.b32.xlu0 %v6854, 124
        %v6928 = vpop.permute.xlu0 %6927
        %6929 = vrot.lane.b32.xlu0 %v6855, 124
        %v6930 = vpop.permute.xlu0 %6929
        %6931 = vrot.lane.b32.xlu0 %v6856, 124
        %v6932 = vpop.permute.xlu0 %6931
        %6933 = vrot.lane.b32.xlu0 %v6857, 124
        %v6934 = vpop.permute.xlu0 %6933
        %6935 = vrot.lane.b32.xlu0 %v6858, 124
        %v6936 = vpop.permute.xlu0 %6935
        %6937 = vrot.lane.b32.xlu0 %v6859, 124
        %v6938 = vpop.permute.xlu0 %6937
        %6939 = vrot.lane.b32.xlu0 %v6860, 124
        %v6940 = vpop.permute.xlu0 %6939
        %6941 = vrot.lane.b32.xlu0 %v6861, 124
        %v6942 = vpop.permute.xlu0 %6941
        %6943 = vrot.lane.b32.xlu0 %v6862, 124
        %v6944 = vpop.permute.xlu0 %6943
        %6945 = vrot.lane.b32.xlu0 %v6863, 124
        %v6946 = vpop.permute.xlu0 %6945
        %6947 = vrot.lane.b32.xlu0 %v6864, 124
        %v6948 = vpop.permute.xlu0 %6947
        %6949 = vrot.lane.b32.xlu0 %v6865, 124
        %v6950 = vpop.permute.xlu0 %6949
        %6951 = vrot.lane.b32.xlu0 %v6866, 124
        %v6952 = vpop.permute.xlu0 %6951
        %6953 = vrot.lane.b32.xlu0 %v6867, 124
        %v6954 = vpop.permute.xlu0 %6953
        %6955 = vrot.lane.b32.xlu0 %v6868, 124
        %v6956 = vpop.permute.xlu0 %6955
        %6957 = vrot.lane.b32.xlu0 %v6869, 124
        %v6958 = vpop.permute.xlu0 %6957
        %6959 = vrot.lane.b32.xlu0 %v6870, 124
        %v6960 = vpop.permute.xlu0 %6959
        %6961 = vrot.lane.b32.xlu0 %v6871, 124
        %v6962 = vpop.permute.xlu0 %6961
        %6963 = vrot.lane.b32.xlu0 %v6872, 124
        %v6964 = vpop.permute.xlu0 %6963
        %6965 = vrot.lane.b32.xlu0 %v6873, 124
        %v6966 = vpop.permute.xlu0 %6965
        %6967 = vrot.lane.b32.xlu0 %v6874, 124
        %v6968 = vpop.permute.xlu0 %6967
        %6969 = vrot.lane.b32.xlu0 %v6875, 124
        %v6970 = vpop.permute.xlu0 %6969
        %6971 = vrot.lane.b32.xlu0 %v6876, 124
        %v6972 = vpop.permute.xlu0 %6971
        %v7005 = vadd.f32 %v6813, %v6910
        %v7006 = vadd.f32 %v6814, %v6912
        %v7007 = vadd.f32 %v6815, %v6914
        %v7008 = vadd.f32 %v6816, %v6916
        %v7009 = vadd.f32 %v6817, %v6918
        %v7010 = vadd.f32 %v6818, %v6920
        %v7011 = vadd.f32 %v6819, %v6922
        %v7012 = vadd.f32 %v6820, %v6924
        %v7013 = vadd.f32 %v6821, %v6926
        %v7014 = vadd.f32 %v6822, %v6928
        %v7015 = vadd.f32 %v6823, %v6930
        %v7016 = vadd.f32 %v6824, %v6932
        %v7017 = vadd.f32 %v6825, %v6934
        %v7018 = vadd.f32 %v6826, %v6936
        %v7019 = vadd.f32 %v6827, %v6938
        %v7020 = vadd.f32 %v6828, %v6940
        %v7021 = vadd.f32 %v6829, %v6942
        %v7022 = vadd.f32 %v6830, %v6944
        %v7023 = vadd.f32 %v6831, %v6946
        %v7024 = vadd.f32 %v6832, %v6948
        %v7025 = vadd.f32 %v6833, %v6950
        %v7026 = vadd.f32 %v6834, %v6952
        %v7027 = vadd.f32 %v6835, %v6954
        %v7028 = vadd.f32 %v6836, %v6956
        %v7029 = vadd.f32 %v6837, %v6958
        %v7030 = vadd.f32 %v6838, %v6960
        %v7031 = vadd.f32 %v6839, %v6962
        %v7032 = vadd.f32 %v6840, %v6964
        %v7033 = vadd.f32 %v6841, %v6966
        %v7034 = vadd.f32 %v6842, %v6968
        %v7035 = vadd.f32 %v6843, %v6970
        %v7036 = vadd.f32 %v6844, %v6972
        %v7037 = vld [vmem:[%s5816 + $0x2] sm:$0xff]
        %v7038 = vld [vmem:[%s5816 + $0xa] sm:$0xff]
        %v7039 = vld [vmem:[%s5816 + $0x1a] sm:$0xff]
        %v7040 = vld [vmem:[%s5816 + $0x22] sm:$0xff]
        %v7041 = vld [vmem:[%s5816 + $0x32] sm:$0xff]
        %v7042 = vld [vmem:[%s5816 + $0x3a] sm:$0xff]
        %v7043 = vld [vmem:[%s5816 + $0x4a] sm:$0xff]
        %v7044 = vld [vmem:[%s5816 + $0x52] sm:$0xff]
        %v7045 = vld [vmem:[%s5816 + $0x62] sm:$0xff]
        %v7046 = vld [vmem:[%s5816 + $0x6a] sm:$0xff]
        %v7047 = vld [vmem:[%s5816 + $0x7a] sm:$0xff]
        %v7048 = vld [vmem:[%s5816 + $0x82] sm:$0xff]
        %v7049 = vld [vmem:[%s5816 + $0x92] sm:$0xff]
        %v7050 = vld [vmem:[%s5816 + $0x9a] sm:$0xff]
        %v7051 = vld [vmem:[%s5816 + $0xaa] sm:$0xff]
        %v7052 = vld [vmem:[%s5816 + $0xb2] sm:$0xff]
        %v7053 = vld [vmem:[%s5816 + $0xc2] sm:$0xff]
        %v7054 = vld [vmem:[%s5816 + $0xca] sm:$0xff]
        %v7055 = vld [vmem:[%s5816 + $0xda] sm:$0xff]
        %v7056 = vld [vmem:[%s5816 + $0xe2] sm:$0xff]
        %v7057 = vld [vmem:[%s5816 + $0xf2] sm:$0xff]
        %v7058 = vld [vmem:[%s5816 + $0xfa] sm:$0xff]
        %v7059 = vld [vmem:[%s5816 + $0x10a] sm:$0xff]
        %v7060 = vld [vmem:[%s5816 + $0x112] sm:$0xff]
        %v7061 = vld [vmem:[%s5816 + $0x122] sm:$0xff]
        %v7062 = vld [vmem:[%s5816 + $0x12a] sm:$0xff]
        %v7063 = vld [vmem:[%s5816 + $0x13a] sm:$0xff]
        %v7064 = vld [vmem:[%s5816 + $0x142] sm:$0xff]
        %v7065 = vld [vmem:[%s5816 + $0x152] sm:$0xff]
        %v7066 = vld [vmem:[%s5816 + $0x15a] sm:$0xff]
        %v7067 = vld [vmem:[%s5816 + $0x16a] sm:$0xff]
        %v7068 = vld [vmem:[%s5816 + $0x172] sm:$0xff]
        %7101 = vrot.lane.b32.xlu0 %v7037, 123
        %v7102 = vpop.permute.xlu0 %7101
        %7103 = vrot.lane.b32.xlu0 %v7038, 123
        %v7104 = vpop.permute.xlu0 %7103
        %7105 = vrot.lane.b32.xlu0 %v7039, 123
        %v7106 = vpop.permute.xlu0 %7105
        %7107 = vrot.lane.b32.xlu0 %v7040, 123
        %v7108 = vpop.permute.xlu0 %7107
        %7109 = vrot.lane.b32.xlu0 %v7041, 123
        %v7110 = vpop.permute.xlu0 %7109
        %7111 = vrot.lane.b32.xlu0 %v7042, 123
        %v7112 = vpop.permute.xlu0 %7111
        %7113 = vrot.lane.b32.xlu0 %v7043, 123
        %v7114 = vpop.permute.xlu0 %7113
        %7115 = vrot.lane.b32.xlu0 %v7044, 123
        %v7116 = vpop.permute.xlu0 %7115
        %7117 = vrot.lane.b32.xlu0 %v7045, 123
        %v7118 = vpop.permute.xlu0 %7117
        %7119 = vrot.lane.b32.xlu0 %v7046, 123
        %v7120 = vpop.permute.xlu0 %7119
        %7121 = vrot.lane.b32.xlu0 %v7047, 123
        %v7122 = vpop.permute.xlu0 %7121
        %7123 = vrot.lane.b32.xlu0 %v7048, 123
        %v7124 = vpop.permute.xlu0 %7123
        %7125 = vrot.lane.b32.xlu0 %v7049, 123
        %v7126 = vpop.permute.xlu0 %7125
        %7127 = vrot.lane.b32.xlu0 %v7050, 123
        %v7128 = vpop.permute.xlu0 %7127
        %7129 = vrot.lane.b32.xlu0 %v7051, 123
        %v7130 = vpop.permute.xlu0 %7129
        %7131 = vrot.lane.b32.xlu0 %v7052, 123
        %v7132 = vpop.permute.xlu0 %7131
        %7133 = vrot.lane.b32.xlu0 %v7053, 123
        %v7134 = vpop.permute.xlu0 %7133
        %7135 = vrot.lane.b32.xlu0 %v7054, 123
        %v7136 = vpop.permute.xlu0 %7135
        %7137 = vrot.lane.b32.xlu0 %v7055, 123
        %v7138 = vpop.permute.xlu0 %7137
        %7139 = vrot.lane.b32.xlu0 %v7056, 123
        %v7140 = vpop.permute.xlu0 %7139
        %7141 = vrot.lane.b32.xlu0 %v7057, 123
        %v7142 = vpop.permute.xlu0 %7141
        %7143 = vrot.lane.b32.xlu0 %v7058, 123
        %v7144 = vpop.permute.xlu0 %7143
        %7145 = vrot.lane.b32.xlu0 %v7059, 123
        %v7146 = vpop.permute.xlu0 %7145
        %7147 = vrot.lane.b32.xlu0 %v7060, 123
        %v7148 = vpop.permute.xlu0 %7147
        %7149 = vrot.lane.b32.xlu0 %v7061, 123
        %v7150 = vpop.permute.xlu0 %7149
        %7151 = vrot.lane.b32.xlu0 %v7062, 123
        %v7152 = vpop.permute.xlu0 %7151
        %7153 = vrot.lane.b32.xlu0 %v7063, 123
        %v7154 = vpop.permute.xlu0 %7153
        %7155 = vrot.lane.b32.xlu0 %v7064, 123
        %v7156 = vpop.permute.xlu0 %7155
        %7157 = vrot.lane.b32.xlu0 %v7065, 123
        %v7158 = vpop.permute.xlu0 %7157
        %7159 = vrot.lane.b32.xlu0 %v7066, 123
        %v7160 = vpop.permute.xlu0 %7159
        %7161 = vrot.lane.b32.xlu0 %v7067, 123
        %v7162 = vpop.permute.xlu0 %7161
        %7163 = vrot.lane.b32.xlu0 %v7068, 123
        %v7164 = vpop.permute.xlu0 %7163
        %v7197 = vadd.f32 %v7005, %v7102
        %v7198 = vadd.f32 %v7006, %v7104
        %v7199 = vadd.f32 %v7007, %v7106
        %v7200 = vadd.f32 %v7008, %v7108
        %v7201 = vadd.f32 %v7009, %v7110
        %v7202 = vadd.f32 %v7010, %v7112
        %v7203 = vadd.f32 %v7011, %v7114
        %v7204 = vadd.f32 %v7012, %v7116
        %v7205 = vadd.f32 %v7013, %v7118
        %v7206 = vadd.f32 %v7014, %v7120
        %v7207 = vadd.f32 %v7015, %v7122
        %v7208 = vadd.f32 %v7016, %v7124
        %v7209 = vadd.f32 %v7017, %v7126
        %v7210 = vadd.f32 %v7018, %v7128
        %v7211 = vadd.f32 %v7019, %v7130
        %v7212 = vadd.f32 %v7020, %v7132
        %v7213 = vadd.f32 %v7021, %v7134
        %v7214 = vadd.f32 %v7022, %v7136
        %v7215 = vadd.f32 %v7023, %v7138
        %v7216 = vadd.f32 %v7024, %v7140
        %v7217 = vadd.f32 %v7025, %v7142
        %v7218 = vadd.f32 %v7026, %v7144
        %v7219 = vadd.f32 %v7027, %v7146
        %v7220 = vadd.f32 %v7028, %v7148
        %v7221 = vadd.f32 %v7029, %v7150
        %v7222 = vadd.f32 %v7030, %v7152
        %v7223 = vadd.f32 %v7031, %v7154
        %v7224 = vadd.f32 %v7032, %v7156
        %v7225 = vadd.f32 %v7033, %v7158
        %v7226 = vadd.f32 %v7034, %v7160
        %v7227 = vadd.f32 %v7035, %v7162
        %v7228 = vadd.f32 %v7036, %v7164
        %s7229 = scalar_lea.vmem [#allocation4], 48
        %v7230 = vld [vmem:[%s7229] sm:$0xff]
        %v7231 = vld [vmem:[%s7229 + $0x8] sm:$0xff]
        %v7232 = vld [vmem:[%s7229 + $0x18] sm:$0xff]
        %v7233 = vld [vmem:[%s7229 + $0x20] sm:$0xff]
        %v7234 = vld [vmem:[%s7229 + $0x30] sm:$0xff]
        %v7235 = vld [vmem:[%s7229 + $0x38] sm:$0xff]
        %v7236 = vld [vmem:[%s7229 + $0x48] sm:$0xff]
        %v7237 = vld [vmem:[%s7229 + $0x50] sm:$0xff]
        %v7238 = vld [vmem:[%s7229 + $0x60] sm:$0xff]
        %v7239 = vld [vmem:[%s7229 + $0x68] sm:$0xff]
        %v7240 = vld [vmem:[%s7229 + $0x78] sm:$0xff]
        %v7241 = vld [vmem:[%s7229 + $0x80] sm:$0xff]
        %v7242 = vld [vmem:[%s7229 + $0x90] sm:$0xff]
        %v7243 = vld [vmem:[%s7229 + $0x98] sm:$0xff]
        %v7244 = vld [vmem:[%s7229 + $0xa8] sm:$0xff]
        %v7245 = vld [vmem:[%s7229 + $0xb0] sm:$0xff]
        %v7246 = vld [vmem:[%s7229 + $0xc0] sm:$0xff]
        %v7247 = vld [vmem:[%s7229 + $0xc8] sm:$0xff]
        %v7248 = vld [vmem:[%s7229 + $0xd8] sm:$0xff]
        %v7249 = vld [vmem:[%s7229 + $0xe0] sm:$0xff]
        %v7250 = vld [vmem:[%s7229 + $0xf0] sm:$0xff]
        %v7251 = vld [vmem:[%s7229 + $0xf8] sm:$0xff]
        %v7252 = vld [vmem:[%s7229 + $0x108] sm:$0xff]
        %v7253 = vld [vmem:[%s7229 + $0x110] sm:$0xff]
        %v7254 = vld [vmem:[%s7229 + $0x120] sm:$0xff]
        %v7255 = vld [vmem:[%s7229 + $0x128] sm:$0xff]
        %v7256 = vld [vmem:[%s7229 + $0x138] sm:$0xff]
        %v7257 = vld [vmem:[%s7229 + $0x140] sm:$0xff]
        %v7258 = vld [vmem:[%s7229 + $0x150] sm:$0xff]
        %v7259 = vld [vmem:[%s7229 + $0x158] sm:$0xff]
        %v7260 = vld [vmem:[%s7229 + $0x168] sm:$0xff]
        %v7261 = vld [vmem:[%s7229 + $0x170] sm:$0xff]
        %7294 = vrot.lane.b32.xlu0 %v7230, 122
        %v7295 = vpop.permute.xlu0 %7294
        %7296 = vrot.lane.b32.xlu0 %v7231, 122
        %v7297 = vpop.permute.xlu0 %7296
        %7298 = vrot.lane.b32.xlu0 %v7232, 122
        %v7299 = vpop.permute.xlu0 %7298
        %7300 = vrot.lane.b32.xlu0 %v7233, 122
        %v7301 = vpop.permute.xlu0 %7300
        %7302 = vrot.lane.b32.xlu0 %v7234, 122
        %v7303 = vpop.permute.xlu0 %7302
        %7304 = vrot.lane.b32.xlu0 %v7235, 122
        %v7305 = vpop.permute.xlu0 %7304
        %7306 = vrot.lane.b32.xlu0 %v7236, 122
        %v7307 = vpop.permute.xlu0 %7306
        %7308 = vrot.lane.b32.xlu0 %v7237, 122
        %v7309 = vpop.permute.xlu0 %7308
        %7310 = vrot.lane.b32.xlu0 %v7238, 122
        %v7311 = vpop.permute.xlu0 %7310
        %7312 = vrot.lane.b32.xlu0 %v7239, 122
        %v7313 = vpop.permute.xlu0 %7312
        %7314 = vrot.lane.b32.xlu0 %v7240, 122
        %v7315 = vpop.permute.xlu0 %7314
        %7316 = vrot.lane.b32.xlu0 %v7241, 122
        %v7317 = vpop.permute.xlu0 %7316
        %7318 = vrot.lane.b32.xlu0 %v7242, 122
        %v7319 = vpop.permute.xlu0 %7318
        %7320 = vrot.lane.b32.xlu0 %v7243, 122
        %v7321 = vpop.permute.xlu0 %7320
        %7322 = vrot.lane.b32.xlu0 %v7244, 122
        %v7323 = vpop.permute.xlu0 %7322
        %7324 = vrot.lane.b32.xlu0 %v7245, 122
        %v7325 = vpop.permute.xlu0 %7324
        %7326 = vrot.lane.b32.xlu0 %v7246, 122
        %v7327 = vpop.permute.xlu0 %7326
        %7328 = vrot.lane.b32.xlu0 %v7247, 122
        %v7329 = vpop.permute.xlu0 %7328
        %7330 = vrot.lane.b32.xlu0 %v7248, 122
        %v7331 = vpop.permute.xlu0 %7330
        %7332 = vrot.lane.b32.xlu0 %v7249, 122
        %v7333 = vpop.permute.xlu0 %7332
        %7334 = vrot.lane.b32.xlu0 %v7250, 122
        %v7335 = vpop.permute.xlu0 %7334
        %7336 = vrot.lane.b32.xlu0 %v7251, 122
        %v7337 = vpop.permute.xlu0 %7336
        %7338 = vrot.lane.b32.xlu0 %v7252, 122
        %v7339 = vpop.permute.xlu0 %7338
        %7340 = vrot.lane.b32.xlu0 %v7253, 122
        %v7341 = vpop.permute.xlu0 %7340
        %7342 = vrot.lane.b32.xlu0 %v7254, 122
        %v7343 = vpop.permute.xlu0 %7342
        %7344 = vrot.lane.b32.xlu0 %v7255, 122
        %v7345 = vpop.permute.xlu0 %7344
        %7346 = vrot.lane.b32.xlu0 %v7256, 122
        %v7347 = vpop.permute.xlu0 %7346
        %7348 = vrot.lane.b32.xlu0 %v7257, 122
        %v7349 = vpop.permute.xlu0 %7348
        %7350 = vrot.lane.b32.xlu0 %v7258, 122
        %v7351 = vpop.permute.xlu0 %7350
        %7352 = vrot.lane.b32.xlu0 %v7259, 122
        %v7353 = vpop.permute.xlu0 %7352
        %7354 = vrot.lane.b32.xlu0 %v7260, 122
        %v7355 = vpop.permute.xlu0 %7354
        %7356 = vrot.lane.b32.xlu0 %v7261, 122
        %v7357 = vpop.permute.xlu0 %7356
        %v7390 = vadd.f32 %v7197, %v7295
        %v7391 = vadd.f32 %v7198, %v7297
        %v7392 = vadd.f32 %v7199, %v7299
        %v7393 = vadd.f32 %v7200, %v7301
        %v7394 = vadd.f32 %v7201, %v7303
        %v7395 = vadd.f32 %v7202, %v7305
        %v7396 = vadd.f32 %v7203, %v7307
        %v7397 = vadd.f32 %v7204, %v7309
        %v7398 = vadd.f32 %v7205, %v7311
        %v7399 = vadd.f32 %v7206, %v7313
        %v7400 = vadd.f32 %v7207, %v7315
        %v7401 = vadd.f32 %v7208, %v7317
        %v7402 = vadd.f32 %v7209, %v7319
        %v7403 = vadd.f32 %v7210, %v7321
        %v7404 = vadd.f32 %v7211, %v7323
        %v7405 = vadd.f32 %v7212, %v7325
        %v7406 = vadd.f32 %v7213, %v7327
        %v7407 = vadd.f32 %v7214, %v7329
        %v7408 = vadd.f32 %v7215, %v7331
        %v7409 = vadd.f32 %v7216, %v7333
        %v7410 = vadd.f32 %v7217, %v7335
        %v7411 = vadd.f32 %v7218, %v7337
        %v7412 = vadd.f32 %v7219, %v7339
        %v7413 = vadd.f32 %v7220, %v7341
        %v7414 = vadd.f32 %v7221, %v7343
        %v7415 = vadd.f32 %v7222, %v7345
        %v7416 = vadd.f32 %v7223, %v7347
        %v7417 = vadd.f32 %v7224, %v7349
        %v7418 = vadd.f32 %v7225, %v7351
        %v7419 = vadd.f32 %v7226, %v7353
        %v7420 = vadd.f32 %v7227, %v7355
        %v7421 = vadd.f32 %v7228, %v7357
        %v7422 = vld [vmem:[%s7229 + $0x1] sm:$0xff]
        %v7423 = vld [vmem:[%s7229 + $0x9] sm:$0xff]
        %v7424 = vld [vmem:[%s7229 + $0x19] sm:$0xff]
        %v7425 = vld [vmem:[%s7229 + $0x21] sm:$0xff]
        %v7426 = vld [vmem:[%s7229 + $0x31] sm:$0xff]
        %v7427 = vld [vmem:[%s7229 + $0x39] sm:$0xff]
        %v7428 = vld [vmem:[%s7229 + $0x49] sm:$0xff]
        %v7429 = vld [vmem:[%s7229 + $0x51] sm:$0xff]
        %v7430 = vld [vmem:[%s7229 + $0x61] sm:$0xff]
        %v7431 = vld [vmem:[%s7229 + $0x69] sm:$0xff]
        %v7432 = vld [vmem:[%s7229 + $0x79] sm:$0xff]
        %v7433 = vld [vmem:[%s7229 + $0x81] sm:$0xff]
        %v7434 = vld [vmem:[%s7229 + $0x91] sm:$0xff]
        %v7435 = vld [vmem:[%s7229 + $0x99] sm:$0xff]
        %v7436 = vld [vmem:[%s7229 + $0xa9] sm:$0xff]
        %v7437 = vld [vmem:[%s7229 + $0xb1] sm:$0xff]
        %v7438 = vld [vmem:[%s7229 + $0xc1] sm:$0xff]
        %v7439 = vld [vmem:[%s7229 + $0xc9] sm:$0xff]
        %v7440 = vld [vmem:[%s7229 + $0xd9] sm:$0xff]
        %v7441 = vld [vmem:[%s7229 + $0xe1] sm:$0xff]
        %v7442 = vld [vmem:[%s7229 + $0xf1] sm:$0xff]
        %v7443 = vld [vmem:[%s7229 + $0xf9] sm:$0xff]
        %v7444 = vld [vmem:[%s7229 + $0x109] sm:$0xff]
        %v7445 = vld [vmem:[%s7229 + $0x111] sm:$0xff]
        %v7446 = vld [vmem:[%s7229 + $0x121] sm:$0xff]
        %v7447 = vld [vmem:[%s7229 + $0x129] sm:$0xff]
        %v7448 = vld [vmem:[%s7229 + $0x139] sm:$0xff]
        %v7449 = vld [vmem:[%s7229 + $0x141] sm:$0xff]
        %v7450 = vld [vmem:[%s7229 + $0x151] sm:$0xff]
        %v7451 = vld [vmem:[%s7229 + $0x159] sm:$0xff]
        %v7452 = vld [vmem:[%s7229 + $0x169] sm:$0xff]
        %v7453 = vld [vmem:[%s7229 + $0x171] sm:$0xff]
        %7486 = vrot.lane.b32.xlu0 %v7422, 121
        %v7487 = vpop.permute.xlu0 %7486
        %7488 = vrot.lane.b32.xlu0 %v7423, 121
        %v7489 = vpop.permute.xlu0 %7488
        %7490 = vrot.lane.b32.xlu0 %v7424, 121
        %v7491 = vpop.permute.xlu0 %7490
        %7492 = vrot.lane.b32.xlu0 %v7425, 121
        %v7493 = vpop.permute.xlu0 %7492
        %7494 = vrot.lane.b32.xlu0 %v7426, 121
        %v7495 = vpop.permute.xlu0 %7494
        %7496 = vrot.lane.b32.xlu0 %v7427, 121
        %v7497 = vpop.permute.xlu0 %7496
        %7498 = vrot.lane.b32.xlu0 %v7428, 121
        %v7499 = vpop.permute.xlu0 %7498
        %7500 = vrot.lane.b32.xlu0 %v7429, 121
        %v7501 = vpop.permute.xlu0 %7500
        %7502 = vrot.lane.b32.xlu0 %v7430, 121
        %v7503 = vpop.permute.xlu0 %7502
        %7504 = vrot.lane.b32.xlu0 %v7431, 121
        %v7505 = vpop.permute.xlu0 %7504
        %7506 = vrot.lane.b32.xlu0 %v7432, 121
        %v7507 = vpop.permute.xlu0 %7506
        %7508 = vrot.lane.b32.xlu0 %v7433, 121
        %v7509 = vpop.permute.xlu0 %7508
        %7510 = vrot.lane.b32.xlu0 %v7434, 121
        %v7511 = vpop.permute.xlu0 %7510
        %7512 = vrot.lane.b32.xlu0 %v7435, 121
        %v7513 = vpop.permute.xlu0 %7512
        %7514 = vrot.lane.b32.xlu0 %v7436, 121
        %v7515 = vpop.permute.xlu0 %7514
        %7516 = vrot.lane.b32.xlu0 %v7437, 121
        %v7517 = vpop.permute.xlu0 %7516
        %7518 = vrot.lane.b32.xlu0 %v7438, 121
        %v7519 = vpop.permute.xlu0 %7518
        %7520 = vrot.lane.b32.xlu0 %v7439, 121
        %v7521 = vpop.permute.xlu0 %7520
        %7522 = vrot.lane.b32.xlu0 %v7440, 121
        %v7523 = vpop.permute.xlu0 %7522
        %7524 = vrot.lane.b32.xlu0 %v7441, 121
        %v7525 = vpop.permute.xlu0 %7524
        %7526 = vrot.lane.b32.xlu0 %v7442, 121
        %v7527 = vpop.permute.xlu0 %7526
        %7528 = vrot.lane.b32.xlu0 %v7443, 121
        %v7529 = vpop.permute.xlu0 %7528
        %7530 = vrot.lane.b32.xlu0 %v7444, 121
        %v7531 = vpop.permute.xlu0 %7530
        %7532 = vrot.lane.b32.xlu0 %v7445, 121
        %v7533 = vpop.permute.xlu0 %7532
        %7534 = vrot.lane.b32.xlu0 %v7446, 121
        %v7535 = vpop.permute.xlu0 %7534
        %7536 = vrot.lane.b32.xlu0 %v7447, 121
        %v7537 = vpop.permute.xlu0 %7536
        %7538 = vrot.lane.b32.xlu0 %v7448, 121
        %v7539 = vpop.permute.xlu0 %7538
        %7540 = vrot.lane.b32.xlu0 %v7449, 121
        %v7541 = vpop.permute.xlu0 %7540
        %7542 = vrot.lane.b32.xlu0 %v7450, 121
        %v7543 = vpop.permute.xlu0 %7542
        %7544 = vrot.lane.b32.xlu0 %v7451, 121
        %v7545 = vpop.permute.xlu0 %7544
        %7546 = vrot.lane.b32.xlu0 %v7452, 121
        %v7547 = vpop.permute.xlu0 %7546
        %7548 = vrot.lane.b32.xlu0 %v7453, 121
        %v7549 = vpop.permute.xlu0 %7548
        %v7582 = vadd.f32 %v7390, %v7487
        %v7583 = vadd.f32 %v7391, %v7489
        %v7584 = vadd.f32 %v7392, %v7491
        %v7585 = vadd.f32 %v7393, %v7493
        %v7586 = vadd.f32 %v7394, %v7495
        %v7587 = vadd.f32 %v7395, %v7497
        %v7588 = vadd.f32 %v7396, %v7499
        %v7589 = vadd.f32 %v7397, %v7501
        %v7590 = vadd.f32 %v7398, %v7503
        %v7591 = vadd.f32 %v7399, %v7505
        %v7592 = vadd.f32 %v7400, %v7507
        %v7593 = vadd.f32 %v7401, %v7509
        %v7594 = vadd.f32 %v7402, %v7511
        %v7595 = vadd.f32 %v7403, %v7513
        %v7596 = vadd.f32 %v7404, %v7515
        %v7597 = vadd.f32 %v7405, %v7517
        %v7598 = vadd.f32 %v7406, %v7519
        %v7599 = vadd.f32 %v7407, %v7521
        %v7600 = vadd.f32 %v7408, %v7523
        %v7601 = vadd.f32 %v7409, %v7525
        %v7602 = vadd.f32 %v7410, %v7527
        %v7603 = vadd.f32 %v7411, %v7529
        %v7604 = vadd.f32 %v7412, %v7531
        %v7605 = vadd.f32 %v7413, %v7533
        %v7606 = vadd.f32 %v7414, %v7535
        %v7607 = vadd.f32 %v7415, %v7537
        %v7608 = vadd.f32 %v7416, %v7539
        %v7609 = vadd.f32 %v7417, %v7541
        %v7610 = vadd.f32 %v7418, %v7543
        %v7611 = vadd.f32 %v7419, %v7545
        %v7612 = vadd.f32 %v7420, %v7547
        %v7613 = vadd.f32 %v7421, %v7549
        %v7614 = vld [vmem:[%s7229 + $0x2] sm:$0xff]
        %v7615 = vld [vmem:[%s7229 + $0xa] sm:$0xff]
        %v7616 = vld [vmem:[%s7229 + $0x1a] sm:$0xff]
        %v7617 = vld [vmem:[%s7229 + $0x22] sm:$0xff]
        %v7618 = vld [vmem:[%s7229 + $0x32] sm:$0xff]
        %v7619 = vld [vmem:[%s7229 + $0x3a] sm:$0xff]
        %v7620 = vld [vmem:[%s7229 + $0x4a] sm:$0xff]
        %v7621 = vld [vmem:[%s7229 + $0x52] sm:$0xff]
        %v7622 = vld [vmem:[%s7229 + $0x62] sm:$0xff]
        %v7623 = vld [vmem:[%s7229 + $0x6a] sm:$0xff]
        %v7624 = vld [vmem:[%s7229 + $0x7a] sm:$0xff]
        %v7625 = vld [vmem:[%s7229 + $0x82] sm:$0xff]
        %v7626 = vld [vmem:[%s7229 + $0x92] sm:$0xff]
        %v7627 = vld [vmem:[%s7229 + $0x9a] sm:$0xff]
        %v7628 = vld [vmem:[%s7229 + $0xaa] sm:$0xff]
        %v7629 = vld [vmem:[%s7229 + $0xb2] sm:$0xff]
        %v7630 = vld [vmem:[%s7229 + $0xc2] sm:$0xff]
        %v7631 = vld [vmem:[%s7229 + $0xca] sm:$0xff]
        %v7632 = vld [vmem:[%s7229 + $0xda] sm:$0xff]
        %v7633 = vld [vmem:[%s7229 + $0xe2] sm:$0xff]
        %v7634 = vld [vmem:[%s7229 + $0xf2] sm:$0xff]
        %v7635 = vld [vmem:[%s7229 + $0xfa] sm:$0xff]
        %v7636 = vld [vmem:[%s7229 + $0x10a] sm:$0xff]
        %v7637 = vld [vmem:[%s7229 + $0x112] sm:$0xff]
        %v7638 = vld [vmem:[%s7229 + $0x122] sm:$0xff]
        %v7639 = vld [vmem:[%s7229 + $0x12a] sm:$0xff]
        %v7640 = vld [vmem:[%s7229 + $0x13a] sm:$0xff]
        %v7641 = vld [vmem:[%s7229 + $0x142] sm:$0xff]
        %v7642 = vld [vmem:[%s7229 + $0x152] sm:$0xff]
        %v7643 = vld [vmem:[%s7229 + $0x15a] sm:$0xff]
        %v7644 = vld [vmem:[%s7229 + $0x16a] sm:$0xff]
        %v7645 = vld [vmem:[%s7229 + $0x172] sm:$0xff]
        %7678 = vrot.lane.b32.xlu0 %v7614, 120
        %v7679 = vpop.permute.xlu0 %7678
        %7680 = vrot.lane.b32.xlu0 %v7615, 120
        %v7681 = vpop.permute.xlu0 %7680
        %7682 = vrot.lane.b32.xlu0 %v7616, 120
        %v7683 = vpop.permute.xlu0 %7682
        %7684 = vrot.lane.b32.xlu0 %v7617, 120
        %v7685 = vpop.permute.xlu0 %7684
        %7686 = vrot.lane.b32.xlu0 %v7618, 120
        %v7687 = vpop.permute.xlu0 %7686
        %7688 = vrot.lane.b32.xlu0 %v7619, 120
        %v7689 = vpop.permute.xlu0 %7688
        %7690 = vrot.lane.b32.xlu0 %v7620, 120
        %v7691 = vpop.permute.xlu0 %7690
        %7692 = vrot.lane.b32.xlu0 %v7621, 120
        %v7693 = vpop.permute.xlu0 %7692
        %7694 = vrot.lane.b32.xlu0 %v7622, 120
        %v7695 = vpop.permute.xlu0 %7694
        %7696 = vrot.lane.b32.xlu0 %v7623, 120
        %v7697 = vpop.permute.xlu0 %7696
        %7698 = vrot.lane.b32.xlu0 %v7624, 120
        %v7699 = vpop.permute.xlu0 %7698
        %7700 = vrot.lane.b32.xlu0 %v7625, 120
        %v7701 = vpop.permute.xlu0 %7700
        %7702 = vrot.lane.b32.xlu0 %v7626, 120
        %v7703 = vpop.permute.xlu0 %7702
        %7704 = vrot.lane.b32.xlu0 %v7627, 120
        %v7705 = vpop.permute.xlu0 %7704
        %7706 = vrot.lane.b32.xlu0 %v7628, 120
        %v7707 = vpop.permute.xlu0 %7706
        %7708 = vrot.lane.b32.xlu0 %v7629, 120
        %v7709 = vpop.permute.xlu0 %7708
        %7710 = vrot.lane.b32.xlu0 %v7630, 120
        %v7711 = vpop.permute.xlu0 %7710
        %7712 = vrot.lane.b32.xlu0 %v7631, 120
        %v7713 = vpop.permute.xlu0 %7712
        %7714 = vrot.lane.b32.xlu0 %v7632, 120
        %v7715 = vpop.permute.xlu0 %7714
        %7716 = vrot.lane.b32.xlu0 %v7633, 120
        %v7717 = vpop.permute.xlu0 %7716
        %7718 = vrot.lane.b32.xlu0 %v7634, 120
        %v7719 = vpop.permute.xlu0 %7718
        %7720 = vrot.lane.b32.xlu0 %v7635, 120
        %v7721 = vpop.permute.xlu0 %7720
        %7722 = vrot.lane.b32.xlu0 %v7636, 120
        %v7723 = vpop.permute.xlu0 %7722
        %7724 = vrot.lane.b32.xlu0 %v7637, 120
        %v7725 = vpop.permute.xlu0 %7724
        %7726 = vrot.lane.b32.xlu0 %v7638, 120
        %v7727 = vpop.permute.xlu0 %7726
        %7728 = vrot.lane.b32.xlu0 %v7639, 120
        %v7729 = vpop.permute.xlu0 %7728
        %7730 = vrot.lane.b32.xlu0 %v7640, 120
        %v7731 = vpop.permute.xlu0 %7730
        %7732 = vrot.lane.b32.xlu0 %v7641, 120
        %v7733 = vpop.permute.xlu0 %7732
        %7734 = vrot.lane.b32.xlu0 %v7642, 120
        %v7735 = vpop.permute.xlu0 %7734
        %7736 = vrot.lane.b32.xlu0 %v7643, 120
        %v7737 = vpop.permute.xlu0 %7736
        %7738 = vrot.lane.b32.xlu0 %v7644, 120
        %v7739 = vpop.permute.xlu0 %7738
        %7740 = vrot.lane.b32.xlu0 %v7645, 120
        %v7741 = vpop.permute.xlu0 %7740
        %v7774 = vadd.f32 %v7582, %v7679
        %v7775 = vadd.f32 %v7583, %v7681
        %v7776 = vadd.f32 %v7584, %v7683
        %v7777 = vadd.f32 %v7585, %v7685
        %v7778 = vadd.f32 %v7586, %v7687
        %v7779 = vadd.f32 %v7587, %v7689
        %v7780 = vadd.f32 %v7588, %v7691
        %v7781 = vadd.f32 %v7589, %v7693
        %v7782 = vadd.f32 %v7590, %v7695
        %v7783 = vadd.f32 %v7591, %v7697
        %v7784 = vadd.f32 %v7592, %v7699
        %v7785 = vadd.f32 %v7593, %v7701
        %v7786 = vadd.f32 %v7594, %v7703
        %v7787 = vadd.f32 %v7595, %v7705
        %v7788 = vadd.f32 %v7596, %v7707
        %v7789 = vadd.f32 %v7597, %v7709
        %v7790 = vadd.f32 %v7598, %v7711
        %v7791 = vadd.f32 %v7599, %v7713
        %v7792 = vadd.f32 %v7600, %v7715
        %v7793 = vadd.f32 %v7601, %v7717
        %v7794 = vadd.f32 %v7602, %v7719
        %v7795 = vadd.f32 %v7603, %v7721
        %v7796 = vadd.f32 %v7604, %v7723
        %v7797 = vadd.f32 %v7605, %v7725
        %v7798 = vadd.f32 %v7606, %v7727
        %v7799 = vadd.f32 %v7607, %v7729
        %v7800 = vadd.f32 %v7608, %v7731
        %v7801 = vadd.f32 %v7609, %v7733
        %v7802 = vadd.f32 %v7610, %v7735
        %v7803 = vadd.f32 %v7611, %v7737
        %v7804 = vadd.f32 %v7612, %v7739
        %v7805 = vadd.f32 %v7613, %v7741
        %s7806 = sld [smem:[#allocation8]]
        %v7807 = vstv %s7806
        %v7808 = vadd.f32 %v7774, %v7807
        %v7809 = vadd.f32 %v7775, %v7807
        %v7810 = vadd.f32 %v7776, %v7807
        %v7811 = vadd.f32 %v7777, %v7807
        %v7812 = vadd.f32 %v7778, %v7807
        %v7813 = vadd.f32 %v7779, %v7807
        %v7814 = vadd.f32 %v7780, %v7807
        %v7815 = vadd.f32 %v7781, %v7807
        %v7816 = vadd.f32 %v7782, %v7807
        %v7817 = vadd.f32 %v7783, %v7807
        %v7818 = vadd.f32 %v7784, %v7807
        %v7819 = vadd.f32 %v7785, %v7807
        %v7820 = vadd.f32 %v7786, %v7807
        %v7821 = vadd.f32 %v7787, %v7807
        %v7822 = vadd.f32 %v7788, %v7807
        %v7823 = vadd.f32 %v7789, %v7807
        %v7824 = vadd.f32 %v7790, %v7807
        %v7825 = vadd.f32 %v7791, %v7807
        %v7826 = vadd.f32 %v7792, %v7807
        %v7827 = vadd.f32 %v7793, %v7807
        %v7828 = vadd.f32 %v7794, %v7807
        %v7829 = vadd.f32 %v7795, %v7807
        %v7830 = vadd.f32 %v7796, %v7807
        %v7831 = vadd.f32 %v7797, %v7807
        %v7832 = vadd.f32 %v7798, %v7807
        %v7833 = vadd.f32 %v7799, %v7807
        %v7834 = vadd.f32 %v7800, %v7807
        %v7835 = vadd.f32 %v7801, %v7807
        %v7836 = vadd.f32 %v7802, %v7807
        %v7837 = vadd.f32 %v7803, %v7807
        %v7838 = vadd.f32 %v7804, %v7807
        %v7839 = vadd.f32 %v7805, %v7807
        %s7840 = sld [smem:[#allocation8 + $0x1]]
        %v7841 = vstv %s7840
        %v7842 = vmul.f32 %v7808, %v7841
        %v7843 = vmul.f32 %v7809, %v7841
        %v7844 = vmul.f32 %v7810, %v7841
        %v7845 = vmul.f32 %v7811, %v7841
        %v7846 = vmul.f32 %v7812, %v7841
        %v7847 = vmul.f32 %v7813, %v7841
        %v7848 = vmul.f32 %v7814, %v7841
        %v7849 = vmul.f32 %v7815, %v7841
        %v7850 = vmul.f32 %v7816, %v7841
        %v7851 = vmul.f32 %v7817, %v7841
        %v7852 = vmul.f32 %v7818, %v7841
        %v7853 = vmul.f32 %v7819, %v7841
        %v7854 = vmul.f32 %v7820, %v7841
        %v7855 = vmul.f32 %v7821, %v7841
        %v7856 = vmul.f32 %v7822, %v7841
        %v7857 = vmul.f32 %v7823, %v7841
        %v7858 = vmul.f32 %v7824, %v7841
        %v7859 = vmul.f32 %v7825, %v7841
        %v7860 = vmul.f32 %v7826, %v7841
        %v7861 = vmul.f32 %v7827, %v7841
        %v7862 = vmul.f32 %v7828, %v7841
        %v7863 = vmul.f32 %v7829, %v7841
        %v7864 = vmul.f32 %v7830, %v7841
        %v7865 = vmul.f32 %v7831, %v7841
        %v7866 = vmul.f32 %v7832, %v7841
        %v7867 = vmul.f32 %v7833, %v7841
        %v7868 = vmul.f32 %v7834, %v7841
        %v7869 = vmul.f32 %v7835, %v7841
        %v7870 = vmul.f32 %v7836, %v7841
        %v7871 = vmul.f32 %v7837, %v7841
        %v7872 = vmul.f32 %v7838, %v7841
        %v7873 = vmul.f32 %v7839, %v7841
        %s7874 = sld [smem:[#allocation8 + $0x2]]
        %v7875 = vstv %s7874
        %v7876 = vadd.f32 %v7842, %v7875
        %v7877 = vadd.f32 %v7843, %v7875
        %v7878 = vadd.f32 %v7844, %v7875
        %v7879 = vadd.f32 %v7845, %v7875
        %v7880 = vadd.f32 %v7846, %v7875
        %v7881 = vadd.f32 %v7847, %v7875
        %v7882 = vadd.f32 %v7848, %v7875
        %v7883 = vadd.f32 %v7849, %v7875
        %v7884 = vadd.f32 %v7850, %v7875
        %v7885 = vadd.f32 %v7851, %v7875
        %v7886 = vadd.f32 %v7852, %v7875
        %v7887 = vadd.f32 %v7853, %v7875
        %v7888 = vadd.f32 %v7854, %v7875
        %v7889 = vadd.f32 %v7855, %v7875
        %v7890 = vadd.f32 %v7856, %v7875
        %v7891 = vadd.f32 %v7857, %v7875
        %v7892 = vadd.f32 %v7858, %v7875
        %v7893 = vadd.f32 %v7859, %v7875
        %v7894 = vadd.f32 %v7860, %v7875
        %v7895 = vadd.f32 %v7861, %v7875
        %v7896 = vadd.f32 %v7862, %v7875
        %v7897 = vadd.f32 %v7863, %v7875
        %v7898 = vadd.f32 %v7864, %v7875
        %v7899 = vadd.f32 %v7865, %v7875
        %v7900 = vadd.f32 %v7866, %v7875
        %v7901 = vadd.f32 %v7867, %v7875
        %v7902 = vadd.f32 %v7868, %v7875
        %v7903 = vadd.f32 %v7869, %v7875
        %v7904 = vadd.f32 %v7870, %v7875
        %v7905 = vadd.f32 %v7871, %v7875
        %v7906 = vadd.f32 %v7872, %v7875
        %v7907 = vadd.f32 %v7873, %v7875
        %v7908 = vxor.u32 %v7876, 2147483648
        %v7909 = vxor.u32 %v7877, 2147483648
        %v7910 = vxor.u32 %v7878, 2147483648
        %v7911 = vxor.u32 %v7879, 2147483648
        %v7912 = vxor.u32 %v7880, 2147483648
        %v7913 = vxor.u32 %v7881, 2147483648
        %v7914 = vxor.u32 %v7882, 2147483648
        %v7915 = vxor.u32 %v7883, 2147483648
        %v7916 = vxor.u32 %v7884, 2147483648
        %v7917 = vxor.u32 %v7885, 2147483648
        %v7918 = vxor.u32 %v7886, 2147483648
        %v7919 = vxor.u32 %v7887, 2147483648
        %v7920 = vxor.u32 %v7888, 2147483648
        %v7921 = vxor.u32 %v7889, 2147483648
        %v7922 = vxor.u32 %v7890, 2147483648
        %v7923 = vxor.u32 %v7891, 2147483648
        %v7924 = vxor.u32 %v7892, 2147483648
        %v7925 = vxor.u32 %v7893, 2147483648
        %v7926 = vxor.u32 %v7894, 2147483648
        %v7927 = vxor.u32 %v7895, 2147483648
        %v7928 = vxor.u32 %v7896, 2147483648
        %v7929 = vxor.u32 %v7897, 2147483648
        %v7930 = vxor.u32 %v7898, 2147483648
        %v7931 = vxor.u32 %v7899, 2147483648
        %v7932 = vxor.u32 %v7900, 2147483648
        %v7933 = vxor.u32 %v7901, 2147483648
        %v7934 = vxor.u32 %v7902, 2147483648
        %v7935 = vxor.u32 %v7903, 2147483648
        %v7936 = vxor.u32 %v7904, 2147483648
        %v7937 = vxor.u32 %v7905, 2147483648
        %v7938 = vxor.u32 %v7906, 2147483648
        %v7939 = vxor.u32 %v7907, 2147483648
        %v7940 = vmul.f32 %v7908, 1.442695
        %v7941 = vpow.pop %v7940
        %v7942 = vmul.f32 %v7909, 1.442695
        %v7943 = vpow.pop %v7942
        %v7944 = vmul.f32 %v7910, 1.442695
        %v7945 = vpow.pop %v7944
        %v7946 = vmul.f32 %v7911, 1.442695
        %v7947 = vpow.pop %v7946
        %v7948 = vmul.f32 %v7912, 1.442695
        %v7949 = vpow.pop %v7948
        %v7950 = vmul.f32 %v7913, 1.442695
        %v7951 = vpow.pop %v7950
        %v7952 = vmul.f32 %v7914, 1.442695
        %v7953 = vpow.pop %v7952
        %v7954 = vmul.f32 %v7915, 1.442695
        %v7955 = vpow.pop %v7954
        %v7956 = vmul.f32 %v7916, 1.442695
        %v7957 = vpow.pop %v7956
        %v7958 = vmul.f32 %v7917, 1.442695
        %v7959 = vpow.pop %v7958
        %v7960 = vmul.f32 %v7918, 1.442695
        %v7961 = vpow.pop %v7960
        %v7962 = vmul.f32 %v7919, 1.442695
        %v7963 = vpow.pop %v7962
        %v7964 = vmul.f32 %v7920, 1.442695
        %v7965 = vpow.pop %v7964
        %v7966 = vmul.f32 %v7921, 1.442695
        %v7967 = vpow.pop %v7966
        %v7968 = vmul.f32 %v7922, 1.442695
        %v7969 = vpow.pop %v7968
        %v7970 = vmul.f32 %v7923, 1.442695
        %v7971 = vpow.pop %v7970
        %v7972 = vmul.f32 %v7924, 1.442695
        %v7973 = vpow.pop %v7972
        %v7974 = vmul.f32 %v7925, 1.442695
        %v7975 = vpow.pop %v7974
        %v7976 = vmul.f32 %v7926, 1.442695
        %v7977 = vpow.pop %v7976
        %v7978 = vmul.f32 %v7927, 1.442695
        %v7979 = vpow.pop %v7978
        %v7980 = vmul.f32 %v7928, 1.442695
        %v7981 = vpow.pop %v7980
        %v7982 = vmul.f32 %v7929, 1.442695
        %v7983 = vpow.pop %v7982
        %v7984 = vmul.f32 %v7930, 1.442695
        %v7985 = vpow.pop %v7984
        %v7986 = vmul.f32 %v7931, 1.442695
        %v7987 = vpow.pop %v7986
        %v7988 = vmul.f32 %v7932, 1.442695
        %v7989 = vpow.pop %v7988
        %v7990 = vmul.f32 %v7933, 1.442695
        %v7991 = vpow.pop %v7990
        %v7992 = vmul.f32 %v7934, 1.442695
        %v7993 = vpow.pop %v7992
        %v7994 = vmul.f32 %v7935, 1.442695
        %v7995 = vpow.pop %v7994
        %v7996 = vmul.f32 %v7936, 1.442695
        %v7997 = vpow.pop %v7996
        %v7998 = vmul.f32 %v7937, 1.442695
        %v7999 = vpow.pop %v7998
        %v8000 = vmul.f32 %v7938, 1.442695
        %v8001 = vpow.pop %v8000
        %v8002 = vmul.f32 %v7939, 1.442695
        %v8003 = vpow.pop %v8002
        %v8004 = vadd.f32 %v7941, 1.0
        %v8005 = vadd.f32 %v7943, 1.0
        %v8006 = vadd.f32 %v7945, 1.0
        %v8007 = vadd.f32 %v7947, 1.0
        %v8008 = vadd.f32 %v7949, 1.0
        %v8009 = vadd.f32 %v7951, 1.0
        %v8010 = vadd.f32 %v7953, 1.0
        %v8011 = vadd.f32 %v7955, 1.0
        %v8012 = vadd.f32 %v7957, 1.0
        %v8013 = vadd.f32 %v7959, 1.0
        %v8014 = vadd.f32 %v7961, 1.0
        %v8015 = vadd.f32 %v7963, 1.0
        %v8016 = vadd.f32 %v7965, 1.0
        %v8017 = vadd.f32 %v7967, 1.0
        %v8018 = vadd.f32 %v7969, 1.0
        %v8019 = vadd.f32 %v7971, 1.0
        %v8020 = vadd.f32 %v7973, 1.0
        %v8021 = vadd.f32 %v7975, 1.0
        %v8022 = vadd.f32 %v7977, 1.0
        %v8023 = vadd.f32 %v7979, 1.0
        %v8024 = vadd.f32 %v7981, 1.0
        %v8025 = vadd.f32 %v7983, 1.0
        %v8026 = vadd.f32 %v7985, 1.0
        %v8027 = vadd.f32 %v7987, 1.0
        %v8028 = vadd.f32 %v7989, 1.0
        %v8029 = vadd.f32 %v7991, 1.0
        %v8030 = vadd.f32 %v7993, 1.0
        %v8031 = vadd.f32 %v7995, 1.0
        %v8032 = vadd.f32 %v7997, 1.0
        %v8033 = vadd.f32 %v7999, 1.0
        %v8034 = vadd.f32 %v8001, 1.0
        %v8035 = vadd.f32 %v8003, 1.0
        %v8036 = vrcp.pop %v8004
        %v8037 = vmul.f32 1.0, %v8036
        %v8038 = vrcp.pop %v8005
        %v8039 = vmul.f32 1.0, %v8038
        %v8040 = vrcp.pop %v8006
        %v8041 = vmul.f32 1.0, %v8040
        %v8042 = vrcp.pop %v8007
        %v8043 = vmul.f32 1.0, %v8042
        %v8044 = vrcp.pop %v8008
        %v8045 = vmul.f32 1.0, %v8044
        %v8046 = vrcp.pop %v8009
        %v8047 = vmul.f32 1.0, %v8046
        %v8048 = vrcp.pop %v8010
        %v8049 = vmul.f32 1.0, %v8048
        %v8050 = vrcp.pop %v8011
        %v8051 = vmul.f32 1.0, %v8050
        %v8052 = vrcp.pop %v8012
        %v8053 = vmul.f32 1.0, %v8052
        %v8054 = vrcp.pop %v8013
        %v8055 = vmul.f32 1.0, %v8054
        %v8056 = vrcp.pop %v8014
        %v8057 = vmul.f32 1.0, %v8056
        %v8058 = vrcp.pop %v8015
        %v8059 = vmul.f32 1.0, %v8058
        %v8060 = vrcp.pop %v8016
        %v8061 = vmul.f32 1.0, %v8060
        %v8062 = vrcp.pop %v8017
        %v8063 = vmul.f32 1.0, %v8062
        %v8064 = vrcp.pop %v8018
        %v8065 = vmul.f32 1.0, %v8064
        %v8066 = vrcp.pop %v8019
        %v8067 = vmul.f32 1.0, %v8066
        %v8068 = vrcp.pop %v8020
        %v8069 = vmul.f32 1.0, %v8068
        %v8070 = vrcp.pop %v8021
        %v8071 = vmul.f32 1.0, %v8070
        %v8072 = vrcp.pop %v8022
        %v8073 = vmul.f32 1.0, %v8072
        %v8074 = vrcp.pop %v8023
        %v8075 = vmul.f32 1.0, %v8074
        %v8076 = vrcp.pop %v8024
        %v8077 = vmul.f32 1.0, %v8076
        %v8078 = vrcp.pop %v8025
        %v8079 = vmul.f32 1.0, %v8078
        %v8080 = vrcp.pop %v8026
        %v8081 = vmul.f32 1.0, %v8080
        %v8082 = vrcp.pop %v8027
        %v8083 = vmul.f32 1.0, %v8082
        %v8084 = vrcp.pop %v8028
        %v8085 = vmul.f32 1.0, %v8084
        %v8086 = vrcp.pop %v8029
        %v8087 = vmul.f32 1.0, %v8086
        %v8088 = vrcp.pop %v8030
        %v8089 = vmul.f32 1.0, %v8088
        %v8090 = vrcp.pop %v8031
        %v8091 = vmul.f32 1.0, %v8090
        %v8092 = vrcp.pop %v8032
        %v8093 = vmul.f32 1.0, %v8092
        %v8094 = vrcp.pop %v8033
        %v8095 = vmul.f32 1.0, %v8094
        %v8096 = vrcp.pop %v8034
        %v8097 = vmul.f32 1.0, %v8096
        %v8098 = vrcp.pop %v8035
        %v8099 = vmul.f32 1.0, %v8098
        %8101 = vset.pattern.permute.xlu0 0
        %8102 = vperm.xlu0 %8101, %v8037
        %v8103 = vpop.permute.xlu0 %8102
        %8106 = vset.pattern.permute.xlu0 0
        %8107 = vperm.xlu0 %8106, %v8039
        %v8108 = vpop.permute.xlu0 %8107
        %8111 = vset.pattern.permute.xlu0 0
        %8112 = vperm.xlu0 %8111, %v8041
        %v8113 = vpop.permute.xlu0 %8112
        %8116 = vset.pattern.permute.xlu0 0
        %8117 = vperm.xlu0 %8116, %v8043
        %v8118 = vpop.permute.xlu0 %8117
        %8121 = vset.pattern.permute.xlu0 0
        %8122 = vperm.xlu0 %8121, %v8045
        %v8123 = vpop.permute.xlu0 %8122
        %8126 = vset.pattern.permute.xlu0 0
        %8127 = vperm.xlu0 %8126, %v8047
        %v8128 = vpop.permute.xlu0 %8127
        %8131 = vset.pattern.permute.xlu0 0
        %8132 = vperm.xlu0 %8131, %v8049
        %v8133 = vpop.permute.xlu0 %8132
        %8136 = vset.pattern.permute.xlu0 0
        %8137 = vperm.xlu0 %8136, %v8051
        %v8138 = vpop.permute.xlu0 %8137
        %8141 = vset.pattern.permute.xlu0 0
        %8142 = vperm.xlu0 %8141, %v8053
        %v8143 = vpop.permute.xlu0 %8142
        %8146 = vset.pattern.permute.xlu0 0
        %8147 = vperm.xlu0 %8146, %v8055
        %v8148 = vpop.permute.xlu0 %8147
        %8151 = vset.pattern.permute.xlu0 0
        %8152 = vperm.xlu0 %8151, %v8057
        %v8153 = vpop.permute.xlu0 %8152
        %8156 = vset.pattern.permute.xlu0 0
        %8157 = vperm.xlu0 %8156, %v8059
        %v8158 = vpop.permute.xlu0 %8157
        %8161 = vset.pattern.permute.xlu0 0
        %8162 = vperm.xlu0 %8161, %v8061
        %v8163 = vpop.permute.xlu0 %8162
        %8166 = vset.pattern.permute.xlu0 0
        %8167 = vperm.xlu0 %8166, %v8063
        %v8168 = vpop.permute.xlu0 %8167
        %8171 = vset.pattern.permute.xlu0 0
        %8172 = vperm.xlu0 %8171, %v8065
        %v8173 = vpop.permute.xlu0 %8172
        %8176 = vset.pattern.permute.xlu0 0
        %8177 = vperm.xlu0 %8176, %v8067
        %v8178 = vpop.permute.xlu0 %8177
        %8181 = vset.pattern.permute.xlu0 0
        %8182 = vperm.xlu0 %8181, %v8069
        %v8183 = vpop.permute.xlu0 %8182
        %8186 = vset.pattern.permute.xlu0 0
        %8187 = vperm.xlu0 %8186, %v8071
        %v8188 = vpop.permute.xlu0 %8187
        %8191 = vset.pattern.permute.xlu0 0
        %8192 = vperm.xlu0 %8191, %v8073
        %v8193 = vpop.permute.xlu0 %8192
        %8196 = vset.pattern.permute.xlu0 0
        %8197 = vperm.xlu0 %8196, %v8075
        %v8198 = vpop.permute.xlu0 %8197
        %8201 = vset.pattern.permute.xlu0 0
        %8202 = vperm.xlu0 %8201, %v8077
        %v8203 = vpop.permute.xlu0 %8202
        %8206 = vset.pattern.permute.xlu0 0
        %8207 = vperm.xlu0 %8206, %v8079
        %v8208 = vpop.permute.xlu0 %8207
        %8211 = vset.pattern.permute.xlu0 0
        %8212 = vperm.xlu0 %8211, %v8081
        %v8213 = vpop.permute.xlu0 %8212
        %8216 = vset.pattern.permute.xlu0 0
        %8217 = vperm.xlu0 %8216, %v8083
        %v8218 = vpop.permute.xlu0 %8217
        %8221 = vset.pattern.permute.xlu0 0
        %8222 = vperm.xlu0 %8221, %v8085
        %v8223 = vpop.permute.xlu0 %8222
        %8226 = vset.pattern.permute.xlu0 0
        %8227 = vperm.xlu0 %8226, %v8087
        %v8228 = vpop.permute.xlu0 %8227
        %8231 = vset.pattern.permute.xlu0 0
        %8232 = vperm.xlu0 %8231, %v8089
        %v8233 = vpop.permute.xlu0 %8232
        %8236 = vset.pattern.permute.xlu0 0
        %8237 = vperm.xlu0 %8236, %v8091
        %v8238 = vpop.permute.xlu0 %8237
        %8241 = vset.pattern.permute.xlu0 0
        %8242 = vperm.xlu0 %8241, %v8093
        %v8243 = vpop.permute.xlu0 %8242
        %8246 = vset.pattern.permute.xlu0 0
        %8247 = vperm.xlu0 %8246, %v8095
        %v8248 = vpop.permute.xlu0 %8247
        %8251 = vset.pattern.permute.xlu0 0
        %8252 = vperm.xlu0 %8251, %v8097
        %v8253 = vpop.permute.xlu0 %8252
        %8256 = vset.pattern.permute.xlu0 0
        %8257 = vperm.xlu0 %8256, %v8099
        %v8258 = vpop.permute.xlu0 %8257
        %v8260 = vmul.f32 %v5775, %v8103
        %v8261 = vmul.f32 %v5776, %v8108
        %v8262 = vmul.f32 %v5777, %v8113
        %v8263 = vmul.f32 %v5778, %v8118
        %v8264 = vmul.f32 %v5779, %v8123
        %v8265 = vmul.f32 %v5780, %v8128
        %v8266 = vmul.f32 %v5781, %v8133
        %v8267 = vmul.f32 %v5782, %v8138
        %v8268 = vmul.f32 %v5783, %v8143
        %v8269 = vmul.f32 %v5784, %v8148
        %v8270 = vmul.f32 %v5785, %v8153
        %v8271 = vmul.f32 %v5786, %v8158
        %v8272 = vmul.f32 %v5787, %v8163
        %v8273 = vmul.f32 %v5788, %v8168
        %v8274 = vmul.f32 %v5789, %v8173
        %v8275 = vmul.f32 %v5790, %v8178
        %v8276 = vmul.f32 %v5791, %v8183
        %v8277 = vmul.f32 %v5792, %v8188
        %v8278 = vmul.f32 %v5793, %v8193
        %v8279 = vmul.f32 %v5794, %v8198
        %v8280 = vmul.f32 %v5795, %v8203
        %v8281 = vmul.f32 %v5796, %v8208
        %v8282 = vmul.f32 %v5797, %v8213
        %v8283 = vmul.f32 %v5798, %v8218
        %v8284 = vmul.f32 %v5799, %v8223
        %v8285 = vmul.f32 %v5800, %v8228
        %v8286 = vmul.f32 %v5801, %v8233
        %v8287 = vmul.f32 %v5802, %v8238
        %v8288 = vmul.f32 %v5803, %v8243
        %v8289 = vmul.f32 %v5804, %v8248
        %v8290 = vmul.f32 %v5805, %v8253
        %v8291 = vmul.f32 %v5806, %v8258
        %v8292 = vadd.f32 %v8260, %v519
        %v8293 = vadd.f32 %v8261, %v520
        %v8294 = vadd.f32 %v8262, %v521
        %v8295 = vadd.f32 %v8263, %v522
        %v8296 = vadd.f32 %v8264, %v523
        %v8297 = vadd.f32 %v8265, %v524
        %v8298 = vadd.f32 %v8266, %v525
        %v8299 = vadd.f32 %v8267, %v526
        %v8300 = vadd.f32 %v8268, %v527
        %v8301 = vadd.f32 %v8269, %v528
        %v8302 = vadd.f32 %v8270, %v529
        %v8303 = vadd.f32 %v8271, %v530
        %v8304 = vadd.f32 %v8272, %v531
        %v8305 = vadd.f32 %v8273, %v532
        %v8306 = vadd.f32 %v8274, %v533
        %v8307 = vadd.f32 %v8275, %v534
        %v8308 = vadd.f32 %v8276, %v535
        %v8309 = vadd.f32 %v8277, %v536
        %v8310 = vadd.f32 %v8278, %v537
        %v8311 = vadd.f32 %v8279, %v538
        %v8312 = vadd.f32 %v8280, %v539
        %v8313 = vadd.f32 %v8281, %v540
        %v8314 = vadd.f32 %v8282, %v541
        %v8315 = vadd.f32 %v8283, %v542
        %v8316 = vadd.f32 %v8284, %v543
        %v8317 = vadd.f32 %v8285, %v544
        %v8318 = vadd.f32 %v8286, %v545
        %v8319 = vadd.f32 %v8287, %v546
        %v8320 = vadd.f32 %v8288, %v547
        %v8321 = vadd.f32 %v8289, %v548
        %v8322 = vadd.f32 %v8290, %v549
        %v8323 = vadd.f32 %v8291, %v550
        %v8324 = vsel %vm1845, %v8292, 0.0
        %v8325 = vsel %vm1845, %v8294, 0.0
        %v8326 = vadd.f32 %v8324, %v8325
        %v8327 = vsel %vm1845, %v8296, 0.0
        %v8328 = vadd.f32 %v8326, %v8327
        %v8329 = vsel %vm1845, %v8298, 0.0
        %v8330 = vadd.f32 %v8328, %v8329
        %v8331 = vsel %vm1845, %v8300, 0.0
        %v8332 = vadd.f32 %v8330, %v8331
        %v8333 = vsel %vm1845, %v8302, 0.0
        %v8334 = vadd.f32 %v8332, %v8333
        %v8335 = vsel %vm1845, %v8304, 0.0
        %v8336 = vadd.f32 %v8334, %v8335
        %v8337 = vsel %vm1845, %v8306, 0.0
        %v8338 = vadd.f32 %v8336, %v8337
        %v8339 = vsel %vm1845, %v8308, 0.0
        %v8340 = vadd.f32 %v8338, %v8339
        %v8341 = vsel %vm1845, %v8310, 0.0
        %v8342 = vadd.f32 %v8340, %v8341
        %v8343 = vsel %vm1845, %v8312, 0.0
        %v8344 = vadd.f32 %v8342, %v8343
        %v8345 = vsel %vm1845, %v8314, 0.0
        %v8346 = vadd.f32 %v8344, %v8345
        %v8347 = vsel %vm1845, %v8316, 0.0
        %v8348 = vadd.f32 %v8346, %v8347
        %v8349 = vsel %vm1845, %v8318, 0.0
        %v8350 = vadd.f32 %v8348, %v8349
        %v8351 = vsel %vm1845, %v8320, 0.0
        %v8352 = vadd.f32 %v8350, %v8351
        %v8353 = vsel %vm1845, %v8322, 0.0
        %v8354 = vadd.f32 %v8352, %v8353
        %v8355 = vsel %vm1845, %v8293, 0.0
        %v8356 = vsel %vm1845, %v8295, 0.0
        %v8357 = vadd.f32 %v8355, %v8356
        %v8358 = vsel %vm1845, %v8297, 0.0
        %v8359 = vadd.f32 %v8357, %v8358
        %v8360 = vsel %vm1845, %v8299, 0.0
        %v8361 = vadd.f32 %v8359, %v8360
        %v8362 = vsel %vm1845, %v8301, 0.0
        %v8363 = vadd.f32 %v8361, %v8362
        %v8364 = vsel %vm1845, %v8303, 0.0
        %v8365 = vadd.f32 %v8363, %v8364
        %v8366 = vsel %vm1845, %v8305, 0.0
        %v8367 = vadd.f32 %v8365, %v8366
        %v8368 = vsel %vm1845, %v8307, 0.0
        %v8369 = vadd.f32 %v8367, %v8368
        %v8370 = vsel %vm1845, %v8309, 0.0
        %v8371 = vadd.f32 %v8369, %v8370
        %v8372 = vsel %vm1845, %v8311, 0.0
        %v8373 = vadd.f32 %v8371, %v8372
        %v8374 = vsel %vm1845, %v8313, 0.0
        %v8375 = vadd.f32 %v8373, %v8374
        %v8376 = vsel %vm1845, %v8315, 0.0
        %v8377 = vadd.f32 %v8375, %v8376
        %v8378 = vsel %vm1845, %v8317, 0.0
        %v8379 = vadd.f32 %v8377, %v8378
        %v8380 = vsel %vm1845, %v8319, 0.0
        %v8381 = vadd.f32 %v8379, %v8380
        %v8382 = vsel %vm1845, %v8321, 0.0
        %v8383 = vadd.f32 %v8381, %v8382
        %v8384 = vsel %vm1845, %v8323, 0.0
        %v8385 = vadd.f32 %v8383, %v8384
        %v8386 = vrcp.pop 16.0
        %v8387 = vmul.f32 %v8354, %v8386
        %v8388 = vmul.f32 %v8385, %v8386
        %v8389 = vsel %vm1845, %v8387, 0.0
        %v8390 = vsel %vm1845, %v8388, 0.0
        %v8391 = vadd.f32 %v8389, %v8390
        %v8392 = vrot.slane %v8391, 4
        %v8393 = vadd.f32 %v8391, %v8392
        %v8394 = vrot.slane %v8393, 2
        %v8395 = vadd.f32 %v8393, %v8394
        %v8396 = vrot.slane %v8395, 1
        %v8397 = vadd.f32 %v8395, %v8396
        %v8398 = vmul.f32 %v8397, %v8386
        %v8399 = vsel %vm1845, %v8292, -inf
        %v8400 = vsel %vm1845, %v8294, -inf
        %v8401 = vsel %vm1845, %v8296, -inf
        %v8402 = vmax.f32 %v8399, %v8401
        %v8403 = vsel %vm1845, %v8298, -inf
        %v8404 = vmax.f32 %v8400, %v8403
        %v8405 = vsel %vm1845, %v8300, -inf
        %v8406 = vmax.f32 %v8402, %v8405
        %v8407 = vsel %vm1845, %v8302, -inf
        %v8408 = vmax.f32 %v8404, %v8407
        %v8409 = vsel %vm1845, %v8304, -inf
        %v8410 = vmax.f32 %v8406, %v8409
        %v8411 = vsel %vm1845, %v8306, -inf
        %v8412 = vmax.f32 %v8408, %v8411
        %v8413 = vsel %vm1845, %v8308, -inf
        %v8414 = vmax.f32 %v8410, %v8413
        %v8415 = vsel %vm1845, %v8310, -inf
        %v8416 = vmax.f32 %v8412, %v8415
        %v8417 = vsel %vm1845, %v8312, -inf
        %v8418 = vmax.f32 %v8414, %v8417
        %v8419 = vsel %vm1845, %v8314, -inf
        %v8420 = vmax.f32 %v8416, %v8419
        %v8421 = vsel %vm1845, %v8316, -inf
        %v8422 = vmax.f32 %v8418, %v8421
        %v8423 = vsel %vm1845, %v8318, -inf
        %v8424 = vmax.f32 %v8420, %v8423
        %v8425 = vsel %vm1845, %v8320, -inf
        %v8426 = vmax.f32 %v8422, %v8425
        %v8427 = vsel %vm1845, %v8322, -inf
        %v8428 = vmax.f32 %v8424, %v8427
        %v8429 = vmax.f32 %v8426, %v8428
        %v8430 = vsel %vm1845, %v8293, -inf
        %v8431 = vsel %vm1845, %v8295, -inf
        %v8432 = vsel %vm1845, %v8297, -inf
        %v8433 = vmax.f32 %v8430, %v8432
        %v8434 = vsel %vm1845, %v8299, -inf
        %v8435 = vmax.f32 %v8431, %v8434
        %v8436 = vsel %vm1845, %v8301, -inf
        %v8437 = vmax.f32 %v8433, %v8436
        %v8438 = vsel %vm1845, %v8303, -inf
        %v8439 = vmax.f32 %v8435, %v8438
        %v8440 = vsel %vm1845, %v8305, -inf
        %v8441 = vmax.f32 %v8437, %v8440
        %v8442 = vsel %vm1845, %v8307, -inf
        %v8443 = vmax.f32 %v8439, %v8442
        %v8444 = vsel %vm1845, %v8309, -inf
        %v8445 = vmax.f32 %v8441, %v8444
        %v8446 = vsel %vm1845, %v8311, -inf
        %v8447 = vmax.f32 %v8443, %v8446
        %v8448 = vsel %vm1845, %v8313, -inf
        %v8449 = vmax.f32 %v8445, %v8448
        %v8450 = vsel %vm1845, %v8315, -inf
        %v8451 = vmax.f32 %v8447, %v8450
        %v8452 = vsel %vm1845, %v8317, -inf
        %v8453 = vmax.f32 %v8449, %v8452
        %v8454 = vsel %vm1845, %v8319, -inf
        %v8455 = vmax.f32 %v8451, %v8454
        %v8456 = vsel %vm1845, %v8321, -inf
        %v8457 = vmax.f32 %v8453, %v8456
        %v8458 = vsel %vm1845, %v8323, -inf
        %v8459 = vmax.f32 %v8455, %v8458
        %v8460 = vmax.f32 %v8457, %v8459
        %v8461 = vsel %vm1845, %v8429, -inf
        %v8462 = vsel %vm1845, %v8460, -inf
        %v8463 = vmax.f32 %v8461, %v8462
        %v8464 = vrot.slane %v8463, 4
        %v8465 = vmax.f32 %v8463, %v8464
        %v8466 = vrot.slane %v8465, 2
        %v8467 = vmax.f32 %v8465, %v8466
        %v8468 = vrot.slane %v8467, 1
        %v8469 = vmax.f32 %v8467, %v8468
        %vm8470 = vcmask 1040384
        %v8471 = vsel %vm8470, %v8398, %v8469
        %v8472 = vld [vmem:[%s9] sm:$0xff]
        %v8473 = vld [vmem:[%s9 + $0x8] sm:$0xff]
        %v8474 = vld [vmem:[#allocation7] sm:$0x1]
        %v8476 = vlaneseq
        %v8477 = vshrl.u32 %v8476, 7
        %v8478 = vsub.s32 0, %v8477
        %v8479 = vrot.slane %v8474, %v8478
        %v8482 = vsel %vm1845, %v8471, 0
        %8484 = vmatprep.subr.mxu0 0.0
        %8485 = vmatpush1.msra.mxu0 %v8472
        %8486 = vmatprep.subr.mxu0 0.0
        %8487 = vmatpush1.msra.mxu0 %v8473
        %8488 = vmatprep.subr.mxu0 0.0
        %8489 = vmatpush1.msra.mxu0 0.0
        %8490 = vmatprep.subr.mxu0 0.0
        %8491 = vmatpush1.msra.mxu0 0.0
        %8492 = vmatprep.subr.mxu0 0.0
        %8493 = vmatpush1.msra.mxu0 0.0
        %8494 = vmatprep.subr.mxu0 0.0
        %8495 = vmatpush1.msra.mxu0 0.0
        %8496 = vmatprep.subr.mxu0 0.0
        %8497 = vmatpush1.msra.mxu0 0.0
        %8498 = vmatprep.subr.mxu0 0.0
        %8499 = vmatpush1.msra.mxu0 0.0
        %8500 = vmatprep.subr.mxu0 0.0
        %8501 = vmatpush1.msra.mxu0 0.0
        %8502 = vmatprep.subr.mxu0 0.0
        %8503 = vmatpush1.msra.mxu0 0.0
        %8504 = vmatprep.subr.mxu0 0.0
        %8505 = vmatpush1.msra.mxu0 0.0
        %8506 = vmatprep.subr.mxu0 0.0
        %8507 = vmatpush1.msra.mxu0 0.0
        %8508 = vmatprep.subr.mxu0 0.0
        %8509 = vmatpush1.msra.mxu0 0.0
        %8510 = vmatprep.subr.mxu0 0.0
        %8511 = vmatpush1.msra.mxu0 0.0
        %8512 = vmatprep.subr.mxu0 0.0
        %8513 = vmatpush1.msra.mxu0 0.0
        %8514 = vmatprep.subr.mxu0 0.0
        %8515 = vmatpush1.msra.mxu0 0.0
        %8516 = vmatprep.subr.mxu0 0.0
        %8517 = vmatpush1.msra.mxu0 0.0
        %8518 = vmatprep.subr.mxu0 0.0
        %8519 = vmatpush1.msra.mxu0 0.0
        %8520 = vmatprep.subr.mxu0 0.0
        %8521 = vmatpush1.msra.mxu0 0.0
        %8522 = vmatprep.subr.mxu0 0.0
        %8523 = vmatpush1.msra.mxu0 0.0
        %8524 = vmatprep.subr.mxu0 0.0
        %8525 = vmatpush1.msra.mxu0 0.0
        %8526 = vmatprep.subr.mxu0 0.0
        %8527 = vmatpush1.msra.mxu0 0.0
        %8528 = vmatprep.subr.mxu0 0.0
        %8529 = vmatpush1.msra.mxu0 0.0
        %8530 = vmatprep.subr.mxu0 0.0
        %8531 = vmatpush1.msra.mxu0 0.0
        %8532 = vmatprep.subr.mxu0 0.0
        %8533 = vmatpush1.msra.mxu0 0.0
        %8534 = vmatprep.subr.mxu0 0.0
        %8535 = vmatpush1.msra.mxu0 0.0
        %8536 = vmatprep.subr.mxu0 0.0
        %8537 = vmatpush1.msra.mxu0 0.0
        %8538 = vmatprep.subr.mxu0 0.0
        %8539 = vmatpush1.msra.mxu0 0.0
        %8540 = vmatprep.subr.mxu0 0.0
        %8541 = vmatpush1.msra.mxu0 0.0
        %8542 = vmatprep.subr.mxu0 0.0
        %8543 = vmatpush1.msra.mxu0 0.0
        %8544 = vmatprep.subr.mxu0 0.0
        %8545 = vmatpush1.msra.mxu0 0.0
        %8546 = vmatprep.subr.mxu0 0.0
        %8547 = vmatpush1.msra.mxu0 0.0
        %8548 = vmatprep.mubr.f32.mxu0 0.0
        %8549 = vmatmul.mubr.f32.gmra.mrb[0].mxu0 %v8482
        %v8550 = vpop.f32.mrb[0].mxu0
        %v8551 = vadd.f32 %v8479, %v8550
        %v8552 = vpop.f32.mrb[0].mxu0
        %8553 = vdwg.mxu0
        %v8554 = vmax.f32 %v8551, 0.0
        %v8555 = vld [vmem:[%s11] sm:$0x1]
        %v8556 = vld [vmem:[%s12] sm:$0x1]
        %v8558 = vlaneseq
        %v8559 = vshrl.u32 %v8558, 7
        %v8560 = vsub.s32 0, %v8559
        %v8561 = vrot.slane %v8556, %v8560
        %v8564 = vsel %vm809, %v8554, 0
        %v8567 = vsel %vm8470, %v8555, 0
        %8569 = vmatprep.subr.mxu0 0.0
        %8570 = vmatpush1.msra.mxu0 %v8567
        %8571 = vmatprep.subr.mxu0 0.0
        %8572 = vmatpush1.msra.mxu0 0.0
        %8573 = vmatprep.subr.mxu0 0.0
        %8574 = vmatpush1.msra.mxu0 0.0
        %8575 = vmatprep.subr.mxu0 0.0
        %8576 = vmatpush1.msra.mxu0 0.0
        %8577 = vmatprep.subr.mxu0 0.0
        %8578 = vmatpush1.msra.mxu0 0.0
        %8579 = vmatprep.subr.mxu0 0.0
        %8580 = vmatpush1.msra.mxu0 0.0
        %8581 = vmatprep.subr.mxu0 0.0
        %8582 = vmatpush1.msra.mxu0 0.0
        %8583 = vmatprep.subr.mxu0 0.0
        %8584 = vmatpush1.msra.mxu0 0.0
        %8585 = vmatprep.subr.mxu0 0.0
        %8586 = vmatpush1.msra.mxu0 0.0
        %8587 = vmatprep.subr.mxu0 0.0
        %8588 = vmatpush1.msra.mxu0 0.0
        %8589 = vmatprep.subr.mxu0 0.0
        %8590 = vmatpush1.msra.mxu0 0.0
        %8591 = vmatprep.subr.mxu0 0.0
        %8592 = vmatpush1.msra.mxu0 0.0
        %8593 = vmatprep.subr.mxu0 0.0
        %8594 = vmatpush1.msra.mxu0 0.0
        %8595 = vmatprep.subr.mxu0 0.0
        %8596 = vmatpush1.msra.mxu0 0.0
        %8597 = vmatprep.subr.mxu0 0.0
        %8598 = vmatpush1.msra.mxu0 0.0
        %8599 = vmatprep.subr.mxu0 0.0
        %8600 = vmatpush1.msra.mxu0 0.0
        %8601 = vmatprep.subr.mxu0 0.0
        %8602 = vmatpush1.msra.mxu0 0.0
        %8603 = vmatprep.subr.mxu0 0.0
        %8604 = vmatpush1.msra.mxu0 0.0
        %8605 = vmatprep.subr.mxu0 0.0
        %8606 = vmatpush1.msra.mxu0 0.0
        %8607 = vmatprep.subr.mxu0 0.0
        %8608 = vmatpush1.msra.mxu0 0.0
        %8609 = vmatprep.subr.mxu0 0.0
        %8610 = vmatpush1.msra.mxu0 0.0
        %8611 = vmatprep.subr.mxu0 0.0
        %8612 = vmatpush1.msra.mxu0 0.0
        %8613 = vmatprep.subr.mxu0 0.0
        %8614 = vmatpush1.msra.mxu0 0.0
        %8615 = vmatprep.subr.mxu0 0.0
        %8616 = vmatpush1.msra.mxu0 0.0
        %8617 = vmatprep.subr.mxu0 0.0
        %8618 = vmatpush1.msra.mxu0 0.0
        %8619 = vmatprep.subr.mxu0 0.0
        %8620 = vmatpush1.msra.mxu0 0.0
        %8621 = vmatprep.subr.mxu0 0.0
        %8622 = vmatpush1.msra.mxu0 0.0
        %8623 = vmatprep.subr.mxu0 0.0
        %8624 = vmatpush1.msra.mxu0 0.0
        %8625 = vmatprep.subr.mxu0 0.0
        %8626 = vmatpush1.msra.mxu0 0.0
        %8627 = vmatprep.subr.mxu0 0.0
        %8628 = vmatpush1.msra.mxu0 0.0
        %8629 = vmatprep.subr.mxu0 0.0
        %8630 = vmatpush1.msra.mxu0 0.0
        %8631 = vmatprep.subr.mxu0 0.0
        %8632 = vmatpush1.msra.mxu0 0.0
        %8633 = vmatprep.mubr.f32.mxu0 0.0
        %8634 = vmatmul.mubr.f32.gmra.mrb[0].mxu0 %v8564
        %v8635 = vpop.f32.mrb[0].mxu0
        %v8636 = vadd.f32 %v8561, %v8635
        %v8637 = vpop.f32.mrb[0].mxu0
        %8638 = vdwg.mxu0
        %v8640 = vrot.slane %v8636, 1
        %v8642 = vadd.f32 %v8636, %v8640
        %v8643 = vxor.u32 %v8642, 2147483648
        %v8644 = vmul.f32 %v8643, 1.442695
        %v8645 = vpow.pop %v8644
        %v8646 = vadd.f32 %v8645, 1.0
        %v8647 = vrcp.pop %v8646
        %v8648 = vmul.f32 1.0, %v8647
        %v8649 = vlaneseq
        %v8650 = vshrl.u32 %v8649, 7
        %v8651 = vsub.s32 0, %v8650
        %v8652 = vrot.slane %v8648, %v8651
        %v8653 = vmul.f32 %v8292, %v8652
        %v8654 = vmul.f32 %v8293, %v8652
        %v8655 = vmul.f32 %v8294, %v8652
        %v8656 = vmul.f32 %v8295, %v8652
        %v8657 = vmul.f32 %v8296, %v8652
        %v8658 = vmul.f32 %v8297, %v8652
        %v8659 = vmul.f32 %v8298, %v8652
        %v8660 = vmul.f32 %v8299, %v8652
        %v8661 = vmul.f32 %v8300, %v8652
        %v8662 = vmul.f32 %v8301, %v8652
        %v8663 = vmul.f32 %v8302, %v8652
        %v8664 = vmul.f32 %v8303, %v8652
        %v8665 = vmul.f32 %v8304, %v8652
        %v8666 = vmul.f32 %v8305, %v8652
        %v8667 = vmul.f32 %v8306, %v8652
        %v8668 = vmul.f32 %v8307, %v8652
        %v8669 = vmul.f32 %v8308, %v8652
        %v8670 = vmul.f32 %v8309, %v8652
        %v8671 = vmul.f32 %v8310, %v8652
        %v8672 = vmul.f32 %v8311, %v8652
        %v8673 = vmul.f32 %v8312, %v8652
        %v8674 = vmul.f32 %v8313, %v8652
        %v8675 = vmul.f32 %v8314, %v8652
        %v8676 = vmul.f32 %v8315, %v8652
        %v8677 = vmul.f32 %v8316, %v8652
        %v8678 = vmul.f32 %v8317, %v8652
        %v8679 = vmul.f32 %v8318, %v8652
        %v8680 = vmul.f32 %v8319, %v8652
        %v8681 = vmul.f32 %v8320, %v8652
        %v8682 = vmul.f32 %v8321, %v8652
        %v8683 = vmul.f32 %v8322, %v8652
        %v8684 = vmul.f32 %v8323, %v8652
        %vm8685 = vcmask 174080
        %8686 = vst.msk [vmem:[#allocation5] sm:$0x7] %vm8685, 0.0
        %8687 = vst.msk [vmem:[#allocation5 + $0x18] sm:$0x7] %vm8685, 0.0
        %8688 = vst.msk [vmem:[#allocation5 + $0x13] sm:$0x7] %vm8685, 0.0
        %8689 = vst.msk [vmem:[#allocation5 + $0x2b] sm:$0x7] %vm8685, 0.0
        %vm8690 = vcmask 23552
        %8691 = vst.msk [vmem:[#allocation5 + $0x3] sm:$0xff] %vm8690, 0.0
        %8692 = vst.msk [vmem:[#allocation5 + $0xb] sm:$0xff] %vm8690, 0.0
        %8693 = vst.msk [vmem:[#allocation5 + $0x1b] sm:$0xff] %vm8690, 0.0
        %8694 = vst.msk [vmem:[#allocation5 + $0x23] sm:$0xff] %vm8690, 0.0
        %vm8695 = vcmask 179352
        %8696 = vst.msk [vmem:[#allocation5 + $0x3] sm:$0xff] %vm8695, 0.0
        %8697 = vst.msk [vmem:[#allocation5 + $0xb] sm:$0xff] %vm8695, 0.0
        %8698 = vst.msk [vmem:[#allocation5 + $0x1b] sm:$0xff] %vm8695, 0.0
        %8699 = vst.msk [vmem:[#allocation5 + $0x23] sm:$0xff] %vm8695, 0.0
        %v8700 = vsel %vm1845, %v8653, -inf
        %8701 = vmax.xlane.f32.xlu0 %v8700
        %v8702 = vpop.xlane.xlu0 %8701
        %v8703 = vsel %vm1845, %v8654, -inf
        %8704 = vmax.xlane.f32.xlu0 %v8703
        %v8705 = vpop.xlane.xlu0 %8704
        %v8706 = vsel %vm1845, %v8655, -inf
        %8707 = vmax.xlane.f32.xlu0 %v8706
        %v8708 = vpop.xlane.xlu0 %8707
        %v8709 = vsel %vm1845, %v8656, -inf
        %8710 = vmax.xlane.f32.xlu0 %v8709
        %v8711 = vpop.xlane.xlu0 %8710
        %v8712 = vsel %vm1845, %v8657, -inf
        %8713 = vmax.xlane.f32.xlu0 %v8712
        %v8714 = vpop.xlane.xlu0 %8713
        %v8715 = vsel %vm1845, %v8658, -inf
        %8716 = vmax.xlane.f32.xlu0 %v8715
        %v8717 = vpop.xlane.xlu0 %8716
        %v8718 = vsel %vm1845, %v8659, -inf
        %8719 = vmax.xlane.f32.xlu0 %v8718
        %v8720 = vpop.xlane.xlu0 %8719
        %v8721 = vsel %vm1845, %v8660, -inf
        %8722 = vmax.xlane.f32.xlu0 %v8721
        %v8723 = vpop.xlane.xlu0 %8722
        %v8724 = vsel %vm1845, %v8661, -inf
        %8725 = vmax.xlane.f32.xlu0 %v8724
        %v8726 = vpop.xlane.xlu0 %8725
        %v8727 = vsel %vm1845, %v8662, -inf
        %8728 = vmax.xlane.f32.xlu0 %v8727
        %v8729 = vpop.xlane.xlu0 %8728
        %v8730 = vsel %vm1845, %v8663, -inf
        %8731 = vmax.xlane.f32.xlu0 %v8730
        %v8732 = vpop.xlane.xlu0 %8731
        %v8733 = vsel %vm1845, %v8664, -inf
        %8734 = vmax.xlane.f32.xlu0 %v8733
        %v8735 = vpop.xlane.xlu0 %8734
        %v8736 = vsel %vm1845, %v8665, -inf
        %8737 = vmax.xlane.f32.xlu0 %v8736
        %v8738 = vpop.xlane.xlu0 %8737
        %v8739 = vsel %vm1845, %v8666, -inf
        %8740 = vmax.xlane.f32.xlu0 %v8739
        %v8741 = vpop.xlane.xlu0 %8740
        %v8742 = vsel %vm1845, %v8667, -inf
        %8743 = vmax.xlane.f32.xlu0 %v8742
        %v8744 = vpop.xlane.xlu0 %8743
        %v8745 = vsel %vm1845, %v8668, -inf
        %8746 = vmax.xlane.f32.xlu0 %v8745
        %v8747 = vpop.xlane.xlu0 %8746
        %v8748 = vsel %vm1845, %v8669, -inf
        %8749 = vmax.xlane.f32.xlu0 %v8748
        %v8750 = vpop.xlane.xlu0 %8749
        %v8751 = vsel %vm1845, %v8670, -inf
        %8752 = vmax.xlane.f32.xlu0 %v8751
        %v8753 = vpop.xlane.xlu0 %8752
        %v8754 = vsel %vm1845, %v8671, -inf
        %8755 = vmax.xlane.f32.xlu0 %v8754
        %v8756 = vpop.xlane.xlu0 %8755
        %v8757 = vsel %vm1845, %v8672, -inf
        %8758 = vmax.xlane.f32.xlu0 %v8757
        %v8759 = vpop.xlane.xlu0 %8758
        %v8760 = vsel %vm1845, %v8673, -inf
        %8761 = vmax.xlane.f32.xlu0 %v8760
        %v8762 = vpop.xlane.xlu0 %8761
        %v8763 = vsel %vm1845, %v8674, -inf
        %8764 = vmax.xlane.f32.xlu0 %v8763
        %v8765 = vpop.xlane.xlu0 %8764
        %v8766 = vsel %vm1845, %v8675, -inf
        %8767 = vmax.xlane.f32.xlu0 %v8766
        %v8768 = vpop.xlane.xlu0 %8767
        %v8769 = vsel %vm1845, %v8676, -inf
        %8770 = vmax.xlane.f32.xlu0 %v8769
        %v8771 = vpop.xlane.xlu0 %8770
        %v8772 = vsel %vm1845, %v8677, -inf
        %8773 = vmax.xlane.f32.xlu0 %v8772
        %v8774 = vpop.xlane.xlu0 %8773
        %v8775 = vsel %vm1845, %v8678, -inf
        %8776 = vmax.xlane.f32.xlu0 %v8775
        %v8777 = vpop.xlane.xlu0 %8776
        %v8778 = vsel %vm1845, %v8679, -inf
        %8779 = vmax.xlane.f32.xlu0 %v8778
        %v8780 = vpop.xlane.xlu0 %8779
        %v8781 = vsel %vm1845, %v8680, -inf
        %8782 = vmax.xlane.f32.xlu0 %v8781
        %v8783 = vpop.xlane.xlu0 %8782
        %v8784 = vsel %vm1845, %v8681, -inf
        %8785 = vmax.xlane.f32.xlu0 %v8784
        %v8786 = vpop.xlane.xlu0 %8785
        %v8787 = vsel %vm1845, %v8682, -inf
        %8788 = vmax.xlane.f32.xlu0 %v8787
        %v8789 = vpop.xlane.xlu0 %8788
        %v8790 = vsel %vm1845, %v8683, -inf
        %8791 = vmax.xlane.f32.xlu0 %v8790
        %v8792 = vpop.xlane.xlu0 %8791
        %v8793 = vsel %vm1845, %v8684, -inf
        %8794 = vmax.xlane.f32.xlu0 %v8793
        %v8795 = vpop.xlane.xlu0 %8794
        %v8828 = vadd.s32 %v1001, 4294967293
        %v8829 = vlaneseq
        %v8830 = vshrl.u32 %v8829, 7
        %v8831 = vsub.s32 %v8828, %v8830
        %v8832 = vrot.slane %v8702, %v8831
        %v8833 = vadd.s32 %v1001, 4294967285
        %v8834 = vlaneseq
        %v8835 = vshrl.u32 %v8834, 7
        %v8836 = vsub.s32 %v8833, %v8835
        %v8837 = vrot.slane %v8705, %v8836
        %vm8838 = vcmask 154712
        %v8839 = vsel %vm8838, %v8837, %v8832
        %v8840 = vlaneseq
        %v8841 = vshrl.u32 %v8840, 7
        %v8842 = vsub.s32 %v8828, %v8841
        %v8843 = vrot.slane %v8708, %v8842
        %v8844 = vlaneseq
        %v8845 = vshrl.u32 %v8844, 7
        %v8846 = vsub.s32 %v8833, %v8845
        %v8847 = vrot.slane %v8711, %v8846
        %v8848 = vsel %vm8838, %v8847, %v8843
        %v8849 = vlaneseq
        %v8850 = vshrl.u32 %v8849, 7
        %v8851 = vsub.s32 %v8828, %v8850
        %v8852 = vrot.slane %v8714, %v8851
        %v8853 = vlaneseq
        %v8854 = vshrl.u32 %v8853, 7
        %v8855 = vsub.s32 %v8833, %v8854
        %v8856 = vrot.slane %v8717, %v8855
        %v8857 = vsel %vm8838, %v8856, %v8852
        %v8858 = vlaneseq
        %v8859 = vshrl.u32 %v8858, 7
        %v8860 = vsub.s32 %v8828, %v8859
        %v8861 = vrot.slane %v8720, %v8860
        %v8862 = vlaneseq
        %v8863 = vshrl.u32 %v8862, 7
        %v8864 = vsub.s32 %v8833, %v8863
        %v8865 = vrot.slane %v8723, %v8864
        %v8866 = vsel %vm8838, %v8865, %v8861
        %v8867 = vlaneseq
        %v8868 = vshrl.u32 %v8867, 7
        %v8869 = vsub.s32 %v8828, %v8868
        %v8870 = vrot.slane %v8726, %v8869
        %v8871 = vlaneseq
        %v8872 = vshrl.u32 %v8871, 7
        %v8873 = vsub.s32 %v8833, %v8872
        %v8874 = vrot.slane %v8729, %v8873
        %v8875 = vsel %vm8838, %v8874, %v8870
        %v8876 = vlaneseq
        %v8877 = vshrl.u32 %v8876, 7
        %v8878 = vsub.s32 %v8828, %v8877
        %v8879 = vrot.slane %v8732, %v8878
        %v8880 = vlaneseq
        %v8881 = vshrl.u32 %v8880, 7
        %v8882 = vsub.s32 %v8833, %v8881
        %v8883 = vrot.slane %v8735, %v8882
        %v8884 = vsel %vm8838, %v8883, %v8879
        %v8885 = vlaneseq
        %v8886 = vshrl.u32 %v8885, 7
        %v8887 = vsub.s32 %v8828, %v8886
        %v8888 = vrot.slane %v8738, %v8887
        %v8889 = vlaneseq
        %v8890 = vshrl.u32 %v8889, 7
        %v8891 = vsub.s32 %v8833, %v8890
        %v8892 = vrot.slane %v8741, %v8891
        %v8893 = vsel %vm8838, %v8892, %v8888
        %v8894 = vlaneseq
        %v8895 = vshrl.u32 %v8894, 7
        %v8896 = vsub.s32 %v8828, %v8895
        %v8897 = vrot.slane %v8744, %v8896
        %v8898 = vlaneseq
        %v8899 = vshrl.u32 %v8898, 7
        %v8900 = vsub.s32 %v8833, %v8899
        %v8901 = vrot.slane %v8747, %v8900
        %v8902 = vsel %vm8838, %v8901, %v8897
        %v8903 = vlaneseq
        %v8904 = vshrl.u32 %v8903, 7
        %v8905 = vsub.s32 %v8828, %v8904
        %v8906 = vrot.slane %v8750, %v8905
        %v8907 = vlaneseq
        %v8908 = vshrl.u32 %v8907, 7
        %v8909 = vsub.s32 %v8833, %v8908
        %v8910 = vrot.slane %v8753, %v8909
        %v8911 = vsel %vm8838, %v8910, %v8906
        %v8912 = vlaneseq
        %v8913 = vshrl.u32 %v8912, 7
        %v8914 = vsub.s32 %v8828, %v8913
        %v8915 = vrot.slane %v8756, %v8914
        %v8916 = vlaneseq
        %v8917 = vshrl.u32 %v8916, 7
        %v8918 = vsub.s32 %v8833, %v8917
        %v8919 = vrot.slane %v8759, %v8918
        %v8920 = vsel %vm8838, %v8919, %v8915
        %v8921 = vlaneseq
        %v8922 = vshrl.u32 %v8921, 7
        %v8923 = vsub.s32 %v8828, %v8922
        %v8924 = vrot.slane %v8762, %v8923
        %v8925 = vlaneseq
        %v8926 = vshrl.u32 %v8925, 7
        %v8927 = vsub.s32 %v8833, %v8926
        %v8928 = vrot.slane %v8765, %v8927
        %v8929 = vsel %vm8838, %v8928, %v8924
        %v8930 = vlaneseq
        %v8931 = vshrl.u32 %v8930, 7
        %v8932 = vsub.s32 %v8828, %v8931
        %v8933 = vrot.slane %v8768, %v8932
        %v8934 = vlaneseq
        %v8935 = vshrl.u32 %v8934, 7
        %v8936 = vsub.s32 %v8833, %v8935
        %v8937 = vrot.slane %v8771, %v8936
        %v8938 = vsel %vm8838, %v8937, %v8933
        %v8939 = vlaneseq
        %v8940 = vshrl.u32 %v8939, 7
        %v8941 = vsub.s32 %v8828, %v8940
        %v8942 = vrot.slane %v8774, %v8941
        %v8943 = vlaneseq
        %v8944 = vshrl.u32 %v8943, 7
        %v8945 = vsub.s32 %v8833, %v8944
        %v8946 = vrot.slane %v8777, %v8945
        %v8947 = vsel %vm8838, %v8946, %v8942
        %v8948 = vlaneseq
        %v8949 = vshrl.u32 %v8948, 7
        %v8950 = vsub.s32 %v8828, %v8949
        %v8951 = vrot.slane %v8780, %v8950
        %v8952 = vlaneseq
        %v8953 = vshrl.u32 %v8952, 7
        %v8954 = vsub.s32 %v8833, %v8953
        %v8955 = vrot.slane %v8783, %v8954
        %v8956 = vsel %vm8838, %v8955, %v8951
        %v8957 = vlaneseq
        %v8958 = vshrl.u32 %v8957, 7
        %v8959 = vsub.s32 %v8828, %v8958
        %v8960 = vrot.slane %v8786, %v8959
        %v8961 = vlaneseq
        %v8962 = vshrl.u32 %v8961, 7
        %v8963 = vsub.s32 %v8833, %v8962
        %v8964 = vrot.slane %v8789, %v8963
        %v8965 = vsel %vm8838, %v8964, %v8960
        %v8966 = vlaneseq
        %v8967 = vshrl.u32 %v8966, 7
        %v8968 = vsub.s32 %v8828, %v8967
        %v8969 = vrot.slane %v8792, %v8968
        %v8970 = vlaneseq
        %v8971 = vshrl.u32 %v8970, 7
        %v8972 = vsub.s32 %v8833, %v8971
        %v8973 = vrot.slane %v8795, %v8972
        %v8974 = vsel %vm8838, %v8973, %v8969
        %vm8975 = vcmask 1041409
        %v8976 = vsel %vm8975, %v8848, %v8839
        %vm8977 = vcmask 1042434
        %v8978 = vsel %vm8977, %v8857, %v8976
        %vm8979 = vcmask 1043459
        %v8980 = vsel %vm8979, %v8866, %v8978
        %vm8981 = vcmask 1044484
        %v8982 = vsel %vm8981, %v8875, %v8980
        %vm8983 = vcmask 1045509
        %v8984 = vsel %vm8983, %v8884, %v8982
        %vm8985 = vcmask 1046534
        %v8986 = vsel %vm8985, %v8893, %v8984
        %vm8987 = vcmask 1047559
        %v8988 = vsel %vm8987, %v8902, %v8986
        %v8989 = vsel %vm8975, %v8920, %v8911
        %v8990 = vsel %vm8977, %v8929, %v8989
        %v8991 = vsel %vm8979, %v8938, %v8990
        %v8992 = vsel %vm8981, %v8947, %v8991
        %v8993 = vsel %vm8983, %v8956, %v8992
        %v8994 = vsel %vm8985, %v8965, %v8993
        %v8995 = vsel %vm8987, %v8974, %v8994
        %vm8998 = vcmask 154648
        %8999 = vst.msk [vmem:[#allocation5 + $0x3] sm:$0xff] %vm8998, %v8988
        %9000 = vst.msk [vmem:[#allocation5 + $0xb] sm:$0xff] %vm8998, %v8995
        %v9001 = vsel %vm1845, %v8653, 0.0
        %9002 = vadd.xlane.f32.xlu0 %v9001
        %v9003 = vpop.xlane.xlu0 %9002
        %v9004 = vsel %vm1845, %v8654, 0.0
        %9005 = vadd.xlane.f32.xlu0 %v9004
        %v9006 = vpop.xlane.xlu0 %9005
        %v9007 = vsel %vm1845, %v8655, 0.0
        %9008 = vadd.xlane.f32.xlu0 %v9007
        %v9009 = vpop.xlane.xlu0 %9008
        %v9010 = vsel %vm1845, %v8656, 0.0
        %9011 = vadd.xlane.f32.xlu0 %v9010
        %v9012 = vpop.xlane.xlu0 %9011
        %v9013 = vsel %vm1845, %v8657, 0.0
        %9014 = vadd.xlane.f32.xlu0 %v9013
        %v9015 = vpop.xlane.xlu0 %9014
        %v9016 = vsel %vm1845, %v8658, 0.0
        %9017 = vadd.xlane.f32.xlu0 %v9016
        %v9018 = vpop.xlane.xlu0 %9017
        %v9019 = vsel %vm1845, %v8659, 0.0
        %9020 = vadd.xlane.f32.xlu0 %v9019
        %v9021 = vpop.xlane.xlu0 %9020
        %v9022 = vsel %vm1845, %v8660, 0.0
        %9023 = vadd.xlane.f32.xlu0 %v9022
        %v9024 = vpop.xlane.xlu0 %9023
        %v9025 = vsel %vm1845, %v8661, 0.0
        %9026 = vadd.xlane.f32.xlu0 %v9025
        %v9027 = vpop.xlane.xlu0 %9026
        %v9028 = vsel %vm1845, %v8662, 0.0
        %9029 = vadd.xlane.f32.xlu0 %v9028
        %v9030 = vpop.xlane.xlu0 %9029
        %v9031 = vsel %vm1845, %v8663, 0.0
        %9032 = vadd.xlane.f32.xlu0 %v9031
        %v9033 = vpop.xlane.xlu0 %9032
        %v9034 = vsel %vm1845, %v8664, 0.0
        %9035 = vadd.xlane.f32.xlu0 %v9034
        %v9036 = vpop.xlane.xlu0 %9035
        %v9037 = vsel %vm1845, %v8665, 0.0
        %9038 = vadd.xlane.f32.xlu0 %v9037
        %v9039 = vpop.xlane.xlu0 %9038
        %v9040 = vsel %vm1845, %v8666, 0.0
        %9041 = vadd.xlane.f32.xlu0 %v9040
        %v9042 = vpop.xlane.xlu0 %9041
        %v9043 = vsel %vm1845, %v8667, 0.0
        %9044 = vadd.xlane.f32.xlu0 %v9043
        %v9045 = vpop.xlane.xlu0 %9044
        %v9046 = vsel %vm1845, %v8668, 0.0
        %9047 = vadd.xlane.f32.xlu0 %v9046
        %v9048 = vpop.xlane.xlu0 %9047
        %v9049 = vsel %vm1845, %v8669, 0.0
        %9050 = vadd.xlane.f32.xlu0 %v9049
        %v9051 = vpop.xlane.xlu0 %9050
        %v9052 = vsel %vm1845, %v8670, 0.0
        %9053 = vadd.xlane.f32.xlu0 %v9052
        %v9054 = vpop.xlane.xlu0 %9053
        %v9055 = vsel %vm1845, %v8671, 0.0
        %9056 = vadd.xlane.f32.xlu0 %v9055
        %v9057 = vpop.xlane.xlu0 %9056
        %v9058 = vsel %vm1845, %v8672, 0.0
        %9059 = vadd.xlane.f32.xlu0 %v9058
        %v9060 = vpop.xlane.xlu0 %9059
        %v9061 = vsel %vm1845, %v8673, 0.0
        %9062 = vadd.xlane.f32.xlu0 %v9061
        %v9063 = vpop.xlane.xlu0 %9062
        %v9064 = vsel %vm1845, %v8674, 0.0
        %9065 = vadd.xlane.f32.xlu0 %v9064
        %v9066 = vpop.xlane.xlu0 %9065
        %v9067 = vsel %vm1845, %v8675, 0.0
        %9068 = vadd.xlane.f32.xlu0 %v9067
        %v9069 = vpop.xlane.xlu0 %9068
        %v9070 = vsel %vm1845, %v8676, 0.0
        %9071 = vadd.xlane.f32.xlu0 %v9070
        %v9072 = vpop.xlane.xlu0 %9071
        %v9073 = vsel %vm1845, %v8677, 0.0
        %9074 = vadd.xlane.f32.xlu0 %v9073
        %v9075 = vpop.xlane.xlu0 %9074
        %v9076 = vsel %vm1845, %v8678, 0.0
        %9077 = vadd.xlane.f32.xlu0 %v9076
        %v9078 = vpop.xlane.xlu0 %9077
        %v9079 = vsel %vm1845, %v8679, 0.0
        %9080 = vadd.xlane.f32.xlu0 %v9079
        %v9081 = vpop.xlane.xlu0 %9080
        %v9082 = vsel %vm1845, %v8680, 0.0
        %9083 = vadd.xlane.f32.xlu0 %v9082
        %v9084 = vpop.xlane.xlu0 %9083
        %v9085 = vsel %vm1845, %v8681, 0.0
        %9086 = vadd.xlane.f32.xlu0 %v9085
        %v9087 = vpop.xlane.xlu0 %9086
        %v9088 = vsel %vm1845, %v8682, 0.0
        %9089 = vadd.xlane.f32.xlu0 %v9088
        %v9090 = vpop.xlane.xlu0 %9089
        %v9091 = vsel %vm1845, %v8683, 0.0
        %9092 = vadd.xlane.f32.xlu0 %v9091
        %v9093 = vpop.xlane.xlu0 %9092
        %v9094 = vsel %vm1845, %v8684, 0.0
        %9095 = vadd.xlane.f32.xlu0 %v9094
        %v9096 = vpop.xlane.xlu0 %9095
        %v9097 = vmul.f32 %v9003, %v8386
        %v9098 = vmul.f32 %v9006, %v8386
        %v9099 = vmul.f32 %v9009, %v8386
        %v9100 = vmul.f32 %v9012, %v8386
        %v9101 = vmul.f32 %v9015, %v8386
        %v9102 = vmul.f32 %v9018, %v8386
        %v9103 = vmul.f32 %v9021, %v8386
        %v9104 = vmul.f32 %v9024, %v8386
        %v9105 = vmul.f32 %v9027, %v8386
        %v9106 = vmul.f32 %v9030, %v8386
        %v9107 = vmul.f32 %v9033, %v8386
        %v9108 = vmul.f32 %v9036, %v8386
        %v9109 = vmul.f32 %v9039, %v8386
        %v9110 = vmul.f32 %v9042, %v8386
        %v9111 = vmul.f32 %v9045, %v8386
        %v9112 = vmul.f32 %v9048, %v8386
        %v9113 = vmul.f32 %v9051, %v8386
        %v9114 = vmul.f32 %v9054, %v8386
        %v9115 = vmul.f32 %v9057, %v8386
        %v9116 = vmul.f32 %v9060, %v8386
        %v9117 = vmul.f32 %v9063, %v8386
        %v9118 = vmul.f32 %v9066, %v8386
        %v9119 = vmul.f32 %v9069, %v8386
        %v9120 = vmul.f32 %v9072, %v8386
        %v9121 = vmul.f32 %v9075, %v8386
        %v9122 = vmul.f32 %v9078, %v8386
        %v9123 = vmul.f32 %v9081, %v8386
        %v9124 = vmul.f32 %v9084, %v8386
        %v9125 = vmul.f32 %v9087, %v8386
        %v9126 = vmul.f32 %v9090, %v8386
        %v9127 = vmul.f32 %v9093, %v8386
        %v9128 = vmul.f32 %v9096, %v8386
        %v9161 = vlaneseq
        %v9162 = vshrl.u32 %v9161, 7
        %v9163 = vsub.s32 %v8828, %v9162
        %v9164 = vrot.slane %v9097, %v9163
        %v9165 = vlaneseq
        %v9166 = vshrl.u32 %v9165, 7
        %v9167 = vsub.s32 %v8833, %v9166
        %v9168 = vrot.slane %v9098, %v9167
        %v9169 = vsel %vm8838, %v9168, %v9164
        %v9170 = vlaneseq
        %v9171 = vshrl.u32 %v9170, 7
        %v9172 = vsub.s32 %v8828, %v9171
        %v9173 = vrot.slane %v9099, %v9172
        %v9174 = vlaneseq
        %v9175 = vshrl.u32 %v9174, 7
        %v9176 = vsub.s32 %v8833, %v9175
        %v9177 = vrot.slane %v9100, %v9176
        %v9178 = vsel %vm8838, %v9177, %v9173
        %v9179 = vlaneseq
        %v9180 = vshrl.u32 %v9179, 7
        %v9181 = vsub.s32 %v8828, %v9180
        %v9182 = vrot.slane %v9101, %v9181
        %v9183 = vlaneseq
        %v9184 = vshrl.u32 %v9183, 7
        %v9185 = vsub.s32 %v8833, %v9184
        %v9186 = vrot.slane %v9102, %v9185
        %v9187 = vsel %vm8838, %v9186, %v9182
        %v9188 = vlaneseq
        %v9189 = vshrl.u32 %v9188, 7
        %v9190 = vsub.s32 %v8828, %v9189
        %v9191 = vrot.slane %v9103, %v9190
        %v9192 = vlaneseq
        %v9193 = vshrl.u32 %v9192, 7
        %v9194 = vsub.s32 %v8833, %v9193
        %v9195 = vrot.slane %v9104, %v9194
        %v9196 = vsel %vm8838, %v9195, %v9191
        %v9197 = vlaneseq
        %v9198 = vshrl.u32 %v9197, 7
        %v9199 = vsub.s32 %v8828, %v9198
        %v9200 = vrot.slane %v9105, %v9199
        %v9201 = vlaneseq
        %v9202 = vshrl.u32 %v9201, 7
        %v9203 = vsub.s32 %v8833, %v9202
        %v9204 = vrot.slane %v9106, %v9203
        %v9205 = vsel %vm8838, %v9204, %v9200
        %v9206 = vlaneseq
        %v9207 = vshrl.u32 %v9206, 7
        %v9208 = vsub.s32 %v8828, %v9207
        %v9209 = vrot.slane %v9107, %v9208
        %v9210 = vlaneseq
        %v9211 = vshrl.u32 %v9210, 7
        %v9212 = vsub.s32 %v8833, %v9211
        %v9213 = vrot.slane %v9108, %v9212
        %v9214 = vsel %vm8838, %v9213, %v9209
        %v9215 = vlaneseq
        %v9216 = vshrl.u32 %v9215, 7
        %v9217 = vsub.s32 %v8828, %v9216
        %v9218 = vrot.slane %v9109, %v9217
        %v9219 = vlaneseq
        %v9220 = vshrl.u32 %v9219, 7
        %v9221 = vsub.s32 %v8833, %v9220
        %v9222 = vrot.slane %v9110, %v9221
        %v9223 = vsel %vm8838, %v9222, %v9218
        %v9224 = vlaneseq
        %v9225 = vshrl.u32 %v9224, 7
        %v9226 = vsub.s32 %v8828, %v9225
        %v9227 = vrot.slane %v9111, %v9226
        %v9228 = vlaneseq
        %v9229 = vshrl.u32 %v9228, 7
        %v9230 = vsub.s32 %v8833, %v9229
        %v9231 = vrot.slane %v9112, %v9230
        %v9232 = vsel %vm8838, %v9231, %v9227
        %v9233 = vlaneseq
        %v9234 = vshrl.u32 %v9233, 7
        %v9235 = vsub.s32 %v8828, %v9234
        %v9236 = vrot.slane %v9113, %v9235
        %v9237 = vlaneseq
        %v9238 = vshrl.u32 %v9237, 7
        %v9239 = vsub.s32 %v8833, %v9238
        %v9240 = vrot.slane %v9114, %v9239
        %v9241 = vsel %vm8838, %v9240, %v9236
        %v9242 = vlaneseq
        %v9243 = vshrl.u32 %v9242, 7
        %v9244 = vsub.s32 %v8828, %v9243
        %v9245 = vrot.slane %v9115, %v9244
        %v9246 = vlaneseq
        %v9247 = vshrl.u32 %v9246, 7
        %v9248 = vsub.s32 %v8833, %v9247
        %v9249 = vrot.slane %v9116, %v9248
        %v9250 = vsel %vm8838, %v9249, %v9245
        %v9251 = vlaneseq
        %v9252 = vshrl.u32 %v9251, 7
        %v9253 = vsub.s32 %v8828, %v9252
        %v9254 = vrot.slane %v9117, %v9253
        %v9255 = vlaneseq
        %v9256 = vshrl.u32 %v9255, 7
        %v9257 = vsub.s32 %v8833, %v9256
        %v9258 = vrot.slane %v9118, %v9257
        %v9259 = vsel %vm8838, %v9258, %v9254
        %v9260 = vlaneseq
        %v9261 = vshrl.u32 %v9260, 7
        %v9262 = vsub.s32 %v8828, %v9261
        %v9263 = vrot.slane %v9119, %v9262
        %v9264 = vlaneseq
        %v9265 = vshrl.u32 %v9264, 7
        %v9266 = vsub.s32 %v8833, %v9265
        %v9267 = vrot.slane %v9120, %v9266
        %v9268 = vsel %vm8838, %v9267, %v9263
        %v9269 = vlaneseq
        %v9270 = vshrl.u32 %v9269, 7
        %v9271 = vsub.s32 %v8828, %v9270
        %v9272 = vrot.slane %v9121, %v9271
        %v9273 = vlaneseq
        %v9274 = vshrl.u32 %v9273, 7
        %v9275 = vsub.s32 %v8833, %v9274
        %v9276 = vrot.slane %v9122, %v9275
        %v9277 = vsel %vm8838, %v9276, %v9272
        %v9278 = vlaneseq
        %v9279 = vshrl.u32 %v9278, 7
        %v9280 = vsub.s32 %v8828, %v9279
        %v9281 = vrot.slane %v9123, %v9280
        %v9282 = vlaneseq
        %v9283 = vshrl.u32 %v9282, 7
        %v9284 = vsub.s32 %v8833, %v9283
        %v9285 = vrot.slane %v9124, %v9284
        %v9286 = vsel %vm8838, %v9285, %v9281
        %v9287 = vlaneseq
        %v9288 = vshrl.u32 %v9287, 7
        %v9289 = vsub.s32 %v8828, %v9288
        %v9290 = vrot.slane %v9125, %v9289
        %v9291 = vlaneseq
        %v9292 = vshrl.u32 %v9291, 7
        %v9293 = vsub.s32 %v8833, %v9292
        %v9294 = vrot.slane %v9126, %v9293
        %v9295 = vsel %vm8838, %v9294, %v9290
        %v9296 = vlaneseq
        %v9297 = vshrl.u32 %v9296, 7
        %v9298 = vsub.s32 %v8828, %v9297
        %v9299 = vrot.slane %v9127, %v9298
        %v9300 = vlaneseq
        %v9301 = vshrl.u32 %v9300, 7
        %v9302 = vsub.s32 %v8833, %v9301
        %v9303 = vrot.slane %v9128, %v9302
        %v9304 = vsel %vm8838, %v9303, %v9299
        %v9305 = vsel %vm8975, %v9178, %v9169
        %v9306 = vsel %vm8977, %v9187, %v9305
        %v9307 = vsel %vm8979, %v9196, %v9306
        %v9308 = vsel %vm8981, %v9205, %v9307
        %v9309 = vsel %vm8983, %v9214, %v9308
        %v9310 = vsel %vm8985, %v9223, %v9309
        %v9311 = vsel %vm8987, %v9232, %v9310
        %v9312 = vsel %vm8975, %v9250, %v9241
        %v9313 = vsel %vm8977, %v9259, %v9312
        %v9314 = vsel %vm8979, %v9268, %v9313
        %v9315 = vsel %vm8981, %v9277, %v9314
        %v9316 = vsel %vm8983, %v9286, %v9315
        %v9317 = vsel %vm8985, %v9295, %v9316
        %v9318 = vsel %vm8987, %v9304, %v9317
        %s9321 = scalar_lea.vmem [#allocation5], 24
        %9322 = vst.msk [vmem:[%s9321 + $0x3] sm:$0xff] %vm8998, %v9311
        %9323 = vst.msk [vmem:[%s9321 + $0xb] sm:$0xff] %vm8998, %v9318
        %v9324 = vld [vmem:[#allocation5] sm:$0xff]
        %v9325 = vld [vmem:[#allocation5 + $0x8] sm:$0xff]
        %vm9326 = vcmask 179200
        %9327 = vst.msk [vmem:[#allocation6] sm:$0xff] %vm9326, %v9324
        %9328 = vst.msk [vmem:[#allocation6 + $0x18] sm:$0xff] %vm9326, %v9325
        %v9329 = vld [vmem:[#allocation5 + $0x1] sm:$0xff]
        %v9330 = vld [vmem:[#allocation5 + $0x9] sm:$0xff]
        %9333 = vrot.lane.b32.xlu0 %v9329, 22
        %v9334 = vpop.permute.xlu0 %9333
        %9335 = vrot.lane.b32.xlu0 %v9330, 22
        %v9336 = vpop.permute.xlu0 %9335
        %vm9339 = vcmask 359600
        %9340 = vst.msk [vmem:[#allocation6] sm:$0xff] %vm9339, %v9334
        %9341 = vst.msk [vmem:[#allocation6 + $0x18] sm:$0xff] %vm9339, %v9336
        %v9342 = vld [vmem:[#allocation5 + $0x2] sm:$0xff]
        %v9343 = vld [vmem:[#allocation5 + $0xa] sm:$0xff]
        %9346 = vrot.lane.b32.xlu0 %v9342, 44
        %v9347 = vpop.permute.xlu0 %9346
        %9348 = vrot.lane.b32.xlu0 %v9343, 44
        %v9349 = vpop.permute.xlu0 %9348
        %vm9352 = vcmask 540000
        %9353 = vst.msk [vmem:[#allocation6] sm:$0xff] %vm9352, %v9347
        %9354 = vst.msk [vmem:[#allocation6 + $0x18] sm:$0xff] %vm9352, %v9349
        %v9355 = vld [vmem:[#allocation5 + $0x3] sm:$0xff]
        %v9356 = vld [vmem:[#allocation5 + $0xb] sm:$0xff]
        %9359 = vrot.lane.b32.xlu0 %v9355, 66
        %v9360 = vpop.permute.xlu0 %9359
        %9361 = vrot.lane.b32.xlu0 %v9356, 66
        %v9362 = vpop.permute.xlu0 %9361
        %vm9365 = vcmask 720400
        %9366 = vst.msk [vmem:[#allocation6] sm:$0xff] %vm9365, %v9360
        %9367 = vst.msk [vmem:[#allocation6 + $0x18] sm:$0xff] %vm9365, %v9362
        %v9368 = vld [vmem:[#allocation5 + $0x4] sm:$0xff]
        %v9369 = vld [vmem:[#allocation5 + $0xc] sm:$0xff]
        %9372 = vrot.lane.b32.xlu0 %v9368, 88
        %v9373 = vpop.permute.xlu0 %9372
        %9374 = vrot.lane.b32.xlu0 %v9369, 88
        %v9375 = vpop.permute.xlu0 %9374
        %vm9378 = vcmask 900800
        %9379 = vst.msk [vmem:[#allocation6] sm:$0xff] %vm9378, %v9373
        %9380 = vst.msk [vmem:[#allocation6 + $0x18] sm:$0xff] %vm9378, %v9375
        %v9381 = vld [vmem:[#allocation5 + $0x5] sm:$0xff]
        %v9382 = vld [vmem:[#allocation5 + $0xd] sm:$0xff]
        %9385 = vrot.lane.b32.xlu0 %v9381, 110
        %v9386 = vpop.permute.xlu0 %9385
        %9387 = vrot.lane.b32.xlu0 %v9382, 110
        %v9388 = vpop.permute.xlu0 %9387
        %vm9391 = vcmask 1048432
        %9392 = vst.msk [vmem:[#allocation6] sm:$0xff] %vm9391, %v9386
        %vm9393 = vcmask 31744
        %9394 = vst.msk [vmem:[#allocation6 + $0x8] sm:$0xff] %vm9393, %v9386
        %9395 = vst.msk [vmem:[#allocation6 + $0x18] sm:$0xff] %vm9391, %v9388
        %9396 = vst.msk [vmem:[#allocation6 + $0x20] sm:$0xff] %vm9393, %v9388
        %v9397 = vld [vmem:[#allocation5 + $0x6] sm:$0xff]
        %v9398 = vld [vmem:[#allocation5 + $0xe] sm:$0xff]
        %9401 = vrot.lane.b32.xlu0 %v9397, 4
        %v9402 = vpop.permute.xlu0 %9401
        %9403 = vrot.lane.b32.xlu0 %v9398, 4
        %v9404 = vpop.permute.xlu0 %9403
        %vm9407 = vcmask 212000
        %9408 = vst.msk [vmem:[#allocation6 + $0x8] sm:$0xff] %vm9407, %v9402
        %9409 = vst.msk [vmem:[#allocation6 + $0x20] sm:$0xff] %vm9407, %v9404
        %v9410 = vld [vmem:[%s9321] sm:$0xff]
        %v9411 = vld [vmem:[%s9321 + $0x8] sm:$0xff]
        %9414 = vrot.lane.b32.xlu0 %v9410, 26
        %v9415 = vpop.permute.xlu0 %9414
        %9416 = vrot.lane.b32.xlu0 %v9411, 26
        %v9417 = vpop.permute.xlu0 %9416
        %vm9420 = vcmask 392400
        %9421 = vst.msk [vmem:[#allocation6 + $0x8] sm:$0xff] %vm9420, %v9415
        %9422 = vst.msk [vmem:[#allocation6 + $0x20] sm:$0xff] %vm9420, %v9417
        %v9423 = vld [vmem:[%s9321 + $0x1] sm:$0xff]
        %v9424 = vld [vmem:[%s9321 + $0x9] sm:$0xff]
        %9427 = vrot.lane.b32.xlu0 %v9423, 48
        %v9428 = vpop.permute.xlu0 %9427
        %9429 = vrot.lane.b32.xlu0 %v9424, 48
        %v9430 = vpop.permute.xlu0 %9429
        %vm9433 = vcmask 572800
        %9434 = vst.msk [vmem:[#allocation6 + $0x8] sm:$0xff] %vm9433, %v9428
        %9435 = vst.msk [vmem:[#allocation6 + $0x20] sm:$0xff] %vm9433, %v9430
        %v9436 = vld [vmem:[%s9321 + $0x2] sm:$0xff]
        %v9437 = vld [vmem:[%s9321 + $0xa] sm:$0xff]
        %9440 = vrot.lane.b32.xlu0 %v9436, 70
        %v9441 = vpop.permute.xlu0 %9440
        %9442 = vrot.lane.b32.xlu0 %v9437, 70
        %v9443 = vpop.permute.xlu0 %9442
        %vm9446 = vcmask 753200
        %9447 = vst.msk [vmem:[#allocation6 + $0x8] sm:$0xff] %vm9446, %v9441
        %9448 = vst.msk [vmem:[#allocation6 + $0x20] sm:$0xff] %vm9446, %v9443
        %v9449 = vld [vmem:[%s9321 + $0x3] sm:$0xff]
        %v9450 = vld [vmem:[%s9321 + $0xb] sm:$0xff]
        %9453 = vrot.lane.b32.xlu0 %v9449, 92
        %v9454 = vpop.permute.xlu0 %9453
        %9455 = vrot.lane.b32.xlu0 %v9450, 92
        %v9456 = vpop.permute.xlu0 %9455
        %vm9459 = vcmask 933600
        %9460 = vst.msk [vmem:[#allocation6 + $0x8] sm:$0xff] %vm9459, %v9454
        %9461 = vst.msk [vmem:[#allocation6 + $0x20] sm:$0xff] %vm9459, %v9456
        %v9462 = vld [vmem:[%s9321 + $0x4] sm:$0xff]
        %v9463 = vld [vmem:[%s9321 + $0xc] sm:$0xff]
        %9466 = vrot.lane.b32.xlu0 %v9462, 114
        %v9467 = vpop.permute.xlu0 %9466
        %9468 = vrot.lane.b32.xlu0 %v9463, 114
        %v9469 = vpop.permute.xlu0 %9468
        %vm9472 = vcmask 1048464
        %9473 = vst.msk [vmem:[#allocation6 + $0x8] sm:$0xff] %vm9472, %v9467
        %9474 = vst.msk [vmem:[#allocation6 + $0x10] sm:$0xff] %vm1430, %v9467
        %9475 = vst.msk [vmem:[#allocation6 + $0x20] sm:$0xff] %vm9472, %v9469
        %9476 = vst.msk [vmem:[#allocation6 + $0x28] sm:$0xff] %vm1430, %v9469
        %v9477 = vld [vmem:[%s9321 + $0x5] sm:$0xff]
        %v9478 = vld [vmem:[%s9321 + $0xd] sm:$0xff]
        %9481 = vrot.lane.b32.xlu0 %v9477, 8
        %v9482 = vpop.permute.xlu0 %9481
        %9483 = vrot.lane.b32.xlu0 %v9478, 8
        %v9484 = vpop.permute.xlu0 %9483
        %vm9487 = vcmask 244800
        %9488 = vst.msk [vmem:[#allocation6 + $0x10] sm:$0xff] %vm9487, %v9482
        %9489 = vst.msk [vmem:[#allocation6 + $0x28] sm:$0xff] %vm9487, %v9484
        %v9490 = vld [vmem:[%s9321 + $0x6] sm:$0xff]
        %v9491 = vld [vmem:[%s9321 + $0xe] sm:$0xff]
        %9494 = vrot.lane.b32.xlu0 %v9490, 30
        %v9495 = vpop.permute.xlu0 %9494
        %9496 = vrot.lane.b32.xlu0 %v9491, 30
        %v9497 = vpop.permute.xlu0 %9496
        %vm9500 = vcmask 425200
        %9501 = vst.msk [vmem:[#allocation6 + $0x10] sm:$0xff] %vm9500, %v9495
        %9502 = vst.msk [vmem:[#allocation6 + $0x28] sm:$0xff] %vm9500, %v9497
        %v9503 = vld [vmem:[#allocation6] sm:$0xff]
        %v9504 = vld [vmem:[#allocation6 + $0x8] sm:$0xff]
        %v9505 = vld [vmem:[#allocation6 + $0x10] sm:$0xff]
        %v9506 = vld [vmem:[#allocation6 + $0x18] sm:$0xff]
        %v9507 = vld [vmem:[#allocation6 + $0x20] sm:$0xff]
        %v9508 = vld [vmem:[#allocation6 + $0x28] sm:$0xff]
        %v9509 = vld [vmem:[%s13] sm:$0xff]
        %v9510 = vld [vmem:[%s13 + $0x8] sm:$0xff]
        %v9511 = vld [vmem:[%s13 + $0x10] sm:$0xff]
        %v9512 = vld [vmem:[%s13 + $0x18] sm:$0xff]
        %v9513 = vld [vmem:[%s13 + $0x20] sm:$0xff]
        %v9514 = vld [vmem:[%s13 + $0x28] sm:$0xff]
        %v9515 = vld [vmem:[%s13 + $0x30] sm:$0xff]
        %v9516 = vld [vmem:[%s13 + $0x38] sm:$0xff]
        %v9517 = vld [vmem:[%s13 + $0x40] sm:$0xff]
        %v9518 = vld [vmem:[%s13 + $0x48] sm:$0xff]
        %v9519 = vld [vmem:[%s13 + $0x50] sm:$0xff]
        %v9520 = vld [vmem:[%s13 + $0x58] sm:$0xff]
        %v9521 = vld [vmem:[%s13 + $0x60] sm:$0xff]
        %v9522 = vld [vmem:[%s13 + $0x68] sm:$0xff]
        %v9523 = vld [vmem:[%s13 + $0x70] sm:$0xff]
        %v9524 = vld [vmem:[%s13 + $0x78] sm:$0xff]
        %v9525 = vld [vmem:[%s13 + $0x80] sm:$0xff]
        %v9526 = vld [vmem:[%s13 + $0x88] sm:$0xff]
        %v9527 = vld [vmem:[%s13 + $0x90] sm:$0xff]
        %v9528 = vld [vmem:[%s13 + $0x98] sm:$0xff]
        %v9529 = vld [vmem:[%s13 + $0xa0] sm:$0xff]
        %v9530 = vld [vmem:[%s13 + $0xa8] sm:$0xff]
        %v9531 = vld [vmem:[%s13 + $0xb0] sm:$0xff]
        %v9532 = vld [vmem:[%s13 + $0xb8] sm:$0xff]
        %v9533 = vld [vmem:[%s13 + $0xc0] sm:$0xff]
        %v9534 = vld [vmem:[%s13 + $0xc8] sm:$0xff]
        %v9535 = vld [vmem:[%s13 + $0xd0] sm:$0xff]
        %v9536 = vld [vmem:[%s13 + $0xd8] sm:$0xff]
        %v9537 = vld [vmem:[%s13 + $0xe0] sm:$0xff]
        %v9538 = vld [vmem:[%s13 + $0xe8] sm:$0xff]
        %v9539 = vld [vmem:[%s13 + $0xf0] sm:$0xff]
        %v9540 = vld [vmem:[%s13 + $0xf8] sm:$0xff]
        %v9541 = vld [vmem:[%s13 + $0x100] sm:$0xff]
        %v9542 = vld [vmem:[%s13 + $0x108] sm:$0xff]
        %v9543 = vld [vmem:[%s13 + $0x110] sm:$0xff]
        %v9544 = vld [vmem:[%s13 + $0x118] sm:$0xff]
        %v9545 = vld [vmem:[%s13 + $0x120] sm:$0xff]
        %v9546 = vld [vmem:[%s13 + $0x128] sm:$0xff]
        %v9547 = vld [vmem:[%s13 + $0x130] sm:$0xf]
        %s9548 = sld [smem:[#allocation8 + $0x3]]
        %v9549 = vstv %s9548
        %vm9550 = vcmask 424960
        %v9552 = vsel %vm9550, %v9505, 0
        %v9555 = vsel %vm9550, %v9508, 0
        %v9558 = vsel %vm985, %v9547, 0
        %9560 = vmatprep.subr.mxu0 0.0
        %9561 = vmatpush1.msra.mxu0 %v9509
        %9562 = vmatprep.subr.mxu0 0.0
        %9563 = vmatpush1.msra.mxu0 %v9510
        %9564 = vmatprep.subr.mxu0 0.0
        %9565 = vmatpush1.msra.mxu0 %v9511
        %9566 = vmatprep.subr.mxu0 0.0
        %9567 = vmatpush1.msra.mxu0 %v9512
        %9568 = vmatprep.subr.mxu0 0.0
        %9569 = vmatpush1.msra.mxu0 %v9513
        %9570 = vmatprep.subr.mxu0 0.0
        %9571 = vmatpush1.msra.mxu0 %v9514
        %9572 = vmatprep.subr.mxu0 0.0
        %9573 = vmatpush1.msra.mxu0 %v9515
        %9574 = vmatprep.subr.mxu0 0.0
        %9575 = vmatpush1.msra.mxu0 %v9516
        %9576 = vmatprep.subr.mxu0 0.0
        %9577 = vmatpush1.msra.mxu0 %v9517
        %9578 = vmatprep.subr.mxu0 0.0
        %9579 = vmatpush1.msra.mxu0 %v9518
        %9580 = vmatprep.subr.mxu0 0.0
        %9581 = vmatpush1.msra.mxu0 %v9519
        %9582 = vmatprep.subr.mxu0 0.0
        %9583 = vmatpush1.msra.mxu0 %v9520
        %9584 = vmatprep.subr.mxu0 0.0
        %9585 = vmatpush1.msra.mxu0 %v9521
        %9586 = vmatprep.subr.mxu0 0.0
        %9587 = vmatpush1.msra.mxu0 %v9522
        %9588 = vmatprep.subr.mxu0 0.0
        %9589 = vmatpush1.msra.mxu0 %v9523
        %9590 = vmatprep.subr.mxu0 0.0
        %9591 = vmatpush1.msra.mxu0 %v9524
        %9592 = vmatprep.subr.mxu0 0.0
        %9593 = vmatpush1.msra.mxu0 %v9525
        %9594 = vmatprep.subr.mxu0 0.0
        %9595 = vmatpush1.msra.mxu0 %v9526
        %9596 = vmatprep.subr.mxu0 0.0
        %9597 = vmatpush1.msra.mxu0 %v9527
        %9598 = vmatprep.subr.mxu0 0.0
        %9599 = vmatpush1.msra.mxu0 %v9528
        %9600 = vmatprep.subr.mxu0 0.0
        %9601 = vmatpush1.msra.mxu0 %v9529
        %9602 = vmatprep.subr.mxu0 0.0
        %9603 = vmatpush1.msra.mxu0 %v9530
        %9604 = vmatprep.subr.mxu0 0.0
        %9605 = vmatpush1.msra.mxu0 %v9531
        %9606 = vmatprep.subr.mxu0 0.0
        %9607 = vmatpush1.msra.mxu0 %v9532
        %9608 = vmatprep.subr.mxu0 0.0
        %9609 = vmatpush1.msra.mxu0 %v9533
        %9610 = vmatprep.subr.mxu0 0.0
        %9611 = vmatpush1.msra.mxu0 %v9534
        %9612 = vmatprep.subr.mxu0 0.0
        %9613 = vmatpush1.msra.mxu0 %v9535
        %9614 = vmatprep.subr.mxu0 0.0
        %9615 = vmatpush1.msra.mxu0 %v9536
        %9616 = vmatprep.subr.mxu0 0.0
        %9617 = vmatpush1.msra.mxu0 %v9537
        %9618 = vmatprep.subr.mxu0 0.0
        %9619 = vmatpush1.msra.mxu0 %v9538
        %9620 = vmatprep.subr.mxu0 0.0
        %9621 = vmatpush1.msra.mxu0 %v9539
        %9622 = vmatprep.subr.mxu0 0.0
        %9623 = vmatpush1.msra.mxu0 %v9540
        %9624 = vmatprep.mubr.f32.mxu0 %v9504
        %9625 = vmatmul.mubr.f32.gmra.mrb[0].mxu0 %v9503
        %v9626 = vpop.f32.mrb[0].mxu0
        %v9627 = vadd.f32 %v9549, %v9626
        %v9628 = vpop.f32.mrb[0].mxu0
        %9629 = vmatprep.mubr.f32.mxu0 %v9507
        %9630 = vmatmul.mubr.f32.gmra.mrb[0].mxu0 %v9506
        %v9631 = vpop.f32.mrb[0].mxu0
        %v9632 = vadd.f32 %v9549, %v9631
        %v9633 = vpop.f32.mrb[0].mxu0
        %9634 = vdwg.mxu0
        %9635 = vmatprep.subr.mxu0 0.0
        %9636 = vmatpush1.msra.mxu0 %v9541
        %9637 = vmatprep.subr.mxu0 0.0
        %9638 = vmatpush1.msra.mxu0 %v9542
        %9639 = vmatprep.subr.mxu0 0.0
        %9640 = vmatpush1.msra.mxu0 %v9543
        %9641 = vmatprep.subr.mxu0 0.0
        %9642 = vmatpush1.msra.mxu0 %v9544
        %9643 = vmatprep.subr.mxu0 0.0
        %9644 = vmatpush1.msra.mxu0 %v9545
        %9645 = vmatprep.subr.mxu0 0.0
        %9646 = vmatpush1.msra.mxu0 %v9546
        %9647 = vmatprep.subr.mxu0 0.0
        %9648 = vmatpush1.msra.mxu0 %v9558
        %9649 = vmatprep.subr.mxu0 0.0
        %9650 = vmatpush1.msra.mxu0 0.0
        %9651 = vmatprep.subr.mxu0 0.0
        %9652 = vmatpush1.msra.mxu0 0.0
        %9653 = vmatprep.subr.mxu0 0.0
        %9654 = vmatpush1.msra.mxu0 0.0
        %9655 = vmatprep.subr.mxu0 0.0
        %9656 = vmatpush1.msra.mxu0 0.0
        %9657 = vmatprep.subr.mxu0 0.0
        %9658 = vmatpush1.msra.mxu0 0.0
        %9659 = vmatprep.subr.mxu0 0.0
        %9660 = vmatpush1.msra.mxu0 0.0
        %9661 = vmatprep.subr.mxu0 0.0
        %9662 = vmatpush1.msra.mxu0 0.0
        %9663 = vmatprep.subr.mxu0 0.0
        %9664 = vmatpush1.msra.mxu0 0.0
        %9665 = vmatprep.subr.mxu0 0.0
        %9666 = vmatpush1.msra.mxu0 0.0
        %9667 = vmatprep.subr.mxu0 0.0
        %9668 = vmatpush1.msra.mxu0 0.0
        %9669 = vmatprep.subr.mxu0 0.0
        %9670 = vmatpush1.msra.mxu0 0.0
        %9671 = vmatprep.subr.mxu0 0.0
        %9672 = vmatpush1.msra.mxu0 0.0
        %9673 = vmatprep.subr.mxu0 0.0
        %9674 = vmatpush1.msra.mxu0 0.0
        %9675 = vmatprep.subr.mxu0 0.0
        %9676 = vmatpush1.msra.mxu0 0.0
        %9677 = vmatprep.subr.mxu0 0.0
        %9678 = vmatpush1.msra.mxu0 0.0
        %9679 = vmatprep.subr.mxu0 0.0
        %9680 = vmatpush1.msra.mxu0 0.0
        %9681 = vmatprep.subr.mxu0 0.0
        %9682 = vmatpush1.msra.mxu0 0.0
        %9683 = vmatprep.subr.mxu0 0.0
        %9684 = vmatpush1.msra.mxu0 0.0
        %9685 = vmatprep.subr.mxu0 0.0
        %9686 = vmatpush1.msra.mxu0 0.0
        %9687 = vmatprep.subr.mxu0 0.0
        %9688 = vmatpush1.msra.mxu0 0.0
        %9689 = vmatprep.subr.mxu0 0.0
        %9690 = vmatpush1.msra.mxu0 0.0
        %9691 = vmatprep.subr.mxu0 0.0
        %9692 = vmatpush1.msra.mxu0 0.0
        %9693 = vmatprep.subr.mxu0 0.0
        %9694 = vmatpush1.msra.mxu0 0.0
        %9695 = vmatprep.subr.mxu0 0.0
        %9696 = vmatpush1.msra.mxu0 0.0
        %9697 = vmatprep.subr.mxu0 0.0
        %9698 = vmatpush1.msra.mxu0 0.0
        %9699 = vmatprep.mubr.f32.mxu0 0.0
        %9700 = vmatmul.mubr.f32.gmra.mrb[0].mxu0 %v9552
        %v9701 = vpop.f32.mrb[0].mxu0
        %v9702 = vadd.f32 %v9627, %v9701
        %v9703 = vpop.f32.mrb[0].mxu0
        %9704 = vmatprep.mubr.f32.mxu0 0.0
        %9705 = vmatmul.mubr.f32.gmra.mrb[0].mxu0 %v9555
        %v9706 = vpop.f32.mrb[0].mxu0
        %v9707 = vadd.f32 %v9632, %v9706
        %v9708 = vpop.f32.mrb[0].mxu0
        %9709 = vdwg.mxu0
        %v9710 = vxor.u32 %v9702, 2147483648
        %v9711 = vxor.u32 %v9707, 2147483648
        %v9712 = vmul.f32 %v9710, 1.442695
        %v9713 = vpow.pop %v9712
        %v9714 = vmul.f32 %v9711, 1.442695
        %v9715 = vpow.pop %v9714
        %v9716 = vadd.f32 %v9713, 1.0
        %v9717 = vadd.f32 %v9715, 1.0
        %v9718 = vrcp.pop %v9716
        %v9719 = vmul.f32 1.0, %v9718
        %v9720 = vrcp.pop %v9717
        %v9721 = vmul.f32 1.0, %v9720
        %v9722 = vlaneseq
        %v9723 = vshrl.u32 %v9722, 7
        %v9724 = vsub.s32 0, %v9723
        %v9725 = vrot.slane %v9719, %v9724
        %9727 = vbcast.lane.b32.xlu0 %v9725, 256
        %v9728 = vpop.permute.xlu0 %9727
        %s9730 = sor.u32 256, 8
        %9731 = vbcast.lane.b32.xlu0 %v9725, %s9730
        %v9732 = vpop.permute.xlu0 %9731
        %v9733 = vlaneseq
        %v9734 = vshrl.u32 %v9733, 7
        %v9735 = vsub.s32 1, %v9734
        %v9736 = vrot.slane %v9719, %v9735
        %9738 = vbcast.lane.b32.xlu0 %v9736, 256
        %v9739 = vpop.permute.xlu0 %9738
        %s9741 = sor.u32 256, 8
        %9742 = vbcast.lane.b32.xlu0 %v9736, %s9741
        %v9743 = vpop.permute.xlu0 %9742
        %v9744 = vlaneseq
        %v9745 = vshrl.u32 %v9744, 7
        %v9746 = vsub.s32 2, %v9745
        %v9747 = vrot.slane %v9719, %v9746
        %9749 = vbcast.lane.b32.xlu0 %v9747, 256
        %v9750 = vpop.permute.xlu0 %9749
        %s9752 = sor.u32 256, 8
        %9753 = vbcast.lane.b32.xlu0 %v9747, %s9752
        %v9754 = vpop.permute.xlu0 %9753
        %v9755 = vlaneseq
        %v9756 = vshrl.u32 %v9755, 7
        %v9757 = vsub.s32 3, %v9756
        %v9758 = vrot.slane %v9719, %v9757
        %9760 = vbcast.lane.b32.xlu0 %v9758, 256
        %v9761 = vpop.permute.xlu0 %9760
        %s9763 = sor.u32 256, 8
        %9764 = vbcast.lane.b32.xlu0 %v9758, %s9763
        %v9765 = vpop.permute.xlu0 %9764
        %v9766 = vlaneseq
        %v9767 = vshrl.u32 %v9766, 7
        %v9768 = vsub.s32 4, %v9767
        %v9769 = vrot.slane %v9719, %v9768
        %9771 = vbcast.lane.b32.xlu0 %v9769, 256
        %v9772 = vpop.permute.xlu0 %9771
        %s9774 = sor.u32 256, 8
        %9775 = vbcast.lane.b32.xlu0 %v9769, %s9774
        %v9776 = vpop.permute.xlu0 %9775
        %v9777 = vlaneseq
        %v9778 = vshrl.u32 %v9777, 7
        %v9779 = vsub.s32 5, %v9778
        %v9780 = vrot.slane %v9719, %v9779
        %9782 = vbcast.lane.b32.xlu0 %v9780, 256
        %v9783 = vpop.permute.xlu0 %9782
        %s9785 = sor.u32 256, 8
        %9786 = vbcast.lane.b32.xlu0 %v9780, %s9785
        %v9787 = vpop.permute.xlu0 %9786
        %v9788 = vlaneseq
        %v9789 = vshrl.u32 %v9788, 7
        %v9790 = vsub.s32 6, %v9789
        %v9791 = vrot.slane %v9719, %v9790
        %9793 = vbcast.lane.b32.xlu0 %v9791, 256
        %v9794 = vpop.permute.xlu0 %9793
        %s9796 = sor.u32 256, 8
        %9797 = vbcast.lane.b32.xlu0 %v9791, %s9796
        %v9798 = vpop.permute.xlu0 %9797
        %v9799 = vlaneseq
        %v9800 = vshrl.u32 %v9799, 7
        %v9801 = vsub.s32 7, %v9800
        %v9802 = vrot.slane %v9719, %v9801
        %9804 = vbcast.lane.b32.xlu0 %v9802, 256
        %v9805 = vpop.permute.xlu0 %9804
        %s9807 = sor.u32 256, 8
        %9808 = vbcast.lane.b32.xlu0 %v9802, %s9807
        %v9809 = vpop.permute.xlu0 %9808
        %v9810 = vlaneseq
        %v9811 = vshrl.u32 %v9810, 7
        %v9812 = vsub.s32 0, %v9811
        %v9813 = vrot.slane %v9721, %v9812
        %9815 = vbcast.lane.b32.xlu0 %v9813, 256
        %v9816 = vpop.permute.xlu0 %9815
        %s9818 = sor.u32 256, 8
        %9819 = vbcast.lane.b32.xlu0 %v9813, %s9818
        %v9820 = vpop.permute.xlu0 %9819
        %v9821 = vlaneseq
        %v9822 = vshrl.u32 %v9821, 7
        %v9823 = vsub.s32 1, %v9822
        %v9824 = vrot.slane %v9721, %v9823
        %9826 = vbcast.lane.b32.xlu0 %v9824, 256
        %v9827 = vpop.permute.xlu0 %9826
        %s9829 = sor.u32 256, 8
        %9830 = vbcast.lane.b32.xlu0 %v9824, %s9829
        %v9831 = vpop.permute.xlu0 %9830
        %v9832 = vlaneseq
        %v9833 = vshrl.u32 %v9832, 7
        %v9834 = vsub.s32 2, %v9833
        %v9835 = vrot.slane %v9721, %v9834
        %9837 = vbcast.lane.b32.xlu0 %v9835, 256
        %v9838 = vpop.permute.xlu0 %9837
        %s9840 = sor.u32 256, 8
        %9841 = vbcast.lane.b32.xlu0 %v9835, %s9840
        %v9842 = vpop.permute.xlu0 %9841
        %v9843 = vlaneseq
        %v9844 = vshrl.u32 %v9843, 7
        %v9845 = vsub.s32 3, %v9844
        %v9846 = vrot.slane %v9721, %v9845
        %9848 = vbcast.lane.b32.xlu0 %v9846, 256
        %v9849 = vpop.permute.xlu0 %9848
        %s9851 = sor.u32 256, 8
        %9852 = vbcast.lane.b32.xlu0 %v9846, %s9851
        %v9853 = vpop.permute.xlu0 %9852
        %v9854 = vlaneseq
        %v9855 = vshrl.u32 %v9854, 7
        %v9856 = vsub.s32 4, %v9855
        %v9857 = vrot.slane %v9721, %v9856
        %9859 = vbcast.lane.b32.xlu0 %v9857, 256
        %v9860 = vpop.permute.xlu0 %9859
        %s9862 = sor.u32 256, 8
        %9863 = vbcast.lane.b32.xlu0 %v9857, %s9862
        %v9864 = vpop.permute.xlu0 %9863
        %v9865 = vlaneseq
        %v9866 = vshrl.u32 %v9865, 7
        %v9867 = vsub.s32 5, %v9866
        %v9868 = vrot.slane %v9721, %v9867
        %9870 = vbcast.lane.b32.xlu0 %v9868, 256
        %v9871 = vpop.permute.xlu0 %9870
        %s9873 = sor.u32 256, 8
        %9874 = vbcast.lane.b32.xlu0 %v9868, %s9873
        %v9875 = vpop.permute.xlu0 %9874
        %v9876 = vlaneseq
        %v9877 = vshrl.u32 %v9876, 7
        %v9878 = vsub.s32 6, %v9877
        %v9879 = vrot.slane %v9721, %v9878
        %9881 = vbcast.lane.b32.xlu0 %v9879, 256
        %v9882 = vpop.permute.xlu0 %9881
        %s9884 = sor.u32 256, 8
        %9885 = vbcast.lane.b32.xlu0 %v9879, %s9884
        %v9886 = vpop.permute.xlu0 %9885
        %v9887 = vlaneseq
        %v9888 = vshrl.u32 %v9887, 7
        %v9889 = vsub.s32 7, %v9888
        %v9890 = vrot.slane %v9721, %v9889
        %9892 = vbcast.lane.b32.xlu0 %v9890, 256
        %v9893 = vpop.permute.xlu0 %9892
        %s9895 = sor.u32 256, 8
        %9896 = vbcast.lane.b32.xlu0 %v9890, %s9895
        %v9897 = vpop.permute.xlu0 %9896
        %v9898 = vmul.f32 %v8653, %v9728
        %v9899 = vmul.f32 %v8654, %v9732
        %v9900 = vmul.f32 %v8655, %v9739
        %v9901 = vmul.f32 %v8656, %v9743
        %v9902 = vmul.f32 %v8657, %v9750
        %v9903 = vmul.f32 %v8658, %v9754
        %v9904 = vmul.f32 %v8659, %v9761
        %v9905 = vmul.f32 %v8660, %v9765
        %v9906 = vmul.f32 %v8661, %v9772
        %v9907 = vmul.f32 %v8662, %v9776
        %v9908 = vmul.f32 %v8663, %v9783
        %v9909 = vmul.f32 %v8664, %v9787
        %v9910 = vmul.f32 %v8665, %v9794
        %v9911 = vmul.f32 %v8666, %v9798
        %v9912 = vmul.f32 %v8667, %v9805
        %v9913 = vmul.f32 %v8668, %v9809
        %v9914 = vmul.f32 %v8669, %v9816
        %v9915 = vmul.f32 %v8670, %v9820
        %v9916 = vmul.f32 %v8671, %v9827
        %v9917 = vmul.f32 %v8672, %v9831
        %v9918 = vmul.f32 %v8673, %v9838
        %v9919 = vmul.f32 %v8674, %v9842
        %v9920 = vmul.f32 %v8675, %v9849
        %v9921 = vmul.f32 %v8676, %v9853
        %v9922 = vmul.f32 %v8677, %v9860
        %v9923 = vmul.f32 %v8678, %v9864
        %v9924 = vmul.f32 %v8679, %v9871
        %v9925 = vmul.f32 %v8680, %v9875
        %v9926 = vmul.f32 %v8681, %v9882
        %v9927 = vmul.f32 %v8682, %v9886
        %v9928 = vmul.f32 %v8683, %v9893
        %v9929 = vmul.f32 %v8684, %v9897
        %9930 = vst.msk [vmem:[%s504] sm:$0xff] %vm1845, %v9898
        %9931 = vst.msk [vmem:[%s504 + $0x8] sm:$0xff] %vm1845, %v9899
        %9932 = vst.msk [vmem:[%s504 + $0x10] sm:$0xff] %vm1845, %v9900
        %9933 = vst.msk [vmem:[%s504 + $0x18] sm:$0xff] %vm1845, %v9901
        %9934 = vst.msk [vmem:[%s504 + $0x20] sm:$0xff] %vm1845, %v9902
        %9935 = vst.msk [vmem:[%s504 + $0x28] sm:$0xff] %vm1845, %v9903
        %9936 = vst.msk [vmem:[%s504 + $0x30] sm:$0xff] %vm1845, %v9904
        %9937 = vst.msk [vmem:[%s504 + $0x38] sm:$0xff] %vm1845, %v9905
        %9938 = vst.msk [vmem:[%s504 + $0x40] sm:$0xff] %vm1845, %v9906
        %9939 = vst.msk [vmem:[%s504 + $0x48] sm:$0xff] %vm1845, %v9907
        %9940 = vst.msk [vmem:[%s504 + $0x50] sm:$0xff] %vm1845, %v9908
        %9941 = vst.msk [vmem:[%s504 + $0x58] sm:$0xff] %vm1845, %v9909
        %9942 = vst.msk [vmem:[%s504 + $0x60] sm:$0xff] %vm1845, %v9910
        %9943 = vst.msk [vmem:[%s504 + $0x68] sm:$0xff] %vm1845, %v9911
        %9944 = vst.msk [vmem:[%s504 + $0x70] sm:$0xff] %vm1845, %v9912
        %9945 = vst.msk [vmem:[%s504 + $0x78] sm:$0xff] %vm1845, %v9913
        %9946 = vst.msk [vmem:[%s504 + $0x80] sm:$0xff] %vm1845, %v9914
        %9947 = vst.msk [vmem:[%s504 + $0x88] sm:$0xff] %vm1845, %v9915
        %9948 = vst.msk [vmem:[%s504 + $0x90] sm:$0xff] %vm1845, %v9916
        %9949 = vst.msk [vmem:[%s504 + $0x98] sm:$0xff] %vm1845, %v9917
        %9950 = vst.msk [vmem:[%s504 + $0xa0] sm:$0xff] %vm1845, %v9918
        %9951 = vst.msk [vmem:[%s504 + $0xa8] sm:$0xff] %vm1845, %v9919
        %9952 = vst.msk [vmem:[%s504 + $0xb0] sm:$0xff] %vm1845, %v9920
        %9953 = vst.msk [vmem:[%s504 + $0xb8] sm:$0xff] %vm1845, %v9921
        %9954 = vst.msk [vmem:[%s504 + $0xc0] sm:$0xff] %vm1845, %v9922
        %9955 = vst.msk [vmem:[%s504 + $0xc8] sm:$0xff] %vm1845, %v9923
        %9956 = vst.msk [vmem:[%s504 + $0xd0] sm:$0xff] %vm1845, %v9924
        %9957 = vst.msk [vmem:[%s504 + $0xd8] sm:$0xff] %vm1845, %v9925
        %9958 = vst.msk [vmem:[%s504 + $0xe0] sm:$0xff] %vm1845, %v9926
        %9959 = vst.msk [vmem:[%s504 + $0xe8] sm:$0xff] %vm1845, %v9927
        %9960 = vst.msk [vmem:[%s504 + $0xf0] sm:$0xff] %vm1845, %v9928
        %9961 = vst.msk [vmem:[%s504 + $0xf8] sm:$0xff] %vm1845, %v9929
        %s9962 = sand.u32 %s348, 1
        %s9963 = scalar_lea.sflag [#allocation9], %s9962
        %s9964 = sand.u32 %s348, 1
        %s9965 = smul.addr %s9964, 256
        %s9966 = scalar_lea.vmem [#allocation11], %s9965
        // Predicated region
        $region81: #{tpu_custom_call.1} parent=75 // pred_check
          %p9967 = pneg %p358
        $region82: #{tpu_custom_call.1} parent=75 // pred_check_branch
          %9969 = sbr.rel (%p9967) target = $region84
        $region83: #{tpu_custom_call.1} parent=75 // pred_region
          %s9971 = ssub.s32 4096, 4096
          %9972 = vsyncadd %s9963, %s9971
          %s9973 = smul.addr %s31, 32
          %s9974 = smul.addr %s9973, 128
          %s9975 = scalar_lea.hbm %s14, %s9974
          %s9976 = sshll.u32 %s9966, 4
          %s9977 = int_to_ptr.vmem [resolvable:$true] %s9976
          %9982 = dma.vmem_to_hbm [thread:$0]  %s9977, 4096, %s9975, %s9963, 128, 128, 8
        $region84: #{tpu_custom_call.1} parent=75 // pred_fallthru
          _
      $region76: #{tpu_custom_call.1} parent=5 // pred_fallthru
        _
      %p9983 = scmp.le.s32.totalorder 2, %s26
      // Predicated region
      $region85: #{tpu_custom_call.1} parent=5 // pred_check
        %p9984 = pneg %p9983
      $region86: #{tpu_custom_call.1} parent=5 // pred_check_branch
        %9986 = sbr.rel (%p9984) target = $region88
      $region87: #{tpu_custom_call.1} parent=5 // pred_region
        %s9987 = ssub.s32 %s26, 2
        // Predicated region
        $region89: #{tpu_custom_call.1} parent=87 // pred_check
          %p9988 = pneg %p364
        $region90: #{tpu_custom_call.1} parent=87 // pred_check_branch
          %9990 = sbr.rel (%p9988) target = $region92
        $region91: #{tpu_custom_call.1} parent=87 // pred_region
          %s9991 = sand.u32 %s349, 1
          %s9992 = scalar_lea.sflag [#allocation9], %s9991
          %s9993 = sand.u32 %s349, 1
          %s9994 = smul.addr %s9993, 256
          %s9995 = scalar_lea.vmem [#allocation11], %s9994
          %9996 = dma.done %s9992, 4096
        $region92: #{tpu_custom_call.1} parent=87 // pred_fallthru
          _
      $region88: #{tpu_custom_call.1} parent=5 // pred_fallthru
        _
    $region6: #{tpu_custom_call.1} parent=1 // loop_footer
      %s30 = sadd.s32 1, %s26
    $region7: #{tpu_custom_call.1} parent=1 // loop_footer_branch
      %25 = sbr.rel target = $region3
    $region8: #{tpu_custom_call.1} parent=1 // loop_exit
      _
    %9997 = vsyncpa [#allocation9], 1
    %s9998 = scalar_lea.sflag [#allocation9], 1
    %9999 = vsyncpa %s9998, 1
    %10000 = vsyncpa [#allocation10], 1
    %s10001 = scalar_lea.sflag [#allocation10], 1
    %10002 = vsyncpa %s10001, 1

</llo_original>
